<compile_context>
chip_gen: v6e
topology: v6e:2x2x1
jax: 0.10.0
libtpu: 0.0.40
codegen_flags: <defaults>
</compile_context>

<pallas_src>
import functools

import numpy as np

import jax
import jax.numpy as jnp
from jax import lax
from jax.experimental import pallas as pl
from jax.experimental.pallas import tpu as pltpu

IMG = 68      # required input spatial size
KSIZE = 5

# Padded row counts (activation slabs are (rows, B*width), channel-major rows, width on lanes).
R1_IN = 208      # 3*68 = 204  -> padded to a multiple of 16 (aligned bf16 sublane concat)
R1_HALF = 288    # 9*32        (already aligned)
R2_IN = 288
R2_HALF = 88     # 6*14 = 84   -> padded to a multiple of 8 (aligned f32 half slicing)
R3_IN = 88
R3_HALF = 80     # 16*5        (already aligned)


# ----------------------------- Pallas kernel -----------------------------

def _sigmoid(v):
    # exp + approximate reciprocal -> EUP slot instead of a full-precision VALU divide.
    return pl.reciprocal(1.0 + jnp.exp(-v), approx=True)


def _conv_pool_block(act, m_ref, b_ref, ce_ref, co_ref, *, width, n_imgs, out_bf16):
    """Fused 5x5 valid conv + bias + ReLU + 2x2/2 max-pool for B lane-batched images.

    act    : (R_in, B*width)  activation slab; image b occupies lanes [b*width, (b+1)*width)
    m_ref  : (2*R_half, 5*R_in) merged banded conv matrix ([even rows ; odd rows], long-K over kw)
    b_ref  : (R_half, 1)      bias (bias[co] repeated POH times, zero on pad rows)
    ce_ref : (B*OW, B*POW)    0/1 selector for even output columns (per image)
    co_ref : (B*OW, B*POW)    0/1 selector for odd output columns
    returns: (R_half, B*POW)  f32 — already the next layer's (R_in, B*width) layout.
    """
    ow = width - KSIZE + 1
    # Long-K RHS: for each kw, lane-concatenate the B per-image kw-shifted valid slices,
    # then sublane-stack the 5 kw blocks.  All slices are static.
    blocks = []
    for kw in range(KSIZE):
        cols = [act[:, b * width + kw: b * width + kw + ow] for b in range(n_imgs)]
        blocks.append(jnp.concatenate(cols, axis=1))                  # (R_in, B*OW)
    rhs = jnp.concatenate(blocks, axis=0)                             # (5*R_in, B*OW)

    res = jnp.dot(m_ref[...], rhs, preferred_element_type=jnp.float32)  # (2*R_half, B*OW)
    r_half = m_ref.shape[0] // 2
    # relu(max(e,o)+b) == max(relu(e+b), relu(o+b)) -> exact 2-row pool of relu(conv + bias).
    y = jnp.maximum(jnp.maximum(res[:r_half], res[r_half:]) + b_ref[...], 0.0)
    if out_bf16:
        y = y.astype(jnp.bfloat16)                                    # bf16 selection dots
    pe = jnp.dot(y, ce_ref[...], preferred_element_type=jnp.float32)  # even columns
    po = jnp.dot(y, co_ref[...], preferred_element_type=jnp.float32)  # odd columns
    return jnp.maximum(pe, po)                                        # (R_half, B*POW)


def _net_kernel(x_ref,
                m1, b1c, ce1, co1,
                m2, b2c, ce2, co2,
                m3, b3c, ce3, co3,
                g1, g1b, g2, g2b, g3, g3b,
                out_ref, *, n_imgs):
    x = x_ref[0]                                                      # (208, B*68) bf16
    a1 = _conv_pool_block(x, m1, b1c, ce1, co1, width=68, n_imgs=n_imgs,
                          out_bf16=True).astype(jnp.bfloat16)         # (288, B*32)
    a2 = _conv_pool_block(a1, m2, b2c, ce2, co2, width=32, n_imgs=n_imgs,
                          out_bf16=True).astype(jnp.bfloat16)         # (88, B*14)
    a3 = _conv_pool_block(a2, m3, b3c, ce3, co3, width=14, n_imgs=n_imgs,
                          out_bf16=False)                             # (80, 5*B) f32, w-major lanes

    # Flatten: feature order g = w*80 + r (folded into g1 at prep time), batch on lanes.
    flat = jnp.concatenate([a3[:, w * n_imgs:(w + 1) * n_imgs] for w in range(5)],
                           axis=0)                                    # (400, B)
    h = _sigmoid(jnp.dot(g1[...], flat, preferred_element_type=jnp.float32) + g1b[...])   # (120,B)
    h = _sigmoid(jnp.dot(g2[...], h, preferred_element_type=jnp.float32) + g2b[...])      # (84,B)
    out_ref[0] = jnp.dot(g3[...], h, preferred_element_type=jnp.float32) + g3b[...]       # (10,B)


# ----------------------------- host-side (one-time) weight repack -----------------------------

def prepare_params(p, n_imgs):
    """Repack PyTorch-style weights into the kernel's operands (runs once, host numpy)."""
    def conv_mats(w, b, H, W, r_in, r_half, fc_reorder, sel_dtype):
        w = np.asarray(w, np.float32)
        b = np.asarray(b, np.float32)
        Cout, Cin, K, _ = w.shape
        OH, OW = H - K + 1, W - K + 1
        POH, POW = OH // 2, OW // 2
        assert r_in >= Cin * H and r_half >= Cout * POH
        # Banded matrices: M[kw, co*OH + oh, ci*H + oh + kh] = w[co, ci, kh, kw]
        M = np.zeros((K, Cout * OH, r_in), np.float32)
        oh = np.arange(OH)
        for kw in range(K):
            for co in range(Cout):
                for ci in range(Cin):
                    for kh in range(K):
                        M[kw, co * OH + oh, ci * H + oh + kh] = w[co, ci, kh, kw]
        M = M.reshape(K, Cout, OH, r_in)
        Me = np.ascontiguousarray(M[:, :, 0::2, :]).reshape(K, Cout * POH, r_in)
        Mo = np.ascontiguousarray(M[:, :, 1::2, :]).reshape(K, Cout * POH, r_in)
        pad = r_half - Cout * POH
        if pad:
            z = np.zeros((K, pad, r_in), np.float32)
            Me = np.concatenate([Me, z], axis=1)
            Mo = np.concatenate([Mo, z], axis=1)
        merged = np.concatenate([Me, Mo], axis=1)                     # (K, 2*r_half, r_in)
        mfull = np.concatenate(list(merged), axis=1)                  # (2*r_half, K*r_in) long-K
        bcol = np.concatenate([np.repeat(b, POH),
                               np.zeros(pad, np.float32)])[:, None]   # (r_half, 1)
        # Column-pool 0/1 selectors (per-image, batch on lanes).  For the last conv layer the
        # output ordering is w-major (w*B + b) so the FC flatten is just 5 static lane slices.
        ce = np.zeros((n_imgs * OW, n_imgs * POW), np.float32)
        co_ = np.zeros((n_imgs * OW, n_imgs * POW), np.float32)
        for bi in range(n_imgs):
            for j in range(POW):
                dst = j * n_imgs + bi if fc_reorder else bi * POW + j
                ce[bi * OW + 2 * j, dst] = 1.0
                co_[bi * OW + 2 * j + 1, dst] = 1.0
        return (jnp.asarray(mfull, jnp.bfloat16), jnp.asarray(bcol, jnp.float32),
                jnp.asarray(ce, sel_dtype), jnp.asarray(co_, sel_dtype))

    l1 = conv_mats(p["w1"], p["b1"], 68, 68, R1_IN, R1_HALF, False, jnp.bfloat16)
    l2 = conv_mats(p["w2"], p["b2"], 32, 32, R2_IN, R2_HALF, False, jnp.bfloat16)
    l3 = conv_mats(p["w3"], p["b3"], 14, 14, R3_IN, R3_HALF, True, jnp.float32)

    # fc1: torch feature index f = c*25 + h*5 + w = r*5 + w (r = row of the last conv slab).
    # Kernel flatten order is g = w*80 + r, so permute fc1's rows accordingly (prep time).
    fw1 = np.asarray(p["fw1"], np.float32)                            # (400, 120)
    G1 = np.zeros((120, 400), np.float32)
    for w in range(5):
        G1[:, w * 80:(w + 1) * 80] = fw1[w::5, :].T
    G2 = np.asarray(p["fw2"], np.float32).T                           # (84, 120)
    G3 = np.asarray(p["fw3"], np.float32).T                           # (10, 84)
    fb1 = np.asarray(p["fb1"], np.float32)[:, None]
    fb2 = np.asarray(p["fb2"], np.float32)[:, None]
    fb3 = np.asarray(p["fb3"], np.float32)[:, None]

    return (*l1, *l2, *l3,
            jnp.asarray(G1), jnp.asarray(fb1),
            jnp.asarray(G2), jnp.asarray(fb2),
            jnp.asarray(G3), jnp.asarray(fb3))


# ----------------------------- wrapper -----------------------------

def _full_spec(a):
    zeros = (0,) * a.ndim
    return pl.BlockSpec(a.shape, lambda n, _z=zeros: _z)


def net_forward(x, prep, n_imgs=4):
    """x: (N, 3, 68, 68) f32 -> (N, 10) f32.  n_imgs = images per grid step (2 on v5e, >=4 else)."""
    N = x.shape[0]
    B = n_imgs
    G = pl.cdiv(N, B)
    pad_n = G * B - N
    if pad_n:
        x = jnp.concatenate([x, jnp.zeros((pad_n,) + x.shape[1:], x.dtype)], axis=0)
    # (G*B, 3, 68, 68) -> (G, 3*68, B*68): channel-major rows, B images lane-concatenated;
    # pad 204 -> 208 rows so the in-kernel long-K sublane stacking stays aligned.
    xg = (x.reshape(G, B, 3, IMG, IMG)
           .transpose(0, 2, 3, 1, 4)
           .reshape(G, 3 * IMG, B * IMG))
    xg = jnp.pad(xg, ((0, 0), (0, R1_IN - 3 * IMG), (0, 0))).astype(jnp.bfloat16)

    weights = list(prep)
    in_specs = [pl.BlockSpec((1, R1_IN, B * IMG), lambda g: (g, 0, 0))]
    in_specs += [_full_spec(w_) for w_ in weights]

    out = pl.pallas_call(
        functools.partial(_net_kernel, n_imgs=B),
        out_shape=jax.ShapeDtypeStruct((G, 10, B), jnp.float32),
        grid=(G,),
        in_specs=in_specs,
        out_specs=pl.BlockSpec((1, 10, B), lambda g: (g, 0, 0)),
        compiler_params=pltpu.CompilerParams(
            dimension_semantics=("parallel",),
            vmem_limit_bytes=32 * 1024 * 1024,
        ),
    )(xg, *weights)
    out = out.transpose(0, 2, 1).reshape(G * B, 10)                   # cheap XLA-side relayout
    return out[:N]


# ----------------------------- params & pure-JAX reference -----------------------------

def _uniform(key, shape, fan_in):
    bound = 1.0 / np.sqrt(fan_in)
    return jax.random.uniform(key, shape, jnp.float32, minval=-bound, maxval=bound)


def init_params(key):
    ks = jax.random.split(key, 12)
    p = {}
    p["w1"] = _uniform(ks[0], (9, 3, 5, 5), 3 * 25);   p["b1"] = _uniform(ks[1], (9,), 3 * 25)
    p["w2"] = _uniform(ks[2], (6, 9, 5, 5), 9 * 25);   p["b2"] = _uniform(ks[3], (6,), 9 * 25)
    p["w3"] = _uniform(ks[4], (16, 6, 5, 5), 6 * 25);  p["b3"] = _uniform(ks[5], (16,), 6 * 25)
    p["fw1"] = _uniform(ks[6], (400, 120), 400);       p["fb1"] = _uniform(ks[7], (120,), 400)
    p["fw2"] = _uniform(ks[8], (120, 84), 120);        p["fb2"] = _uniform(ks[9], (84,), 120)
    p["fw3"] = _uniform(ks[10], (84, 10), 84);         p["fb3"] = _uniform(ks[11], (10,), 84)
    return p


def ref_forward(x, p):
    """Pure-JAX f32 reference mirroring the PyTorch forward."""
    def conv(x, w, b):
        y = lax.conv_general_dilated(x, w, (1, 1), "VALID",
                                     dimension_numbers=("NCHW", "OIHW", "NCHW"),
                                     precision=lax.Precision.HIGHEST)
        return jax.nn.relu(y + b[None, :, None, None])

    def pool(x):
        return lax.reduce_window(x, -jnp.inf, lax.max, (1, 1, 2, 2), (1, 1, 2, 2), "VALID")

    x = pool(conv(x, p["w1"], p["b1"]))
    x = pool(conv(x, p["w2"], p["b2"]))
    x = pool(conv(x, p["w3"], p["b3"]))
    x = x.reshape(x.shape[0], -1)
    x = jax.nn.sigmoid(x @ p["fw1"] + p["fb1"])
    x = jax.nn.sigmoid(x @ p["fw2"] + p["fb2"])
    return x @ p["fw3"] + p["fb3"]


# ----------------------------- main -----------------------------

if __name__ == "__main__":
    B = 4          # images per grid step (lane batching); pick 2 on v5e, >=4 on v6e/v7x
    N = 8          # batch -> grid of N//B = 2 steps (keeps both v7x TensorCores busy)
    x = jax.random.normal(jax.random.PRNGKey(0), (N, 3, IMG, IMG), dtype=jnp.float32)
    params = init_params(jax.random.PRNGKey(1))
    prep = prepare_params(params, B)              # one-time weight repack (host side)

    fwd = jax.jit(functools.partial(net_forward, n_imgs=B))
    out = jax.block_until_ready(fwd(x, prep))
    assert out.shape == (N, 10) and out.dtype == jnp.float32

    ref = jax.block_until_ready(ref_forward(x, params))
    # relaxed tolerance vs. the pure-f32 XLA reference: conv matmul operands are bf16
    # (f32 accumulation) and the sigmoid uses the approximate EUP reciprocal.
    np.testing.assert_allclose(np.asarray(out), np.asarray(ref), rtol=2e-2, atol=2e-2)

    print("KERNEL_OK")
</pallas_src>

<mosaic_0001>
module attributes {stable_mosaic.version = 11 : i64} {
  func.func @_net_kernel(%arg0: i32, %arg1: memref<1x208x272xbf16, #tpu.memory_space<vmem>>, %arg2: memref<576x1040xbf16, #tpu.memory_space<vmem>>, %arg3: memref<288x1xf32, #tpu.memory_space<vmem>>, %arg4: memref<256x128xbf16, #tpu.memory_space<vmem>>, %arg5: memref<256x128xbf16, #tpu.memory_space<vmem>>, %arg6: memref<176x1440xbf16, #tpu.memory_space<vmem>>, %arg7: memref<88x1xf32, #tpu.memory_space<vmem>>, %arg8: memref<112x56xbf16, #tpu.memory_space<vmem>>, %arg9: memref<112x56xbf16, #tpu.memory_space<vmem>>, %arg10: memref<160x440xbf16, #tpu.memory_space<vmem>>, %arg11: memref<80x1xf32, #tpu.memory_space<vmem>>, %arg12: memref<40x20xf32, #tpu.memory_space<vmem>>, %arg13: memref<40x20xf32, #tpu.memory_space<vmem>>, %arg14: memref<120x400xf32, #tpu.memory_space<vmem>>, %arg15: memref<120x1xf32, #tpu.memory_space<vmem>>, %arg16: memref<84x120xf32, #tpu.memory_space<vmem>>, %arg17: memref<84x1xf32, #tpu.memory_space<vmem>>, %arg18: memref<10x84xf32, #tpu.memory_space<vmem>>, %arg19: memref<10x1xf32, #tpu.memory_space<vmem>>, %arg20: memref<1x10x4xf32, #tpu.memory_space<vmem>>) attributes {dimension_semantics = [#tpu.dimension_semantics<parallel>], iteration_bounds = array<i64: 2>, scalar_prefetch = 0 : i64, scratch_operands = 0 : i64, tpu.core_type = #tpu.core_type<tc>, window_params = [{transform_indices = @transform_0, window_bounds = array<i64: 1, 208, 272>}, {pipeline_mode = #tpu.pipeline_mode<synchronous>, transform_indices = @transform_1, window_bounds = array<i64: 576, 1040>}, {pipeline_mode = #tpu.pipeline_mode<synchronous>, transform_indices = @transform_2, window_bounds = array<i64: 288, 1>}, {pipeline_mode = #tpu.pipeline_mode<synchronous>, transform_indices = @transform_3, window_bounds = array<i64: 256, 128>}, {pipeline_mode = #tpu.pipeline_mode<synchronous>, transform_indices = @transform_4, window_bounds = array<i64: 256, 128>}, {pipeline_mode = #tpu.pipeline_mode<synchronous>, transform_indices = @transform_5, window_bounds = array<i64: 176, 1440>}, {pipeline_mode = #tpu.pipeline_mode<synchronous>, transform_indices = @transform_6, window_bounds = array<i64: 88, 1>}, {pipeline_mode = #tpu.pipeline_mode<synchronous>, transform_indices = @transform_7, window_bounds = array<i64: 112, 56>}, {pipeline_mode = #tpu.pipeline_mode<synchronous>, transform_indices = @transform_8, window_bounds = array<i64: 112, 56>}, {pipeline_mode = #tpu.pipeline_mode<synchronous>, transform_indices = @transform_9, window_bounds = array<i64: 160, 440>}, {pipeline_mode = #tpu.pipeline_mode<synchronous>, transform_indices = @transform_10, window_bounds = array<i64: 80, 1>}, {pipeline_mode = #tpu.pipeline_mode<synchronous>, transform_indices = @transform_11, window_bounds = array<i64: 40, 20>}, {pipeline_mode = #tpu.pipeline_mode<synchronous>, transform_indices = @transform_12, window_bounds = array<i64: 40, 20>}, {pipeline_mode = #tpu.pipeline_mode<synchronous>, transform_indices = @transform_13, window_bounds = array<i64: 120, 400>}, {pipeline_mode = #tpu.pipeline_mode<synchronous>, transform_indices = @transform_14, window_bounds = array<i64: 120, 1>}, {pipeline_mode = #tpu.pipeline_mode<synchronous>, transform_indices = @transform_15, window_bounds = array<i64: 84, 120>}, {pipeline_mode = #tpu.pipeline_mode<synchronous>, transform_indices = @transform_16, window_bounds = array<i64: 84, 1>}, {pipeline_mode = #tpu.pipeline_mode<synchronous>, transform_indices = @transform_17, window_bounds = array<i64: 10, 84>}, {pipeline_mode = #tpu.pipeline_mode<synchronous>, transform_indices = @transform_18, window_bounds = array<i64: 10, 1>}, {transform_indices = @transform_19, window_bounds = array<i64: 1, 10, 4>}]} {
    %c0 = arith.constant 0 : index
    %c0_0 = arith.constant 0 : index
    %c0_1 = arith.constant 0 : index
    %0 = vector.load %arg1[%c0, %c0_0, %c0_1] : memref<1x208x272xbf16, #tpu.memory_space<vmem>>, vector<1x208x272xbf16>
    %1 = vector.shape_cast %0 : vector<1x208x272xbf16> to vector<208x272xbf16>
    %2 = vector.extract_strided_slice %1 {offsets = [0, 0], sizes = [208, 64], strides = [1, 1]} : vector<208x272xbf16> to vector<208x64xbf16>
    %3 = vector.extract_strided_slice %1 {offsets = [0, 68], sizes = [208, 64], strides = [1, 1]} : vector<208x272xbf16> to vector<208x64xbf16>
    %4 = vector.extract_strided_slice %1 {offsets = [0, 136], sizes = [208, 64], strides = [1, 1]} : vector<208x272xbf16> to vector<208x64xbf16>
    %5 = vector.extract_strided_slice %1 {offsets = [0, 204], sizes = [208, 64], strides = [1, 1]} : vector<208x272xbf16> to vector<208x64xbf16>
    %6 = tpu.concatenate %2, %3, %4, %5 in 1 : vector<208x64xbf16>, vector<208x64xbf16>, vector<208x64xbf16>, vector<208x64xbf16> -> vector<208x256xbf16>
    %7 = vector.extract_strided_slice %1 {offsets = [0, 1], sizes = [208, 64], strides = [1, 1]} : vector<208x272xbf16> to vector<208x64xbf16>
    %8 = vector.extract_strided_slice %1 {offsets = [0, 69], sizes = [208, 64], strides = [1, 1]} : vector<208x272xbf16> to vector<208x64xbf16>
    %9 = vector.extract_strided_slice %1 {offsets = [0, 137], sizes = [208, 64], strides = [1, 1]} : vector<208x272xbf16> to vector<208x64xbf16>
    %10 = vector.extract_strided_slice %1 {offsets = [0, 205], sizes = [208, 64], strides = [1, 1]} : vector<208x272xbf16> to vector<208x64xbf16>
    %11 = tpu.concatenate %7, %8, %9, %10 in 1 : vector<208x64xbf16>, vector<208x64xbf16>, vector<208x64xbf16>, vector<208x64xbf16> -> vector<208x256xbf16>
    %12 = vector.extract_strided_slice %1 {offsets = [0, 2], sizes = [208, 64], strides = [1, 1]} : vector<208x272xbf16> to vector<208x64xbf16>
    %13 = vector.extract_strided_slice %1 {offsets = [0, 70], sizes = [208, 64], strides = [1, 1]} : vector<208x272xbf16> to vector<208x64xbf16>
    %14 = vector.extract_strided_slice %1 {offsets = [0, 138], sizes = [208, 64], strides = [1, 1]} : vector<208x272xbf16> to vector<208x64xbf16>
    %15 = vector.extract_strided_slice %1 {offsets = [0, 206], sizes = [208, 64], strides = [1, 1]} : vector<208x272xbf16> to vector<208x64xbf16>
    %16 = tpu.concatenate %12, %13, %14, %15 in 1 : vector<208x64xbf16>, vector<208x64xbf16>, vector<208x64xbf16>, vector<208x64xbf16> -> vector<208x256xbf16>
    %17 = vector.extract_strided_slice %1 {offsets = [0, 3], sizes = [208, 64], strides = [1, 1]} : vector<208x272xbf16> to vector<208x64xbf16>
    %18 = vector.extract_strided_slice %1 {offsets = [0, 71], sizes = [208, 64], strides = [1, 1]} : vector<208x272xbf16> to vector<208x64xbf16>
    %19 = vector.extract_strided_slice %1 {offsets = [0, 139], sizes = [208, 64], strides = [1, 1]} : vector<208x272xbf16> to vector<208x64xbf16>
    %20 = vector.extract_strided_slice %1 {offsets = [0, 207], sizes = [208, 64], strides = [1, 1]} : vector<208x272xbf16> to vector<208x64xbf16>
    %21 = tpu.concatenate %17, %18, %19, %20 in 1 : vector<208x64xbf16>, vector<208x64xbf16>, vector<208x64xbf16>, vector<208x64xbf16> -> vector<208x256xbf16>
    %22 = vector.extract_strided_slice %1 {offsets = [0, 4], sizes = [208, 64], strides = [1, 1]} : vector<208x272xbf16> to vector<208x64xbf16>
    %23 = vector.extract_strided_slice %1 {offsets = [0, 72], sizes = [208, 64], strides = [1, 1]} : vector<208x272xbf16> to vector<208x64xbf16>
    %24 = vector.extract_strided_slice %1 {offsets = [0, 140], sizes = [208, 64], strides = [1, 1]} : vector<208x272xbf16> to vector<208x64xbf16>
    %25 = vector.extract_strided_slice %1 {offsets = [0, 208], sizes = [208, 64], strides = [1, 1]} : vector<208x272xbf16> to vector<208x64xbf16>
    %26 = tpu.concatenate %22, %23, %24, %25 in 1 : vector<208x64xbf16>, vector<208x64xbf16>, vector<208x64xbf16>, vector<208x64xbf16> -> vector<208x256xbf16>
    %27 = tpu.concatenate %6, %11, %16, %21, %26 in 0 : vector<208x256xbf16>, vector<208x256xbf16>, vector<208x256xbf16>, vector<208x256xbf16>, vector<208x256xbf16> -> vector<1040x256xbf16>
    %c0_2 = arith.constant 0 : index
    %c0_3 = arith.constant 0 : index
    %28 = vector.load %arg2[%c0_2, %c0_3] : memref<576x1040xbf16, #tpu.memory_space<vmem>>, vector<576x1040xbf16>
    %cst = arith.constant dense<0.000000e+00> : vector<576x256xf32>
    %29 = tpu.matmul %28, %27, %cst {dimension_numbers = #tpu.dot_dimension_numbers<[1], [0], [0], [1], [0, 0, 1, 1], [], []>} : vector<576x1040xbf16>, vector<1040x256xbf16>, vector<576x256xf32> -> vector<576x256xf32>
    %30 = vector.extract_strided_slice %29 {offsets = [0, 0], sizes = [288, 256], strides = [1, 1]} : vector<576x256xf32> to vector<288x256xf32>
    %31 = vector.extract_strided_slice %29 {offsets = [288, 0], sizes = [288, 256], strides = [1, 1]} : vector<576x256xf32> to vector<288x256xf32>
    %32 = arith.maximumf %30, %31 : vector<288x256xf32>
    %c0_4 = arith.constant 0 : index
    %c0_5 = arith.constant 0 : index
    %33 = vector.load %arg3[%c0_4, %c0_5] : memref<288x1xf32, #tpu.memory_space<vmem>>, vector<288x1xf32>
    %34 = vector.broadcast %33 : vector<288x1xf32> to vector<288x256xf32>
    %35 = arith.addf %32, %34 : vector<288x256xf32>
    %cst_6 = arith.constant 0.000000e+00 : f32
    %36 = vector.broadcast %cst_6 : f32 to vector<288x256xf32>
    %37 = arith.maximumf %35, %36 : vector<288x256xf32>
    %38 = arith.truncf %37 : vector<288x256xf32> to vector<288x256xbf16>
    %c0_7 = arith.constant 0 : index
    %c0_8 = arith.constant 0 : index
    %39 = vector.load %arg4[%c0_7, %c0_8] : memref<256x128xbf16, #tpu.memory_space<vmem>>, vector<256x128xbf16>
    %cst_9 = arith.constant dense<0.000000e+00> : vector<288x128xf32>
    %40 = tpu.matmul %38, %39, %cst_9 {dimension_numbers = #tpu.dot_dimension_numbers<[1], [0], [0], [1], [0, 0, 1, 1], [], []>} : vector<288x256xbf16>, vector<256x128xbf16>, vector<288x128xf32> -> vector<288x128xf32>
    %c0_10 = arith.constant 0 : index
    %c0_11 = arith.constant 0 : index
    %41 = vector.load %arg5[%c0_10, %c0_11] : memref<256x128xbf16, #tpu.memory_space<vmem>>, vector<256x128xbf16>
    %cst_12 = arith.constant dense<0.000000e+00> : vector<288x128xf32>
    %42 = tpu.matmul %38, %41, %cst_12 {dimension_numbers = #tpu.dot_dimension_numbers<[1], [0], [0], [1], [0, 0, 1, 1], [], []>} : vector<288x256xbf16>, vector<256x128xbf16>, vector<288x128xf32> -> vector<288x128xf32>
    %43 = arith.maximumf %40, %42 : vector<288x128xf32>
    %44 = arith.truncf %43 : vector<288x128xf32> to vector<288x128xbf16>
    %45 = vector.extract_strided_slice %44 {offsets = [0, 0], sizes = [288, 28], strides = [1, 1]} : vector<288x128xbf16> to vector<288x28xbf16>
    %46 = vector.extract_strided_slice %44 {offsets = [0, 32], sizes = [288, 28], strides = [1, 1]} : vector<288x128xbf16> to vector<288x28xbf16>
    %47 = vector.extract_strided_slice %44 {offsets = [0, 64], sizes = [288, 28], strides = [1, 1]} : vector<288x128xbf16> to vector<288x28xbf16>
    %48 = vector.extract_strided_slice %44 {offsets = [0, 96], sizes = [288, 28], strides = [1, 1]} : vector<288x128xbf16> to vector<288x28xbf16>
    %49 = tpu.concatenate %45, %46, %47, %48 in 1 : vector<288x28xbf16>, vector<288x28xbf16>, vector<288x28xbf16>, vector<288x28xbf16> -> vector<288x112xbf16>
    %50 = vector.extract_strided_slice %44 {offsets = [0, 1], sizes = [288, 28], strides = [1, 1]} : vector<288x128xbf16> to vector<288x28xbf16>
    %51 = vector.extract_strided_slice %44 {offsets = [0, 33], sizes = [288, 28], strides = [1, 1]} : vector<288x128xbf16> to vector<288x28xbf16>
    %52 = vector.extract_strided_slice %44 {offsets = [0, 65], sizes = [288, 28], strides = [1, 1]} : vector<288x128xbf16> to vector<288x28xbf16>
    %53 = vector.extract_strided_slice %44 {offsets = [0, 97], sizes = [288, 28], strides = [1, 1]} : vector<288x128xbf16> to vector<288x28xbf16>
    %54 = tpu.concatenate %50, %51, %52, %53 in 1 : vector<288x28xbf16>, vector<288x28xbf16>, vector<288x28xbf16>, vector<288x28xbf16> -> vector<288x112xbf16>
    %55 = vector.extract_strided_slice %44 {offsets = [0, 2], sizes = [288, 28], strides = [1, 1]} : vector<288x128xbf16> to vector<288x28xbf16>
    %56 = vector.extract_strided_slice %44 {offsets = [0, 34], sizes = [288, 28], strides = [1, 1]} : vector<288x128xbf16> to vector<288x28xbf16>
    %57 = vector.extract_strided_slice %44 {offsets = [0, 66], sizes = [288, 28], strides = [1, 1]} : vector<288x128xbf16> to vector<288x28xbf16>
    %58 = vector.extract_strided_slice %44 {offsets = [0, 98], sizes = [288, 28], strides = [1, 1]} : vector<288x128xbf16> to vector<288x28xbf16>
    %59 = tpu.concatenate %55, %56, %57, %58 in 1 : vector<288x28xbf16>, vector<288x28xbf16>, vector<288x28xbf16>, vector<288x28xbf16> -> vector<288x112xbf16>
    %60 = vector.extract_strided_slice %44 {offsets = [0, 3], sizes = [288, 28], strides = [1, 1]} : vector<288x128xbf16> to vector<288x28xbf16>
    %61 = vector.extract_strided_slice %44 {offsets = [0, 35], sizes = [288, 28], strides = [1, 1]} : vector<288x128xbf16> to vector<288x28xbf16>
    %62 = vector.extract_strided_slice %44 {offsets = [0, 67], sizes = [288, 28], strides = [1, 1]} : vector<288x128xbf16> to vector<288x28xbf16>
    %63 = vector.extract_strided_slice %44 {offsets = [0, 99], sizes = [288, 28], strides = [1, 1]} : vector<288x128xbf16> to vector<288x28xbf16>
    %64 = tpu.concatenate %60, %61, %62, %63 in 1 : vector<288x28xbf16>, vector<288x28xbf16>, vector<288x28xbf16>, vector<288x28xbf16> -> vector<288x112xbf16>
    %65 = vector.extract_strided_slice %44 {offsets = [0, 4], sizes = [288, 28], strides = [1, 1]} : vector<288x128xbf16> to vector<288x28xbf16>
    %66 = vector.extract_strided_slice %44 {offsets = [0, 36], sizes = [288, 28], strides = [1, 1]} : vector<288x128xbf16> to vector<288x28xbf16>
    %67 = vector.extract_strided_slice %44 {offsets = [0, 68], sizes = [288, 28], strides = [1, 1]} : vector<288x128xbf16> to vector<288x28xbf16>
    %68 = vector.extract_strided_slice %44 {offsets = [0, 100], sizes = [288, 28], strides = [1, 1]} : vector<288x128xbf16> to vector<288x28xbf16>
    %69 = tpu.concatenate %65, %66, %67, %68 in 1 : vector<288x28xbf16>, vector<288x28xbf16>, vector<288x28xbf16>, vector<288x28xbf16> -> vector<288x112xbf16>
    %70 = tpu.concatenate %49, %54, %59, %64, %69 in 0 : vector<288x112xbf16>, vector<288x112xbf16>, vector<288x112xbf16>, vector<288x112xbf16>, vector<288x112xbf16> -> vector<1440x112xbf16>
    %c0_13 = arith.constant 0 : index
    %c0_14 = arith.constant 0 : index
    %71 = vector.load %arg6[%c0_13, %c0_14] : memref<176x1440xbf16, #tpu.memory_space<vmem>>, vector<176x1440xbf16>
    %cst_15 = arith.constant dense<0.000000e+00> : vector<176x112xf32>
    %72 = tpu.matmul %71, %70, %cst_15 {dimension_numbers = #tpu.dot_dimension_numbers<[1], [0], [0], [1], [0, 0, 1, 1], [], []>} : vector<176x1440xbf16>, vector<1440x112xbf16>, vector<176x112xf32> -> vector<176x112xf32>
    %73 = vector.extract_strided_slice %72 {offsets = [0, 0], sizes = [88, 112], strides = [1, 1]} : vector<176x112xf32> to vector<88x112xf32>
    %74 = vector.extract_strided_slice %72 {offsets = [88, 0], sizes = [88, 112], strides = [1, 1]} : vector<176x112xf32> to vector<88x112xf32>
    %75 = arith.maximumf %73, %74 : vector<88x112xf32>
    %c0_16 = arith.constant 0 : index
    %c0_17 = arith.constant 0 : index
    %76 = vector.load %arg7[%c0_16, %c0_17] : memref<88x1xf32, #tpu.memory_space<vmem>>, vector<88x1xf32>
    %77 = vector.broadcast %76 : vector<88x1xf32> to vector<88x112xf32>
    %78 = arith.addf %75, %77 : vector<88x112xf32>
    %cst_18 = arith.constant 0.000000e+00 : f32
    %79 = vector.broadcast %cst_18 : f32 to vector<88x112xf32>
    %80 = arith.maximumf %78, %79 : vector<88x112xf32>
    %81 = arith.truncf %80 : vector<88x112xf32> to vector<88x112xbf16>
    %c0_19 = arith.constant 0 : index
    %c0_20 = arith.constant 0 : index
    %82 = vector.load %arg8[%c0_19, %c0_20] : memref<112x56xbf16, #tpu.memory_space<vmem>>, vector<112x56xbf16>
    %cst_21 = arith.constant dense<0.000000e+00> : vector<88x56xf32>
    %83 = tpu.matmul %81, %82, %cst_21 {dimension_numbers = #tpu.dot_dimension_numbers<[1], [0], [0], [1], [0, 0, 1, 1], [], []>} : vector<88x112xbf16>, vector<112x56xbf16>, vector<88x56xf32> -> vector<88x56xf32>
    %c0_22 = arith.constant 0 : index
    %c0_23 = arith.constant 0 : index
    %84 = vector.load %arg9[%c0_22, %c0_23] : memref<112x56xbf16, #tpu.memory_space<vmem>>, vector<112x56xbf16>
    %cst_24 = arith.constant dense<0.000000e+00> : vector<88x56xf32>
    %85 = tpu.matmul %81, %84, %cst_24 {dimension_numbers = #tpu.dot_dimension_numbers<[1], [0], [0], [1], [0, 0, 1, 1], [], []>} : vector<88x112xbf16>, vector<112x56xbf16>, vector<88x56xf32> -> vector<88x56xf32>
    %86 = arith.maximumf %83, %85 : vector<88x56xf32>
    %87 = arith.truncf %86 : vector<88x56xf32> to vector<88x56xbf16>
    %88 = vector.extract_strided_slice %87 {offsets = [0, 0], sizes = [88, 10], strides = [1, 1]} : vector<88x56xbf16> to vector<88x10xbf16>
    %89 = vector.extract_strided_slice %87 {offsets = [0, 14], sizes = [88, 10], strides = [1, 1]} : vector<88x56xbf16> to vector<88x10xbf16>
    %90 = vector.extract_strided_slice %87 {offsets = [0, 28], sizes = [88, 10], strides = [1, 1]} : vector<88x56xbf16> to vector<88x10xbf16>
    %91 = vector.extract_strided_slice %87 {offsets = [0, 42], sizes = [88, 10], strides = [1, 1]} : vector<88x56xbf16> to vector<88x10xbf16>
    %92 = tpu.concatenate %88, %89, %90, %91 in 1 : vector<88x10xbf16>, vector<88x10xbf16>, vector<88x10xbf16>, vector<88x10xbf16> -> vector<88x40xbf16>
    %93 = vector.extract_strided_slice %87 {offsets = [0, 1], sizes = [88, 10], strides = [1, 1]} : vector<88x56xbf16> to vector<88x10xbf16>
    %94 = vector.extract_strided_slice %87 {offsets = [0, 15], sizes = [88, 10], strides = [1, 1]} : vector<88x56xbf16> to vector<88x10xbf16>
    %95 = vector.extract_strided_slice %87 {offsets = [0, 29], sizes = [88, 10], strides = [1, 1]} : vector<88x56xbf16> to vector<88x10xbf16>
    %96 = vector.extract_strided_slice %87 {offsets = [0, 43], sizes = [88, 10], strides = [1, 1]} : vector<88x56xbf16> to vector<88x10xbf16>
    %97 = tpu.concatenate %93, %94, %95, %96 in 1 : vector<88x10xbf16>, vector<88x10xbf16>, vector<88x10xbf16>, vector<88x10xbf16> -> vector<88x40xbf16>
    %98 = vector.extract_strided_slice %87 {offsets = [0, 2], sizes = [88, 10], strides = [1, 1]} : vector<88x56xbf16> to vector<88x10xbf16>
    %99 = vector.extract_strided_slice %87 {offsets = [0, 16], sizes = [88, 10], strides = [1, 1]} : vector<88x56xbf16> to vector<88x10xbf16>
    %100 = vector.extract_strided_slice %87 {offsets = [0, 30], sizes = [88, 10], strides = [1, 1]} : vector<88x56xbf16> to vector<88x10xbf16>
    %101 = vector.extract_strided_slice %87 {offsets = [0, 44], sizes = [88, 10], strides = [1, 1]} : vector<88x56xbf16> to vector<88x10xbf16>
    %102 = tpu.concatenate %98, %99, %100, %101 in 1 : vector<88x10xbf16>, vector<88x10xbf16>, vector<88x10xbf16>, vector<88x10xbf16> -> vector<88x40xbf16>
    %103 = vector.extract_strided_slice %87 {offsets = [0, 3], sizes = [88, 10], strides = [1, 1]} : vector<88x56xbf16> to vector<88x10xbf16>
    %104 = vector.extract_strided_slice %87 {offsets = [0, 17], sizes = [88, 10], strides = [1, 1]} : vector<88x56xbf16> to vector<88x10xbf16>
    %105 = vector.extract_strided_slice %87 {offsets = [0, 31], sizes = [88, 10], strides = [1, 1]} : vector<88x56xbf16> to vector<88x10xbf16>
    %106 = vector.extract_strided_slice %87 {offsets = [0, 45], sizes = [88, 10], strides = [1, 1]} : vector<88x56xbf16> to vector<88x10xbf16>
    %107 = tpu.concatenate %103, %104, %105, %106 in 1 : vector<88x10xbf16>, vector<88x10xbf16>, vector<88x10xbf16>, vector<88x10xbf16> -> vector<88x40xbf16>
    %108 = vector.extract_strided_slice %87 {offsets = [0, 4], sizes = [88, 10], strides = [1, 1]} : vector<88x56xbf16> to vector<88x10xbf16>
    %109 = vector.extract_strided_slice %87 {offsets = [0, 18], sizes = [88, 10], strides = [1, 1]} : vector<88x56xbf16> to vector<88x10xbf16>
    %110 = vector.extract_strided_slice %87 {offsets = [0, 32], sizes = [88, 10], strides = [1, 1]} : vector<88x56xbf16> to vector<88x10xbf16>
    %111 = vector.extract_strided_slice %87 {offsets = [0, 46], sizes = [88, 10], strides = [1, 1]} : vector<88x56xbf16> to vector<88x10xbf16>
    %112 = tpu.concatenate %108, %109, %110, %111 in 1 : vector<88x10xbf16>, vector<88x10xbf16>, vector<88x10xbf16>, vector<88x10xbf16> -> vector<88x40xbf16>
    %113 = tpu.concatenate %92, %97, %102, %107, %112 in 0 : vector<88x40xbf16>, vector<88x40xbf16>, vector<88x40xbf16>, vector<88x40xbf16>, vector<88x40xbf16> -> vector<440x40xbf16>
    %c0_25 = arith.constant 0 : index
    %c0_26 = arith.constant 0 : index
    %114 = vector.load %arg10[%c0_25, %c0_26] : memref<160x440xbf16, #tpu.memory_space<vmem>>, vector<160x440xbf16>
    %cst_27 = arith.constant dense<0.000000e+00> : vector<160x40xf32>
    %115 = tpu.matmul %114, %113, %cst_27 {dimension_numbers = #tpu.dot_dimension_numbers<[1], [0], [0], [1], [0, 0, 1, 1], [], []>} : vector<160x440xbf16>, vector<440x40xbf16>, vector<160x40xf32> -> vector<160x40xf32>
    %116 = vector.extract_strided_slice %115 {offsets = [0, 0], sizes = [80, 40], strides = [1, 1]} : vector<160x40xf32> to vector<80x40xf32>
    %117 = vector.extract_strided_slice %115 {offsets = [80, 0], sizes = [80, 40], strides = [1, 1]} : vector<160x40xf32> to vector<80x40xf32>
    %118 = arith.maximumf %116, %117 : vector<80x40xf32>
    %c0_28 = arith.constant 0 : index
    %c0_29 = arith.constant 0 : index
    %119 = vector.load %arg11[%c0_28, %c0_29] : memref<80x1xf32, #tpu.memory_space<vmem>>, vector<80x1xf32>
    %120 = vector.broadcast %119 : vector<80x1xf32> to vector<80x40xf32>
    %121 = arith.addf %118, %120 : vector<80x40xf32>
    %cst_30 = arith.constant 0.000000e+00 : f32
    %122 = vector.broadcast %cst_30 : f32 to vector<80x40xf32>
    %123 = arith.maximumf %121, %122 : vector<80x40xf32>
    %c0_31 = arith.constant 0 : index
    %c0_32 = arith.constant 0 : index
    %124 = vector.load %arg12[%c0_31, %c0_32] : memref<40x20xf32, #tpu.memory_space<vmem>>, vector<40x20xf32>
    %cst_33 = arith.constant dense<0.000000e+00> : vector<80x20xf32>
    %125 = tpu.matmul %123, %124, %cst_33 {dimension_numbers = #tpu.dot_dimension_numbers<[1], [0], [0], [1], [0, 0, 1, 1], [], []>} : vector<80x40xf32>, vector<40x20xf32>, vector<80x20xf32> -> vector<80x20xf32>
    %c0_34 = arith.constant 0 : index
    %c0_35 = arith.constant 0 : index
    %126 = vector.load %arg13[%c0_34, %c0_35] : memref<40x20xf32, #tpu.memory_space<vmem>>, vector<40x20xf32>
    %cst_36 = arith.constant dense<0.000000e+00> : vector<80x20xf32>
    %127 = tpu.matmul %123, %126, %cst_36 {dimension_numbers = #tpu.dot_dimension_numbers<[1], [0], [0], [1], [0, 0, 1, 1], [], []>} : vector<80x40xf32>, vector<40x20xf32>, vector<80x20xf32> -> vector<80x20xf32>
    %128 = arith.maximumf %125, %127 : vector<80x20xf32>
    %129 = vector.extract_strided_slice %128 {offsets = [0, 0], sizes = [80, 4], strides = [1, 1]} : vector<80x20xf32> to vector<80x4xf32>
    %130 = vector.extract_strided_slice %128 {offsets = [0, 4], sizes = [80, 4], strides = [1, 1]} : vector<80x20xf32> to vector<80x4xf32>
    %131 = vector.extract_strided_slice %128 {offsets = [0, 8], sizes = [80, 4], strides = [1, 1]} : vector<80x20xf32> to vector<80x4xf32>
    %132 = vector.extract_strided_slice %128 {offsets = [0, 12], sizes = [80, 4], strides = [1, 1]} : vector<80x20xf32> to vector<80x4xf32>
    %133 = vector.extract_strided_slice %128 {offsets = [0, 16], sizes = [80, 4], strides = [1, 1]} : vector<80x20xf32> to vector<80x4xf32>
    %134 = tpu.concatenate %129, %130, %131, %132, %133 in 0 : vector<80x4xf32>, vector<80x4xf32>, vector<80x4xf32>, vector<80x4xf32>, vector<80x4xf32> -> vector<400x4xf32>
    %c0_37 = arith.constant 0 : index
    %c0_38 = arith.constant 0 : index
    %135 = vector.load %arg14[%c0_37, %c0_38] : memref<120x400xf32, #tpu.memory_space<vmem>>, vector<120x400xf32>
    %cst_39 = arith.constant dense<0.000000e+00> : vector<120x4xf32>
    %136 = tpu.matmul %135, %134, %cst_39 {dimension_numbers = #tpu.dot_dimension_numbers<[1], [0], [0], [1], [0, 0, 1, 1], [], []>} : vector<120x400xf32>, vector<400x4xf32>, vector<120x4xf32> -> vector<120x4xf32>
    %c0_40 = arith.constant 0 : index
    %c0_41 = arith.constant 0 : index
    %137 = vector.load %arg15[%c0_40, %c0_41] : memref<120x1xf32, #tpu.memory_space<vmem>>, vector<120x1xf32>
    %138 = vector.broadcast %137 : vector<120x1xf32> to vector<120x4xf32>
    %139 = arith.addf %136, %138 : vector<120x4xf32>
    %cst_42 = arith.constant 0.000000e+00 : f32
    %140 = vector.broadcast %cst_42 : f32 to vector<120x4xf32>
    %141 = arith.subf %140, %139 : vector<120x4xf32>
    %142 = math.exp %141 : vector<120x4xf32>
    %cst_43 = arith.constant 1.000000e+00 : f32
    %143 = vector.broadcast %cst_43 : f32 to vector<120x4xf32>
    %144 = arith.addf %143, %142 : vector<120x4xf32>
    %145 = tpu.reciprocal %144 {approx = true} : vector<120x4xf32> -> vector<120x4xf32>
    %c0_44 = arith.constant 0 : index
    %c0_45 = arith.constant 0 : index
    %146 = vector.load %arg16[%c0_44, %c0_45] : memref<84x120xf32, #tpu.memory_space<vmem>>, vector<84x120xf32>
    %cst_46 = arith.constant dense<0.000000e+00> : vector<84x4xf32>
    %147 = tpu.matmul %146, %145, %cst_46 {dimension_numbers = #tpu.dot_dimension_numbers<[1], [0], [0], [1], [0, 0, 1, 1], [], []>} : vector<84x120xf32>, vector<120x4xf32>, vector<84x4xf32> -> vector<84x4xf32>
    %c0_47 = arith.constant 0 : index
    %c0_48 = arith.constant 0 : index
    %148 = vector.load %arg17[%c0_47, %c0_48] : memref<84x1xf32, #tpu.memory_space<vmem>>, vector<84x1xf32>
    %149 = vector.broadcast %148 : vector<84x1xf32> to vector<84x4xf32>
    %150 = arith.addf %147, %149 : vector<84x4xf32>
    %cst_49 = arith.constant 0.000000e+00 : f32
    %151 = vector.broadcast %cst_49 : f32 to vector<84x4xf32>
    %152 = arith.subf %151, %150 : vector<84x4xf32>
    %153 = math.exp %152 : vector<84x4xf32>
    %cst_50 = arith.constant 1.000000e+00 : f32
    %154 = vector.broadcast %cst_50 : f32 to vector<84x4xf32>
    %155 = arith.addf %154, %153 : vector<84x4xf32>
    %156 = tpu.reciprocal %155 {approx = true} : vector<84x4xf32> -> vector<84x4xf32>
    %c0_51 = arith.constant 0 : index
    %c0_52 = arith.constant 0 : index
    %157 = vector.load %arg18[%c0_51, %c0_52] : memref<10x84xf32, #tpu.memory_space<vmem>>, vector<10x84xf32>
    %cst_53 = arith.constant dense<0.000000e+00> : vector<10x4xf32>
    %158 = tpu.matmul %157, %156, %cst_53 {dimension_numbers = #tpu.dot_dimension_numbers<[1], [0], [0], [1], [0, 0, 1, 1], [], []>} : vector<10x84xf32>, vector<84x4xf32>, vector<10x4xf32> -> vector<10x4xf32>
    %c0_54 = arith.constant 0 : index
    %c0_55 = arith.constant 0 : index
    %159 = vector.load %arg19[%c0_54, %c0_55] : memref<10x1xf32, #tpu.memory_space<vmem>>, vector<10x1xf32>
    %160 = vector.broadcast %159 : vector<10x1xf32> to vector<10x4xf32>
    %161 = arith.addf %158, %160 : vector<10x4xf32>
    %c0_56 = arith.constant 0 : index
    %c0_57 = arith.constant 0 : index
    %c0_58 = arith.constant 0 : index
    %162 = vector.load %arg20[%c0_56, %c0_57, %c0_58] : memref<1x10x4xf32, #tpu.memory_space<vmem>>, vector<1x10x4xf32>
    %163 = vector.shape_cast %162 : vector<1x10x4xf32> to vector<10x4xf32>
    %164 = vector.shape_cast %161 : vector<10x4xf32> to vector<1x10x4xf32>
    tpu.vector_store %arg20[%c0_56, %c0_57, %c0_58], %164 {strides = array<i32>} : memref<1x10x4xf32, #tpu.memory_space<vmem>>, vector<1x10x4xf32>,
    return
  }
  func.func @transform_0(%arg0: i32) -> (i32, i32, i32) {
    %c0_i32 = arith.constant 0 : i32
    %c0_i32_0 = arith.constant 0 : i32
    %c0_i32_1 = arith.constant 0 : i32
    return %arg0, %c0_i32, %c0_i32_0 : i32, i32, i32
  }
  func.func @transform_1(%arg0: i32) -> (i32, i32) {
    %c0_i32 = arith.constant 0 : i32
    %c0_i32_0 = arith.constant 0 : i32
    %c0_i32_1 = arith.constant 0 : i32
    return %c0_i32, %c0_i32_0 : i32, i32
  }
  func.func @transform_2(%arg0: i32) -> (i32, i32) {
    %c0_i32 = arith.constant 0 : i32
    %c0_i32_0 = arith.constant 0 : i32
    %c0_i32_1 = arith.constant 0 : i32
    return %c0_i32, %c0_i32_0 : i32, i32
  }
  func.func @transform_3(%arg0: i32) -> (i32, i32) {
    %c0_i32 = arith.constant 0 : i32
    %c0_i32_0 = arith.constant 0 : i32
    %c0_i32_1 = arith.constant 0 : i32
    return %c0_i32, %c0_i32_0 : i32, i32
  }
  func.func @transform_4(%arg0: i32) -> (i32, i32) {
    %c0_i32 = arith.constant 0 : i32
    %c0_i32_0 = arith.constant 0 : i32
    %c0_i32_1 = arith.constant 0 : i32
    return %c0_i32, %c0_i32_0 : i32, i32
  }
  func.func @transform_5(%arg0: i32) -> (i32, i32) {
    %c0_i32 = arith.constant 0 : i32
    %c0_i32_0 = arith.constant 0 : i32
    %c0_i32_1 = arith.constant 0 : i32
    return %c0_i32, %c0_i32_0 : i32, i32
  }
  func.func @transform_6(%arg0: i32) -> (i32, i32) {
    %c0_i32 = arith.constant 0 : i32
    %c0_i32_0 = arith.constant 0 : i32
    %c0_i32_1 = arith.constant 0 : i32
    return %c0_i32, %c0_i32_0 : i32, i32
  }
  func.func @transform_7(%arg0: i32) -> (i32, i32) {
    %c0_i32 = arith.constant 0 : i32
    %c0_i32_0 = arith.constant 0 : i32
    %c0_i32_1 = arith.constant 0 : i32
    return %c0_i32, %c0_i32_0 : i32, i32
  }
  func.func @transform_8(%arg0: i32) -> (i32, i32) {
    %c0_i32 = arith.constant 0 : i32
    %c0_i32_0 = arith.constant 0 : i32
    %c0_i32_1 = arith.constant 0 : i32
    return %c0_i32, %c0_i32_0 : i32, i32
  }
  func.func @transform_9(%arg0: i32) -> (i32, i32) {
    %c0_i32 = arith.constant 0 : i32
    %c0_i32_0 = arith.constant 0 : i32
    %c0_i32_1 = arith.constant 0 : i32
    return %c0_i32, %c0_i32_0 : i32, i32
  }
  func.func @transform_10(%arg0: i32) -> (i32, i32) {
    %c0_i32 = arith.constant 0 : i32
    %c0_i32_0 = arith.constant 0 : i32
    %c0_i32_1 = arith.constant 0 : i32
    return %c0_i32, %c0_i32_0 : i32, i32
  }
  func.func @transform_11(%arg0: i32) -> (i32, i32) {
    %c0_i32 = arith.constant 0 : i32
    %c0_i32_0 = arith.constant 0 : i32
    %c0_i32_1 = arith.constant 0 : i32
    return %c0_i32, %c0_i32_0 : i32, i32
  }
  func.func @transform_12(%arg0: i32) -> (i32, i32) {
    %c0_i32 = arith.constant 0 : i32
    %c0_i32_0 = arith.constant 0 : i32
    %c0_i32_1 = arith.constant 0 : i32
    return %c0_i32, %c0_i32_0 : i32, i32
  }
  func.func @transform_13(%arg0: i32) -> (i32, i32) {
    %c0_i32 = arith.constant 0 : i32
    %c0_i32_0 = arith.constant 0 : i32
    %c0_i32_1 = arith.constant 0 : i32
    return %c0_i32, %c0_i32_0 : i32, i32
  }
  func.func @transform_14(%arg0: i32) -> (i32, i32) {
    %c0_i32 = arith.constant 0 : i32
    %c0_i32_0 = arith.constant 0 : i32
    %c0_i32_1 = arith.constant 0 : i32
    return %c0_i32, %c0_i32_0 : i32, i32
  }
  func.func @transform_15(%arg0: i32) -> (i32, i32) {
    %c0_i32 = arith.constant 0 : i32
    %c0_i32_0 = arith.constant 0 : i32
    %c0_i32_1 = arith.constant 0 : i32
    return %c0_i32, %c0_i32_0 : i32, i32
  }
  func.func @transform_16(%arg0: i32) -> (i32, i32) {
    %c0_i32 = arith.constant 0 : i32
    %c0_i32_0 = arith.constant 0 : i32
    %c0_i32_1 = arith.constant 0 : i32
    return %c0_i32, %c0_i32_0 : i32, i32
  }
  func.func @transform_17(%arg0: i32) -> (i32, i32) {
    %c0_i32 = arith.constant 0 : i32
    %c0_i32_0 = arith.constant 0 : i32
    %c0_i32_1 = arith.constant 0 : i32
    return %c0_i32, %c0_i32_0 : i32, i32
  }
  func.func @transform_18(%arg0: i32) -> (i32, i32) {
    %c0_i32 = arith.constant 0 : i32
    %c0_i32_0 = arith.constant 0 : i32
    %c0_i32_1 = arith.constant 0 : i32
    return %c0_i32, %c0_i32_0 : i32, i32
  }
  func.func @transform_19(%arg0: i32) -> (i32, i32, i32) {
    %c0_i32 = arith.constant 0 : i32
    %c0_i32_0 = arith.constant 0 : i32
    %c0_i32_1 = arith.constant 0 : i32
    return %arg0, %c0_i32, %c0_i32_0 : i32, i32, i32
  }
}

</mosaic_0001>

<llo_original>
// kernel: net_forward.1
$region0: #{net_forward.1}
  #allocation0 [shape = 'u32[]', space=smem, size = 0x4, offset = 0x4, fixed_abs, tag = 'smem constant byte address 0x4 - core index']
  #allocation1 [shape = 'u32[144,128]{1,0:T(1,128)}', space=vmem, size = 0x12000, scoped, tag = 'internal scratch']
  %s0 = inlined_call_operand.vmem [shape: bf16[2,208,272], index: 0, kind: input, shape index: {}]
  %s1 = inlined_call_operand.vmem [shape: bf16[576,1040], index: 1, kind: input, shape index: {}]
  %s2 = inlined_call_operand.vmem [shape: f32[288,1], index: 2, kind: input, shape index: {}]
  %s3 = inlined_call_operand.vmem [shape: bf16[256,128], index: 3, kind: input, shape index: {}]
  %s4 = inlined_call_operand.vmem [shape: bf16[256,128], index: 4, kind: input, shape index: {}]
  %s5 = inlined_call_operand.vmem [shape: bf16[176,1440], index: 5, kind: input, shape index: {}]
  %s6 = inlined_call_operand.vmem [shape: f32[88,1], index: 6, kind: input, shape index: {}]
  %s7 = inlined_call_operand.vmem [shape: bf16[112,56], index: 7, kind: input, shape index: {}]
  %s8 = inlined_call_operand.vmem [shape: bf16[112,56], index: 8, kind: input, shape index: {}]
  %s9 = inlined_call_operand.vmem [shape: bf16[160,440], index: 9, kind: input, shape index: {}]
  %s10 = inlined_call_operand.vmem [shape: f32[80,1], index: 10, kind: input, shape index: {}]
  %s11 = inlined_call_operand.vmem [shape: f32[40,20], index: 11, kind: input, shape index: {}]
  %s12 = inlined_call_operand.vmem [shape: f32[40,20], index: 12, kind: input, shape index: {}]
  %s13 = inlined_call_operand.vmem [shape: f32[120,400], index: 13, kind: input, shape index: {}]
  %s14 = inlined_call_operand.vmem [shape: f32[120,1], index: 14, kind: input, shape index: {}]
  %s15 = inlined_call_operand.vmem [shape: f32[84,120], index: 15, kind: input, shape index: {}]
  %s16 = inlined_call_operand.vmem [shape: f32[84,1], index: 16, kind: input, shape index: {}]
  %s17 = inlined_call_operand.vmem [shape: f32[10,84], index: 17, kind: input, shape index: {}]
  %s18 = inlined_call_operand.vmem [shape: f32[10,1], index: 18, kind: input, shape index: {}]
  %s19 = inlined_call_operand.vmem [shape: f32[2,10,4], index: 19, kind: output, shape index: {}]
  %s20 = sld [smem:[#allocation0]]
  $region109: #{net_forward.1} parent=0
    _
  %s22 = ssub.s32 1, %s20
  %s23 = scalar_select 0, %s22, %s20
  loop: start=0, step=1, limit=4
  $region2: #{net_forward.1} parent=0 // loop_pre_header
    _
  $region3: #{net_forward.1} parent=0 // loop_header
    %s25 = sphi 0, %s29
    %p26 = scmp.ge.s32.totalorder %s25, 4
    %s35 = sphi 0, %s37
    %s38 = sphi 0, %s35
    %s39 = sphi 0, %s38
    %s55 = sphi 0, %s39
    %s59 = sphi 0, %s59
    %s61 = sphi 0, %s59
    %s62 = sphi 0, %s61
    %s76 = sphi 0, %s62
    %s80 = sphi 0, %s80
    %s82 = sphi 0, %s80
    %s83 = sphi 0, %s82
    %s97 = sphi 0, %s83
    %s101 = sphi 0, %s101
    %s103 = sphi 0, %s101
    %s104 = sphi 0, %s103
    %s118 = sphi 0, %s104
    %s122 = sphi 0, %s122
    %s124 = sphi 0, %s122
    %s125 = sphi 0, %s124
    %s139 = sphi 0, %s125
    %s143 = sphi 0, %s143
    %s145 = sphi 0, %s143
    %s146 = sphi 0, %s145
    %s160 = sphi 0, %s146
    %s164 = sphi 0, %s164
    %s166 = sphi 0, %s164
    %s167 = sphi 0, %s166
    %s181 = sphi 0, %s167
    %s185 = sphi 0, %s185
    %s187 = sphi 0, %s185
    %s188 = sphi 0, %s187
    %s202 = sphi 0, %s188
    %s206 = sphi 0, %s206
    %s208 = sphi 0, %s206
    %s209 = sphi 0, %s208
    %s223 = sphi 0, %s209
    %s227 = sphi 0, %s227
    %s229 = sphi 0, %s227
    %s230 = sphi 0, %s229
    %s244 = sphi 0, %s230
    %s248 = sphi 0, %s248
    %s250 = sphi 0, %s248
    %s251 = sphi 0, %s250
    %s265 = sphi 0, %s251
    %s269 = sphi 0, %s269
    %s271 = sphi 0, %s269
    %s272 = sphi 0, %s271
    %s286 = sphi 0, %s272
    %s290 = sphi 0, %s290
    %s292 = sphi 0, %s290
    %s293 = sphi 0, %s292
    %s307 = sphi 0, %s293
    %s311 = sphi 0, %s311
    %s313 = sphi 0, %s311
    %s314 = sphi 0, %s313
    %s328 = sphi 0, %s314
    %s332 = sphi 0, %s332
    %s334 = sphi 0, %s332
    %s335 = sphi 0, %s334
    %s349 = sphi 0, %s335
    %s353 = sphi 0, %s353
    %s355 = sphi 0, %s353
    %s356 = sphi 0, %s355
    %s370 = sphi 0, %s356
    %s374 = sphi 0, %s374
    %s376 = sphi 0, %s374
    %s377 = sphi 0, %s376
    %s391 = sphi 0, %s377
    %s395 = sphi 0, %s395
    %s397 = sphi 0, %s395
    %s398 = sphi 0, %s397
    %s412 = sphi 0, %s398
    %s416 = sphi 0, %s416
    %s418 = sphi 0, %s416
    %s419 = sphi 0, %s418
    %s433 = sphi 0, %s419
    %s439 = sphi 0, %s441
    %s442 = sphi 0, %s439
    %s443 = sphi 0, %s442
    %s459 = sphi 0, %s443
  $region4: #{net_forward.1} parent=0 // loop_header_branch
    %28 = sbr.rel (%p26) target = $region8
  $region5: #{net_forward.1} parent=0 // loop_body
    %s30 = ssub.s32 %s25, 1
    %s31 = ssub.s32 %s25, 2
    %s32 = sadd.s32 %s25, 1
    %s33 = ssub.s32 %s25, %s32
    %p34 = scmp.eq.s32.totalorder %s33, 0
    %s36 = sadd.s32 %s35, 1
    %s37 = scalar_select %p34, %s35, %s36
    %p40 = pneg %p34
    %p41 = scmp.eq.s32.totalorder %s25, 1
    %p42 = por %p40, %p41
    %p43 = scmp.ne.s32.totalorder %s35, %s38
    %p44 = scmp.eq.s32.totalorder %s25, 0
    %p45 = por %p43, %p44
    %p46 = scmp.ne.s32.totalorder %s35, %s38
    %p47 = scmp.eq.s32.totalorder %s30, 1
    %p48 = por %p46, %p47
    %p49 = scmp.ne.s32.totalorder %s38, %s39
    %p50 = scmp.eq.s32.totalorder %s30, 0
    %p51 = por %p49, %p50
    %p52 = scmp.ne.s32.totalorder %s38, %s39
    %p53 = scmp.eq.s32.totalorder %s31, 1
    %p54 = por %p52, %p53
    %p56 = scmp.ne.s32.totalorder %s39, %s55
    %p57 = scmp.eq.s32.totalorder %s31, 0
    %p58 = por %p56, %p57
    %s60 = sadd.s32 %s59, 1
    %p63 = scmp.eq.s32.totalorder %s25, 1
    %p64 = scmp.ne.s32.totalorder %s59, %s61
    %p65 = scmp.eq.s32.totalorder %s25, 0
    %p66 = por %p64, %p65
    %p67 = scmp.ne.s32.totalorder %s59, %s61
    %p68 = scmp.eq.s32.totalorder %s30, 1
    %p69 = por %p67, %p68
    %p70 = scmp.ne.s32.totalorder %s61, %s62
    %p71 = scmp.eq.s32.totalorder %s30, 0
    %p72 = por %p70, %p71
    %p73 = scmp.ne.s32.totalorder %s61, %s62
    %p74 = scmp.eq.s32.totalorder %s31, 1
    %p75 = por %p73, %p74
    %p77 = scmp.ne.s32.totalorder %s62, %s76
    %p78 = scmp.eq.s32.totalorder %s31, 0
    %p79 = por %p77, %p78
    %s81 = sadd.s32 %s80, 1
    %p84 = scmp.eq.s32.totalorder %s25, 1
    %p85 = scmp.ne.s32.totalorder %s80, %s82
    %p86 = scmp.eq.s32.totalorder %s25, 0
    %p87 = por %p85, %p86
    %p88 = scmp.ne.s32.totalorder %s80, %s82
    %p89 = scmp.eq.s32.totalorder %s30, 1
    %p90 = por %p88, %p89
    %p91 = scmp.ne.s32.totalorder %s82, %s83
    %p92 = scmp.eq.s32.totalorder %s30, 0
    %p93 = por %p91, %p92
    %p94 = scmp.ne.s32.totalorder %s82, %s83
    %p95 = scmp.eq.s32.totalorder %s31, 1
    %p96 = por %p94, %p95
    %p98 = scmp.ne.s32.totalorder %s83, %s97
    %p99 = scmp.eq.s32.totalorder %s31, 0
    %p100 = por %p98, %p99
    %s102 = sadd.s32 %s101, 1
    %p105 = scmp.eq.s32.totalorder %s25, 1
    %p106 = scmp.ne.s32.totalorder %s101, %s103
    %p107 = scmp.eq.s32.totalorder %s25, 0
    %p108 = por %p106, %p107
    %p109 = scmp.ne.s32.totalorder %s101, %s103
    %p110 = scmp.eq.s32.totalorder %s30, 1
    %p111 = por %p109, %p110
    %p112 = scmp.ne.s32.totalorder %s103, %s104
    %p113 = scmp.eq.s32.totalorder %s30, 0
    %p114 = por %p112, %p113
    %p115 = scmp.ne.s32.totalorder %s103, %s104
    %p116 = scmp.eq.s32.totalorder %s31, 1
    %p117 = por %p115, %p116
    %p119 = scmp.ne.s32.totalorder %s104, %s118
    %p120 = scmp.eq.s32.totalorder %s31, 0
    %p121 = por %p119, %p120
    %s123 = sadd.s32 %s122, 1
    %p126 = scmp.eq.s32.totalorder %s25, 1
    %p127 = scmp.ne.s32.totalorder %s122, %s124
    %p128 = scmp.eq.s32.totalorder %s25, 0
    %p129 = por %p127, %p128
    %p130 = scmp.ne.s32.totalorder %s122, %s124
    %p131 = scmp.eq.s32.totalorder %s30, 1
    %p132 = por %p130, %p131
    %p133 = scmp.ne.s32.totalorder %s124, %s125
    %p134 = scmp.eq.s32.totalorder %s30, 0
    %p135 = por %p133, %p134
    %p136 = scmp.ne.s32.totalorder %s124, %s125
    %p137 = scmp.eq.s32.totalorder %s31, 1
    %p138 = por %p136, %p137
    %p140 = scmp.ne.s32.totalorder %s125, %s139
    %p141 = scmp.eq.s32.totalorder %s31, 0
    %p142 = por %p140, %p141
    %s144 = sadd.s32 %s143, 1
    %p147 = scmp.eq.s32.totalorder %s25, 1
    %p148 = scmp.ne.s32.totalorder %s143, %s145
    %p149 = scmp.eq.s32.totalorder %s25, 0
    %p150 = por %p148, %p149
    %p151 = scmp.ne.s32.totalorder %s143, %s145
    %p152 = scmp.eq.s32.totalorder %s30, 1
    %p153 = por %p151, %p152
    %p154 = scmp.ne.s32.totalorder %s145, %s146
    %p155 = scmp.eq.s32.totalorder %s30, 0
    %p156 = por %p154, %p155
    %p157 = scmp.ne.s32.totalorder %s145, %s146
    %p158 = scmp.eq.s32.totalorder %s31, 1
    %p159 = por %p157, %p158
    %p161 = scmp.ne.s32.totalorder %s146, %s160
    %p162 = scmp.eq.s32.totalorder %s31, 0
    %p163 = por %p161, %p162
    %s165 = sadd.s32 %s164, 1
    %p168 = scmp.eq.s32.totalorder %s25, 1
    %p169 = scmp.ne.s32.totalorder %s164, %s166
    %p170 = scmp.eq.s32.totalorder %s25, 0
    %p171 = por %p169, %p170
    %p172 = scmp.ne.s32.totalorder %s164, %s166
    %p173 = scmp.eq.s32.totalorder %s30, 1
    %p174 = por %p172, %p173
    %p175 = scmp.ne.s32.totalorder %s166, %s167
    %p176 = scmp.eq.s32.totalorder %s30, 0
    %p177 = por %p175, %p176
    %p178 = scmp.ne.s32.totalorder %s166, %s167
    %p179 = scmp.eq.s32.totalorder %s31, 1
    %p180 = por %p178, %p179
    %p182 = scmp.ne.s32.totalorder %s167, %s181
    %p183 = scmp.eq.s32.totalorder %s31, 0
    %p184 = por %p182, %p183
    %s186 = sadd.s32 %s185, 1
    %p189 = scmp.eq.s32.totalorder %s25, 1
    %p190 = scmp.ne.s32.totalorder %s185, %s187
    %p191 = scmp.eq.s32.totalorder %s25, 0
    %p192 = por %p190, %p191
    %p193 = scmp.ne.s32.totalorder %s185, %s187
    %p194 = scmp.eq.s32.totalorder %s30, 1
    %p195 = por %p193, %p194
    %p196 = scmp.ne.s32.totalorder %s187, %s188
    %p197 = scmp.eq.s32.totalorder %s30, 0
    %p198 = por %p196, %p197
    %p199 = scmp.ne.s32.totalorder %s187, %s188
    %p200 = scmp.eq.s32.totalorder %s31, 1
    %p201 = por %p199, %p200
    %p203 = scmp.ne.s32.totalorder %s188, %s202
    %p204 = scmp.eq.s32.totalorder %s31, 0
    %p205 = por %p203, %p204
    %s207 = sadd.s32 %s206, 1
    %p210 = scmp.eq.s32.totalorder %s25, 1
    %p211 = scmp.ne.s32.totalorder %s206, %s208
    %p212 = scmp.eq.s32.totalorder %s25, 0
    %p213 = por %p211, %p212
    %p214 = scmp.ne.s32.totalorder %s206, %s208
    %p215 = scmp.eq.s32.totalorder %s30, 1
    %p216 = por %p214, %p215
    %p217 = scmp.ne.s32.totalorder %s208, %s209
    %p218 = scmp.eq.s32.totalorder %s30, 0
    %p219 = por %p217, %p218
    %p220 = scmp.ne.s32.totalorder %s208, %s209
    %p221 = scmp.eq.s32.totalorder %s31, 1
    %p222 = por %p220, %p221
    %p224 = scmp.ne.s32.totalorder %s209, %s223
    %p225 = scmp.eq.s32.totalorder %s31, 0
    %p226 = por %p224, %p225
    %s228 = sadd.s32 %s227, 1
    %p231 = scmp.eq.s32.totalorder %s25, 1
    %p232 = scmp.ne.s32.totalorder %s227, %s229
    %p233 = scmp.eq.s32.totalorder %s25, 0
    %p234 = por %p232, %p233
    %p235 = scmp.ne.s32.totalorder %s227, %s229
    %p236 = scmp.eq.s32.totalorder %s30, 1
    %p237 = por %p235, %p236
    %p238 = scmp.ne.s32.totalorder %s229, %s230
    %p239 = scmp.eq.s32.totalorder %s30, 0
    %p240 = por %p238, %p239
    %p241 = scmp.ne.s32.totalorder %s229, %s230
    %p242 = scmp.eq.s32.totalorder %s31, 1
    %p243 = por %p241, %p242
    %p245 = scmp.ne.s32.totalorder %s230, %s244
    %p246 = scmp.eq.s32.totalorder %s31, 0
    %p247 = por %p245, %p246
    %s249 = sadd.s32 %s248, 1
    %p252 = scmp.eq.s32.totalorder %s25, 1
    %p253 = scmp.ne.s32.totalorder %s248, %s250
    %p254 = scmp.eq.s32.totalorder %s25, 0
    %p255 = por %p253, %p254
    %p256 = scmp.ne.s32.totalorder %s248, %s250
    %p257 = scmp.eq.s32.totalorder %s30, 1
    %p258 = por %p256, %p257
    %p259 = scmp.ne.s32.totalorder %s250, %s251
    %p260 = scmp.eq.s32.totalorder %s30, 0
    %p261 = por %p259, %p260
    %p262 = scmp.ne.s32.totalorder %s250, %s251
    %p263 = scmp.eq.s32.totalorder %s31, 1
    %p264 = por %p262, %p263
    %p266 = scmp.ne.s32.totalorder %s251, %s265
    %p267 = scmp.eq.s32.totalorder %s31, 0
    %p268 = por %p266, %p267
    %s270 = sadd.s32 %s269, 1
    %p273 = scmp.eq.s32.totalorder %s25, 1
    %p274 = scmp.ne.s32.totalorder %s269, %s271
    %p275 = scmp.eq.s32.totalorder %s25, 0
    %p276 = por %p274, %p275
    %p277 = scmp.ne.s32.totalorder %s269, %s271
    %p278 = scmp.eq.s32.totalorder %s30, 1
    %p279 = por %p277, %p278
    %p280 = scmp.ne.s32.totalorder %s271, %s272
    %p281 = scmp.eq.s32.totalorder %s30, 0
    %p282 = por %p280, %p281
    %p283 = scmp.ne.s32.totalorder %s271, %s272
    %p284 = scmp.eq.s32.totalorder %s31, 1
    %p285 = por %p283, %p284
    %p287 = scmp.ne.s32.totalorder %s272, %s286
    %p288 = scmp.eq.s32.totalorder %s31, 0
    %p289 = por %p287, %p288
    %s291 = sadd.s32 %s290, 1
    %p294 = scmp.eq.s32.totalorder %s25, 1
    %p295 = scmp.ne.s32.totalorder %s290, %s292
    %p296 = scmp.eq.s32.totalorder %s25, 0
    %p297 = por %p295, %p296
    %p298 = scmp.ne.s32.totalorder %s290, %s292
    %p299 = scmp.eq.s32.totalorder %s30, 1
    %p300 = por %p298, %p299
    %p301 = scmp.ne.s32.totalorder %s292, %s293
    %p302 = scmp.eq.s32.totalorder %s30, 0
    %p303 = por %p301, %p302
    %p304 = scmp.ne.s32.totalorder %s292, %s293
    %p305 = scmp.eq.s32.totalorder %s31, 1
    %p306 = por %p304, %p305
    %p308 = scmp.ne.s32.totalorder %s293, %s307
    %p309 = scmp.eq.s32.totalorder %s31, 0
    %p310 = por %p308, %p309
    %s312 = sadd.s32 %s311, 1
    %p315 = scmp.eq.s32.totalorder %s25, 1
    %p316 = scmp.ne.s32.totalorder %s311, %s313
    %p317 = scmp.eq.s32.totalorder %s25, 0
    %p318 = por %p316, %p317
    %p319 = scmp.ne.s32.totalorder %s311, %s313
    %p320 = scmp.eq.s32.totalorder %s30, 1
    %p321 = por %p319, %p320
    %p322 = scmp.ne.s32.totalorder %s313, %s314
    %p323 = scmp.eq.s32.totalorder %s30, 0
    %p324 = por %p322, %p323
    %p325 = scmp.ne.s32.totalorder %s313, %s314
    %p326 = scmp.eq.s32.totalorder %s31, 1
    %p327 = por %p325, %p326
    %p329 = scmp.ne.s32.totalorder %s314, %s328
    %p330 = scmp.eq.s32.totalorder %s31, 0
    %p331 = por %p329, %p330
    %s333 = sadd.s32 %s332, 1
    %p336 = scmp.eq.s32.totalorder %s25, 1
    %p337 = scmp.ne.s32.totalorder %s332, %s334
    %p338 = scmp.eq.s32.totalorder %s25, 0
    %p339 = por %p337, %p338
    %p340 = scmp.ne.s32.totalorder %s332, %s334
    %p341 = scmp.eq.s32.totalorder %s30, 1
    %p342 = por %p340, %p341
    %p343 = scmp.ne.s32.totalorder %s334, %s335
    %p344 = scmp.eq.s32.totalorder %s30, 0
    %p345 = por %p343, %p344
    %p346 = scmp.ne.s32.totalorder %s334, %s335
    %p347 = scmp.eq.s32.totalorder %s31, 1
    %p348 = por %p346, %p347
    %p350 = scmp.ne.s32.totalorder %s335, %s349
    %p351 = scmp.eq.s32.totalorder %s31, 0
    %p352 = por %p350, %p351
    %s354 = sadd.s32 %s353, 1
    %p357 = scmp.eq.s32.totalorder %s25, 1
    %p358 = scmp.ne.s32.totalorder %s353, %s355
    %p359 = scmp.eq.s32.totalorder %s25, 0
    %p360 = por %p358, %p359
    %p361 = scmp.ne.s32.totalorder %s353, %s355
    %p362 = scmp.eq.s32.totalorder %s30, 1
    %p363 = por %p361, %p362
    %p364 = scmp.ne.s32.totalorder %s355, %s356
    %p365 = scmp.eq.s32.totalorder %s30, 0
    %p366 = por %p364, %p365
    %p367 = scmp.ne.s32.totalorder %s355, %s356
    %p368 = scmp.eq.s32.totalorder %s31, 1
    %p369 = por %p367, %p368
    %p371 = scmp.ne.s32.totalorder %s356, %s370
    %p372 = scmp.eq.s32.totalorder %s31, 0
    %p373 = por %p371, %p372
    %s375 = sadd.s32 %s374, 1
    %p378 = scmp.eq.s32.totalorder %s25, 1
    %p379 = scmp.ne.s32.totalorder %s374, %s376
    %p380 = scmp.eq.s32.totalorder %s25, 0
    %p381 = por %p379, %p380
    %p382 = scmp.ne.s32.totalorder %s374, %s376
    %p383 = scmp.eq.s32.totalorder %s30, 1
    %p384 = por %p382, %p383
    %p385 = scmp.ne.s32.totalorder %s376, %s377
    %p386 = scmp.eq.s32.totalorder %s30, 0
    %p387 = por %p385, %p386
    %p388 = scmp.ne.s32.totalorder %s376, %s377
    %p389 = scmp.eq.s32.totalorder %s31, 1
    %p390 = por %p388, %p389
    %p392 = scmp.ne.s32.totalorder %s377, %s391
    %p393 = scmp.eq.s32.totalorder %s31, 0
    %p394 = por %p392, %p393
    %s396 = sadd.s32 %s395, 1
    %p399 = scmp.eq.s32.totalorder %s25, 1
    %p400 = scmp.ne.s32.totalorder %s395, %s397
    %p401 = scmp.eq.s32.totalorder %s25, 0
    %p402 = por %p400, %p401
    %p403 = scmp.ne.s32.totalorder %s395, %s397
    %p404 = scmp.eq.s32.totalorder %s30, 1
    %p405 = por %p403, %p404
    %p406 = scmp.ne.s32.totalorder %s397, %s398
    %p407 = scmp.eq.s32.totalorder %s30, 0
    %p408 = por %p406, %p407
    %p409 = scmp.ne.s32.totalorder %s397, %s398
    %p410 = scmp.eq.s32.totalorder %s31, 1
    %p411 = por %p409, %p410
    %p413 = scmp.ne.s32.totalorder %s398, %s412
    %p414 = scmp.eq.s32.totalorder %s31, 0
    %p415 = por %p413, %p414
    %s417 = sadd.s32 %s416, 1
    %p420 = scmp.eq.s32.totalorder %s25, 1
    %p421 = scmp.ne.s32.totalorder %s416, %s418
    %p422 = scmp.eq.s32.totalorder %s25, 0
    %p423 = por %p421, %p422
    %p424 = scmp.ne.s32.totalorder %s416, %s418
    %p425 = scmp.eq.s32.totalorder %s30, 1
    %p426 = por %p424, %p425
    %p427 = scmp.ne.s32.totalorder %s418, %s419
    %p428 = scmp.eq.s32.totalorder %s30, 0
    %p429 = por %p427, %p428
    %p430 = scmp.ne.s32.totalorder %s418, %s419
    %p431 = scmp.eq.s32.totalorder %s31, 1
    %p432 = por %p430, %p431
    %p434 = scmp.ne.s32.totalorder %s419, %s433
    %p435 = scmp.eq.s32.totalorder %s31, 0
    %p436 = por %p434, %p435
    %s437 = ssub.s32 %s25, %s32
    %p438 = scmp.eq.s32.totalorder %s437, 0
    %s440 = sadd.s32 %s439, 1
    %s441 = scalar_select %p438, %s439, %s440
    %p444 = pneg %p438
    %p445 = scmp.eq.s32.totalorder %s25, 1
    %p446 = por %p444, %p445
    %p447 = scmp.ne.s32.totalorder %s439, %s442
    %p448 = scmp.eq.s32.totalorder %s25, 0
    %p449 = por %p447, %p448
    %p450 = scmp.ne.s32.totalorder %s439, %s442
    %p451 = scmp.eq.s32.totalorder %s30, 1
    %p452 = por %p450, %p451
    %p453 = scmp.ne.s32.totalorder %s442, %s443
    %p454 = scmp.eq.s32.totalorder %s30, 0
    %p455 = por %p453, %p454
    %p456 = scmp.ne.s32.totalorder %s442, %s443
    %p457 = scmp.eq.s32.totalorder %s31, 1
    %p458 = por %p456, %p457
    %p460 = scmp.ne.s32.totalorder %s443, %s459
    %p461 = scmp.eq.s32.totalorder %s31, 0
    %p462 = por %p460, %p461
    %p463 = scmp.le.s32.totalorder 1, %s25
    %p464 = scmp.lt.s32.totalorder %s25, 3
    %p465 = pnand %p463, %p464
    %p466 = pneg %p465
    // Predicated region
    $region9: #{net_forward.1} parent=5 // pred_check
      _
    $region10: #{net_forward.1} parent=5 // pred_check_branch
      %468 = sbr.rel (%p465) target = $region12
    $region11: #{net_forward.1} parent=5 // pred_region
      %s469 = ssub.s32 %s25, 1
      // Predicated region
      $region13: #{net_forward.1} parent=11 // pred_check
        %p470 = pneg %p72
      $region14: #{net_forward.1} parent=11 // pred_check_branch
        %472 = sbr.rel (%p470) target = $region16
      $region15: #{net_forward.1} parent=11 // pred_region
        _
      $region16: #{net_forward.1} parent=11 // pred_fallthru
        _
      // Predicated region
      $region17: #{net_forward.1} parent=11 // pred_check
        %p473 = pneg %p93
      $region18: #{net_forward.1} parent=11 // pred_check_branch
        %475 = sbr.rel (%p473) target = $region20
      $region19: #{net_forward.1} parent=11 // pred_region
        _
      $region20: #{net_forward.1} parent=11 // pred_fallthru
        _
      // Predicated region
      $region21: #{net_forward.1} parent=11 // pred_check
        %p476 = pneg %p114
      $region22: #{net_forward.1} parent=11 // pred_check_branch
        %478 = sbr.rel (%p476) target = $region24
      $region23: #{net_forward.1} parent=11 // pred_region
        _
      $region24: #{net_forward.1} parent=11 // pred_fallthru
        _
      // Predicated region
      $region25: #{net_forward.1} parent=11 // pred_check
        %p479 = pneg %p135
      $region26: #{net_forward.1} parent=11 // pred_check_branch
        %481 = sbr.rel (%p479) target = $region28
      $region27: #{net_forward.1} parent=11 // pred_region
        _
      $region28: #{net_forward.1} parent=11 // pred_fallthru
        _
      // Predicated region
      $region29: #{net_forward.1} parent=11 // pred_check
        %p482 = pneg %p156
      $region30: #{net_forward.1} parent=11 // pred_check_branch
        %484 = sbr.rel (%p482) target = $region32
      $region31: #{net_forward.1} parent=11 // pred_region
        _
      $region32: #{net_forward.1} parent=11 // pred_fallthru
        _
      // Predicated region
      $region33: #{net_forward.1} parent=11 // pred_check
        %p485 = pneg %p177
      $region34: #{net_forward.1} parent=11 // pred_check_branch
        %487 = sbr.rel (%p485) target = $region36
      $region35: #{net_forward.1} parent=11 // pred_region
        _
      $region36: #{net_forward.1} parent=11 // pred_fallthru
        _
      // Predicated region
      $region37: #{net_forward.1} parent=11 // pred_check
        %p488 = pneg %p198
      $region38: #{net_forward.1} parent=11 // pred_check_branch
        %490 = sbr.rel (%p488) target = $region40
      $region39: #{net_forward.1} parent=11 // pred_region
        _
      $region40: #{net_forward.1} parent=11 // pred_fallthru
        _
      // Predicated region
      $region41: #{net_forward.1} parent=11 // pred_check
        %p491 = pneg %p219
      $region42: #{net_forward.1} parent=11 // pred_check_branch
        %493 = sbr.rel (%p491) target = $region44
      $region43: #{net_forward.1} parent=11 // pred_region
        _
      $region44: #{net_forward.1} parent=11 // pred_fallthru
        _
      // Predicated region
      $region45: #{net_forward.1} parent=11 // pred_check
        %p494 = pneg %p240
      $region46: #{net_forward.1} parent=11 // pred_check_branch
        %496 = sbr.rel (%p494) target = $region48
      $region47: #{net_forward.1} parent=11 // pred_region
        _
      $region48: #{net_forward.1} parent=11 // pred_fallthru
        _
      // Predicated region
      $region49: #{net_forward.1} parent=11 // pred_check
        %p497 = pneg %p261
      $region50: #{net_forward.1} parent=11 // pred_check_branch
        %499 = sbr.rel (%p497) target = $region52
      $region51: #{net_forward.1} parent=11 // pred_region
        _
      $region52: #{net_forward.1} parent=11 // pred_fallthru
        _
      // Predicated region
      $region53: #{net_forward.1} parent=11 // pred_check
        %p500 = pneg %p282
      $region54: #{net_forward.1} parent=11 // pred_check_branch
        %502 = sbr.rel (%p500) target = $region56
      $region55: #{net_forward.1} parent=11 // pred_region
        _
      $region56: #{net_forward.1} parent=11 // pred_fallthru
        _
      // Predicated region
      $region57: #{net_forward.1} parent=11 // pred_check
        %p503 = pneg %p303
      $region58: #{net_forward.1} parent=11 // pred_check_branch
        %505 = sbr.rel (%p503) target = $region60
      $region59: #{net_forward.1} parent=11 // pred_region
        _
      $region60: #{net_forward.1} parent=11 // pred_fallthru
        _
      // Predicated region
      $region61: #{net_forward.1} parent=11 // pred_check
        %p506 = pneg %p324
      $region62: #{net_forward.1} parent=11 // pred_check_branch
        %508 = sbr.rel (%p506) target = $region64
      $region63: #{net_forward.1} parent=11 // pred_region
        _
      $region64: #{net_forward.1} parent=11 // pred_fallthru
        _
      // Predicated region
      $region65: #{net_forward.1} parent=11 // pred_check
        %p509 = pneg %p345
      $region66: #{net_forward.1} parent=11 // pred_check_branch
        %511 = sbr.rel (%p509) target = $region68
      $region67: #{net_forward.1} parent=11 // pred_region
        _
      $region68: #{net_forward.1} parent=11 // pred_fallthru
        _
      // Predicated region
      $region69: #{net_forward.1} parent=11 // pred_check
        %p512 = pneg %p366
      $region70: #{net_forward.1} parent=11 // pred_check_branch
        %514 = sbr.rel (%p512) target = $region72
      $region71: #{net_forward.1} parent=11 // pred_region
        _
      $region72: #{net_forward.1} parent=11 // pred_fallthru
        _
      // Predicated region
      $region73: #{net_forward.1} parent=11 // pred_check
        %p515 = pneg %p387
      $region74: #{net_forward.1} parent=11 // pred_check_branch
        %517 = sbr.rel (%p515) target = $region76
      $region75: #{net_forward.1} parent=11 // pred_region
        _
      $region76: #{net_forward.1} parent=11 // pred_fallthru
        _
      // Predicated region
      $region77: #{net_forward.1} parent=11 // pred_check
        %p518 = pneg %p408
      $region78: #{net_forward.1} parent=11 // pred_check_branch
        %520 = sbr.rel (%p518) target = $region80
      $region79: #{net_forward.1} parent=11 // pred_region
        _
      $region80: #{net_forward.1} parent=11 // pred_fallthru
        _
      // Predicated region
      $region81: #{net_forward.1} parent=11 // pred_check
        %p521 = pneg %p429
      $region82: #{net_forward.1} parent=11 // pred_check_branch
        %523 = sbr.rel (%p521) target = $region84
      $region83: #{net_forward.1} parent=11 // pred_region
        _
      $region84: #{net_forward.1} parent=11 // pred_fallthru
        _
    $region12: #{net_forward.1} parent=5 // pred_fallthru
      _
    %p524 = scmp.lt.s32.totalorder %s25, 2
    // Predicated region
    $region85: #{net_forward.1} parent=5 // pred_check
      %p525 = pneg %p524
    $region86: #{net_forward.1} parent=5 // pred_check_branch
      %527 = sbr.rel (%p525) target = $region88
    $region87: #{net_forward.1} parent=5 // pred_region
      // Predicated region
      $region89: #{net_forward.1} parent=87 // pred_check
        %p528 = pneg %p45
      $region90: #{net_forward.1} parent=87 // pred_check_branch
        %530 = sbr.rel (%p528) target = $region92
      $region91: #{net_forward.1} parent=87 // pred_region
        %p531 = scmp.lt.s32.totalorder %s25, 1
        %s532 = scalar_select %p531, %s25, 1
        %s533 = smul.addr %s532, 78
        %s534 = smul.addr %s533, 4
        %s535 = scalar_lea.vmem %s0, %s534
      $region92: #{net_forward.1} parent=87 // pred_fallthru
        _
    $region88: #{net_forward.1} parent=5 // pred_fallthru
      _
    %p536 = scmp.le.s32.totalorder 1, %s25
    %p537 = scmp.lt.s32.totalorder %s25, 3
    %p538 = pnand %p536, %p537
    %p539 = pneg %p538
    // Predicated region
    $region93: #{net_forward.1} parent=5 // pred_check
      _
    $region94: #{net_forward.1} parent=5 // pred_check_branch
      %541 = sbr.rel (%p538) target = $region96
    $region95: #{net_forward.1} parent=5 // pred_region
      %s542 = ssub.s32 %s25, 1
      %p543 = scmp.lt.s32.totalorder %s30, 1
      %s544 = scalar_select %p543, %s30, 1
      %s545 = smul.addr %s544, 78
      %s546 = smul.addr %s545, 4
      %s547 = scalar_lea.vmem %s0, %s546
      %p548 = pneg %p51
      %p549 = pneg %p48
      %p550 = pneg %p72
      %p551 = pneg %p69
      %p552 = pneg %p93
      %p553 = pneg %p90
      %p554 = pneg %p114
      %p555 = pneg %p111
      %p556 = pneg %p135
      %p557 = pneg %p132
      %p558 = pneg %p156
      %p559 = pneg %p153
      %p560 = pneg %p177
      %p561 = pneg %p174
      %p562 = pneg %p198
      %p563 = pneg %p195
      %p564 = pneg %p219
      %p565 = pneg %p216
      %p566 = pneg %p240
      %p567 = pneg %p237
      %p568 = pneg %p261
      %p569 = pneg %p258
      %p570 = pneg %p282
      %p571 = pneg %p279
      %p572 = pneg %p303
      %p573 = pneg %p300
      %p574 = pneg %p324
      %p575 = pneg %p321
      %p576 = pneg %p345
      %p577 = pneg %p342
      %p578 = pneg %p366
      %p579 = pneg %p363
      %p580 = pneg %p387
      %p581 = pneg %p384
      %p582 = pneg %p408
      %p583 = pneg %p405
      %p584 = pneg %p429
      %p585 = pneg %p426
      %p586 = pneg %p455
      %p587 = pneg %p452
      %p588 = scmp.lt.s32.totalorder %s30, 1
      %s589 = scalar_select %p588, %s30, 1
      %s590 = smul.addr %s589, 2
      %s591 = smul.addr %s590, 8
      %s592 = scalar_lea.vmem %s19, %s591
      %p593 = scmp.lt.s32.totalorder %s30, 1
      %s594 = scalar_select %p593, %s30, 1
      %s595 = smul.addr %s594, 78
      %s596 = smul.addr %s595, 4
      %s597 = scalar_lea.vmem %s0, %s596
      %p598 = scmp.lt.s32.totalorder %s30, 1
      %s599 = scalar_select %p598, %s30, 1
      %s600 = smul.addr %s599, 2
      %s601 = smul.addr %s600, 8
      %s602 = scalar_lea.vmem %s19, %s601
      %v604 = vld [vmem:[%s597] sm:$0xff]
      %v605 = vld [vmem:[%s597 + $0x8] sm:$0xf]
      %v606 = vld [vmem:[%s597 + $0xc] sm:$0xff]
      %v607 = vld [vmem:[%s597 + $0x14] sm:$0xf]
      %v608 = vld [vmem:[%s597 + $0x18] sm:$0xff]
      %v609 = vld [vmem:[%s597 + $0x20] sm:$0xf]
      %v610 = vld [vmem:[%s597 + $0x24] sm:$0xff]
      %v611 = vld [vmem:[%s597 + $0x2c] sm:$0xf]
      %v612 = vld [vmem:[%s597 + $0x30] sm:$0xff]
      %v613 = vld [vmem:[%s597 + $0x38] sm:$0xf]
      %v614 = vld [vmem:[%s597 + $0x3c] sm:$0xff]
      %v615 = vld [vmem:[%s597 + $0x44] sm:$0xf]
      %v616 = vld [vmem:[%s597 + $0x48] sm:$0xff]
      %v617 = vld [vmem:[%s597 + $0x50] sm:$0xf]
      %v618 = vld [vmem:[%s597 + $0x54] sm:$0xff]
      %v619 = vld [vmem:[%s597 + $0x5c] sm:$0xf]
      %v620 = vld [vmem:[%s597 + $0x60] sm:$0xff]
      %v621 = vld [vmem:[%s597 + $0x68] sm:$0xf]
      %v622 = vld [vmem:[%s597 + $0x6c] sm:$0xff]
      %v623 = vld [vmem:[%s597 + $0x74] sm:$0xf]
      %v624 = vld [vmem:[%s597 + $0x78] sm:$0xff]
      %v625 = vld [vmem:[%s597 + $0x80] sm:$0xf]
      %v626 = vld [vmem:[%s597 + $0x84] sm:$0xff]
      %v627 = vld [vmem:[%s597 + $0x8c] sm:$0xf]
      %v628 = vld [vmem:[%s597 + $0x90] sm:$0xff]
      %v629 = vld [vmem:[%s597 + $0x98] sm:$0xf]
      %v630 = vld [vmem:[%s597 + $0x9c] sm:$0xff]
      %v631 = vld [vmem:[%s597 + $0xa4] sm:$0xf]
      %v632 = vld [vmem:[%s597 + $0xa8] sm:$0xff]
      %v633 = vld [vmem:[%s597 + $0xb0] sm:$0xf]
      %v634 = vld [vmem:[%s597 + $0xb4] sm:$0xff]
      %v635 = vld [vmem:[%s597 + $0xbc] sm:$0xf]
      %v636 = vld [vmem:[%s597 + $0xc0] sm:$0xff]
      %v637 = vld [vmem:[%s597 + $0xc8] sm:$0xf]
      %v638 = vld [vmem:[%s597 + $0xcc] sm:$0xff]
      %v639 = vld [vmem:[%s597 + $0xd4] sm:$0xf]
      %v640 = vld [vmem:[%s597 + $0xd8] sm:$0xff]
      %v641 = vld [vmem:[%s597 + $0xe0] sm:$0xf]
      %v642 = vld [vmem:[%s597 + $0xe4] sm:$0xff]
      %v643 = vld [vmem:[%s597 + $0xec] sm:$0xf]
      %v644 = vld [vmem:[%s597 + $0xf0] sm:$0xff]
      %v645 = vld [vmem:[%s597 + $0xf8] sm:$0xf]
      %v646 = vld [vmem:[%s597 + $0xfc] sm:$0xff]
      %v647 = vld [vmem:[%s597 + $0x104] sm:$0xf]
      %v648 = vld [vmem:[%s597 + $0x108] sm:$0xff]
      %v649 = vld [vmem:[%s597 + $0x110] sm:$0xf]
      %v650 = vld [vmem:[%s597 + $0x114] sm:$0xff]
      %v651 = vld [vmem:[%s597 + $0x11c] sm:$0xf]
      %v652 = vld [vmem:[%s597 + $0x120] sm:$0xff]
      %v653 = vld [vmem:[%s597 + $0x128] sm:$0xf]
      %v654 = vld [vmem:[%s597 + $0x12c] sm:$0xff]
      %v655 = vld [vmem:[%s597 + $0x134] sm:$0xf]
      %v682 = vunpack.c.l.b16 %v604
      %v683 = vunpack.c.l.b16 %v606
      %v684 = vunpack.c.l.b16 %v608
      %v685 = vunpack.c.l.b16 %v610
      %v686 = vunpack.c.l.b16 %v612
      %v687 = vunpack.c.l.b16 %v614
      %v688 = vunpack.c.l.b16 %v616
      %v689 = vunpack.c.l.b16 %v618
      %v690 = vunpack.c.l.b16 %v620
      %v691 = vunpack.c.l.b16 %v622
      %v692 = vunpack.c.l.b16 %v624
      %v693 = vunpack.c.l.b16 %v626
      %v694 = vunpack.c.l.b16 %v628
      %v695 = vunpack.c.l.b16 %v630
      %v696 = vunpack.c.l.b16 %v632
      %v697 = vunpack.c.l.b16 %v634
      %v698 = vunpack.c.l.b16 %v636
      %v699 = vunpack.c.l.b16 %v638
      %v700 = vunpack.c.l.b16 %v640
      %v701 = vunpack.c.l.b16 %v642
      %v702 = vunpack.c.l.b16 %v644
      %v703 = vunpack.c.l.b16 %v646
      %v704 = vunpack.c.l.b16 %v648
      %v705 = vunpack.c.l.b16 %v650
      %v706 = vunpack.c.l.b16 %v652
      %v707 = vunpack.c.l.b16 %v654
      %v708 = vpack.c.b16 %v683, %v682
      %v709 = vpack.c.b16 %v685, %v684
      %v710 = vpack.c.b16 %v687, %v686
      %v711 = vpack.c.b16 %v689, %v688
      %v712 = vpack.c.b16 %v691, %v690
      %v713 = vpack.c.b16 %v693, %v692
      %v714 = vpack.c.b16 %v695, %v694
      %v715 = vpack.c.b16 %v697, %v696
      %v716 = vpack.c.b16 %v699, %v698
      %v717 = vpack.c.b16 %v701, %v700
      %v718 = vpack.c.b16 %v703, %v702
      %v719 = vpack.c.b16 %v705, %v704
      %v720 = vpack.c.b16 %v707, %v706
      %v721 = vunpack.c.h.b16 %v604
      %v722 = vunpack.c.h.b16 %v606
      %v723 = vunpack.c.h.b16 %v608
      %v724 = vunpack.c.h.b16 %v610
      %v725 = vunpack.c.h.b16 %v612
      %v726 = vunpack.c.h.b16 %v614
      %v727 = vunpack.c.h.b16 %v616
      %v728 = vunpack.c.h.b16 %v618
      %v729 = vunpack.c.h.b16 %v620
      %v730 = vunpack.c.h.b16 %v622
      %v731 = vunpack.c.h.b16 %v624
      %v732 = vunpack.c.h.b16 %v626
      %v733 = vunpack.c.h.b16 %v628
      %v734 = vunpack.c.h.b16 %v630
      %v735 = vunpack.c.h.b16 %v632
      %v736 = vunpack.c.h.b16 %v634
      %v737 = vunpack.c.h.b16 %v636
      %v738 = vunpack.c.h.b16 %v638
      %v739 = vunpack.c.h.b16 %v640
      %v740 = vunpack.c.h.b16 %v642
      %v741 = vunpack.c.h.b16 %v644
      %v742 = vunpack.c.h.b16 %v646
      %v743 = vunpack.c.h.b16 %v648
      %v744 = vunpack.c.h.b16 %v650
      %v745 = vunpack.c.h.b16 %v652
      %v746 = vunpack.c.h.b16 %v654
      %v747 = vpack.c.b16 %v722, %v721
      %v748 = vpack.c.b16 %v724, %v723
      %v749 = vpack.c.b16 %v726, %v725
      %v750 = vpack.c.b16 %v728, %v727
      %v751 = vpack.c.b16 %v730, %v729
      %v752 = vpack.c.b16 %v732, %v731
      %v753 = vpack.c.b16 %v734, %v733
      %v754 = vpack.c.b16 %v736, %v735
      %v755 = vpack.c.b16 %v738, %v737
      %v756 = vpack.c.b16 %v740, %v739
      %v757 = vpack.c.b16 %v742, %v741
      %v758 = vpack.c.b16 %v744, %v743
      %v759 = vpack.c.b16 %v746, %v745
      %760 = vrot.lane.b32.xlu0 %v708, 124
      %v761 = vpop.permute.xlu0 %760
      %762 = vrot.lane.b32.xlu0 %v747, 124
      %v763 = vpop.permute.xlu0 %762
      %764 = vrot.lane.b32.xlu0 %v709, 124
      %v765 = vpop.permute.xlu0 %764
      %766 = vrot.lane.b32.xlu0 %v748, 124
      %v767 = vpop.permute.xlu0 %766
      %768 = vrot.lane.b32.xlu0 %v710, 124
      %v769 = vpop.permute.xlu0 %768
      %770 = vrot.lane.b32.xlu0 %v749, 124
      %v771 = vpop.permute.xlu0 %770
      %772 = vrot.lane.b32.xlu0 %v711, 124
      %v773 = vpop.permute.xlu0 %772
      %774 = vrot.lane.b32.xlu0 %v750, 124
      %v775 = vpop.permute.xlu0 %774
      %776 = vrot.lane.b32.xlu0 %v712, 124
      %v777 = vpop.permute.xlu0 %776
      %778 = vrot.lane.b32.xlu0 %v751, 124
      %v779 = vpop.permute.xlu0 %778
      %780 = vrot.lane.b32.xlu0 %v713, 124
      %v781 = vpop.permute.xlu0 %780
      %782 = vrot.lane.b32.xlu0 %v752, 124
      %v783 = vpop.permute.xlu0 %782
      %784 = vrot.lane.b32.xlu0 %v714, 124
      %v785 = vpop.permute.xlu0 %784
      %786 = vrot.lane.b32.xlu0 %v753, 124
      %v787 = vpop.permute.xlu0 %786
      %788 = vrot.lane.b32.xlu0 %v715, 124
      %v789 = vpop.permute.xlu0 %788
      %790 = vrot.lane.b32.xlu0 %v754, 124
      %v791 = vpop.permute.xlu0 %790
      %792 = vrot.lane.b32.xlu0 %v716, 124
      %v793 = vpop.permute.xlu0 %792
      %794 = vrot.lane.b32.xlu0 %v755, 124
      %v795 = vpop.permute.xlu0 %794
      %796 = vrot.lane.b32.xlu0 %v717, 124
      %v797 = vpop.permute.xlu0 %796
      %798 = vrot.lane.b32.xlu0 %v756, 124
      %v799 = vpop.permute.xlu0 %798
      %800 = vrot.lane.b32.xlu0 %v718, 124
      %v801 = vpop.permute.xlu0 %800
      %802 = vrot.lane.b32.xlu0 %v757, 124
      %v803 = vpop.permute.xlu0 %802
      %804 = vrot.lane.b32.xlu0 %v719, 124
      %v805 = vpop.permute.xlu0 %804
      %806 = vrot.lane.b32.xlu0 %v758, 124
      %v807 = vpop.permute.xlu0 %806
      %808 = vrot.lane.b32.xlu0 %v720, 124
      %v809 = vpop.permute.xlu0 %808
      %810 = vrot.lane.b32.xlu0 %v759, 124
      %v811 = vpop.permute.xlu0 %810
      %vm812 = vcmask 1014784
      %v813 = vsel %vm812, %v761, %v763
      %v814 = vsel %vm812, %v765, %v767
      %v815 = vsel %vm812, %v769, %v771
      %v816 = vsel %vm812, %v773, %v775
      %v817 = vsel %vm812, %v777, %v779
      %v818 = vsel %vm812, %v781, %v783
      %v819 = vsel %vm812, %v785, %v787
      %v820 = vsel %vm812, %v789, %v791
      %v821 = vsel %vm812, %v793, %v795
      %v822 = vsel %vm812, %v797, %v799
      %v823 = vsel %vm812, %v801, %v803
      %v824 = vsel %vm812, %v805, %v807
      %v825 = vsel %vm812, %v809, %v811
      %826 = vrot.lane.b32.xlu0 %v747, 120
      %v827 = vpop.permute.xlu0 %826
      %828 = vrot.lane.b32.xlu0 %v748, 120
      %v829 = vpop.permute.xlu0 %828
      %830 = vrot.lane.b32.xlu0 %v749, 120
      %v831 = vpop.permute.xlu0 %830
      %832 = vrot.lane.b32.xlu0 %v750, 120
      %v833 = vpop.permute.xlu0 %832
      %834 = vrot.lane.b32.xlu0 %v751, 120
      %v835 = vpop.permute.xlu0 %834
      %836 = vrot.lane.b32.xlu0 %v752, 120
      %v837 = vpop.permute.xlu0 %836
      %838 = vrot.lane.b32.xlu0 %v753, 120
      %v839 = vpop.permute.xlu0 %838
      %840 = vrot.lane.b32.xlu0 %v754, 120
      %v841 = vpop.permute.xlu0 %840
      %842 = vrot.lane.b32.xlu0 %v755, 120
      %v843 = vpop.permute.xlu0 %842
      %844 = vrot.lane.b32.xlu0 %v756, 120
      %v845 = vpop.permute.xlu0 %844
      %846 = vrot.lane.b32.xlu0 %v757, 120
      %v847 = vpop.permute.xlu0 %846
      %848 = vrot.lane.b32.xlu0 %v758, 120
      %v849 = vpop.permute.xlu0 %848
      %850 = vrot.lane.b32.xlu0 %v759, 120
      %v851 = vpop.permute.xlu0 %850
      %v878 = vunpack.c.l.b16 %v605
      %v879 = vunpack.c.l.b16 %v607
      %v880 = vunpack.c.l.b16 %v609
      %v881 = vunpack.c.l.b16 %v611
      %v882 = vunpack.c.l.b16 %v613
      %v883 = vunpack.c.l.b16 %v615
      %v884 = vunpack.c.l.b16 %v617
      %v885 = vunpack.c.l.b16 %v619
      %v886 = vunpack.c.l.b16 %v621
      %v887 = vunpack.c.l.b16 %v623
      %v888 = vunpack.c.l.b16 %v625
      %v889 = vunpack.c.l.b16 %v627
      %v890 = vunpack.c.l.b16 %v629
      %v891 = vunpack.c.l.b16 %v631
      %v892 = vunpack.c.l.b16 %v633
      %v893 = vunpack.c.l.b16 %v635
      %v894 = vunpack.c.l.b16 %v637
      %v895 = vunpack.c.l.b16 %v639
      %v896 = vunpack.c.l.b16 %v641
      %v897 = vunpack.c.l.b16 %v643
      %v898 = vunpack.c.l.b16 %v645
      %v899 = vunpack.c.l.b16 %v647
      %v900 = vunpack.c.l.b16 %v649
      %v901 = vunpack.c.l.b16 %v651
      %v902 = vunpack.c.l.b16 %v653
      %v903 = vunpack.c.l.b16 %v655
      %v904 = vpack.c.b16 %v879, %v878
      %v905 = vpack.c.b16 %v881, %v880
      %v906 = vpack.c.b16 %v883, %v882
      %v907 = vpack.c.b16 %v885, %v884
      %v908 = vpack.c.b16 %v887, %v886
      %v909 = vpack.c.b16 %v889, %v888
      %v910 = vpack.c.b16 %v891, %v890
      %v911 = vpack.c.b16 %v893, %v892
      %v912 = vpack.c.b16 %v895, %v894
      %v913 = vpack.c.b16 %v897, %v896
      %v914 = vpack.c.b16 %v899, %v898
      %v915 = vpack.c.b16 %v901, %v900
      %v916 = vpack.c.b16 %v903, %v902
      %917 = vrot.lane.b32.xlu0 %v747, 116
      %v918 = vpop.permute.xlu0 %917
      %919 = vrot.lane.b32.xlu0 %v904, 116
      %v920 = vpop.permute.xlu0 %919
      %921 = vrot.lane.b32.xlu0 %v748, 116
      %v922 = vpop.permute.xlu0 %921
      %923 = vrot.lane.b32.xlu0 %v905, 116
      %v924 = vpop.permute.xlu0 %923
      %925 = vrot.lane.b32.xlu0 %v749, 116
      %v926 = vpop.permute.xlu0 %925
      %927 = vrot.lane.b32.xlu0 %v906, 116
      %v928 = vpop.permute.xlu0 %927
      %929 = vrot.lane.b32.xlu0 %v750, 116
      %v930 = vpop.permute.xlu0 %929
      %931 = vrot.lane.b32.xlu0 %v907, 116
      %v932 = vpop.permute.xlu0 %931
      %933 = vrot.lane.b32.xlu0 %v751, 116
      %v934 = vpop.permute.xlu0 %933
      %935 = vrot.lane.b32.xlu0 %v908, 116
      %v936 = vpop.permute.xlu0 %935
      %937 = vrot.lane.b32.xlu0 %v752, 116
      %v938 = vpop.permute.xlu0 %937
      %939 = vrot.lane.b32.xlu0 %v909, 116
      %v940 = vpop.permute.xlu0 %939
      %941 = vrot.lane.b32.xlu0 %v753, 116
      %v942 = vpop.permute.xlu0 %941
      %943 = vrot.lane.b32.xlu0 %v910, 116
      %v944 = vpop.permute.xlu0 %943
      %945 = vrot.lane.b32.xlu0 %v754, 116
      %v946 = vpop.permute.xlu0 %945
      %947 = vrot.lane.b32.xlu0 %v911, 116
      %v948 = vpop.permute.xlu0 %947
      %949 = vrot.lane.b32.xlu0 %v755, 116
      %v950 = vpop.permute.xlu0 %949
      %951 = vrot.lane.b32.xlu0 %v912, 116
      %v952 = vpop.permute.xlu0 %951
      %953 = vrot.lane.b32.xlu0 %v756, 116
      %v954 = vpop.permute.xlu0 %953
      %955 = vrot.lane.b32.xlu0 %v913, 116
      %v956 = vpop.permute.xlu0 %955
      %957 = vrot.lane.b32.xlu0 %v757, 116
      %v958 = vpop.permute.xlu0 %957
      %959 = vrot.lane.b32.xlu0 %v914, 116
      %v960 = vpop.permute.xlu0 %959
      %961 = vrot.lane.b32.xlu0 %v758, 116
      %v962 = vpop.permute.xlu0 %961
      %963 = vrot.lane.b32.xlu0 %v915, 116
      %v964 = vpop.permute.xlu0 %963
      %965 = vrot.lane.b32.xlu0 %v759, 116
      %v966 = vpop.permute.xlu0 %965
      %967 = vrot.lane.b32.xlu0 %v916, 116
      %v968 = vpop.permute.xlu0 %967
      %vm969 = vcmask 949248
      %v970 = vsel %vm969, %v918, %v920
      %v971 = vsel %vm969, %v922, %v924
      %v972 = vsel %vm969, %v926, %v928
      %v973 = vsel %vm969, %v930, %v932
      %v974 = vsel %vm969, %v934, %v936
      %v975 = vsel %vm969, %v938, %v940
      %v976 = vsel %vm969, %v942, %v944
      %v977 = vsel %vm969, %v946, %v948
      %v978 = vsel %vm969, %v950, %v952
      %v979 = vsel %vm969, %v954, %v956
      %v980 = vsel %vm969, %v958, %v960
      %v981 = vsel %vm969, %v962, %v964
      %v982 = vsel %vm969, %v966, %v968
      %vm983 = vcmask 523264
      %v986 = vsel %vm983, %v708, %v813
      %v990 = vsel %vm983, %v709, %v814
      %v994 = vsel %vm983, %v710, %v815
      %v998 = vsel %vm983, %v711, %v816
      %v1002 = vsel %vm983, %v712, %v817
      %v1006 = vsel %vm983, %v713, %v818
      %v1010 = vsel %vm983, %v714, %v819
      %v1014 = vsel %vm983, %v715, %v820
      %v1018 = vsel %vm983, %v716, %v821
      %v1022 = vsel %vm983, %v717, %v822
      %v1026 = vsel %vm983, %v718, %v823
      %v1030 = vsel %vm983, %v719, %v824
      %v1034 = vsel %vm983, %v720, %v825
      %v1038 = vsel %vm983, %v827, %v970
      %v1042 = vsel %vm983, %v829, %v971
      %v1046 = vsel %vm983, %v831, %v972
      %v1050 = vsel %vm983, %v833, %v973
      %v1054 = vsel %vm983, %v835, %v974
      %v1058 = vsel %vm983, %v837, %v975
      %v1062 = vsel %vm983, %v839, %v976
      %v1066 = vsel %vm983, %v841, %v977
      %v1070 = vsel %vm983, %v843, %v978
      %v1074 = vsel %vm983, %v845, %v979
      %v1078 = vsel %vm983, %v847, %v980
      %v1082 = vsel %vm983, %v849, %v981
      %v1086 = vsel %vm983, %v851, %v982
      %1088 = vrot.lane.b32.xlu0 %v708, 127
      %v1089 = vpop.permute.xlu0 %1088
      %1090 = vrot.lane.b32.xlu0 %v709, 127
      %v1091 = vpop.permute.xlu0 %1090
      %1092 = vrot.lane.b32.xlu0 %v710, 127
      %v1093 = vpop.permute.xlu0 %1092
      %1094 = vrot.lane.b32.xlu0 %v711, 127
      %v1095 = vpop.permute.xlu0 %1094
      %1096 = vrot.lane.b32.xlu0 %v712, 127
      %v1097 = vpop.permute.xlu0 %1096
      %1098 = vrot.lane.b32.xlu0 %v713, 127
      %v1099 = vpop.permute.xlu0 %1098
      %1100 = vrot.lane.b32.xlu0 %v714, 127
      %v1101 = vpop.permute.xlu0 %1100
      %1102 = vrot.lane.b32.xlu0 %v715, 127
      %v1103 = vpop.permute.xlu0 %1102
      %1104 = vrot.lane.b32.xlu0 %v716, 127
      %v1105 = vpop.permute.xlu0 %1104
      %1106 = vrot.lane.b32.xlu0 %v717, 127
      %v1107 = vpop.permute.xlu0 %1106
      %1108 = vrot.lane.b32.xlu0 %v718, 127
      %v1109 = vpop.permute.xlu0 %1108
      %1110 = vrot.lane.b32.xlu0 %v719, 127
      %v1111 = vpop.permute.xlu0 %1110
      %1112 = vrot.lane.b32.xlu0 %v720, 127
      %v1113 = vpop.permute.xlu0 %1112
      %1114 = vrot.lane.b32.xlu0 %v708, 123
      %v1115 = vpop.permute.xlu0 %1114
      %1116 = vrot.lane.b32.xlu0 %v747, 123
      %v1117 = vpop.permute.xlu0 %1116
      %1118 = vrot.lane.b32.xlu0 %v709, 123
      %v1119 = vpop.permute.xlu0 %1118
      %1120 = vrot.lane.b32.xlu0 %v748, 123
      %v1121 = vpop.permute.xlu0 %1120
      %1122 = vrot.lane.b32.xlu0 %v710, 123
      %v1123 = vpop.permute.xlu0 %1122
      %1124 = vrot.lane.b32.xlu0 %v749, 123
      %v1125 = vpop.permute.xlu0 %1124
      %1126 = vrot.lane.b32.xlu0 %v711, 123
      %v1127 = vpop.permute.xlu0 %1126
      %1128 = vrot.lane.b32.xlu0 %v750, 123
      %v1129 = vpop.permute.xlu0 %1128
      %1130 = vrot.lane.b32.xlu0 %v712, 123
      %v1131 = vpop.permute.xlu0 %1130
      %1132 = vrot.lane.b32.xlu0 %v751, 123
      %v1133 = vpop.permute.xlu0 %1132
      %1134 = vrot.lane.b32.xlu0 %v713, 123
      %v1135 = vpop.permute.xlu0 %1134
      %1136 = vrot.lane.b32.xlu0 %v752, 123
      %v1137 = vpop.permute.xlu0 %1136
      %1138 = vrot.lane.b32.xlu0 %v714, 123
      %v1139 = vpop.permute.xlu0 %1138
      %1140 = vrot.lane.b32.xlu0 %v753, 123
      %v1141 = vpop.permute.xlu0 %1140
      %1142 = vrot.lane.b32.xlu0 %v715, 123
      %v1143 = vpop.permute.xlu0 %1142
      %1144 = vrot.lane.b32.xlu0 %v754, 123
      %v1145 = vpop.permute.xlu0 %1144
      %1146 = vrot.lane.b32.xlu0 %v716, 123
      %v1147 = vpop.permute.xlu0 %1146
      %1148 = vrot.lane.b32.xlu0 %v755, 123
      %v1149 = vpop.permute.xlu0 %1148
      %1150 = vrot.lane.b32.xlu0 %v717, 123
      %v1151 = vpop.permute.xlu0 %1150
      %1152 = vrot.lane.b32.xlu0 %v756, 123
      %v1153 = vpop.permute.xlu0 %1152
      %1154 = vrot.lane.b32.xlu0 %v718, 123
      %v1155 = vpop.permute.xlu0 %1154
      %1156 = vrot.lane.b32.xlu0 %v757, 123
      %v1157 = vpop.permute.xlu0 %1156
      %1158 = vrot.lane.b32.xlu0 %v719, 123
      %v1159 = vpop.permute.xlu0 %1158
      %1160 = vrot.lane.b32.xlu0 %v758, 123
      %v1161 = vpop.permute.xlu0 %1160
      %1162 = vrot.lane.b32.xlu0 %v720, 123
      %v1163 = vpop.permute.xlu0 %1162
      %1164 = vrot.lane.b32.xlu0 %v759, 123
      %v1165 = vpop.permute.xlu0 %1164
      %vm1166 = vcmask 1006592
      %v1167 = vsel %vm1166, %v1115, %v1117
      %v1168 = vsel %vm1166, %v1119, %v1121
      %v1169 = vsel %vm1166, %v1123, %v1125
      %v1170 = vsel %vm1166, %v1127, %v1129
      %v1171 = vsel %vm1166, %v1131, %v1133
      %v1172 = vsel %vm1166, %v1135, %v1137
      %v1173 = vsel %vm1166, %v1139, %v1141
      %v1174 = vsel %vm1166, %v1143, %v1145
      %v1175 = vsel %vm1166, %v1147, %v1149
      %v1176 = vsel %vm1166, %v1151, %v1153
      %v1177 = vsel %vm1166, %v1155, %v1157
      %v1178 = vsel %vm1166, %v1159, %v1161
      %v1179 = vsel %vm1166, %v1163, %v1165
      %1180 = vrot.lane.b32.xlu0 %v747, 119
      %v1181 = vpop.permute.xlu0 %1180
      %1182 = vrot.lane.b32.xlu0 %v748, 119
      %v1183 = vpop.permute.xlu0 %1182
      %1184 = vrot.lane.b32.xlu0 %v749, 119
      %v1185 = vpop.permute.xlu0 %1184
      %1186 = vrot.lane.b32.xlu0 %v750, 119
      %v1187 = vpop.permute.xlu0 %1186
      %1188 = vrot.lane.b32.xlu0 %v751, 119
      %v1189 = vpop.permute.xlu0 %1188
      %1190 = vrot.lane.b32.xlu0 %v752, 119
      %v1191 = vpop.permute.xlu0 %1190
      %1192 = vrot.lane.b32.xlu0 %v753, 119
      %v1193 = vpop.permute.xlu0 %1192
      %1194 = vrot.lane.b32.xlu0 %v754, 119
      %v1195 = vpop.permute.xlu0 %1194
      %1196 = vrot.lane.b32.xlu0 %v755, 119
      %v1197 = vpop.permute.xlu0 %1196
      %1198 = vrot.lane.b32.xlu0 %v756, 119
      %v1199 = vpop.permute.xlu0 %1198
      %1200 = vrot.lane.b32.xlu0 %v757, 119
      %v1201 = vpop.permute.xlu0 %1200
      %1202 = vrot.lane.b32.xlu0 %v758, 119
      %v1203 = vpop.permute.xlu0 %1202
      %1204 = vrot.lane.b32.xlu0 %v759, 119
      %v1205 = vpop.permute.xlu0 %1204
      %1206 = vrot.lane.b32.xlu0 %v747, 115
      %v1207 = vpop.permute.xlu0 %1206
      %1208 = vrot.lane.b32.xlu0 %v904, 115
      %v1209 = vpop.permute.xlu0 %1208
      %1210 = vrot.lane.b32.xlu0 %v748, 115
      %v1211 = vpop.permute.xlu0 %1210
      %1212 = vrot.lane.b32.xlu0 %v905, 115
      %v1213 = vpop.permute.xlu0 %1212
      %1214 = vrot.lane.b32.xlu0 %v749, 115
      %v1215 = vpop.permute.xlu0 %1214
      %1216 = vrot.lane.b32.xlu0 %v906, 115
      %v1217 = vpop.permute.xlu0 %1216
      %1218 = vrot.lane.b32.xlu0 %v750, 115
      %v1219 = vpop.permute.xlu0 %1218
      %1220 = vrot.lane.b32.xlu0 %v907, 115
      %v1221 = vpop.permute.xlu0 %1220
      %1222 = vrot.lane.b32.xlu0 %v751, 115
      %v1223 = vpop.permute.xlu0 %1222
      %1224 = vrot.lane.b32.xlu0 %v908, 115
      %v1225 = vpop.permute.xlu0 %1224
      %1226 = vrot.lane.b32.xlu0 %v752, 115
      %v1227 = vpop.permute.xlu0 %1226
      %1228 = vrot.lane.b32.xlu0 %v909, 115
      %v1229 = vpop.permute.xlu0 %1228
      %1230 = vrot.lane.b32.xlu0 %v753, 115
      %v1231 = vpop.permute.xlu0 %1230
      %1232 = vrot.lane.b32.xlu0 %v910, 115
      %v1233 = vpop.permute.xlu0 %1232
      %1234 = vrot.lane.b32.xlu0 %v754, 115
      %v1235 = vpop.permute.xlu0 %1234
      %1236 = vrot.lane.b32.xlu0 %v911, 115
      %v1237 = vpop.permute.xlu0 %1236
      %1238 = vrot.lane.b32.xlu0 %v755, 115
      %v1239 = vpop.permute.xlu0 %1238
      %1240 = vrot.lane.b32.xlu0 %v912, 115
      %v1241 = vpop.permute.xlu0 %1240
      %1242 = vrot.lane.b32.xlu0 %v756, 115
      %v1243 = vpop.permute.xlu0 %1242
      %1244 = vrot.lane.b32.xlu0 %v913, 115
      %v1245 = vpop.permute.xlu0 %1244
      %1246 = vrot.lane.b32.xlu0 %v757, 115
      %v1247 = vpop.permute.xlu0 %1246
      %1248 = vrot.lane.b32.xlu0 %v914, 115
      %v1249 = vpop.permute.xlu0 %1248
      %1250 = vrot.lane.b32.xlu0 %v758, 115
      %v1251 = vpop.permute.xlu0 %1250
      %1252 = vrot.lane.b32.xlu0 %v915, 115
      %v1253 = vpop.permute.xlu0 %1252
      %1254 = vrot.lane.b32.xlu0 %v759, 115
      %v1255 = vpop.permute.xlu0 %1254
      %1256 = vrot.lane.b32.xlu0 %v916, 115
      %v1257 = vpop.permute.xlu0 %1256
      %vm1258 = vcmask 941056
      %v1259 = vsel %vm1258, %v1207, %v1209
      %v1260 = vsel %vm1258, %v1211, %v1213
      %v1261 = vsel %vm1258, %v1215, %v1217
      %v1262 = vsel %vm1258, %v1219, %v1221
      %v1263 = vsel %vm1258, %v1223, %v1225
      %v1264 = vsel %vm1258, %v1227, %v1229
      %v1265 = vsel %vm1258, %v1231, %v1233
      %v1266 = vsel %vm1258, %v1235, %v1237
      %v1267 = vsel %vm1258, %v1239, %v1241
      %v1268 = vsel %vm1258, %v1243, %v1245
      %v1269 = vsel %vm1258, %v1247, %v1249
      %v1270 = vsel %vm1258, %v1251, %v1253
      %v1271 = vsel %vm1258, %v1255, %v1257
      %v1274 = vsel %vm983, %v1089, %v1167
      %v1278 = vsel %vm983, %v1091, %v1168
      %v1282 = vsel %vm983, %v1093, %v1169
      %v1286 = vsel %vm983, %v1095, %v1170
      %v1290 = vsel %vm983, %v1097, %v1171
      %v1294 = vsel %vm983, %v1099, %v1172
      %v1298 = vsel %vm983, %v1101, %v1173
      %v1302 = vsel %vm983, %v1103, %v1174
      %v1306 = vsel %vm983, %v1105, %v1175
      %v1310 = vsel %vm983, %v1107, %v1176
      %v1314 = vsel %vm983, %v1109, %v1177
      %v1318 = vsel %vm983, %v1111, %v1178
      %v1322 = vsel %vm983, %v1113, %v1179
      %v1326 = vsel %vm983, %v1181, %v1259
      %v1330 = vsel %vm983, %v1183, %v1260
      %v1334 = vsel %vm983, %v1185, %v1261
      %v1338 = vsel %vm983, %v1187, %v1262
      %v1342 = vsel %vm983, %v1189, %v1263
      %v1346 = vsel %vm983, %v1191, %v1264
      %v1350 = vsel %vm983, %v1193, %v1265
      %v1354 = vsel %vm983, %v1195, %v1266
      %v1358 = vsel %vm983, %v1197, %v1267
      %v1362 = vsel %vm983, %v1199, %v1268
      %v1366 = vsel %vm983, %v1201, %v1269
      %v1370 = vsel %vm983, %v1203, %v1270
      %v1374 = vsel %vm983, %v1205, %v1271
      %1376 = vrot.lane.b32.xlu0 %v708, 126
      %v1377 = vpop.permute.xlu0 %1376
      %1378 = vrot.lane.b32.xlu0 %v709, 126
      %v1379 = vpop.permute.xlu0 %1378
      %1380 = vrot.lane.b32.xlu0 %v710, 126
      %v1381 = vpop.permute.xlu0 %1380
      %1382 = vrot.lane.b32.xlu0 %v711, 126
      %v1383 = vpop.permute.xlu0 %1382
      %1384 = vrot.lane.b32.xlu0 %v712, 126
      %v1385 = vpop.permute.xlu0 %1384
      %1386 = vrot.lane.b32.xlu0 %v713, 126
      %v1387 = vpop.permute.xlu0 %1386
      %1388 = vrot.lane.b32.xlu0 %v714, 126
      %v1389 = vpop.permute.xlu0 %1388
      %1390 = vrot.lane.b32.xlu0 %v715, 126
      %v1391 = vpop.permute.xlu0 %1390
      %1392 = vrot.lane.b32.xlu0 %v716, 126
      %v1393 = vpop.permute.xlu0 %1392
      %1394 = vrot.lane.b32.xlu0 %v717, 126
      %v1395 = vpop.permute.xlu0 %1394
      %1396 = vrot.lane.b32.xlu0 %v718, 126
      %v1397 = vpop.permute.xlu0 %1396
      %1398 = vrot.lane.b32.xlu0 %v719, 126
      %v1399 = vpop.permute.xlu0 %1398
      %1400 = vrot.lane.b32.xlu0 %v720, 126
      %v1401 = vpop.permute.xlu0 %1400
      %1402 = vrot.lane.b32.xlu0 %v708, 122
      %v1403 = vpop.permute.xlu0 %1402
      %1404 = vrot.lane.b32.xlu0 %v747, 122
      %v1405 = vpop.permute.xlu0 %1404
      %1406 = vrot.lane.b32.xlu0 %v709, 122
      %v1407 = vpop.permute.xlu0 %1406
      %1408 = vrot.lane.b32.xlu0 %v748, 122
      %v1409 = vpop.permute.xlu0 %1408
      %1410 = vrot.lane.b32.xlu0 %v710, 122
      %v1411 = vpop.permute.xlu0 %1410
      %1412 = vrot.lane.b32.xlu0 %v749, 122
      %v1413 = vpop.permute.xlu0 %1412
      %1414 = vrot.lane.b32.xlu0 %v711, 122
      %v1415 = vpop.permute.xlu0 %1414
      %1416 = vrot.lane.b32.xlu0 %v750, 122
      %v1417 = vpop.permute.xlu0 %1416
      %1418 = vrot.lane.b32.xlu0 %v712, 122
      %v1419 = vpop.permute.xlu0 %1418
      %1420 = vrot.lane.b32.xlu0 %v751, 122
      %v1421 = vpop.permute.xlu0 %1420
      %1422 = vrot.lane.b32.xlu0 %v713, 122
      %v1423 = vpop.permute.xlu0 %1422
      %1424 = vrot.lane.b32.xlu0 %v752, 122
      %v1425 = vpop.permute.xlu0 %1424
      %1426 = vrot.lane.b32.xlu0 %v714, 122
      %v1427 = vpop.permute.xlu0 %1426
      %1428 = vrot.lane.b32.xlu0 %v753, 122
      %v1429 = vpop.permute.xlu0 %1428
      %1430 = vrot.lane.b32.xlu0 %v715, 122
      %v1431 = vpop.permute.xlu0 %1430
      %1432 = vrot.lane.b32.xlu0 %v754, 122
      %v1433 = vpop.permute.xlu0 %1432
      %1434 = vrot.lane.b32.xlu0 %v716, 122
      %v1435 = vpop.permute.xlu0 %1434
      %1436 = vrot.lane.b32.xlu0 %v755, 122
      %v1437 = vpop.permute.xlu0 %1436
      %1438 = vrot.lane.b32.xlu0 %v717, 122
      %v1439 = vpop.permute.xlu0 %1438
      %1440 = vrot.lane.b32.xlu0 %v756, 122
      %v1441 = vpop.permute.xlu0 %1440
      %1442 = vrot.lane.b32.xlu0 %v718, 122
      %v1443 = vpop.permute.xlu0 %1442
      %1444 = vrot.lane.b32.xlu0 %v757, 122
      %v1445 = vpop.permute.xlu0 %1444
      %1446 = vrot.lane.b32.xlu0 %v719, 122
      %v1447 = vpop.permute.xlu0 %1446
      %1448 = vrot.lane.b32.xlu0 %v758, 122
      %v1449 = vpop.permute.xlu0 %1448
      %1450 = vrot.lane.b32.xlu0 %v720, 122
      %v1451 = vpop.permute.xlu0 %1450
      %1452 = vrot.lane.b32.xlu0 %v759, 122
      %v1453 = vpop.permute.xlu0 %1452
      %vm1454 = vcmask 998400
      %v1455 = vsel %vm1454, %v1403, %v1405
      %v1456 = vsel %vm1454, %v1407, %v1409
      %v1457 = vsel %vm1454, %v1411, %v1413
      %v1458 = vsel %vm1454, %v1415, %v1417
      %v1459 = vsel %vm1454, %v1419, %v1421
      %v1460 = vsel %vm1454, %v1423, %v1425
      %v1461 = vsel %vm1454, %v1427, %v1429
      %v1462 = vsel %vm1454, %v1431, %v1433
      %v1463 = vsel %vm1454, %v1435, %v1437
      %v1464 = vsel %vm1454, %v1439, %v1441
      %v1465 = vsel %vm1454, %v1443, %v1445
      %v1466 = vsel %vm1454, %v1447, %v1449
      %v1467 = vsel %vm1454, %v1451, %v1453
      %1468 = vrot.lane.b32.xlu0 %v747, 118
      %v1469 = vpop.permute.xlu0 %1468
      %1470 = vrot.lane.b32.xlu0 %v748, 118
      %v1471 = vpop.permute.xlu0 %1470
      %1472 = vrot.lane.b32.xlu0 %v749, 118
      %v1473 = vpop.permute.xlu0 %1472
      %1474 = vrot.lane.b32.xlu0 %v750, 118
      %v1475 = vpop.permute.xlu0 %1474
      %1476 = vrot.lane.b32.xlu0 %v751, 118
      %v1477 = vpop.permute.xlu0 %1476
      %1478 = vrot.lane.b32.xlu0 %v752, 118
      %v1479 = vpop.permute.xlu0 %1478
      %1480 = vrot.lane.b32.xlu0 %v753, 118
      %v1481 = vpop.permute.xlu0 %1480
      %1482 = vrot.lane.b32.xlu0 %v754, 118
      %v1483 = vpop.permute.xlu0 %1482
      %1484 = vrot.lane.b32.xlu0 %v755, 118
      %v1485 = vpop.permute.xlu0 %1484
      %1486 = vrot.lane.b32.xlu0 %v756, 118
      %v1487 = vpop.permute.xlu0 %1486
      %1488 = vrot.lane.b32.xlu0 %v757, 118
      %v1489 = vpop.permute.xlu0 %1488
      %1490 = vrot.lane.b32.xlu0 %v758, 118
      %v1491 = vpop.permute.xlu0 %1490
      %1492 = vrot.lane.b32.xlu0 %v759, 118
      %v1493 = vpop.permute.xlu0 %1492
      %1494 = vrot.lane.b32.xlu0 %v747, 114
      %v1495 = vpop.permute.xlu0 %1494
      %1496 = vrot.lane.b32.xlu0 %v904, 114
      %v1497 = vpop.permute.xlu0 %1496
      %1498 = vrot.lane.b32.xlu0 %v748, 114
      %v1499 = vpop.permute.xlu0 %1498
      %1500 = vrot.lane.b32.xlu0 %v905, 114
      %v1501 = vpop.permute.xlu0 %1500
      %1502 = vrot.lane.b32.xlu0 %v749, 114
      %v1503 = vpop.permute.xlu0 %1502
      %1504 = vrot.lane.b32.xlu0 %v906, 114
      %v1505 = vpop.permute.xlu0 %1504
      %1506 = vrot.lane.b32.xlu0 %v750, 114
      %v1507 = vpop.permute.xlu0 %1506
      %1508 = vrot.lane.b32.xlu0 %v907, 114
      %v1509 = vpop.permute.xlu0 %1508
      %1510 = vrot.lane.b32.xlu0 %v751, 114
      %v1511 = vpop.permute.xlu0 %1510
      %1512 = vrot.lane.b32.xlu0 %v908, 114
      %v1513 = vpop.permute.xlu0 %1512
      %1514 = vrot.lane.b32.xlu0 %v752, 114
      %v1515 = vpop.permute.xlu0 %1514
      %1516 = vrot.lane.b32.xlu0 %v909, 114
      %v1517 = vpop.permute.xlu0 %1516
      %1518 = vrot.lane.b32.xlu0 %v753, 114
      %v1519 = vpop.permute.xlu0 %1518
      %1520 = vrot.lane.b32.xlu0 %v910, 114
      %v1521 = vpop.permute.xlu0 %1520
      %1522 = vrot.lane.b32.xlu0 %v754, 114
      %v1523 = vpop.permute.xlu0 %1522
      %1524 = vrot.lane.b32.xlu0 %v911, 114
      %v1525 = vpop.permute.xlu0 %1524
      %1526 = vrot.lane.b32.xlu0 %v755, 114
      %v1527 = vpop.permute.xlu0 %1526
      %1528 = vrot.lane.b32.xlu0 %v912, 114
      %v1529 = vpop.permute.xlu0 %1528
      %1530 = vrot.lane.b32.xlu0 %v756, 114
      %v1531 = vpop.permute.xlu0 %1530
      %1532 = vrot.lane.b32.xlu0 %v913, 114
      %v1533 = vpop.permute.xlu0 %1532
      %1534 = vrot.lane.b32.xlu0 %v757, 114
      %v1535 = vpop.permute.xlu0 %1534
      %1536 = vrot.lane.b32.xlu0 %v914, 114
      %v1537 = vpop.permute.xlu0 %1536
      %1538 = vrot.lane.b32.xlu0 %v758, 114
      %v1539 = vpop.permute.xlu0 %1538
      %1540 = vrot.lane.b32.xlu0 %v915, 114
      %v1541 = vpop.permute.xlu0 %1540
      %1542 = vrot.lane.b32.xlu0 %v759, 114
      %v1543 = vpop.permute.xlu0 %1542
      %1544 = vrot.lane.b32.xlu0 %v916, 114
      %v1545 = vpop.permute.xlu0 %1544
      %vm1546 = vcmask 932864
      %v1547 = vsel %vm1546, %v1495, %v1497
      %v1548 = vsel %vm1546, %v1499, %v1501
      %v1549 = vsel %vm1546, %v1503, %v1505
      %v1550 = vsel %vm1546, %v1507, %v1509
      %v1551 = vsel %vm1546, %v1511, %v1513
      %v1552 = vsel %vm1546, %v1515, %v1517
      %v1553 = vsel %vm1546, %v1519, %v1521
      %v1554 = vsel %vm1546, %v1523, %v1525
      %v1555 = vsel %vm1546, %v1527, %v1529
      %v1556 = vsel %vm1546, %v1531, %v1533
      %v1557 = vsel %vm1546, %v1535, %v1537
      %v1558 = vsel %vm1546, %v1539, %v1541
      %v1559 = vsel %vm1546, %v1543, %v1545
      %v1562 = vsel %vm983, %v1377, %v1455
      %v1566 = vsel %vm983, %v1379, %v1456
      %v1570 = vsel %vm983, %v1381, %v1457
      %v1574 = vsel %vm983, %v1383, %v1458
      %v1578 = vsel %vm983, %v1385, %v1459
      %v1582 = vsel %vm983, %v1387, %v1460
      %v1586 = vsel %vm983, %v1389, %v1461
      %v1590 = vsel %vm983, %v1391, %v1462
      %v1594 = vsel %vm983, %v1393, %v1463
      %v1598 = vsel %vm983, %v1395, %v1464
      %v1602 = vsel %vm983, %v1397, %v1465
      %v1606 = vsel %vm983, %v1399, %v1466
      %v1610 = vsel %vm983, %v1401, %v1467
      %v1614 = vsel %vm983, %v1469, %v1547
      %v1618 = vsel %vm983, %v1471, %v1548
      %v1622 = vsel %vm983, %v1473, %v1549
      %v1626 = vsel %vm983, %v1475, %v1550
      %v1630 = vsel %vm983, %v1477, %v1551
      %v1634 = vsel %vm983, %v1479, %v1552
      %v1638 = vsel %vm983, %v1481, %v1553
      %v1642 = vsel %vm983, %v1483, %v1554
      %v1646 = vsel %vm983, %v1485, %v1555
      %v1650 = vsel %vm983, %v1487, %v1556
      %v1654 = vsel %vm983, %v1489, %v1557
      %v1658 = vsel %vm983, %v1491, %v1558
      %v1662 = vsel %vm983, %v1493, %v1559
      %1664 = vrot.lane.b32.xlu0 %v708, 125
      %v1665 = vpop.permute.xlu0 %1664
      %1666 = vrot.lane.b32.xlu0 %v709, 125
      %v1667 = vpop.permute.xlu0 %1666
      %1668 = vrot.lane.b32.xlu0 %v710, 125
      %v1669 = vpop.permute.xlu0 %1668
      %1670 = vrot.lane.b32.xlu0 %v711, 125
      %v1671 = vpop.permute.xlu0 %1670
      %1672 = vrot.lane.b32.xlu0 %v712, 125
      %v1673 = vpop.permute.xlu0 %1672
      %1674 = vrot.lane.b32.xlu0 %v713, 125
      %v1675 = vpop.permute.xlu0 %1674
      %1676 = vrot.lane.b32.xlu0 %v714, 125
      %v1677 = vpop.permute.xlu0 %1676
      %1678 = vrot.lane.b32.xlu0 %v715, 125
      %v1679 = vpop.permute.xlu0 %1678
      %1680 = vrot.lane.b32.xlu0 %v716, 125
      %v1681 = vpop.permute.xlu0 %1680
      %1682 = vrot.lane.b32.xlu0 %v717, 125
      %v1683 = vpop.permute.xlu0 %1682
      %1684 = vrot.lane.b32.xlu0 %v718, 125
      %v1685 = vpop.permute.xlu0 %1684
      %1686 = vrot.lane.b32.xlu0 %v719, 125
      %v1687 = vpop.permute.xlu0 %1686
      %1688 = vrot.lane.b32.xlu0 %v720, 125
      %v1689 = vpop.permute.xlu0 %1688
      %1690 = vrot.lane.b32.xlu0 %v708, 121
      %v1691 = vpop.permute.xlu0 %1690
      %1692 = vrot.lane.b32.xlu0 %v747, 121
      %v1693 = vpop.permute.xlu0 %1692
      %1694 = vrot.lane.b32.xlu0 %v709, 121
      %v1695 = vpop.permute.xlu0 %1694
      %1696 = vrot.lane.b32.xlu0 %v748, 121
      %v1697 = vpop.permute.xlu0 %1696
      %1698 = vrot.lane.b32.xlu0 %v710, 121
      %v1699 = vpop.permute.xlu0 %1698
      %1700 = vrot.lane.b32.xlu0 %v749, 121
      %v1701 = vpop.permute.xlu0 %1700
      %1702 = vrot.lane.b32.xlu0 %v711, 121
      %v1703 = vpop.permute.xlu0 %1702
      %1704 = vrot.lane.b32.xlu0 %v750, 121
      %v1705 = vpop.permute.xlu0 %1704
      %1706 = vrot.lane.b32.xlu0 %v712, 121
      %v1707 = vpop.permute.xlu0 %1706
      %1708 = vrot.lane.b32.xlu0 %v751, 121
      %v1709 = vpop.permute.xlu0 %1708
      %1710 = vrot.lane.b32.xlu0 %v713, 121
      %v1711 = vpop.permute.xlu0 %1710
      %1712 = vrot.lane.b32.xlu0 %v752, 121
      %v1713 = vpop.permute.xlu0 %1712
      %1714 = vrot.lane.b32.xlu0 %v714, 121
      %v1715 = vpop.permute.xlu0 %1714
      %1716 = vrot.lane.b32.xlu0 %v753, 121
      %v1717 = vpop.permute.xlu0 %1716
      %1718 = vrot.lane.b32.xlu0 %v715, 121
      %v1719 = vpop.permute.xlu0 %1718
      %1720 = vrot.lane.b32.xlu0 %v754, 121
      %v1721 = vpop.permute.xlu0 %1720
      %1722 = vrot.lane.b32.xlu0 %v716, 121
      %v1723 = vpop.permute.xlu0 %1722
      %1724 = vrot.lane.b32.xlu0 %v755, 121
      %v1725 = vpop.permute.xlu0 %1724
      %1726 = vrot.lane.b32.xlu0 %v717, 121
      %v1727 = vpop.permute.xlu0 %1726
      %1728 = vrot.lane.b32.xlu0 %v756, 121
      %v1729 = vpop.permute.xlu0 %1728
      %1730 = vrot.lane.b32.xlu0 %v718, 121
      %v1731 = vpop.permute.xlu0 %1730
      %1732 = vrot.lane.b32.xlu0 %v757, 121
      %v1733 = vpop.permute.xlu0 %1732
      %1734 = vrot.lane.b32.xlu0 %v719, 121
      %v1735 = vpop.permute.xlu0 %1734
      %1736 = vrot.lane.b32.xlu0 %v758, 121
      %v1737 = vpop.permute.xlu0 %1736
      %1738 = vrot.lane.b32.xlu0 %v720, 121
      %v1739 = vpop.permute.xlu0 %1738
      %1740 = vrot.lane.b32.xlu0 %v759, 121
      %v1741 = vpop.permute.xlu0 %1740
      %vm1742 = vcmask 990208
      %v1743 = vsel %vm1742, %v1691, %v1693
      %v1744 = vsel %vm1742, %v1695, %v1697
      %v1745 = vsel %vm1742, %v1699, %v1701
      %v1746 = vsel %vm1742, %v1703, %v1705
      %v1747 = vsel %vm1742, %v1707, %v1709
      %v1748 = vsel %vm1742, %v1711, %v1713
      %v1749 = vsel %vm1742, %v1715, %v1717
      %v1750 = vsel %vm1742, %v1719, %v1721
      %v1751 = vsel %vm1742, %v1723, %v1725
      %v1752 = vsel %vm1742, %v1727, %v1729
      %v1753 = vsel %vm1742, %v1731, %v1733
      %v1754 = vsel %vm1742, %v1735, %v1737
      %v1755 = vsel %vm1742, %v1739, %v1741
      %1756 = vrot.lane.b32.xlu0 %v747, 117
      %v1757 = vpop.permute.xlu0 %1756
      %1758 = vrot.lane.b32.xlu0 %v748, 117
      %v1759 = vpop.permute.xlu0 %1758
      %1760 = vrot.lane.b32.xlu0 %v749, 117
      %v1761 = vpop.permute.xlu0 %1760
      %1762 = vrot.lane.b32.xlu0 %v750, 117
      %v1763 = vpop.permute.xlu0 %1762
      %1764 = vrot.lane.b32.xlu0 %v751, 117
      %v1765 = vpop.permute.xlu0 %1764
      %1766 = vrot.lane.b32.xlu0 %v752, 117
      %v1767 = vpop.permute.xlu0 %1766
      %1768 = vrot.lane.b32.xlu0 %v753, 117
      %v1769 = vpop.permute.xlu0 %1768
      %1770 = vrot.lane.b32.xlu0 %v754, 117
      %v1771 = vpop.permute.xlu0 %1770
      %1772 = vrot.lane.b32.xlu0 %v755, 117
      %v1773 = vpop.permute.xlu0 %1772
      %1774 = vrot.lane.b32.xlu0 %v756, 117
      %v1775 = vpop.permute.xlu0 %1774
      %1776 = vrot.lane.b32.xlu0 %v757, 117
      %v1777 = vpop.permute.xlu0 %1776
      %1778 = vrot.lane.b32.xlu0 %v758, 117
      %v1779 = vpop.permute.xlu0 %1778
      %1780 = vrot.lane.b32.xlu0 %v759, 117
      %v1781 = vpop.permute.xlu0 %1780
      %1782 = vrot.lane.b32.xlu0 %v747, 113
      %v1783 = vpop.permute.xlu0 %1782
      %1784 = vrot.lane.b32.xlu0 %v904, 113
      %v1785 = vpop.permute.xlu0 %1784
      %1786 = vrot.lane.b32.xlu0 %v748, 113
      %v1787 = vpop.permute.xlu0 %1786
      %1788 = vrot.lane.b32.xlu0 %v905, 113
      %v1789 = vpop.permute.xlu0 %1788
      %1790 = vrot.lane.b32.xlu0 %v749, 113
      %v1791 = vpop.permute.xlu0 %1790
      %1792 = vrot.lane.b32.xlu0 %v906, 113
      %v1793 = vpop.permute.xlu0 %1792
      %1794 = vrot.lane.b32.xlu0 %v750, 113
      %v1795 = vpop.permute.xlu0 %1794
      %1796 = vrot.lane.b32.xlu0 %v907, 113
      %v1797 = vpop.permute.xlu0 %1796
      %1798 = vrot.lane.b32.xlu0 %v751, 113
      %v1799 = vpop.permute.xlu0 %1798
      %1800 = vrot.lane.b32.xlu0 %v908, 113
      %v1801 = vpop.permute.xlu0 %1800
      %1802 = vrot.lane.b32.xlu0 %v752, 113
      %v1803 = vpop.permute.xlu0 %1802
      %1804 = vrot.lane.b32.xlu0 %v909, 113
      %v1805 = vpop.permute.xlu0 %1804
      %1806 = vrot.lane.b32.xlu0 %v753, 113
      %v1807 = vpop.permute.xlu0 %1806
      %1808 = vrot.lane.b32.xlu0 %v910, 113
      %v1809 = vpop.permute.xlu0 %1808
      %1810 = vrot.lane.b32.xlu0 %v754, 113
      %v1811 = vpop.permute.xlu0 %1810
      %1812 = vrot.lane.b32.xlu0 %v911, 113
      %v1813 = vpop.permute.xlu0 %1812
      %1814 = vrot.lane.b32.xlu0 %v755, 113
      %v1815 = vpop.permute.xlu0 %1814
      %1816 = vrot.lane.b32.xlu0 %v912, 113
      %v1817 = vpop.permute.xlu0 %1816
      %1818 = vrot.lane.b32.xlu0 %v756, 113
      %v1819 = vpop.permute.xlu0 %1818
      %1820 = vrot.lane.b32.xlu0 %v913, 113
      %v1821 = vpop.permute.xlu0 %1820
      %1822 = vrot.lane.b32.xlu0 %v757, 113
      %v1823 = vpop.permute.xlu0 %1822
      %1824 = vrot.lane.b32.xlu0 %v914, 113
      %v1825 = vpop.permute.xlu0 %1824
      %1826 = vrot.lane.b32.xlu0 %v758, 113
      %v1827 = vpop.permute.xlu0 %1826
      %1828 = vrot.lane.b32.xlu0 %v915, 113
      %v1829 = vpop.permute.xlu0 %1828
      %1830 = vrot.lane.b32.xlu0 %v759, 113
      %v1831 = vpop.permute.xlu0 %1830
      %1832 = vrot.lane.b32.xlu0 %v916, 113
      %v1833 = vpop.permute.xlu0 %1832
      %vm1834 = vcmask 924672
      %v1835 = vsel %vm1834, %v1783, %v1785
      %v1836 = vsel %vm1834, %v1787, %v1789
      %v1837 = vsel %vm1834, %v1791, %v1793
      %v1838 = vsel %vm1834, %v1795, %v1797
      %v1839 = vsel %vm1834, %v1799, %v1801
      %v1840 = vsel %vm1834, %v1803, %v1805
      %v1841 = vsel %vm1834, %v1807, %v1809
      %v1842 = vsel %vm1834, %v1811, %v1813
      %v1843 = vsel %vm1834, %v1815, %v1817
      %v1844 = vsel %vm1834, %v1819, %v1821
      %v1845 = vsel %vm1834, %v1823, %v1825
      %v1846 = vsel %vm1834, %v1827, %v1829
      %v1847 = vsel %vm1834, %v1831, %v1833
      %v1850 = vsel %vm983, %v1665, %v1743
      %v1854 = vsel %vm983, %v1667, %v1744
      %v1858 = vsel %vm983, %v1669, %v1745
      %v1862 = vsel %vm983, %v1671, %v1746
      %v1866 = vsel %vm983, %v1673, %v1747
      %v1870 = vsel %vm983, %v1675, %v1748
      %v1874 = vsel %vm983, %v1677, %v1749
      %v1878 = vsel %vm983, %v1679, %v1750
      %v1882 = vsel %vm983, %v1681, %v1751
      %v1886 = vsel %vm983, %v1683, %v1752
      %v1890 = vsel %vm983, %v1685, %v1753
      %v1894 = vsel %vm983, %v1687, %v1754
      %v1898 = vsel %vm983, %v1689, %v1755
      %v1902 = vsel %vm983, %v1757, %v1835
      %v1906 = vsel %vm983, %v1759, %v1836
      %v1910 = vsel %vm983, %v1761, %v1837
      %v1914 = vsel %vm983, %v1763, %v1838
      %v1918 = vsel %vm983, %v1765, %v1839
      %v1922 = vsel %vm983, %v1767, %v1840
      %v1926 = vsel %vm983, %v1769, %v1841
      %v1930 = vsel %vm983, %v1771, %v1842
      %v1934 = vsel %vm983, %v1773, %v1843
      %v1938 = vsel %vm983, %v1775, %v1844
      %v1942 = vsel %vm983, %v1777, %v1845
      %v1946 = vsel %vm983, %v1779, %v1846
      %v1950 = vsel %vm983, %v1781, %v1847
      %1952 = vrot.lane.b32.xlu0 %v708, 120
      %v1953 = vpop.permute.xlu0 %1952
      %1954 = vrot.lane.b32.xlu0 %v709, 120
      %v1955 = vpop.permute.xlu0 %1954
      %1956 = vrot.lane.b32.xlu0 %v710, 120
      %v1957 = vpop.permute.xlu0 %1956
      %1958 = vrot.lane.b32.xlu0 %v711, 120
      %v1959 = vpop.permute.xlu0 %1958
      %1960 = vrot.lane.b32.xlu0 %v712, 120
      %v1961 = vpop.permute.xlu0 %1960
      %1962 = vrot.lane.b32.xlu0 %v713, 120
      %v1963 = vpop.permute.xlu0 %1962
      %1964 = vrot.lane.b32.xlu0 %v714, 120
      %v1965 = vpop.permute.xlu0 %1964
      %1966 = vrot.lane.b32.xlu0 %v715, 120
      %v1967 = vpop.permute.xlu0 %1966
      %1968 = vrot.lane.b32.xlu0 %v716, 120
      %v1969 = vpop.permute.xlu0 %1968
      %1970 = vrot.lane.b32.xlu0 %v717, 120
      %v1971 = vpop.permute.xlu0 %1970
      %1972 = vrot.lane.b32.xlu0 %v718, 120
      %v1973 = vpop.permute.xlu0 %1972
      %1974 = vrot.lane.b32.xlu0 %v719, 120
      %v1975 = vpop.permute.xlu0 %1974
      %1976 = vrot.lane.b32.xlu0 %v720, 120
      %v1977 = vpop.permute.xlu0 %1976
      %vm1978 = vcmask 982016
      %v1979 = vsel %vm1978, %v1953, %v827
      %v1980 = vsel %vm1978, %v1955, %v829
      %v1981 = vsel %vm1978, %v1957, %v831
      %v1982 = vsel %vm1978, %v1959, %v833
      %v1983 = vsel %vm1978, %v1961, %v835
      %v1984 = vsel %vm1978, %v1963, %v837
      %v1985 = vsel %vm1978, %v1965, %v839
      %v1986 = vsel %vm1978, %v1967, %v841
      %v1987 = vsel %vm1978, %v1969, %v843
      %v1988 = vsel %vm1978, %v1971, %v845
      %v1989 = vsel %vm1978, %v1973, %v847
      %v1990 = vsel %vm1978, %v1975, %v849
      %v1991 = vsel %vm1978, %v1977, %v851
      %1992 = vrot.lane.b32.xlu0 %v747, 112
      %v1993 = vpop.permute.xlu0 %1992
      %1994 = vrot.lane.b32.xlu0 %v904, 112
      %v1995 = vpop.permute.xlu0 %1994
      %1996 = vrot.lane.b32.xlu0 %v748, 112
      %v1997 = vpop.permute.xlu0 %1996
      %1998 = vrot.lane.b32.xlu0 %v905, 112
      %v1999 = vpop.permute.xlu0 %1998
      %2000 = vrot.lane.b32.xlu0 %v749, 112
      %v2001 = vpop.permute.xlu0 %2000
      %2002 = vrot.lane.b32.xlu0 %v906, 112
      %v2003 = vpop.permute.xlu0 %2002
      %2004 = vrot.lane.b32.xlu0 %v750, 112
      %v2005 = vpop.permute.xlu0 %2004
      %2006 = vrot.lane.b32.xlu0 %v907, 112
      %v2007 = vpop.permute.xlu0 %2006
      %2008 = vrot.lane.b32.xlu0 %v751, 112
      %v2009 = vpop.permute.xlu0 %2008
      %2010 = vrot.lane.b32.xlu0 %v908, 112
      %v2011 = vpop.permute.xlu0 %2010
      %2012 = vrot.lane.b32.xlu0 %v752, 112
      %v2013 = vpop.permute.xlu0 %2012
      %2014 = vrot.lane.b32.xlu0 %v909, 112
      %v2015 = vpop.permute.xlu0 %2014
      %2016 = vrot.lane.b32.xlu0 %v753, 112
      %v2017 = vpop.permute.xlu0 %2016
      %2018 = vrot.lane.b32.xlu0 %v910, 112
      %v2019 = vpop.permute.xlu0 %2018
      %2020 = vrot.lane.b32.xlu0 %v754, 112
      %v2021 = vpop.permute.xlu0 %2020
      %2022 = vrot.lane.b32.xlu0 %v911, 112
      %v2023 = vpop.permute.xlu0 %2022
      %2024 = vrot.lane.b32.xlu0 %v755, 112
      %v2025 = vpop.permute.xlu0 %2024
      %2026 = vrot.lane.b32.xlu0 %v912, 112
      %v2027 = vpop.permute.xlu0 %2026
      %2028 = vrot.lane.b32.xlu0 %v756, 112
      %v2029 = vpop.permute.xlu0 %2028
      %2030 = vrot.lane.b32.xlu0 %v913, 112
      %v2031 = vpop.permute.xlu0 %2030
      %2032 = vrot.lane.b32.xlu0 %v757, 112
      %v2033 = vpop.permute.xlu0 %2032
      %2034 = vrot.lane.b32.xlu0 %v914, 112
      %v2035 = vpop.permute.xlu0 %2034
      %2036 = vrot.lane.b32.xlu0 %v758, 112
      %v2037 = vpop.permute.xlu0 %2036
      %2038 = vrot.lane.b32.xlu0 %v915, 112
      %v2039 = vpop.permute.xlu0 %2038
      %2040 = vrot.lane.b32.xlu0 %v759, 112
      %v2041 = vpop.permute.xlu0 %2040
      %2042 = vrot.lane.b32.xlu0 %v916, 112
      %v2043 = vpop.permute.xlu0 %2042
      %vm2044 = vcmask 916480
      %v2045 = vsel %vm2044, %v1993, %v1995
      %v2046 = vsel %vm2044, %v1997, %v1999
      %v2047 = vsel %vm2044, %v2001, %v2003
      %v2048 = vsel %vm2044, %v2005, %v2007
      %v2049 = vsel %vm2044, %v2009, %v2011
      %v2050 = vsel %vm2044, %v2013, %v2015
      %v2051 = vsel %vm2044, %v2017, %v2019
      %v2052 = vsel %vm2044, %v2021, %v2023
      %v2053 = vsel %vm2044, %v2025, %v2027
      %v2054 = vsel %vm2044, %v2029, %v2031
      %v2055 = vsel %vm2044, %v2033, %v2035
      %v2056 = vsel %vm2044, %v2037, %v2039
      %v2057 = vsel %vm2044, %v2041, %v2043
      %v2060 = vsel %vm983, %v761, %v1979
      %v2064 = vsel %vm983, %v765, %v1980
      %v2068 = vsel %vm983, %v769, %v1981
      %v2072 = vsel %vm983, %v773, %v1982
      %v2076 = vsel %vm983, %v777, %v1983
      %v2080 = vsel %vm983, %v781, %v1984
      %v2084 = vsel %vm983, %v785, %v1985
      %v2088 = vsel %vm983, %v789, %v1986
      %v2092 = vsel %vm983, %v793, %v1987
      %v2096 = vsel %vm983, %v797, %v1988
      %v2100 = vsel %vm983, %v801, %v1989
      %v2104 = vsel %vm983, %v805, %v1990
      %v2108 = vsel %vm983, %v809, %v1991
      %v2112 = vsel %vm983, %v918, %v2045
      %v2116 = vsel %vm983, %v922, %v2046
      %v2120 = vsel %vm983, %v926, %v2047
      %v2124 = vsel %vm983, %v930, %v2048
      %v2128 = vsel %vm983, %v934, %v2049
      %v2132 = vsel %vm983, %v938, %v2050
      %v2136 = vsel %vm983, %v942, %v2051
      %v2140 = vsel %vm983, %v946, %v2052
      %v2144 = vsel %vm983, %v950, %v2053
      %v2148 = vsel %vm983, %v954, %v2054
      %v2152 = vsel %vm983, %v958, %v2055
      %v2156 = vsel %vm983, %v962, %v2056
      %v2160 = vsel %vm983, %v966, %v2057
      %v2162 = vld [vmem:[%s1] sm:$0xff]
      %v2163 = vld [vmem:[%s1 + $0x8] sm:$0xff]
      %v2164 = vld [vmem:[%s1 + $0x10] sm:$0xff]
      %v2165 = vld [vmem:[%s1 + $0x18] sm:$0xff]
      %v2166 = vld [vmem:[%s1 + $0x20] sm:$0xf]
      %v2167 = vld [vmem:[%s1 + $0x24] sm:$0xff]
      %v2168 = vld [vmem:[%s1 + $0x2c] sm:$0xff]
      %v2169 = vld [vmem:[%s1 + $0x34] sm:$0xff]
      %v2170 = vld [vmem:[%s1 + $0x3c] sm:$0xff]
      %v2171 = vld [vmem:[%s1 + $0x44] sm:$0xf]
      %v2172 = vld [vmem:[%s1 + $0x48] sm:$0xff]
      %v2173 = vld [vmem:[%s1 + $0x50] sm:$0xff]
      %v2174 = vld [vmem:[%s1 + $0x58] sm:$0xff]
      %v2175 = vld [vmem:[%s1 + $0x60] sm:$0xff]
      %v2176 = vld [vmem:[%s1 + $0x68] sm:$0xf]
      %v2177 = vld [vmem:[%s1 + $0x6c] sm:$0xff]
      %v2178 = vld [vmem:[%s1 + $0x74] sm:$0xff]
      %v2179 = vld [vmem:[%s1 + $0x7c] sm:$0xff]
      %v2180 = vld [vmem:[%s1 + $0x84] sm:$0xff]
      %v2181 = vld [vmem:[%s1 + $0x8c] sm:$0xf]
      %v2182 = vld [vmem:[%s1 + $0x90] sm:$0xff]
      %v2183 = vld [vmem:[%s1 + $0x98] sm:$0xff]
      %v2184 = vld [vmem:[%s1 + $0xa0] sm:$0xff]
      %v2185 = vld [vmem:[%s1 + $0xa8] sm:$0xff]
      %v2186 = vld [vmem:[%s1 + $0xb0] sm:$0xf]
      %v2187 = vld [vmem:[%s1 + $0xb4] sm:$0xff]
      %v2188 = vld [vmem:[%s1 + $0xbc] sm:$0xff]
      %v2189 = vld [vmem:[%s1 + $0xc4] sm:$0xff]
      %v2190 = vld [vmem:[%s1 + $0xcc] sm:$0xff]
      %v2191 = vld [vmem:[%s1 + $0xd4] sm:$0xf]
      %v2192 = vld [vmem:[%s1 + $0xd8] sm:$0xff]
      %v2193 = vld [vmem:[%s1 + $0xe0] sm:$0xff]
      %v2194 = vld [vmem:[%s1 + $0xe8] sm:$0xff]
      %v2195 = vld [vmem:[%s1 + $0xf0] sm:$0xff]
      %v2196 = vld [vmem:[%s1 + $0xf8] sm:$0xf]
      %v2197 = vld [vmem:[%s1 + $0xfc] sm:$0xff]
      %v2198 = vld [vmem:[%s1 + $0x104] sm:$0xff]
      %v2199 = vld [vmem:[%s1 + $0x10c] sm:$0xff]
      %v2200 = vld [vmem:[%s1 + $0x114] sm:$0xff]
      %v2201 = vld [vmem:[%s1 + $0x11c] sm:$0xf]
      %v2202 = vld [vmem:[%s1 + $0x120] sm:$0xff]
      %v2203 = vld [vmem:[%s1 + $0x128] sm:$0xff]
      %v2204 = vld [vmem:[%s1 + $0x130] sm:$0xff]
      %v2205 = vld [vmem:[%s1 + $0x138] sm:$0xff]
      %v2206 = vld [vmem:[%s1 + $0x140] sm:$0xf]
      %v2207 = vld [vmem:[%s1 + $0x144] sm:$0xff]
      %v2208 = vld [vmem:[%s1 + $0x14c] sm:$0xff]
      %v2209 = vld [vmem:[%s1 + $0x154] sm:$0xff]
      %v2210 = vld [vmem:[%s1 + $0x15c] sm:$0xff]
      %v2211 = vld [vmem:[%s1 + $0x164] sm:$0xf]
      %v2212 = vld [vmem:[%s1 + $0x168] sm:$0xff]
      %v2213 = vld [vmem:[%s1 + $0x170] sm:$0xff]
      %v2214 = vld [vmem:[%s1 + $0x178] sm:$0xff]
      %v2215 = vld [vmem:[%s1 + $0x180] sm:$0xff]
      %v2216 = vld [vmem:[%s1 + $0x188] sm:$0xf]
      %v2217 = vld [vmem:[%s1 + $0x18c] sm:$0xff]
      %v2218 = vld [vmem:[%s1 + $0x194] sm:$0xff]
      %v2219 = vld [vmem:[%s1 + $0x19c] sm:$0xff]
      %v2220 = vld [vmem:[%s1 + $0x1a4] sm:$0xff]
      %v2221 = vld [vmem:[%s1 + $0x1ac] sm:$0xf]
      %v2222 = vld [vmem:[%s1 + $0x1b0] sm:$0xff]
      %v2223 = vld [vmem:[%s1 + $0x1b8] sm:$0xff]
      %v2224 = vld [vmem:[%s1 + $0x1c0] sm:$0xff]
      %v2225 = vld [vmem:[%s1 + $0x1c8] sm:$0xff]
      %v2226 = vld [vmem:[%s1 + $0x1d0] sm:$0xf]
      %v2227 = vld [vmem:[%s1 + $0x1d4] sm:$0xff]
      %v2228 = vld [vmem:[%s1 + $0x1dc] sm:$0xff]
      %v2229 = vld [vmem:[%s1 + $0x1e4] sm:$0xff]
      %v2230 = vld [vmem:[%s1 + $0x1ec] sm:$0xff]
      %v2231 = vld [vmem:[%s1 + $0x1f4] sm:$0xf]
      %v2232 = vld [vmem:[%s1 + $0x1f8] sm:$0xff]
      %v2233 = vld [vmem:[%s1 + $0x200] sm:$0xff]
      %v2234 = vld [vmem:[%s1 + $0x208] sm:$0xff]
      %v2235 = vld [vmem:[%s1 + $0x210] sm:$0xff]
      %v2236 = vld [vmem:[%s1 + $0x218] sm:$0xf]
      %v2237 = vld [vmem:[%s1 + $0x21c] sm:$0xff]
      %v2238 = vld [vmem:[%s1 + $0x224] sm:$0xff]
      %v2239 = vld [vmem:[%s1 + $0x22c] sm:$0xff]
      %v2240 = vld [vmem:[%s1 + $0x234] sm:$0xff]
      %v2241 = vld [vmem:[%s1 + $0x23c] sm:$0xf]
      %v2242 = vld [vmem:[%s1 + $0x240] sm:$0xff]
      %v2243 = vld [vmem:[%s1 + $0x248] sm:$0xff]
      %v2244 = vld [vmem:[%s1 + $0x250] sm:$0xff]
      %v2245 = vld [vmem:[%s1 + $0x258] sm:$0xff]
      %v2246 = vld [vmem:[%s1 + $0x260] sm:$0xf]
      %v2247 = vld [vmem:[%s1 + $0x264] sm:$0xff]
      %v2248 = vld [vmem:[%s1 + $0x26c] sm:$0xff]
      %v2249 = vld [vmem:[%s1 + $0x274] sm:$0xff]
      %v2250 = vld [vmem:[%s1 + $0x27c] sm:$0xff]
      %v2251 = vld [vmem:[%s1 + $0x284] sm:$0xf]
      %v2252 = vld [vmem:[%s1 + $0x288] sm:$0xff]
      %v2253 = vld [vmem:[%s1 + $0x290] sm:$0xff]
      %v2254 = vld [vmem:[%s1 + $0x298] sm:$0xff]
      %v2255 = vld [vmem:[%s1 + $0x2a0] sm:$0xff]
      %v2256 = vld [vmem:[%s1 + $0x2a8] sm:$0xf]
      %v2257 = vld [vmem:[%s1 + $0x2ac] sm:$0xff]
      %v2258 = vld [vmem:[%s1 + $0x2b4] sm:$0xff]
      %v2259 = vld [vmem:[%s1 + $0x2bc] sm:$0xff]
      %v2260 = vld [vmem:[%s1 + $0x2c4] sm:$0xff]
      %v2261 = vld [vmem:[%s1 + $0x2cc] sm:$0xf]
      %v2262 = vld [vmem:[%s1 + $0x2d0] sm:$0xff]
      %v2263 = vld [vmem:[%s1 + $0x2d8] sm:$0xff]
      %v2264 = vld [vmem:[%s1 + $0x2e0] sm:$0xff]
      %v2265 = vld [vmem:[%s1 + $0x2e8] sm:$0xff]
      %v2266 = vld [vmem:[%s1 + $0x2f0] sm:$0xf]
      %v2267 = vld [vmem:[%s1 + $0x2f4] sm:$0xff]
      %v2268 = vld [vmem:[%s1 + $0x2fc] sm:$0xff]
      %v2269 = vld [vmem:[%s1 + $0x304] sm:$0xff]
      %v2270 = vld [vmem:[%s1 + $0x30c] sm:$0xff]
      %v2271 = vld [vmem:[%s1 + $0x314] sm:$0xf]
      %v2272 = vld [vmem:[%s1 + $0x318] sm:$0xff]
      %v2273 = vld [vmem:[%s1 + $0x320] sm:$0xff]
      %v2274 = vld [vmem:[%s1 + $0x328] sm:$0xff]
      %v2275 = vld [vmem:[%s1 + $0x330] sm:$0xff]
      %v2276 = vld [vmem:[%s1 + $0x338] sm:$0xf]
      %v2277 = vld [vmem:[%s1 + $0x33c] sm:$0xff]
      %v2278 = vld [vmem:[%s1 + $0x344] sm:$0xff]
      %v2279 = vld [vmem:[%s1 + $0x34c] sm:$0xff]
      %v2280 = vld [vmem:[%s1 + $0x354] sm:$0xff]
      %v2281 = vld [vmem:[%s1 + $0x35c] sm:$0xf]
      %v2282 = vld [vmem:[%s1 + $0x360] sm:$0xff]
      %v2283 = vld [vmem:[%s1 + $0x368] sm:$0xff]
      %v2284 = vld [vmem:[%s1 + $0x370] sm:$0xff]
      %v2285 = vld [vmem:[%s1 + $0x378] sm:$0xff]
      %v2286 = vld [vmem:[%s1 + $0x380] sm:$0xf]
      %v2287 = vld [vmem:[%s1 + $0x384] sm:$0xff]
      %v2288 = vld [vmem:[%s1 + $0x38c] sm:$0xff]
      %v2289 = vld [vmem:[%s1 + $0x394] sm:$0xff]
      %v2290 = vld [vmem:[%s1 + $0x39c] sm:$0xff]
      %v2291 = vld [vmem:[%s1 + $0x3a4] sm:$0xf]
      %v2292 = vld [vmem:[%s1 + $0x3a8] sm:$0xff]
      %v2293 = vld [vmem:[%s1 + $0x3b0] sm:$0xff]
      %v2294 = vld [vmem:[%s1 + $0x3b8] sm:$0xff]
      %v2295 = vld [vmem:[%s1 + $0x3c0] sm:$0xff]
      %v2296 = vld [vmem:[%s1 + $0x3c8] sm:$0xf]
      %v2297 = vld [vmem:[%s1 + $0x3cc] sm:$0xff]
      %v2298 = vld [vmem:[%s1 + $0x3d4] sm:$0xff]
      %v2299 = vld [vmem:[%s1 + $0x3dc] sm:$0xff]
      %v2300 = vld [vmem:[%s1 + $0x3e4] sm:$0xff]
      %v2301 = vld [vmem:[%s1 + $0x3ec] sm:$0xf]
      %v2302 = vld [vmem:[%s1 + $0x3f0] sm:$0xff]
      %v2303 = vld [vmem:[%s1 + $0x3f8] sm:$0xff]
      %v2304 = vld [vmem:[%s1 + $0x400] sm:$0xff]
      %v2305 = vld [vmem:[%s1 + $0x408] sm:$0xff]
      %v2306 = vld [vmem:[%s1 + $0x410] sm:$0xf]
      %v2307 = vld [vmem:[%s1 + $0x414] sm:$0xff]
      %v2308 = vld [vmem:[%s1 + $0x41c] sm:$0xff]
      %v2309 = vld [vmem:[%s1 + $0x424] sm:$0xff]
      %v2310 = vld [vmem:[%s1 + $0x42c] sm:$0xff]
      %v2311 = vld [vmem:[%s1 + $0x434] sm:$0xf]
      %v2312 = vld [vmem:[%s1 + $0x438] sm:$0xff]
      %v2313 = vld [vmem:[%s1 + $0x440] sm:$0xff]
      %v2314 = vld [vmem:[%s1 + $0x448] sm:$0xff]
      %v2315 = vld [vmem:[%s1 + $0x450] sm:$0xff]
      %v2316 = vld [vmem:[%s1 + $0x458] sm:$0xf]
      %v2317 = vld [vmem:[%s1 + $0x45c] sm:$0xff]
      %v2318 = vld [vmem:[%s1 + $0x464] sm:$0xff]
      %v2319 = vld [vmem:[%s1 + $0x46c] sm:$0xff]
      %v2320 = vld [vmem:[%s1 + $0x474] sm:$0xff]
      %v2321 = vld [vmem:[%s1 + $0x47c] sm:$0xf]
      %v2322 = vld [vmem:[%s1 + $0x480] sm:$0xff]
      %v2323 = vld [vmem:[%s1 + $0x488] sm:$0xff]
      %v2324 = vld [vmem:[%s1 + $0x490] sm:$0xff]
      %v2325 = vld [vmem:[%s1 + $0x498] sm:$0xff]
      %v2326 = vld [vmem:[%s1 + $0x4a0] sm:$0xf]
      %v2327 = vld [vmem:[%s1 + $0x4a4] sm:$0xff]
      %v2328 = vld [vmem:[%s1 + $0x4ac] sm:$0xff]
      %v2329 = vld [vmem:[%s1 + $0x4b4] sm:$0xff]
      %v2330 = vld [vmem:[%s1 + $0x4bc] sm:$0xff]
      %v2331 = vld [vmem:[%s1 + $0x4c4] sm:$0xf]
      %v2332 = vld [vmem:[%s1 + $0x4c8] sm:$0xff]
      %v2333 = vld [vmem:[%s1 + $0x4d0] sm:$0xff]
      %v2334 = vld [vmem:[%s1 + $0x4d8] sm:$0xff]
      %v2335 = vld [vmem:[%s1 + $0x4e0] sm:$0xff]
      %v2336 = vld [vmem:[%s1 + $0x4e8] sm:$0xf]
      %v2337 = vld [vmem:[%s1 + $0x4ec] sm:$0xff]
      %v2338 = vld [vmem:[%s1 + $0x4f4] sm:$0xff]
      %v2339 = vld [vmem:[%s1 + $0x4fc] sm:$0xff]
      %v2340 = vld [vmem:[%s1 + $0x504] sm:$0xff]
      %v2341 = vld [vmem:[%s1 + $0x50c] sm:$0xf]
      %v2342 = vld [vmem:[%s1 + $0x510] sm:$0xff]
      %v2343 = vld [vmem:[%s1 + $0x518] sm:$0xff]
      %v2344 = vld [vmem:[%s1 + $0x520] sm:$0xff]
      %v2345 = vld [vmem:[%s1 + $0x528] sm:$0xff]
      %v2346 = vld [vmem:[%s1 + $0x530] sm:$0xf]
      %v2347 = vld [vmem:[%s1 + $0x534] sm:$0xff]
      %v2348 = vld [vmem:[%s1 + $0x53c] sm:$0xff]
      %v2349 = vld [vmem:[%s1 + $0x544] sm:$0xff]
      %v2350 = vld [vmem:[%s1 + $0x54c] sm:$0xff]
      %v2351 = vld [vmem:[%s1 + $0x554] sm:$0xf]
      %v2352 = vld [vmem:[%s1 + $0x558] sm:$0xff]
      %v2353 = vld [vmem:[%s1 + $0x560] sm:$0xff]
      %v2354 = vld [vmem:[%s1 + $0x568] sm:$0xff]
      %v2355 = vld [vmem:[%s1 + $0x570] sm:$0xff]
      %v2356 = vld [vmem:[%s1 + $0x578] sm:$0xf]
      %v2357 = vld [vmem:[%s1 + $0x57c] sm:$0xff]
      %v2358 = vld [vmem:[%s1 + $0x584] sm:$0xff]
      %v2359 = vld [vmem:[%s1 + $0x58c] sm:$0xff]
      %v2360 = vld [vmem:[%s1 + $0x594] sm:$0xff]
      %v2361 = vld [vmem:[%s1 + $0x59c] sm:$0xf]
      %v2362 = vld [vmem:[%s1 + $0x5a0] sm:$0xff]
      %v2363 = vld [vmem:[%s1 + $0x5a8] sm:$0xff]
      %v2364 = vld [vmem:[%s1 + $0x5b0] sm:$0xff]
      %v2365 = vld [vmem:[%s1 + $0x5b8] sm:$0xff]
      %v2366 = vld [vmem:[%s1 + $0x5c0] sm:$0xf]
      %v2367 = vld [vmem:[%s1 + $0x5c4] sm:$0xff]
      %v2368 = vld [vmem:[%s1 + $0x5cc] sm:$0xff]
      %v2369 = vld [vmem:[%s1 + $0x5d4] sm:$0xff]
      %v2370 = vld [vmem:[%s1 + $0x5dc] sm:$0xff]
      %v2371 = vld [vmem:[%s1 + $0x5e4] sm:$0xf]
      %v2372 = vld [vmem:[%s1 + $0x5e8] sm:$0xff]
      %v2373 = vld [vmem:[%s1 + $0x5f0] sm:$0xff]
      %v2374 = vld [vmem:[%s1 + $0x5f8] sm:$0xff]
      %v2375 = vld [vmem:[%s1 + $0x600] sm:$0xff]
      %v2376 = vld [vmem:[%s1 + $0x608] sm:$0xf]
      %v2377 = vld [vmem:[%s1 + $0x60c] sm:$0xff]
      %v2378 = vld [vmem:[%s1 + $0x614] sm:$0xff]
      %v2379 = vld [vmem:[%s1 + $0x61c] sm:$0xff]
      %v2380 = vld [vmem:[%s1 + $0x624] sm:$0xff]
      %v2381 = vld [vmem:[%s1 + $0x62c] sm:$0xf]
      %v2382 = vld [vmem:[%s1 + $0x630] sm:$0xff]
      %v2383 = vld [vmem:[%s1 + $0x638] sm:$0xff]
      %v2384 = vld [vmem:[%s1 + $0x640] sm:$0xff]
      %v2385 = vld [vmem:[%s1 + $0x648] sm:$0xff]
      %v2386 = vld [vmem:[%s1 + $0x650] sm:$0xf]
      %v2387 = vld [vmem:[%s1 + $0x654] sm:$0xff]
      %v2388 = vld [vmem:[%s1 + $0x65c] sm:$0xff]
      %v2389 = vld [vmem:[%s1 + $0x664] sm:$0xff]
      %v2390 = vld [vmem:[%s1 + $0x66c] sm:$0xff]
      %v2391 = vld [vmem:[%s1 + $0x674] sm:$0xf]
      %v2392 = vld [vmem:[%s1 + $0x678] sm:$0xff]
      %v2393 = vld [vmem:[%s1 + $0x680] sm:$0xff]
      %v2394 = vld [vmem:[%s1 + $0x688] sm:$0xff]
      %v2395 = vld [vmem:[%s1 + $0x690] sm:$0xff]
      %v2396 = vld [vmem:[%s1 + $0x698] sm:$0xf]
      %v2397 = vld [vmem:[%s1 + $0x69c] sm:$0xff]
      %v2398 = vld [vmem:[%s1 + $0x6a4] sm:$0xff]
      %v2399 = vld [vmem:[%s1 + $0x6ac] sm:$0xff]
      %v2400 = vld [vmem:[%s1 + $0x6b4] sm:$0xff]
      %v2401 = vld [vmem:[%s1 + $0x6bc] sm:$0xf]
      %v2402 = vld [vmem:[%s1 + $0x6c0] sm:$0xff]
      %v2403 = vld [vmem:[%s1 + $0x6c8] sm:$0xff]
      %v2404 = vld [vmem:[%s1 + $0x6d0] sm:$0xff]
      %v2405 = vld [vmem:[%s1 + $0x6d8] sm:$0xff]
      %v2406 = vld [vmem:[%s1 + $0x6e0] sm:$0xf]
      %v2407 = vld [vmem:[%s1 + $0x6e4] sm:$0xff]
      %v2408 = vld [vmem:[%s1 + $0x6ec] sm:$0xff]
      %v2409 = vld [vmem:[%s1 + $0x6f4] sm:$0xff]
      %v2410 = vld [vmem:[%s1 + $0x6fc] sm:$0xff]
      %v2411 = vld [vmem:[%s1 + $0x704] sm:$0xf]
      %v2412 = vld [vmem:[%s1 + $0x708] sm:$0xff]
      %v2413 = vld [vmem:[%s1 + $0x710] sm:$0xff]
      %v2414 = vld [vmem:[%s1 + $0x718] sm:$0xff]
      %v2415 = vld [vmem:[%s1 + $0x720] sm:$0xff]
      %v2416 = vld [vmem:[%s1 + $0x728] sm:$0xf]
      %v2417 = vld [vmem:[%s1 + $0x72c] sm:$0xff]
      %v2418 = vld [vmem:[%s1 + $0x734] sm:$0xff]
      %v2419 = vld [vmem:[%s1 + $0x73c] sm:$0xff]
      %v2420 = vld [vmem:[%s1 + $0x744] sm:$0xff]
      %v2421 = vld [vmem:[%s1 + $0x74c] sm:$0xf]
      %v2422 = vld [vmem:[%s1 + $0x750] sm:$0xff]
      %v2423 = vld [vmem:[%s1 + $0x758] sm:$0xff]
      %v2424 = vld [vmem:[%s1 + $0x760] sm:$0xff]
      %v2425 = vld [vmem:[%s1 + $0x768] sm:$0xff]
      %v2426 = vld [vmem:[%s1 + $0x770] sm:$0xf]
      %v2427 = vld [vmem:[%s1 + $0x774] sm:$0xff]
      %v2428 = vld [vmem:[%s1 + $0x77c] sm:$0xff]
      %v2429 = vld [vmem:[%s1 + $0x784] sm:$0xff]
      %v2430 = vld [vmem:[%s1 + $0x78c] sm:$0xff]
      %v2431 = vld [vmem:[%s1 + $0x794] sm:$0xf]
      %v2432 = vld [vmem:[%s1 + $0x798] sm:$0xff]
      %v2433 = vld [vmem:[%s1 + $0x7a0] sm:$0xff]
      %v2434 = vld [vmem:[%s1 + $0x7a8] sm:$0xff]
      %v2435 = vld [vmem:[%s1 + $0x7b0] sm:$0xff]
      %v2436 = vld [vmem:[%s1 + $0x7b8] sm:$0xf]
      %v2437 = vld [vmem:[%s1 + $0x7bc] sm:$0xff]
      %v2438 = vld [vmem:[%s1 + $0x7c4] sm:$0xff]
      %v2439 = vld [vmem:[%s1 + $0x7cc] sm:$0xff]
      %v2440 = vld [vmem:[%s1 + $0x7d4] sm:$0xff]
      %v2441 = vld [vmem:[%s1 + $0x7dc] sm:$0xf]
      %v2442 = vld [vmem:[%s1 + $0x7e0] sm:$0xff]
      %v2443 = vld [vmem:[%s1 + $0x7e8] sm:$0xff]
      %v2444 = vld [vmem:[%s1 + $0x7f0] sm:$0xff]
      %v2445 = vld [vmem:[%s1 + $0x7f8] sm:$0xff]
      %v2446 = vld [vmem:[%s1 + $0x800] sm:$0xf]
      %v2447 = vld [vmem:[%s1 + $0x804] sm:$0xff]
      %v2448 = vld [vmem:[%s1 + $0x80c] sm:$0xff]
      %v2449 = vld [vmem:[%s1 + $0x814] sm:$0xff]
      %v2450 = vld [vmem:[%s1 + $0x81c] sm:$0xff]
      %v2451 = vld [vmem:[%s1 + $0x824] sm:$0xf]
      %v2452 = vld [vmem:[%s1 + $0x828] sm:$0xff]
      %v2453 = vld [vmem:[%s1 + $0x830] sm:$0xff]
      %v2454 = vld [vmem:[%s1 + $0x838] sm:$0xff]
      %v2455 = vld [vmem:[%s1 + $0x840] sm:$0xff]
      %v2456 = vld [vmem:[%s1 + $0x848] sm:$0xf]
      %v2457 = vld [vmem:[%s1 + $0x84c] sm:$0xff]
      %v2458 = vld [vmem:[%s1 + $0x854] sm:$0xff]
      %v2459 = vld [vmem:[%s1 + $0x85c] sm:$0xff]
      %v2460 = vld [vmem:[%s1 + $0x864] sm:$0xff]
      %v2461 = vld [vmem:[%s1 + $0x86c] sm:$0xf]
      %v2462 = vld [vmem:[%s1 + $0x870] sm:$0xff]
      %v2463 = vld [vmem:[%s1 + $0x878] sm:$0xff]
      %v2464 = vld [vmem:[%s1 + $0x880] sm:$0xff]
      %v2465 = vld [vmem:[%s1 + $0x888] sm:$0xff]
      %v2466 = vld [vmem:[%s1 + $0x890] sm:$0xf]
      %v2467 = vld [vmem:[%s1 + $0x894] sm:$0xff]
      %v2468 = vld [vmem:[%s1 + $0x89c] sm:$0xff]
      %v2469 = vld [vmem:[%s1 + $0x8a4] sm:$0xff]
      %v2470 = vld [vmem:[%s1 + $0x8ac] sm:$0xff]
      %v2471 = vld [vmem:[%s1 + $0x8b4] sm:$0xf]
      %v2472 = vld [vmem:[%s1 + $0x8b8] sm:$0xff]
      %v2473 = vld [vmem:[%s1 + $0x8c0] sm:$0xff]
      %v2474 = vld [vmem:[%s1 + $0x8c8] sm:$0xff]
      %v2475 = vld [vmem:[%s1 + $0x8d0] sm:$0xff]
      %v2476 = vld [vmem:[%s1 + $0x8d8] sm:$0xf]
      %v2477 = vld [vmem:[%s1 + $0x8dc] sm:$0xff]
      %v2478 = vld [vmem:[%s1 + $0x8e4] sm:$0xff]
      %v2479 = vld [vmem:[%s1 + $0x8ec] sm:$0xff]
      %v2480 = vld [vmem:[%s1 + $0x8f4] sm:$0xff]
      %v2481 = vld [vmem:[%s1 + $0x8fc] sm:$0xf]
      %v2482 = vld [vmem:[%s1 + $0x900] sm:$0xff]
      %v2483 = vld [vmem:[%s1 + $0x908] sm:$0xff]
      %v2484 = vld [vmem:[%s1 + $0x910] sm:$0xff]
      %v2485 = vld [vmem:[%s1 + $0x918] sm:$0xff]
      %v2486 = vld [vmem:[%s1 + $0x920] sm:$0xf]
      %v2487 = vld [vmem:[%s1 + $0x924] sm:$0xff]
      %v2488 = vld [vmem:[%s1 + $0x92c] sm:$0xff]
      %v2489 = vld [vmem:[%s1 + $0x934] sm:$0xff]
      %v2490 = vld [vmem:[%s1 + $0x93c] sm:$0xff]
      %v2491 = vld [vmem:[%s1 + $0x944] sm:$0xf]
      %v2492 = vld [vmem:[%s1 + $0x948] sm:$0xff]
      %v2493 = vld [vmem:[%s1 + $0x950] sm:$0xff]
      %v2494 = vld [vmem:[%s1 + $0x958] sm:$0xff]
      %v2495 = vld [vmem:[%s1 + $0x960] sm:$0xff]
      %v2496 = vld [vmem:[%s1 + $0x968] sm:$0xf]
      %v2497 = vld [vmem:[%s1 + $0x96c] sm:$0xff]
      %v2498 = vld [vmem:[%s1 + $0x974] sm:$0xff]
      %v2499 = vld [vmem:[%s1 + $0x97c] sm:$0xff]
      %v2500 = vld [vmem:[%s1 + $0x984] sm:$0xff]
      %v2501 = vld [vmem:[%s1 + $0x98c] sm:$0xf]
      %v2502 = vld [vmem:[%s1 + $0x990] sm:$0xff]
      %v2503 = vld [vmem:[%s1 + $0x998] sm:$0xff]
      %v2504 = vld [vmem:[%s1 + $0x9a0] sm:$0xff]
      %v2505 = vld [vmem:[%s1 + $0x9a8] sm:$0xff]
      %v2506 = vld [vmem:[%s1 + $0x9b0] sm:$0xf]
      %v2507 = vld [vmem:[%s1 + $0x9b4] sm:$0xff]
      %v2508 = vld [vmem:[%s1 + $0x9bc] sm:$0xff]
      %v2509 = vld [vmem:[%s1 + $0x9c4] sm:$0xff]
      %v2510 = vld [vmem:[%s1 + $0x9cc] sm:$0xff]
      %v2511 = vld [vmem:[%s1 + $0x9d4] sm:$0xf]
      %v2512 = vld [vmem:[%s1 + $0x9d8] sm:$0xff]
      %v2513 = vld [vmem:[%s1 + $0x9e0] sm:$0xff]
      %v2514 = vld [vmem:[%s1 + $0x9e8] sm:$0xff]
      %v2515 = vld [vmem:[%s1 + $0x9f0] sm:$0xff]
      %v2516 = vld [vmem:[%s1 + $0x9f8] sm:$0xf]
      %v2517 = vld [vmem:[%s1 + $0x9fc] sm:$0xff]
      %v2518 = vld [vmem:[%s1 + $0xa04] sm:$0xff]
      %v2519 = vld [vmem:[%s1 + $0xa0c] sm:$0xff]
      %v2520 = vld [vmem:[%s1 + $0xa14] sm:$0xff]
      %v2521 = vld [vmem:[%s1 + $0xa1c] sm:$0xf]
      %v2882 = vunpack.c.l.b16 %v2162
      %v2883 = vunpack.c.h.b16 %v2162
      %v2884 = vunpack.c.l.b16 %v2163
      %v2885 = vunpack.c.h.b16 %v2163
      %v2886 = vunpack.c.l.b16 %v2164
      %v2887 = vunpack.c.h.b16 %v2164
      %v2888 = vunpack.c.l.b16 %v2165
      %v2889 = vunpack.c.h.b16 %v2165
      %v2890 = vunpack.c.l.b16 %v2166
      %v2891 = vunpack.c.l.b16 %v2167
      %v2892 = vunpack.c.h.b16 %v2167
      %v2893 = vunpack.c.l.b16 %v2168
      %v2894 = vunpack.c.h.b16 %v2168
      %v2895 = vunpack.c.l.b16 %v2169
      %v2896 = vunpack.c.h.b16 %v2169
      %v2897 = vunpack.c.l.b16 %v2170
      %v2898 = vunpack.c.h.b16 %v2170
      %v2899 = vunpack.c.l.b16 %v2171
      %v2900 = vunpack.c.l.b16 %v2172
      %v2901 = vunpack.c.h.b16 %v2172
      %v2902 = vunpack.c.l.b16 %v2173
      %v2903 = vunpack.c.h.b16 %v2173
      %v2904 = vunpack.c.l.b16 %v2174
      %v2905 = vunpack.c.h.b16 %v2174
      %v2906 = vunpack.c.l.b16 %v2175
      %v2907 = vunpack.c.h.b16 %v2175
      %v2908 = vunpack.c.l.b16 %v2176
      %v2909 = vunpack.c.l.b16 %v2177
      %v2910 = vunpack.c.h.b16 %v2177
      %v2911 = vunpack.c.l.b16 %v2178
      %v2912 = vunpack.c.h.b16 %v2178
      %v2913 = vunpack.c.l.b16 %v2179
      %v2914 = vunpack.c.h.b16 %v2179
      %v2915 = vunpack.c.l.b16 %v2180
      %v2916 = vunpack.c.h.b16 %v2180
      %v2917 = vunpack.c.l.b16 %v2181
      %v2918 = vunpack.c.l.b16 %v2182
      %v2919 = vunpack.c.h.b16 %v2182
      %v2920 = vunpack.c.l.b16 %v2183
      %v2921 = vunpack.c.h.b16 %v2183
      %v2922 = vunpack.c.l.b16 %v2184
      %v2923 = vunpack.c.h.b16 %v2184
      %v2924 = vunpack.c.l.b16 %v2185
      %v2925 = vunpack.c.h.b16 %v2185
      %v2926 = vunpack.c.l.b16 %v2186
      %v2927 = vunpack.c.l.b16 %v2187
      %v2928 = vunpack.c.h.b16 %v2187
      %v2929 = vunpack.c.l.b16 %v2188
      %v2930 = vunpack.c.h.b16 %v2188
      %v2931 = vunpack.c.l.b16 %v2189
      %v2932 = vunpack.c.h.b16 %v2189
      %v2933 = vunpack.c.l.b16 %v2190
      %v2934 = vunpack.c.h.b16 %v2190
      %v2935 = vunpack.c.l.b16 %v2191
      %v2936 = vunpack.c.l.b16 %v2192
      %v2937 = vunpack.c.h.b16 %v2192
      %v2938 = vunpack.c.l.b16 %v2193
      %v2939 = vunpack.c.h.b16 %v2193
      %v2940 = vunpack.c.l.b16 %v2194
      %v2941 = vunpack.c.h.b16 %v2194
      %v2942 = vunpack.c.l.b16 %v2195
      %v2943 = vunpack.c.h.b16 %v2195
      %v2944 = vunpack.c.l.b16 %v2196
      %v2945 = vunpack.c.l.b16 %v2197
      %v2946 = vunpack.c.h.b16 %v2197
      %v2947 = vunpack.c.l.b16 %v2198
      %v2948 = vunpack.c.h.b16 %v2198
      %v2949 = vunpack.c.l.b16 %v2199
      %v2950 = vunpack.c.h.b16 %v2199
      %v2951 = vunpack.c.l.b16 %v2200
      %v2952 = vunpack.c.h.b16 %v2200
      %v2953 = vunpack.c.l.b16 %v2201
      %v2954 = vunpack.c.l.b16 %v2202
      %v2955 = vunpack.c.h.b16 %v2202
      %v2956 = vunpack.c.l.b16 %v2203
      %v2957 = vunpack.c.h.b16 %v2203
      %v2958 = vunpack.c.l.b16 %v2204
      %v2959 = vunpack.c.h.b16 %v2204
      %v2960 = vunpack.c.l.b16 %v2205
      %v2961 = vunpack.c.h.b16 %v2205
      %v2962 = vunpack.c.l.b16 %v2206
      %v2963 = vunpack.c.l.b16 %v2207
      %v2964 = vunpack.c.h.b16 %v2207
      %v2965 = vunpack.c.l.b16 %v2208
      %v2966 = vunpack.c.h.b16 %v2208
      %v2967 = vunpack.c.l.b16 %v2209
      %v2968 = vunpack.c.h.b16 %v2209
      %v2969 = vunpack.c.l.b16 %v2210
      %v2970 = vunpack.c.h.b16 %v2210
      %v2971 = vunpack.c.l.b16 %v2211
      %v2972 = vunpack.c.l.b16 %v2212
      %v2973 = vunpack.c.h.b16 %v2212
      %v2974 = vunpack.c.l.b16 %v2213
      %v2975 = vunpack.c.h.b16 %v2213
      %v2976 = vunpack.c.l.b16 %v2214
      %v2977 = vunpack.c.h.b16 %v2214
      %v2978 = vunpack.c.l.b16 %v2215
      %v2979 = vunpack.c.h.b16 %v2215
      %v2980 = vunpack.c.l.b16 %v2216
      %v2981 = vunpack.c.l.b16 %v2217
      %v2982 = vunpack.c.h.b16 %v2217
      %v2983 = vunpack.c.l.b16 %v2218
      %v2984 = vunpack.c.h.b16 %v2218
      %v2985 = vunpack.c.l.b16 %v2219
      %v2986 = vunpack.c.h.b16 %v2219
      %v2987 = vunpack.c.l.b16 %v2220
      %v2988 = vunpack.c.h.b16 %v2220
      %v2989 = vunpack.c.l.b16 %v2221
      %v2990 = vunpack.c.l.b16 %v2222
      %v2991 = vunpack.c.h.b16 %v2222
      %v2992 = vunpack.c.l.b16 %v2223
      %v2993 = vunpack.c.h.b16 %v2223
      %v2994 = vunpack.c.l.b16 %v2224
      %v2995 = vunpack.c.h.b16 %v2224
      %v2996 = vunpack.c.l.b16 %v2225
      %v2997 = vunpack.c.h.b16 %v2225
      %v2998 = vunpack.c.l.b16 %v2226
      %v2999 = vunpack.c.l.b16 %v2227
      %v3000 = vunpack.c.h.b16 %v2227
      %v3001 = vunpack.c.l.b16 %v2228
      %v3002 = vunpack.c.h.b16 %v2228
      %v3003 = vunpack.c.l.b16 %v2229
      %v3004 = vunpack.c.h.b16 %v2229
      %v3005 = vunpack.c.l.b16 %v2230
      %v3006 = vunpack.c.h.b16 %v2230
      %v3007 = vunpack.c.l.b16 %v2231
      %v3008 = vunpack.c.l.b16 %v2232
      %v3009 = vunpack.c.h.b16 %v2232
      %v3010 = vunpack.c.l.b16 %v2233
      %v3011 = vunpack.c.h.b16 %v2233
      %v3012 = vunpack.c.l.b16 %v2234
      %v3013 = vunpack.c.h.b16 %v2234
      %v3014 = vunpack.c.l.b16 %v2235
      %v3015 = vunpack.c.h.b16 %v2235
      %v3016 = vunpack.c.l.b16 %v2236
      %v3017 = vunpack.c.l.b16 %v2237
      %v3018 = vunpack.c.h.b16 %v2237
      %v3019 = vunpack.c.l.b16 %v2238
      %v3020 = vunpack.c.h.b16 %v2238
      %v3021 = vunpack.c.l.b16 %v2239
      %v3022 = vunpack.c.h.b16 %v2239
      %v3023 = vunpack.c.l.b16 %v2240
      %v3024 = vunpack.c.h.b16 %v2240
      %v3025 = vunpack.c.l.b16 %v2241
      %v3026 = vunpack.c.l.b16 %v2242
      %v3027 = vunpack.c.h.b16 %v2242
      %v3028 = vunpack.c.l.b16 %v2243
      %v3029 = vunpack.c.h.b16 %v2243
      %v3030 = vunpack.c.l.b16 %v2244
      %v3031 = vunpack.c.h.b16 %v2244
      %v3032 = vunpack.c.l.b16 %v2245
      %v3033 = vunpack.c.h.b16 %v2245
      %v3034 = vunpack.c.l.b16 %v2246
      %v3035 = vunpack.c.l.b16 %v2247
      %v3036 = vunpack.c.h.b16 %v2247
      %v3037 = vunpack.c.l.b16 %v2248
      %v3038 = vunpack.c.h.b16 %v2248
      %v3039 = vunpack.c.l.b16 %v2249
      %v3040 = vunpack.c.h.b16 %v2249
      %v3041 = vunpack.c.l.b16 %v2250
      %v3042 = vunpack.c.h.b16 %v2250
      %v3043 = vunpack.c.l.b16 %v2251
      %v3044 = vunpack.c.l.b16 %v2252
      %v3045 = vunpack.c.h.b16 %v2252
      %v3046 = vunpack.c.l.b16 %v2253
      %v3047 = vunpack.c.h.b16 %v2253
      %v3048 = vunpack.c.l.b16 %v2254
      %v3049 = vunpack.c.h.b16 %v2254
      %v3050 = vunpack.c.l.b16 %v2255
      %v3051 = vunpack.c.h.b16 %v2255
      %v3052 = vunpack.c.l.b16 %v2256
      %v3053 = vunpack.c.l.b16 %v2257
      %v3054 = vunpack.c.h.b16 %v2257
      %v3055 = vunpack.c.l.b16 %v2258
      %v3056 = vunpack.c.h.b16 %v2258
      %v3057 = vunpack.c.l.b16 %v2259
      %v3058 = vunpack.c.h.b16 %v2259
      %v3059 = vunpack.c.l.b16 %v2260
      %v3060 = vunpack.c.h.b16 %v2260
      %v3061 = vunpack.c.l.b16 %v2261
      %v3062 = vunpack.c.l.b16 %v2262
      %v3063 = vunpack.c.h.b16 %v2262
      %v3064 = vunpack.c.l.b16 %v2263
      %v3065 = vunpack.c.h.b16 %v2263
      %v3066 = vunpack.c.l.b16 %v2264
      %v3067 = vunpack.c.h.b16 %v2264
      %v3068 = vunpack.c.l.b16 %v2265
      %v3069 = vunpack.c.h.b16 %v2265
      %v3070 = vunpack.c.l.b16 %v2266
      %v3071 = vunpack.c.l.b16 %v2267
      %v3072 = vunpack.c.h.b16 %v2267
      %v3073 = vunpack.c.l.b16 %v2268
      %v3074 = vunpack.c.h.b16 %v2268
      %v3075 = vunpack.c.l.b16 %v2269
      %v3076 = vunpack.c.h.b16 %v2269
      %v3077 = vunpack.c.l.b16 %v2270
      %v3078 = vunpack.c.h.b16 %v2270
      %v3079 = vunpack.c.l.b16 %v2271
      %v3080 = vunpack.c.l.b16 %v2272
      %v3081 = vunpack.c.h.b16 %v2272
      %v3082 = vunpack.c.l.b16 %v2273
      %v3083 = vunpack.c.h.b16 %v2273
      %v3084 = vunpack.c.l.b16 %v2274
      %v3085 = vunpack.c.h.b16 %v2274
      %v3086 = vunpack.c.l.b16 %v2275
      %v3087 = vunpack.c.h.b16 %v2275
      %v3088 = vunpack.c.l.b16 %v2276
      %v3089 = vunpack.c.l.b16 %v2277
      %v3090 = vunpack.c.h.b16 %v2277
      %v3091 = vunpack.c.l.b16 %v2278
      %v3092 = vunpack.c.h.b16 %v2278
      %v3093 = vunpack.c.l.b16 %v2279
      %v3094 = vunpack.c.h.b16 %v2279
      %v3095 = vunpack.c.l.b16 %v2280
      %v3096 = vunpack.c.h.b16 %v2280
      %v3097 = vunpack.c.l.b16 %v2281
      %v3098 = vunpack.c.l.b16 %v2282
      %v3099 = vunpack.c.h.b16 %v2282
      %v3100 = vunpack.c.l.b16 %v2283
      %v3101 = vunpack.c.h.b16 %v2283
      %v3102 = vunpack.c.l.b16 %v2284
      %v3103 = vunpack.c.h.b16 %v2284
      %v3104 = vunpack.c.l.b16 %v2285
      %v3105 = vunpack.c.h.b16 %v2285
      %v3106 = vunpack.c.l.b16 %v2286
      %v3107 = vunpack.c.l.b16 %v2287
      %v3108 = vunpack.c.h.b16 %v2287
      %v3109 = vunpack.c.l.b16 %v2288
      %v3110 = vunpack.c.h.b16 %v2288
      %v3111 = vunpack.c.l.b16 %v2289
      %v3112 = vunpack.c.h.b16 %v2289
      %v3113 = vunpack.c.l.b16 %v2290
      %v3114 = vunpack.c.h.b16 %v2290
      %v3115 = vunpack.c.l.b16 %v2291
      %v3116 = vunpack.c.l.b16 %v2292
      %v3117 = vunpack.c.h.b16 %v2292
      %v3118 = vunpack.c.l.b16 %v2293
      %v3119 = vunpack.c.h.b16 %v2293
      %v3120 = vunpack.c.l.b16 %v2294
      %v3121 = vunpack.c.h.b16 %v2294
      %v3122 = vunpack.c.l.b16 %v2295
      %v3123 = vunpack.c.h.b16 %v2295
      %v3124 = vunpack.c.l.b16 %v2296
      %v3125 = vunpack.c.l.b16 %v2297
      %v3126 = vunpack.c.h.b16 %v2297
      %v3127 = vunpack.c.l.b16 %v2298
      %v3128 = vunpack.c.h.b16 %v2298
      %v3129 = vunpack.c.l.b16 %v2299
      %v3130 = vunpack.c.h.b16 %v2299
      %v3131 = vunpack.c.l.b16 %v2300
      %v3132 = vunpack.c.h.b16 %v2300
      %v3133 = vunpack.c.l.b16 %v2301
      %v3134 = vunpack.c.l.b16 %v2302
      %v3135 = vunpack.c.h.b16 %v2302
      %v3136 = vunpack.c.l.b16 %v2303
      %v3137 = vunpack.c.h.b16 %v2303
      %v3138 = vunpack.c.l.b16 %v2304
      %v3139 = vunpack.c.h.b16 %v2304
      %v3140 = vunpack.c.l.b16 %v2305
      %v3141 = vunpack.c.h.b16 %v2305
      %v3142 = vunpack.c.l.b16 %v2306
      %v3143 = vunpack.c.l.b16 %v2307
      %v3144 = vunpack.c.h.b16 %v2307
      %v3145 = vunpack.c.l.b16 %v2308
      %v3146 = vunpack.c.h.b16 %v2308
      %v3147 = vunpack.c.l.b16 %v2309
      %v3148 = vunpack.c.h.b16 %v2309
      %v3149 = vunpack.c.l.b16 %v2310
      %v3150 = vunpack.c.h.b16 %v2310
      %v3151 = vunpack.c.l.b16 %v2311
      %v3152 = vunpack.c.l.b16 %v2312
      %v3153 = vunpack.c.h.b16 %v2312
      %v3154 = vunpack.c.l.b16 %v2313
      %v3155 = vunpack.c.h.b16 %v2313
      %v3156 = vunpack.c.l.b16 %v2314
      %v3157 = vunpack.c.h.b16 %v2314
      %v3158 = vunpack.c.l.b16 %v2315
      %v3159 = vunpack.c.h.b16 %v2315
      %v3160 = vunpack.c.l.b16 %v2316
      %v3161 = vunpack.c.l.b16 %v2317
      %v3162 = vunpack.c.h.b16 %v2317
      %v3163 = vunpack.c.l.b16 %v2318
      %v3164 = vunpack.c.h.b16 %v2318
      %v3165 = vunpack.c.l.b16 %v2319
      %v3166 = vunpack.c.h.b16 %v2319
      %v3167 = vunpack.c.l.b16 %v2320
      %v3168 = vunpack.c.h.b16 %v2320
      %v3169 = vunpack.c.l.b16 %v2321
      %v3170 = vunpack.c.l.b16 %v2322
      %v3171 = vunpack.c.h.b16 %v2322
      %v3172 = vunpack.c.l.b16 %v2323
      %v3173 = vunpack.c.h.b16 %v2323
      %v3174 = vunpack.c.l.b16 %v2324
      %v3175 = vunpack.c.h.b16 %v2324
      %v3176 = vunpack.c.l.b16 %v2325
      %v3177 = vunpack.c.h.b16 %v2325
      %v3178 = vunpack.c.l.b16 %v2326
      %v3179 = vunpack.c.l.b16 %v2327
      %v3180 = vunpack.c.h.b16 %v2327
      %v3181 = vunpack.c.l.b16 %v2328
      %v3182 = vunpack.c.h.b16 %v2328
      %v3183 = vunpack.c.l.b16 %v2329
      %v3184 = vunpack.c.h.b16 %v2329
      %v3185 = vunpack.c.l.b16 %v2330
      %v3186 = vunpack.c.h.b16 %v2330
      %v3187 = vunpack.c.l.b16 %v2331
      %v3188 = vunpack.c.l.b16 %v2332
      %v3189 = vunpack.c.h.b16 %v2332
      %v3190 = vunpack.c.l.b16 %v2333
      %v3191 = vunpack.c.h.b16 %v2333
      %v3192 = vunpack.c.l.b16 %v2334
      %v3193 = vunpack.c.h.b16 %v2334
      %v3194 = vunpack.c.l.b16 %v2335
      %v3195 = vunpack.c.h.b16 %v2335
      %v3196 = vunpack.c.l.b16 %v2336
      %v3197 = vunpack.c.l.b16 %v2337
      %v3198 = vunpack.c.h.b16 %v2337
      %v3199 = vunpack.c.l.b16 %v2338
      %v3200 = vunpack.c.h.b16 %v2338
      %v3201 = vunpack.c.l.b16 %v2339
      %v3202 = vunpack.c.h.b16 %v2339
      %v3203 = vunpack.c.l.b16 %v2340
      %v3204 = vunpack.c.h.b16 %v2340
      %v3205 = vunpack.c.l.b16 %v2341
      %v3206 = vunpack.c.l.b16 %v2342
      %v3207 = vunpack.c.h.b16 %v2342
      %v3208 = vunpack.c.l.b16 %v2343
      %v3209 = vunpack.c.h.b16 %v2343
      %v3210 = vunpack.c.l.b16 %v2344
      %v3211 = vunpack.c.h.b16 %v2344
      %v3212 = vunpack.c.l.b16 %v2345
      %v3213 = vunpack.c.h.b16 %v2345
      %v3214 = vunpack.c.l.b16 %v2346
      %v3215 = vunpack.c.l.b16 %v2347
      %v3216 = vunpack.c.h.b16 %v2347
      %v3217 = vunpack.c.l.b16 %v2348
      %v3218 = vunpack.c.h.b16 %v2348
      %v3219 = vunpack.c.l.b16 %v2349
      %v3220 = vunpack.c.h.b16 %v2349
      %v3221 = vunpack.c.l.b16 %v2350
      %v3222 = vunpack.c.h.b16 %v2350
      %v3223 = vunpack.c.l.b16 %v2351
      %v3224 = vunpack.c.l.b16 %v2352
      %v3225 = vunpack.c.h.b16 %v2352
      %v3226 = vunpack.c.l.b16 %v2353
      %v3227 = vunpack.c.h.b16 %v2353
      %v3228 = vunpack.c.l.b16 %v2354
      %v3229 = vunpack.c.h.b16 %v2354
      %v3230 = vunpack.c.l.b16 %v2355
      %v3231 = vunpack.c.h.b16 %v2355
      %v3232 = vunpack.c.l.b16 %v2356
      %v3233 = vunpack.c.l.b16 %v2357
      %v3234 = vunpack.c.h.b16 %v2357
      %v3235 = vunpack.c.l.b16 %v2358
      %v3236 = vunpack.c.h.b16 %v2358
      %v3237 = vunpack.c.l.b16 %v2359
      %v3238 = vunpack.c.h.b16 %v2359
      %v3239 = vunpack.c.l.b16 %v2360
      %v3240 = vunpack.c.h.b16 %v2360
      %v3241 = vunpack.c.l.b16 %v2361
      %v3242 = vunpack.c.l.b16 %v2362
      %v3243 = vunpack.c.h.b16 %v2362
      %v3244 = vunpack.c.l.b16 %v2363
      %v3245 = vunpack.c.h.b16 %v2363
      %v3246 = vunpack.c.l.b16 %v2364
      %v3247 = vunpack.c.h.b16 %v2364
      %v3248 = vunpack.c.l.b16 %v2365
      %v3249 = vunpack.c.h.b16 %v2365
      %v3250 = vunpack.c.l.b16 %v2366
      %v3251 = vunpack.c.l.b16 %v2367
      %v3252 = vunpack.c.h.b16 %v2367
      %v3253 = vunpack.c.l.b16 %v2368
      %v3254 = vunpack.c.h.b16 %v2368
      %v3255 = vunpack.c.l.b16 %v2369
      %v3256 = vunpack.c.h.b16 %v2369
      %v3257 = vunpack.c.l.b16 %v2370
      %v3258 = vunpack.c.h.b16 %v2370
      %v3259 = vunpack.c.l.b16 %v2371
      %v3260 = vunpack.c.l.b16 %v2372
      %v3261 = vunpack.c.h.b16 %v2372
      %v3262 = vunpack.c.l.b16 %v2373
      %v3263 = vunpack.c.h.b16 %v2373
      %v3264 = vunpack.c.l.b16 %v2374
      %v3265 = vunpack.c.h.b16 %v2374
      %v3266 = vunpack.c.l.b16 %v2375
      %v3267 = vunpack.c.h.b16 %v2375
      %v3268 = vunpack.c.l.b16 %v2376
      %v3269 = vunpack.c.l.b16 %v2377
      %v3270 = vunpack.c.h.b16 %v2377
      %v3271 = vunpack.c.l.b16 %v2378
      %v3272 = vunpack.c.h.b16 %v2378
      %v3273 = vunpack.c.l.b16 %v2379
      %v3274 = vunpack.c.h.b16 %v2379
      %v3275 = vunpack.c.l.b16 %v2380
      %v3276 = vunpack.c.h.b16 %v2380
      %v3277 = vunpack.c.l.b16 %v2381
      %v3278 = vunpack.c.l.b16 %v2382
      %v3279 = vunpack.c.h.b16 %v2382
      %v3280 = vunpack.c.l.b16 %v2383
      %v3281 = vunpack.c.h.b16 %v2383
      %v3282 = vunpack.c.l.b16 %v2384
      %v3283 = vunpack.c.h.b16 %v2384
      %v3284 = vunpack.c.l.b16 %v2385
      %v3285 = vunpack.c.h.b16 %v2385
      %v3286 = vunpack.c.l.b16 %v2386
      %v3287 = vunpack.c.l.b16 %v2387
      %v3288 = vunpack.c.h.b16 %v2387
      %v3289 = vunpack.c.l.b16 %v2388
      %v3290 = vunpack.c.h.b16 %v2388
      %v3291 = vunpack.c.l.b16 %v2389
      %v3292 = vunpack.c.h.b16 %v2389
      %v3293 = vunpack.c.l.b16 %v2390
      %v3294 = vunpack.c.h.b16 %v2390
      %v3295 = vunpack.c.l.b16 %v2391
      %v3296 = vunpack.c.l.b16 %v2392
      %v3297 = vunpack.c.h.b16 %v2392
      %v3298 = vunpack.c.l.b16 %v2393
      %v3299 = vunpack.c.h.b16 %v2393
      %v3300 = vunpack.c.l.b16 %v2394
      %v3301 = vunpack.c.h.b16 %v2394
      %v3302 = vunpack.c.l.b16 %v2395
      %v3303 = vunpack.c.h.b16 %v2395
      %v3304 = vunpack.c.l.b16 %v2396
      %v3305 = vunpack.c.l.b16 %v2397
      %v3306 = vunpack.c.h.b16 %v2397
      %v3307 = vunpack.c.l.b16 %v2398
      %v3308 = vunpack.c.h.b16 %v2398
      %v3309 = vunpack.c.l.b16 %v2399
      %v3310 = vunpack.c.h.b16 %v2399
      %v3311 = vunpack.c.l.b16 %v2400
      %v3312 = vunpack.c.h.b16 %v2400
      %v3313 = vunpack.c.l.b16 %v2401
      %v3314 = vunpack.c.l.b16 %v2402
      %v3315 = vunpack.c.h.b16 %v2402
      %v3316 = vunpack.c.l.b16 %v2403
      %v3317 = vunpack.c.h.b16 %v2403
      %v3318 = vunpack.c.l.b16 %v2404
      %v3319 = vunpack.c.h.b16 %v2404
      %v3320 = vunpack.c.l.b16 %v2405
      %v3321 = vunpack.c.h.b16 %v2405
      %v3322 = vunpack.c.l.b16 %v2406
      %v3323 = vunpack.c.l.b16 %v2407
      %v3324 = vunpack.c.h.b16 %v2407
      %v3325 = vunpack.c.l.b16 %v2408
      %v3326 = vunpack.c.h.b16 %v2408
      %v3327 = vunpack.c.l.b16 %v2409
      %v3328 = vunpack.c.h.b16 %v2409
      %v3329 = vunpack.c.l.b16 %v2410
      %v3330 = vunpack.c.h.b16 %v2410
      %v3331 = vunpack.c.l.b16 %v2411
      %v3332 = vunpack.c.l.b16 %v2412
      %v3333 = vunpack.c.h.b16 %v2412
      %v3334 = vunpack.c.l.b16 %v2413
      %v3335 = vunpack.c.h.b16 %v2413
      %v3336 = vunpack.c.l.b16 %v2414
      %v3337 = vunpack.c.h.b16 %v2414
      %v3338 = vunpack.c.l.b16 %v2415
      %v3339 = vunpack.c.h.b16 %v2415
      %v3340 = vunpack.c.l.b16 %v2416
      %v3341 = vunpack.c.l.b16 %v2417
      %v3342 = vunpack.c.h.b16 %v2417
      %v3343 = vunpack.c.l.b16 %v2418
      %v3344 = vunpack.c.h.b16 %v2418
      %v3345 = vunpack.c.l.b16 %v2419
      %v3346 = vunpack.c.h.b16 %v2419
      %v3347 = vunpack.c.l.b16 %v2420
      %v3348 = vunpack.c.h.b16 %v2420
      %v3349 = vunpack.c.l.b16 %v2421
      %v3350 = vunpack.c.l.b16 %v2422
      %v3351 = vunpack.c.h.b16 %v2422
      %v3352 = vunpack.c.l.b16 %v2423
      %v3353 = vunpack.c.h.b16 %v2423
      %v3354 = vunpack.c.l.b16 %v2424
      %v3355 = vunpack.c.h.b16 %v2424
      %v3356 = vunpack.c.l.b16 %v2425
      %v3357 = vunpack.c.h.b16 %v2425
      %v3358 = vunpack.c.l.b16 %v2426
      %v3359 = vunpack.c.l.b16 %v2427
      %v3360 = vunpack.c.h.b16 %v2427
      %v3361 = vunpack.c.l.b16 %v2428
      %v3362 = vunpack.c.h.b16 %v2428
      %v3363 = vunpack.c.l.b16 %v2429
      %v3364 = vunpack.c.h.b16 %v2429
      %v3365 = vunpack.c.l.b16 %v2430
      %v3366 = vunpack.c.h.b16 %v2430
      %v3367 = vunpack.c.l.b16 %v2431
      %v3368 = vunpack.c.l.b16 %v2432
      %v3369 = vunpack.c.h.b16 %v2432
      %v3370 = vunpack.c.l.b16 %v2433
      %v3371 = vunpack.c.h.b16 %v2433
      %v3372 = vunpack.c.l.b16 %v2434
      %v3373 = vunpack.c.h.b16 %v2434
      %v3374 = vunpack.c.l.b16 %v2435
      %v3375 = vunpack.c.h.b16 %v2435
      %v3376 = vunpack.c.l.b16 %v2436
      %v3377 = vunpack.c.l.b16 %v2437
      %v3378 = vunpack.c.h.b16 %v2437
      %v3379 = vunpack.c.l.b16 %v2438
      %v3380 = vunpack.c.h.b16 %v2438
      %v3381 = vunpack.c.l.b16 %v2439
      %v3382 = vunpack.c.h.b16 %v2439
      %v3383 = vunpack.c.l.b16 %v2440
      %v3384 = vunpack.c.h.b16 %v2440
      %v3385 = vunpack.c.l.b16 %v2441
      %v3386 = vunpack.c.l.b16 %v2442
      %v3387 = vunpack.c.h.b16 %v2442
      %v3388 = vunpack.c.l.b16 %v2443
      %v3389 = vunpack.c.h.b16 %v2443
      %v3390 = vunpack.c.l.b16 %v2444
      %v3391 = vunpack.c.h.b16 %v2444
      %v3392 = vunpack.c.l.b16 %v2445
      %v3393 = vunpack.c.h.b16 %v2445
      %v3394 = vunpack.c.l.b16 %v2446
      %v3395 = vunpack.c.l.b16 %v2447
      %v3396 = vunpack.c.h.b16 %v2447
      %v3397 = vunpack.c.l.b16 %v2448
      %v3398 = vunpack.c.h.b16 %v2448
      %v3399 = vunpack.c.l.b16 %v2449
      %v3400 = vunpack.c.h.b16 %v2449
      %v3401 = vunpack.c.l.b16 %v2450
      %v3402 = vunpack.c.h.b16 %v2450
      %v3403 = vunpack.c.l.b16 %v2451
      %v3404 = vunpack.c.l.b16 %v2452
      %v3405 = vunpack.c.h.b16 %v2452
      %v3406 = vunpack.c.l.b16 %v2453
      %v3407 = vunpack.c.h.b16 %v2453
      %v3408 = vunpack.c.l.b16 %v2454
      %v3409 = vunpack.c.h.b16 %v2454
      %v3410 = vunpack.c.l.b16 %v2455
      %v3411 = vunpack.c.h.b16 %v2455
      %v3412 = vunpack.c.l.b16 %v2456
      %v3413 = vunpack.c.l.b16 %v2457
      %v3414 = vunpack.c.h.b16 %v2457
      %v3415 = vunpack.c.l.b16 %v2458
      %v3416 = vunpack.c.h.b16 %v2458
      %v3417 = vunpack.c.l.b16 %v2459
      %v3418 = vunpack.c.h.b16 %v2459
      %v3419 = vunpack.c.l.b16 %v2460
      %v3420 = vunpack.c.h.b16 %v2460
      %v3421 = vunpack.c.l.b16 %v2461
      %v3422 = vunpack.c.l.b16 %v2462
      %v3423 = vunpack.c.h.b16 %v2462
      %v3424 = vunpack.c.l.b16 %v2463
      %v3425 = vunpack.c.h.b16 %v2463
      %v3426 = vunpack.c.l.b16 %v2464
      %v3427 = vunpack.c.h.b16 %v2464
      %v3428 = vunpack.c.l.b16 %v2465
      %v3429 = vunpack.c.h.b16 %v2465
      %v3430 = vunpack.c.l.b16 %v2466
      %v3431 = vunpack.c.l.b16 %v2467
      %v3432 = vunpack.c.h.b16 %v2467
      %v3433 = vunpack.c.l.b16 %v2468
      %v3434 = vunpack.c.h.b16 %v2468
      %v3435 = vunpack.c.l.b16 %v2469
      %v3436 = vunpack.c.h.b16 %v2469
      %v3437 = vunpack.c.l.b16 %v2470
      %v3438 = vunpack.c.h.b16 %v2470
      %v3439 = vunpack.c.l.b16 %v2471
      %v3440 = vunpack.c.l.b16 %v2472
      %v3441 = vunpack.c.h.b16 %v2472
      %v3442 = vunpack.c.l.b16 %v2473
      %v3443 = vunpack.c.h.b16 %v2473
      %v3444 = vunpack.c.l.b16 %v2474
      %v3445 = vunpack.c.h.b16 %v2474
      %v3446 = vunpack.c.l.b16 %v2475
      %v3447 = vunpack.c.h.b16 %v2475
      %v3448 = vunpack.c.l.b16 %v2476
      %v3449 = vunpack.c.l.b16 %v2477
      %v3450 = vunpack.c.h.b16 %v2477
      %v3451 = vunpack.c.l.b16 %v2478
      %v3452 = vunpack.c.h.b16 %v2478
      %v3453 = vunpack.c.l.b16 %v2479
      %v3454 = vunpack.c.h.b16 %v2479
      %v3455 = vunpack.c.l.b16 %v2480
      %v3456 = vunpack.c.h.b16 %v2480
      %v3457 = vunpack.c.l.b16 %v2481
      %v3458 = vunpack.c.l.b16 %v2482
      %v3459 = vunpack.c.h.b16 %v2482
      %v3460 = vunpack.c.l.b16 %v2483
      %v3461 = vunpack.c.h.b16 %v2483
      %v3462 = vunpack.c.l.b16 %v2484
      %v3463 = vunpack.c.h.b16 %v2484
      %v3464 = vunpack.c.l.b16 %v2485
      %v3465 = vunpack.c.h.b16 %v2485
      %v3466 = vunpack.c.l.b16 %v2486
      %v3467 = vunpack.c.l.b16 %v2487
      %v3468 = vunpack.c.h.b16 %v2487
      %v3469 = vunpack.c.l.b16 %v2488
      %v3470 = vunpack.c.h.b16 %v2488
      %v3471 = vunpack.c.l.b16 %v2489
      %v3472 = vunpack.c.h.b16 %v2489
      %v3473 = vunpack.c.l.b16 %v2490
      %v3474 = vunpack.c.h.b16 %v2490
      %v3475 = vunpack.c.l.b16 %v2491
      %v3476 = vunpack.c.l.b16 %v2492
      %v3477 = vunpack.c.h.b16 %v2492
      %v3478 = vunpack.c.l.b16 %v2493
      %v3479 = vunpack.c.h.b16 %v2493
      %v3480 = vunpack.c.l.b16 %v2494
      %v3481 = vunpack.c.h.b16 %v2494
      %v3482 = vunpack.c.l.b16 %v2495
      %v3483 = vunpack.c.h.b16 %v2495
      %v3484 = vunpack.c.l.b16 %v2496
      %v3485 = vunpack.c.l.b16 %v2497
      %v3486 = vunpack.c.h.b16 %v2497
      %v3487 = vunpack.c.l.b16 %v2498
      %v3488 = vunpack.c.h.b16 %v2498
      %v3489 = vunpack.c.l.b16 %v2499
      %v3490 = vunpack.c.h.b16 %v2499
      %v3491 = vunpack.c.l.b16 %v2500
      %v3492 = vunpack.c.h.b16 %v2500
      %v3493 = vunpack.c.l.b16 %v2501
      %v3494 = vunpack.c.l.b16 %v2502
      %v3495 = vunpack.c.h.b16 %v2502
      %v3496 = vunpack.c.l.b16 %v2503
      %v3497 = vunpack.c.h.b16 %v2503
      %v3498 = vunpack.c.l.b16 %v2504
      %v3499 = vunpack.c.h.b16 %v2504
      %v3500 = vunpack.c.l.b16 %v2505
      %v3501 = vunpack.c.h.b16 %v2505
      %v3502 = vunpack.c.l.b16 %v2506
      %v3503 = vunpack.c.l.b16 %v2507
      %v3504 = vunpack.c.h.b16 %v2507
      %v3505 = vunpack.c.l.b16 %v2508
      %v3506 = vunpack.c.h.b16 %v2508
      %v3507 = vunpack.c.l.b16 %v2509
      %v3508 = vunpack.c.h.b16 %v2509
      %v3509 = vunpack.c.l.b16 %v2510
      %v3510 = vunpack.c.h.b16 %v2510
      %v3511 = vunpack.c.l.b16 %v2511
      %v3512 = vunpack.c.l.b16 %v2512
      %v3513 = vunpack.c.h.b16 %v2512
      %v3514 = vunpack.c.l.b16 %v2513
      %v3515 = vunpack.c.h.b16 %v2513
      %v3516 = vunpack.c.l.b16 %v2514
      %v3517 = vunpack.c.h.b16 %v2514
      %v3518 = vunpack.c.l.b16 %v2515
      %v3519 = vunpack.c.h.b16 %v2515
      %v3520 = vunpack.c.l.b16 %v2516
      %v3521 = vunpack.c.l.b16 %v2517
      %v3522 = vunpack.c.h.b16 %v2517
      %v3523 = vunpack.c.l.b16 %v2518
      %v3524 = vunpack.c.h.b16 %v2518
      %v3525 = vunpack.c.l.b16 %v2519
      %v3526 = vunpack.c.h.b16 %v2519
      %v3527 = vunpack.c.l.b16 %v2520
      %v3528 = vunpack.c.h.b16 %v2520
      %v3529 = vunpack.c.l.b16 %v2521
      %v3530 = vpack.c.b16 %v2891, %v2882
      %v3531 = vpack.c.b16 %v2892, %v2883
      %v3532 = vpack.c.b16 %v2893, %v2884
      %v3533 = vpack.c.b16 %v2894, %v2885
      %v3534 = vpack.c.b16 %v2895, %v2886
      %v3535 = vpack.c.b16 %v2896, %v2887
      %v3536 = vpack.c.b16 %v2897, %v2888
      %v3537 = vpack.c.b16 %v2898, %v2889
      %v3538 = vpack.c.b16 %v2899, %v2890
      %v3539 = vpack.c.b16 %v2909, %v2900
      %v3540 = vpack.c.b16 %v2910, %v2901
      %v3541 = vpack.c.b16 %v2911, %v2902
      %v3542 = vpack.c.b16 %v2912, %v2903
      %v3543 = vpack.c.b16 %v2913, %v2904
      %v3544 = vpack.c.b16 %v2914, %v2905
      %v3545 = vpack.c.b16 %v2915, %v2906
      %v3546 = vpack.c.b16 %v2916, %v2907
      %v3547 = vpack.c.b16 %v2917, %v2908
      %v3548 = vpack.c.b16 %v2927, %v2918
      %v3549 = vpack.c.b16 %v2928, %v2919
      %v3550 = vpack.c.b16 %v2929, %v2920
      %v3551 = vpack.c.b16 %v2930, %v2921
      %v3552 = vpack.c.b16 %v2931, %v2922
      %v3553 = vpack.c.b16 %v2932, %v2923
      %v3554 = vpack.c.b16 %v2933, %v2924
      %v3555 = vpack.c.b16 %v2934, %v2925
      %v3556 = vpack.c.b16 %v2935, %v2926
      %v3557 = vpack.c.b16 %v2945, %v2936
      %v3558 = vpack.c.b16 %v2946, %v2937
      %v3559 = vpack.c.b16 %v2947, %v2938
      %v3560 = vpack.c.b16 %v2948, %v2939
      %v3561 = vpack.c.b16 %v2949, %v2940
      %v3562 = vpack.c.b16 %v2950, %v2941
      %v3563 = vpack.c.b16 %v2951, %v2942
      %v3564 = vpack.c.b16 %v2952, %v2943
      %v3565 = vpack.c.b16 %v2953, %v2944
      %v3566 = vpack.c.b16 %v2963, %v2954
      %v3567 = vpack.c.b16 %v2964, %v2955
      %v3568 = vpack.c.b16 %v2965, %v2956
      %v3569 = vpack.c.b16 %v2966, %v2957
      %v3570 = vpack.c.b16 %v2967, %v2958
      %v3571 = vpack.c.b16 %v2968, %v2959
      %v3572 = vpack.c.b16 %v2969, %v2960
      %v3573 = vpack.c.b16 %v2970, %v2961
      %v3574 = vpack.c.b16 %v2971, %v2962
      %v3575 = vpack.c.b16 %v2981, %v2972
      %v3576 = vpack.c.b16 %v2982, %v2973
      %v3577 = vpack.c.b16 %v2983, %v2974
      %v3578 = vpack.c.b16 %v2984, %v2975
      %v3579 = vpack.c.b16 %v2985, %v2976
      %v3580 = vpack.c.b16 %v2986, %v2977
      %v3581 = vpack.c.b16 %v2987, %v2978
      %v3582 = vpack.c.b16 %v2988, %v2979
      %v3583 = vpack.c.b16 %v2989, %v2980
      %v3584 = vpack.c.b16 %v2999, %v2990
      %v3585 = vpack.c.b16 %v3000, %v2991
      %v3586 = vpack.c.b16 %v3001, %v2992
      %v3587 = vpack.c.b16 %v3002, %v2993
      %v3588 = vpack.c.b16 %v3003, %v2994
      %v3589 = vpack.c.b16 %v3004, %v2995
      %v3590 = vpack.c.b16 %v3005, %v2996
      %v3591 = vpack.c.b16 %v3006, %v2997
      %v3592 = vpack.c.b16 %v3007, %v2998
      %v3593 = vpack.c.b16 %v3017, %v3008
      %v3594 = vpack.c.b16 %v3018, %v3009
      %v3595 = vpack.c.b16 %v3019, %v3010
      %v3596 = vpack.c.b16 %v3020, %v3011
      %v3597 = vpack.c.b16 %v3021, %v3012
      %v3598 = vpack.c.b16 %v3022, %v3013
      %v3599 = vpack.c.b16 %v3023, %v3014
      %v3600 = vpack.c.b16 %v3024, %v3015
      %v3601 = vpack.c.b16 %v3025, %v3016
      %v3602 = vpack.c.b16 %v3035, %v3026
      %v3603 = vpack.c.b16 %v3036, %v3027
      %v3604 = vpack.c.b16 %v3037, %v3028
      %v3605 = vpack.c.b16 %v3038, %v3029
      %v3606 = vpack.c.b16 %v3039, %v3030
      %v3607 = vpack.c.b16 %v3040, %v3031
      %v3608 = vpack.c.b16 %v3041, %v3032
      %v3609 = vpack.c.b16 %v3042, %v3033
      %v3610 = vpack.c.b16 %v3043, %v3034
      %v3611 = vpack.c.b16 %v3053, %v3044
      %v3612 = vpack.c.b16 %v3054, %v3045
      %v3613 = vpack.c.b16 %v3055, %v3046
      %v3614 = vpack.c.b16 %v3056, %v3047
      %v3615 = vpack.c.b16 %v3057, %v3048
      %v3616 = vpack.c.b16 %v3058, %v3049
      %v3617 = vpack.c.b16 %v3059, %v3050
      %v3618 = vpack.c.b16 %v3060, %v3051
      %v3619 = vpack.c.b16 %v3061, %v3052
      %v3620 = vpack.c.b16 %v3071, %v3062
      %v3621 = vpack.c.b16 %v3072, %v3063
      %v3622 = vpack.c.b16 %v3073, %v3064
      %v3623 = vpack.c.b16 %v3074, %v3065
      %v3624 = vpack.c.b16 %v3075, %v3066
      %v3625 = vpack.c.b16 %v3076, %v3067
      %v3626 = vpack.c.b16 %v3077, %v3068
      %v3627 = vpack.c.b16 %v3078, %v3069
      %v3628 = vpack.c.b16 %v3079, %v3070
      %v3629 = vpack.c.b16 %v3089, %v3080
      %v3630 = vpack.c.b16 %v3090, %v3081
      %v3631 = vpack.c.b16 %v3091, %v3082
      %v3632 = vpack.c.b16 %v3092, %v3083
      %v3633 = vpack.c.b16 %v3093, %v3084
      %v3634 = vpack.c.b16 %v3094, %v3085
      %v3635 = vpack.c.b16 %v3095, %v3086
      %v3636 = vpack.c.b16 %v3096, %v3087
      %v3637 = vpack.c.b16 %v3097, %v3088
      %v3638 = vpack.c.b16 %v3107, %v3098
      %v3639 = vpack.c.b16 %v3108, %v3099
      %v3640 = vpack.c.b16 %v3109, %v3100
      %v3641 = vpack.c.b16 %v3110, %v3101
      %v3642 = vpack.c.b16 %v3111, %v3102
      %v3643 = vpack.c.b16 %v3112, %v3103
      %v3644 = vpack.c.b16 %v3113, %v3104
      %v3645 = vpack.c.b16 %v3114, %v3105
      %v3646 = vpack.c.b16 %v3115, %v3106
      %v3647 = vpack.c.b16 %v3125, %v3116
      %v3648 = vpack.c.b16 %v3126, %v3117
      %v3649 = vpack.c.b16 %v3127, %v3118
      %v3650 = vpack.c.b16 %v3128, %v3119
      %v3651 = vpack.c.b16 %v3129, %v3120
      %v3652 = vpack.c.b16 %v3130, %v3121
      %v3653 = vpack.c.b16 %v3131, %v3122
      %v3654 = vpack.c.b16 %v3132, %v3123
      %v3655 = vpack.c.b16 %v3133, %v3124
      %v3656 = vpack.c.b16 %v3143, %v3134
      %v3657 = vpack.c.b16 %v3144, %v3135
      %v3658 = vpack.c.b16 %v3145, %v3136
      %v3659 = vpack.c.b16 %v3146, %v3137
      %v3660 = vpack.c.b16 %v3147, %v3138
      %v3661 = vpack.c.b16 %v3148, %v3139
      %v3662 = vpack.c.b16 %v3149, %v3140
      %v3663 = vpack.c.b16 %v3150, %v3141
      %v3664 = vpack.c.b16 %v3151, %v3142
      %v3665 = vpack.c.b16 %v3161, %v3152
      %v3666 = vpack.c.b16 %v3162, %v3153
      %v3667 = vpack.c.b16 %v3163, %v3154
      %v3668 = vpack.c.b16 %v3164, %v3155
      %v3669 = vpack.c.b16 %v3165, %v3156
      %v3670 = vpack.c.b16 %v3166, %v3157
      %v3671 = vpack.c.b16 %v3167, %v3158
      %v3672 = vpack.c.b16 %v3168, %v3159
      %v3673 = vpack.c.b16 %v3169, %v3160
      %v3674 = vpack.c.b16 %v3179, %v3170
      %v3675 = vpack.c.b16 %v3180, %v3171
      %v3676 = vpack.c.b16 %v3181, %v3172
      %v3677 = vpack.c.b16 %v3182, %v3173
      %v3678 = vpack.c.b16 %v3183, %v3174
      %v3679 = vpack.c.b16 %v3184, %v3175
      %v3680 = vpack.c.b16 %v3185, %v3176
      %v3681 = vpack.c.b16 %v3186, %v3177
      %v3682 = vpack.c.b16 %v3187, %v3178
      %v3683 = vpack.c.b16 %v3197, %v3188
      %v3684 = vpack.c.b16 %v3198, %v3189
      %v3685 = vpack.c.b16 %v3199, %v3190
      %v3686 = vpack.c.b16 %v3200, %v3191
      %v3687 = vpack.c.b16 %v3201, %v3192
      %v3688 = vpack.c.b16 %v3202, %v3193
      %v3689 = vpack.c.b16 %v3203, %v3194
      %v3690 = vpack.c.b16 %v3204, %v3195
      %v3691 = vpack.c.b16 %v3205, %v3196
      %v3692 = vpack.c.b16 %v3215, %v3206
      %v3693 = vpack.c.b16 %v3216, %v3207
      %v3694 = vpack.c.b16 %v3217, %v3208
      %v3695 = vpack.c.b16 %v3218, %v3209
      %v3696 = vpack.c.b16 %v3219, %v3210
      %v3697 = vpack.c.b16 %v3220, %v3211
      %v3698 = vpack.c.b16 %v3221, %v3212
      %v3699 = vpack.c.b16 %v3222, %v3213
      %v3700 = vpack.c.b16 %v3223, %v3214
      %v3701 = vpack.c.b16 %v3233, %v3224
      %v3702 = vpack.c.b16 %v3234, %v3225
      %v3703 = vpack.c.b16 %v3235, %v3226
      %v3704 = vpack.c.b16 %v3236, %v3227
      %v3705 = vpack.c.b16 %v3237, %v3228
      %v3706 = vpack.c.b16 %v3238, %v3229
      %v3707 = vpack.c.b16 %v3239, %v3230
      %v3708 = vpack.c.b16 %v3240, %v3231
      %v3709 = vpack.c.b16 %v3241, %v3232
      %v3710 = vpack.c.b16 %v3251, %v3242
      %v3711 = vpack.c.b16 %v3252, %v3243
      %v3712 = vpack.c.b16 %v3253, %v3244
      %v3713 = vpack.c.b16 %v3254, %v3245
      %v3714 = vpack.c.b16 %v3255, %v3246
      %v3715 = vpack.c.b16 %v3256, %v3247
      %v3716 = vpack.c.b16 %v3257, %v3248
      %v3717 = vpack.c.b16 %v3258, %v3249
      %v3718 = vpack.c.b16 %v3259, %v3250
      %v3719 = vpack.c.b16 %v3269, %v3260
      %v3720 = vpack.c.b16 %v3270, %v3261
      %v3721 = vpack.c.b16 %v3271, %v3262
      %v3722 = vpack.c.b16 %v3272, %v3263
      %v3723 = vpack.c.b16 %v3273, %v3264
      %v3724 = vpack.c.b16 %v3274, %v3265
      %v3725 = vpack.c.b16 %v3275, %v3266
      %v3726 = vpack.c.b16 %v3276, %v3267
      %v3727 = vpack.c.b16 %v3277, %v3268
      %v3728 = vpack.c.b16 %v3287, %v3278
      %v3729 = vpack.c.b16 %v3288, %v3279
      %v3730 = vpack.c.b16 %v3289, %v3280
      %v3731 = vpack.c.b16 %v3290, %v3281
      %v3732 = vpack.c.b16 %v3291, %v3282
      %v3733 = vpack.c.b16 %v3292, %v3283
      %v3734 = vpack.c.b16 %v3293, %v3284
      %v3735 = vpack.c.b16 %v3294, %v3285
      %v3736 = vpack.c.b16 %v3295, %v3286
      %v3737 = vpack.c.b16 %v3305, %v3296
      %v3738 = vpack.c.b16 %v3306, %v3297
      %v3739 = vpack.c.b16 %v3307, %v3298
      %v3740 = vpack.c.b16 %v3308, %v3299
      %v3741 = vpack.c.b16 %v3309, %v3300
      %v3742 = vpack.c.b16 %v3310, %v3301
      %v3743 = vpack.c.b16 %v3311, %v3302
      %v3744 = vpack.c.b16 %v3312, %v3303
      %v3745 = vpack.c.b16 %v3313, %v3304
      %v3746 = vpack.c.b16 %v3323, %v3314
      %v3747 = vpack.c.b16 %v3324, %v3315
      %v3748 = vpack.c.b16 %v3325, %v3316
      %v3749 = vpack.c.b16 %v3326, %v3317
      %v3750 = vpack.c.b16 %v3327, %v3318
      %v3751 = vpack.c.b16 %v3328, %v3319
      %v3752 = vpack.c.b16 %v3329, %v3320
      %v3753 = vpack.c.b16 %v3330, %v3321
      %v3754 = vpack.c.b16 %v3331, %v3322
      %v3755 = vpack.c.b16 %v3341, %v3332
      %v3756 = vpack.c.b16 %v3342, %v3333
      %v3757 = vpack.c.b16 %v3343, %v3334
      %v3758 = vpack.c.b16 %v3344, %v3335
      %v3759 = vpack.c.b16 %v3345, %v3336
      %v3760 = vpack.c.b16 %v3346, %v3337
      %v3761 = vpack.c.b16 %v3347, %v3338
      %v3762 = vpack.c.b16 %v3348, %v3339
      %v3763 = vpack.c.b16 %v3349, %v3340
      %v3764 = vpack.c.b16 %v3359, %v3350
      %v3765 = vpack.c.b16 %v3360, %v3351
      %v3766 = vpack.c.b16 %v3361, %v3352
      %v3767 = vpack.c.b16 %v3362, %v3353
      %v3768 = vpack.c.b16 %v3363, %v3354
      %v3769 = vpack.c.b16 %v3364, %v3355
      %v3770 = vpack.c.b16 %v3365, %v3356
      %v3771 = vpack.c.b16 %v3366, %v3357
      %v3772 = vpack.c.b16 %v3367, %v3358
      %v3773 = vpack.c.b16 %v3377, %v3368
      %v3774 = vpack.c.b16 %v3378, %v3369
      %v3775 = vpack.c.b16 %v3379, %v3370
      %v3776 = vpack.c.b16 %v3380, %v3371
      %v3777 = vpack.c.b16 %v3381, %v3372
      %v3778 = vpack.c.b16 %v3382, %v3373
      %v3779 = vpack.c.b16 %v3383, %v3374
      %v3780 = vpack.c.b16 %v3384, %v3375
      %v3781 = vpack.c.b16 %v3385, %v3376
      %v3782 = vpack.c.b16 %v3395, %v3386
      %v3783 = vpack.c.b16 %v3396, %v3387
      %v3784 = vpack.c.b16 %v3397, %v3388
      %v3785 = vpack.c.b16 %v3398, %v3389
      %v3786 = vpack.c.b16 %v3399, %v3390
      %v3787 = vpack.c.b16 %v3400, %v3391
      %v3788 = vpack.c.b16 %v3401, %v3392
      %v3789 = vpack.c.b16 %v3402, %v3393
      %v3790 = vpack.c.b16 %v3403, %v3394
      %v3791 = vpack.c.b16 %v3413, %v3404
      %v3792 = vpack.c.b16 %v3414, %v3405
      %v3793 = vpack.c.b16 %v3415, %v3406
      %v3794 = vpack.c.b16 %v3416, %v3407
      %v3795 = vpack.c.b16 %v3417, %v3408
      %v3796 = vpack.c.b16 %v3418, %v3409
      %v3797 = vpack.c.b16 %v3419, %v3410
      %v3798 = vpack.c.b16 %v3420, %v3411
      %v3799 = vpack.c.b16 %v3421, %v3412
      %v3800 = vpack.c.b16 %v3431, %v3422
      %v3801 = vpack.c.b16 %v3432, %v3423
      %v3802 = vpack.c.b16 %v3433, %v3424
      %v3803 = vpack.c.b16 %v3434, %v3425
      %v3804 = vpack.c.b16 %v3435, %v3426
      %v3805 = vpack.c.b16 %v3436, %v3427
      %v3806 = vpack.c.b16 %v3437, %v3428
      %v3807 = vpack.c.b16 %v3438, %v3429
      %v3808 = vpack.c.b16 %v3439, %v3430
      %v3809 = vpack.c.b16 %v3449, %v3440
      %v3810 = vpack.c.b16 %v3450, %v3441
      %v3811 = vpack.c.b16 %v3451, %v3442
      %v3812 = vpack.c.b16 %v3452, %v3443
      %v3813 = vpack.c.b16 %v3453, %v3444
      %v3814 = vpack.c.b16 %v3454, %v3445
      %v3815 = vpack.c.b16 %v3455, %v3446
      %v3816 = vpack.c.b16 %v3456, %v3447
      %v3817 = vpack.c.b16 %v3457, %v3448
      %v3818 = vpack.c.b16 %v3467, %v3458
      %v3819 = vpack.c.b16 %v3468, %v3459
      %v3820 = vpack.c.b16 %v3469, %v3460
      %v3821 = vpack.c.b16 %v3470, %v3461
      %v3822 = vpack.c.b16 %v3471, %v3462
      %v3823 = vpack.c.b16 %v3472, %v3463
      %v3824 = vpack.c.b16 %v3473, %v3464
      %v3825 = vpack.c.b16 %v3474, %v3465
      %v3826 = vpack.c.b16 %v3475, %v3466
      %v3827 = vpack.c.b16 %v3485, %v3476
      %v3828 = vpack.c.b16 %v3486, %v3477
      %v3829 = vpack.c.b16 %v3487, %v3478
      %v3830 = vpack.c.b16 %v3488, %v3479
      %v3831 = vpack.c.b16 %v3489, %v3480
      %v3832 = vpack.c.b16 %v3490, %v3481
      %v3833 = vpack.c.b16 %v3491, %v3482
      %v3834 = vpack.c.b16 %v3492, %v3483
      %v3835 = vpack.c.b16 %v3493, %v3484
      %v3836 = vpack.c.b16 %v3503, %v3494
      %v3837 = vpack.c.b16 %v3504, %v3495
      %v3838 = vpack.c.b16 %v3505, %v3496
      %v3839 = vpack.c.b16 %v3506, %v3497
      %v3840 = vpack.c.b16 %v3507, %v3498
      %v3841 = vpack.c.b16 %v3508, %v3499
      %v3842 = vpack.c.b16 %v3509, %v3500
      %v3843 = vpack.c.b16 %v3510, %v3501
      %v3844 = vpack.c.b16 %v3511, %v3502
      %v3845 = vpack.c.b16 %v3521, %v3512
      %v3846 = vpack.c.b16 %v3522, %v3513
      %v3847 = vpack.c.b16 %v3523, %v3514
      %v3848 = vpack.c.b16 %v3524, %v3515
      %v3849 = vpack.c.b16 %v3525, %v3516
      %v3850 = vpack.c.b16 %v3526, %v3517
      %v3851 = vpack.c.b16 %v3527, %v3518
      %v3852 = vpack.c.b16 %v3528, %v3519
      %v3853 = vpack.c.b16 %v3529, %v3520
      %vm4142 = vcmask 130048
      %v4144 = vsel %vm4142, %v3538, 0
      %v4147 = vsel %vm4142, %v3547, 0
      %v4150 = vsel %vm4142, %v3556, 0
      %v4153 = vsel %vm4142, %v3565, 0
      %v4156 = vsel %vm4142, %v3574, 0
      %v4159 = vsel %vm4142, %v3583, 0
      %v4162 = vsel %vm4142, %v3592, 0
      %v4165 = vsel %vm4142, %v3601, 0
      %v4168 = vsel %vm4142, %v3610, 0
      %v4171 = vsel %vm4142, %v3619, 0
      %v4174 = vsel %vm4142, %v3628, 0
      %v4177 = vsel %vm4142, %v3637, 0
      %v4180 = vsel %vm4142, %v3646, 0
      %v4183 = vsel %vm4142, %v3655, 0
      %v4186 = vsel %vm4142, %v3664, 0
      %v4189 = vsel %vm4142, %v3673, 0
      %v4192 = vsel %vm4142, %v3682, 0
      %v4195 = vsel %vm4142, %v3691, 0
      %v4198 = vsel %vm4142, %v3700, 0
      %v4201 = vsel %vm4142, %v3709, 0
      %v4204 = vsel %vm4142, %v3718, 0
      %v4207 = vsel %vm4142, %v3727, 0
      %v4210 = vsel %vm4142, %v3736, 0
      %v4213 = vsel %vm4142, %v3745, 0
      %v4216 = vsel %vm4142, %v3754, 0
      %v4219 = vsel %vm4142, %v3763, 0
      %v4222 = vsel %vm4142, %v3772, 0
      %v4225 = vsel %vm4142, %v3781, 0
      %v4228 = vsel %vm4142, %v3790, 0
      %v4231 = vsel %vm4142, %v3799, 0
      %v4234 = vsel %vm4142, %v3808, 0
      %v4237 = vsel %vm4142, %v3817, 0
      %v4240 = vsel %vm4142, %v3826, 0
      %v4243 = vsel %vm4142, %v3835, 0
      %v4246 = vsel %vm4142, %v3844, 0
      %v4249 = vsel %vm4142, %v3853, 0
      %4251 = vmatprep.subr.bf16.mxu0 %v1066
      %4252 = vmatpush1.bf16.msra.mxu0 %v1014
      %4253 = vmatprep.subr.bf16.mxu0 %v1062
      %4254 = vmatpush1.bf16.msra.mxu0 %v1010
      %4255 = vmatprep.subr.bf16.mxu0 %v1058
      %4256 = vmatpush1.bf16.msra.mxu0 %v1006
      %4257 = vmatprep.subr.bf16.mxu0 %v1054
      %4258 = vmatpush1.bf16.msra.mxu0 %v1002
      %4259 = vmatprep.subr.bf16.mxu0 %v1050
      %4260 = vmatpush1.bf16.msra.mxu0 %v998
      %4261 = vmatprep.subr.bf16.mxu0 %v1046
      %4262 = vmatpush1.bf16.msra.mxu0 %v994
      %4263 = vmatprep.subr.bf16.mxu0 %v1042
      %4264 = vmatpush1.bf16.msra.mxu0 %v990
      %4265 = vmatprep.subr.bf16.mxu0 %v1038
      %4266 = vmatpush1.bf16.msra.mxu0 %v986
      %4267 = vmatprep.subr.bf16.mxu0 %v1334
      %4268 = vmatpush2.bf16.msra.mxu0 %v1282
      %4269 = vmatprep.subr.bf16.mxu0 %v1330
      %4270 = vmatpush2.bf16.msra.mxu0 %v1278
      %4271 = vmatprep.subr.bf16.mxu0 %v1326
      %4272 = vmatpush2.bf16.msra.mxu0 %v1274
      %4273 = vmatprep.subr.bf16.mxu0 %v1086
      %4274 = vmatpush2.bf16.msra.mxu0 %v1034
      %4275 = vmatprep.subr.bf16.mxu0 %v1082
      %4276 = vmatpush2.bf16.msra.mxu0 %v1030
      %4277 = vmatprep.subr.bf16.mxu0 %v1078
      %4278 = vmatpush2.bf16.msra.mxu0 %v1026
      %4279 = vmatprep.subr.bf16.mxu0 %v1074
      %4280 = vmatpush2.bf16.msra.mxu0 %v1022
      %4281 = vmatprep.subr.bf16.mxu0 %v1070
      %4282 = vmatpush2.bf16.msra.mxu0 %v1018
      %4283 = vmatprep.mubr.bf16.mxu0 %v3531
      %4284 = vmatmul.mubr.bf16.gmra.mxu0 %v3530
      %v4285 = vpop.f32.mrf.mxu0
      %v4286 = vadd.f32 0.0, %v4285
      %v4287 = vpop.f32.mrf.mxu0
      %v4288 = vadd.f32 0.0, %v4287
      %v4289 = vpop.f32.mrf.mxu0
      %v4290 = vadd.f32 0.0, %v4289
      %v4291 = vpop.f32.mrf.mxu0
      %v4292 = vadd.f32 0.0, %v4291
      %4293 = vmatprep.mubr.bf16.mxu0 %v3540
      %4294 = vmatmul.mubr.bf16.gmra.mxu0 %v3539
      %v4295 = vpop.f32.mrf.mxu0
      %v4296 = vadd.f32 0.0, %v4295
      %v4297 = vpop.f32.mrf.mxu0
      %v4298 = vadd.f32 0.0, %v4297
      %v4299 = vpop.f32.mrf.mxu0
      %v4300 = vadd.f32 0.0, %v4299
      %v4301 = vpop.f32.mrf.mxu0
      %v4302 = vadd.f32 0.0, %v4301
      %4303 = vmatprep.mubr.bf16.mxu0 %v3549
      %4304 = vmatmul.mubr.bf16.gmra.mxu0 %v3548
      %v4305 = vpop.f32.mrf.mxu0
      %v4306 = vadd.f32 0.0, %v4305
      %v4307 = vpop.f32.mrf.mxu0
      %v4308 = vadd.f32 0.0, %v4307
      %v4309 = vpop.f32.mrf.mxu0
      %v4310 = vadd.f32 0.0, %v4309
      %v4311 = vpop.f32.mrf.mxu0
      %v4312 = vadd.f32 0.0, %v4311
      %4313 = vmatprep.mubr.bf16.mxu0 %v3558
      %4314 = vmatmul.mubr.bf16.gmra.mxu0 %v3557
      %v4315 = vpop.f32.mrf.mxu0
      %v4316 = vadd.f32 0.0, %v4315
      %v4317 = vpop.f32.mrf.mxu0
      %v4318 = vadd.f32 0.0, %v4317
      %v4319 = vpop.f32.mrf.mxu0
      %v4320 = vadd.f32 0.0, %v4319
      %v4321 = vpop.f32.mrf.mxu0
      %v4322 = vadd.f32 0.0, %v4321
      %4323 = vmatprep.mubr.bf16.mxu0 %v3567
      %4324 = vmatmul.mubr.bf16.gmra.mxu0 %v3566
      %v4325 = vpop.f32.mrf.mxu0
      %v4326 = vadd.f32 0.0, %v4325
      %v4327 = vpop.f32.mrf.mxu0
      %v4328 = vadd.f32 0.0, %v4327
      %v4329 = vpop.f32.mrf.mxu0
      %v4330 = vadd.f32 0.0, %v4329
      %v4331 = vpop.f32.mrf.mxu0
      %v4332 = vadd.f32 0.0, %v4331
      %4333 = vmatprep.mubr.bf16.mxu0 %v3576
      %4334 = vmatmul.mubr.bf16.gmra.mxu0 %v3575
      %v4335 = vpop.f32.mrf.mxu0
      %v4336 = vadd.f32 0.0, %v4335
      %v4337 = vpop.f32.mrf.mxu0
      %v4338 = vadd.f32 0.0, %v4337
      %v4339 = vpop.f32.mrf.mxu0
      %v4340 = vadd.f32 0.0, %v4339
      %v4341 = vpop.f32.mrf.mxu0
      %v4342 = vadd.f32 0.0, %v4341
      %4343 = vmatprep.mubr.bf16.mxu0 %v3585
      %4344 = vmatmul.mubr.bf16.gmra.mxu0 %v3584
      %v4345 = vpop.f32.mrf.mxu0
      %v4346 = vadd.f32 0.0, %v4345
      %v4347 = vpop.f32.mrf.mxu0
      %v4348 = vadd.f32 0.0, %v4347
      %v4349 = vpop.f32.mrf.mxu0
      %v4350 = vadd.f32 0.0, %v4349
      %v4351 = vpop.f32.mrf.mxu0
      %v4352 = vadd.f32 0.0, %v4351
      %4353 = vmatprep.mubr.bf16.mxu0 %v3594
      %4354 = vmatmul.mubr.bf16.gmra.mxu0 %v3593
      %v4355 = vpop.f32.mrf.mxu0
      %v4356 = vadd.f32 0.0, %v4355
      %v4357 = vpop.f32.mrf.mxu0
      %v4358 = vadd.f32 0.0, %v4357
      %v4359 = vpop.f32.mrf.mxu0
      %v4360 = vadd.f32 0.0, %v4359
      %v4361 = vpop.f32.mrf.mxu0
      %v4362 = vadd.f32 0.0, %v4361
      %4363 = vmatprep.mubr.bf16.mxu0 %v3603
      %4364 = vmatmul.mubr.bf16.gmra.mxu0 %v3602
      %v4365 = vpop.f32.mrf.mxu0
      %v4366 = vadd.f32 0.0, %v4365
      %v4367 = vpop.f32.mrf.mxu0
      %v4368 = vadd.f32 0.0, %v4367
      %v4369 = vpop.f32.mrf.mxu0
      %v4370 = vadd.f32 0.0, %v4369
      %v4371 = vpop.f32.mrf.mxu0
      %v4372 = vadd.f32 0.0, %v4371
      %4373 = vmatprep.mubr.bf16.mxu0 %v3612
      %4374 = vmatmul.mubr.bf16.gmra.mxu0 %v3611
      %v4375 = vpop.f32.mrf.mxu0
      %v4376 = vadd.f32 0.0, %v4375
      %v4377 = vpop.f32.mrf.mxu0
      %v4378 = vadd.f32 0.0, %v4377
      %v4379 = vpop.f32.mrf.mxu0
      %v4380 = vadd.f32 0.0, %v4379
      %v4381 = vpop.f32.mrf.mxu0
      %v4382 = vadd.f32 0.0, %v4381
      %4383 = vmatprep.mubr.bf16.mxu0 %v3621
      %4384 = vmatmul.mubr.bf16.gmra.mxu0 %v3620
      %v4385 = vpop.f32.mrf.mxu0
      %v4386 = vadd.f32 0.0, %v4385
      %v4387 = vpop.f32.mrf.mxu0
      %v4388 = vadd.f32 0.0, %v4387
      %v4389 = vpop.f32.mrf.mxu0
      %v4390 = vadd.f32 0.0, %v4389
      %v4391 = vpop.f32.mrf.mxu0
      %v4392 = vadd.f32 0.0, %v4391
      %4393 = vmatprep.mubr.bf16.mxu0 %v3630
      %4394 = vmatmul.mubr.bf16.gmra.mxu0 %v3629
      %v4395 = vpop.f32.mrf.mxu0
      %v4396 = vadd.f32 0.0, %v4395
      %v4397 = vpop.f32.mrf.mxu0
      %v4398 = vadd.f32 0.0, %v4397
      %v4399 = vpop.f32.mrf.mxu0
      %v4400 = vadd.f32 0.0, %v4399
      %v4401 = vpop.f32.mrf.mxu0
      %v4402 = vadd.f32 0.0, %v4401
      %4403 = vmatprep.mubr.bf16.mxu0 %v3639
      %4404 = vmatmul.mubr.bf16.gmra.mxu0 %v3638
      %v4405 = vpop.f32.mrf.mxu0
      %v4406 = vadd.f32 0.0, %v4405
      %v4407 = vpop.f32.mrf.mxu0
      %v4408 = vadd.f32 0.0, %v4407
      %v4409 = vpop.f32.mrf.mxu0
      %v4410 = vadd.f32 0.0, %v4409
      %v4411 = vpop.f32.mrf.mxu0
      %v4412 = vadd.f32 0.0, %v4411
      %4413 = vmatprep.mubr.bf16.mxu0 %v3648
      %4414 = vmatmul.mubr.bf16.gmra.mxu0 %v3647
      %v4415 = vpop.f32.mrf.mxu0
      %v4416 = vadd.f32 0.0, %v4415
      %v4417 = vpop.f32.mrf.mxu0
      %v4418 = vadd.f32 0.0, %v4417
      %v4419 = vpop.f32.mrf.mxu0
      %v4420 = vadd.f32 0.0, %v4419
      %v4421 = vpop.f32.mrf.mxu0
      %v4422 = vadd.f32 0.0, %v4421
      %4423 = vmatprep.mubr.bf16.mxu0 %v3657
      %4424 = vmatmul.mubr.bf16.gmra.mxu0 %v3656
      %v4425 = vpop.f32.mrf.mxu0
      %v4426 = vadd.f32 0.0, %v4425
      %v4427 = vpop.f32.mrf.mxu0
      %v4428 = vadd.f32 0.0, %v4427
      %v4429 = vpop.f32.mrf.mxu0
      %v4430 = vadd.f32 0.0, %v4429
      %v4431 = vpop.f32.mrf.mxu0
      %v4432 = vadd.f32 0.0, %v4431
      %4433 = vmatprep.mubr.bf16.mxu0 %v3666
      %4434 = vmatmul.mubr.bf16.gmra.mxu0 %v3665
      %v4435 = vpop.f32.mrf.mxu0
      %v4436 = vadd.f32 0.0, %v4435
      %v4437 = vpop.f32.mrf.mxu0
      %v4438 = vadd.f32 0.0, %v4437
      %v4439 = vpop.f32.mrf.mxu0
      %v4440 = vadd.f32 0.0, %v4439
      %v4441 = vpop.f32.mrf.mxu0
      %v4442 = vadd.f32 0.0, %v4441
      %4443 = vmatprep.mubr.bf16.mxu0 %v3675
      %4444 = vmatmul.mubr.bf16.gmra.mxu0 %v3674
      %v4445 = vpop.f32.mrf.mxu0
      %v4446 = vadd.f32 0.0, %v4445
      %v4447 = vpop.f32.mrf.mxu0
      %v4448 = vadd.f32 0.0, %v4447
      %v4449 = vpop.f32.mrf.mxu0
      %v4450 = vadd.f32 0.0, %v4449
      %v4451 = vpop.f32.mrf.mxu0
      %v4452 = vadd.f32 0.0, %v4451
      %4453 = vmatprep.mubr.bf16.mxu0 %v3684
      %4454 = vmatmul.mubr.bf16.gmra.mxu0 %v3683
      %v4455 = vpop.f32.mrf.mxu0
      %v4456 = vadd.f32 0.0, %v4455
      %v4457 = vpop.f32.mrf.mxu0
      %v4458 = vadd.f32 0.0, %v4457
      %v4459 = vpop.f32.mrf.mxu0
      %v4460 = vadd.f32 0.0, %v4459
      %v4461 = vpop.f32.mrf.mxu0
      %v4462 = vadd.f32 0.0, %v4461
      %4463 = vmatprep.mubr.bf16.mxu0 %v3693
      %4464 = vmatmul.mubr.bf16.gmra.mxu0 %v3692
      %v4465 = vpop.f32.mrf.mxu0
      %v4466 = vadd.f32 0.0, %v4465
      %v4467 = vpop.f32.mrf.mxu0
      %v4468 = vadd.f32 0.0, %v4467
      %v4469 = vpop.f32.mrf.mxu0
      %v4470 = vadd.f32 0.0, %v4469
      %v4471 = vpop.f32.mrf.mxu0
      %v4472 = vadd.f32 0.0, %v4471
      %4473 = vmatprep.mubr.bf16.mxu0 %v3702
      %4474 = vmatmul.mubr.bf16.gmra.mxu0 %v3701
      %v4475 = vpop.f32.mrf.mxu0
      %v4476 = vadd.f32 0.0, %v4475
      %v4477 = vpop.f32.mrf.mxu0
      %v4478 = vadd.f32 0.0, %v4477
      %v4479 = vpop.f32.mrf.mxu0
      %v4480 = vadd.f32 0.0, %v4479
      %v4481 = vpop.f32.mrf.mxu0
      %v4482 = vadd.f32 0.0, %v4481
      %4483 = vmatprep.mubr.bf16.mxu0 %v3711
      %4484 = vmatmul.mubr.bf16.gmra.mxu0 %v3710
      %v4485 = vpop.f32.mrf.mxu0
      %v4486 = vadd.f32 0.0, %v4485
      %v4487 = vpop.f32.mrf.mxu0
      %v4488 = vadd.f32 0.0, %v4487
      %v4489 = vpop.f32.mrf.mxu0
      %v4490 = vadd.f32 0.0, %v4489
      %v4491 = vpop.f32.mrf.mxu0
      %v4492 = vadd.f32 0.0, %v4491
      %4493 = vmatprep.mubr.bf16.mxu0 %v3720
      %4494 = vmatmul.mubr.bf16.gmra.mxu0 %v3719
      %v4495 = vpop.f32.mrf.mxu0
      %v4496 = vadd.f32 0.0, %v4495
      %v4497 = vpop.f32.mrf.mxu0
      %v4498 = vadd.f32 0.0, %v4497
      %v4499 = vpop.f32.mrf.mxu0
      %v4500 = vadd.f32 0.0, %v4499
      %v4501 = vpop.f32.mrf.mxu0
      %v4502 = vadd.f32 0.0, %v4501
      %4503 = vmatprep.mubr.bf16.mxu0 %v3729
      %4504 = vmatmul.mubr.bf16.gmra.mxu0 %v3728
      %v4505 = vpop.f32.mrf.mxu0
      %v4506 = vadd.f32 0.0, %v4505
      %v4507 = vpop.f32.mrf.mxu0
      %v4508 = vadd.f32 0.0, %v4507
      %v4509 = vpop.f32.mrf.mxu0
      %v4510 = vadd.f32 0.0, %v4509
      %v4511 = vpop.f32.mrf.mxu0
      %v4512 = vadd.f32 0.0, %v4511
      %4513 = vmatprep.mubr.bf16.mxu0 %v3738
      %4514 = vmatmul.mubr.bf16.gmra.mxu0 %v3737
      %v4515 = vpop.f32.mrf.mxu0
      %v4516 = vadd.f32 0.0, %v4515
      %v4517 = vpop.f32.mrf.mxu0
      %v4518 = vadd.f32 0.0, %v4517
      %v4519 = vpop.f32.mrf.mxu0
      %v4520 = vadd.f32 0.0, %v4519
      %v4521 = vpop.f32.mrf.mxu0
      %v4522 = vadd.f32 0.0, %v4521
      %4523 = vmatprep.mubr.bf16.mxu0 %v3747
      %4524 = vmatmul.mubr.bf16.gmra.mxu0 %v3746
      %v4525 = vpop.f32.mrf.mxu0
      %v4526 = vadd.f32 0.0, %v4525
      %v4527 = vpop.f32.mrf.mxu0
      %v4528 = vadd.f32 0.0, %v4527
      %v4529 = vpop.f32.mrf.mxu0
      %v4530 = vadd.f32 0.0, %v4529
      %v4531 = vpop.f32.mrf.mxu0
      %v4532 = vadd.f32 0.0, %v4531
      %4533 = vmatprep.mubr.bf16.mxu0 %v3756
      %4534 = vmatmul.mubr.bf16.gmra.mxu0 %v3755
      %v4535 = vpop.f32.mrf.mxu0
      %v4536 = vadd.f32 0.0, %v4535
      %v4537 = vpop.f32.mrf.mxu0
      %v4538 = vadd.f32 0.0, %v4537
      %v4539 = vpop.f32.mrf.mxu0
      %v4540 = vadd.f32 0.0, %v4539
      %v4541 = vpop.f32.mrf.mxu0
      %v4542 = vadd.f32 0.0, %v4541
      %4543 = vmatprep.mubr.bf16.mxu0 %v3765
      %4544 = vmatmul.mubr.bf16.gmra.mxu0 %v3764
      %v4545 = vpop.f32.mrf.mxu0
      %v4546 = vadd.f32 0.0, %v4545
      %v4547 = vpop.f32.mrf.mxu0
      %v4548 = vadd.f32 0.0, %v4547
      %v4549 = vpop.f32.mrf.mxu0
      %v4550 = vadd.f32 0.0, %v4549
      %v4551 = vpop.f32.mrf.mxu0
      %v4552 = vadd.f32 0.0, %v4551
      %4553 = vmatprep.mubr.bf16.mxu0 %v3774
      %4554 = vmatmul.mubr.bf16.gmra.mxu0 %v3773
      %v4555 = vpop.f32.mrf.mxu0
      %v4556 = vadd.f32 0.0, %v4555
      %v4557 = vpop.f32.mrf.mxu0
      %v4558 = vadd.f32 0.0, %v4557
      %v4559 = vpop.f32.mrf.mxu0
      %v4560 = vadd.f32 0.0, %v4559
      %v4561 = vpop.f32.mrf.mxu0
      %v4562 = vadd.f32 0.0, %v4561
      %4563 = vmatprep.mubr.bf16.mxu0 %v3783
      %4564 = vmatmul.mubr.bf16.gmra.mxu0 %v3782
      %v4565 = vpop.f32.mrf.mxu0
      %v4566 = vadd.f32 0.0, %v4565
      %v4567 = vpop.f32.mrf.mxu0
      %v4568 = vadd.f32 0.0, %v4567
      %v4569 = vpop.f32.mrf.mxu0
      %v4570 = vadd.f32 0.0, %v4569
      %v4571 = vpop.f32.mrf.mxu0
      %v4572 = vadd.f32 0.0, %v4571
      %4573 = vmatprep.mubr.bf16.mxu0 %v3792
      %4574 = vmatmul.mubr.bf16.gmra.mxu0 %v3791
      %v4575 = vpop.f32.mrf.mxu0
      %v4576 = vadd.f32 0.0, %v4575
      %v4577 = vpop.f32.mrf.mxu0
      %v4578 = vadd.f32 0.0, %v4577
      %v4579 = vpop.f32.mrf.mxu0
      %v4580 = vadd.f32 0.0, %v4579
      %v4581 = vpop.f32.mrf.mxu0
      %v4582 = vadd.f32 0.0, %v4581
      %4583 = vmatprep.mubr.bf16.mxu0 %v3801
      %4584 = vmatmul.mubr.bf16.gmra.mxu0 %v3800
      %v4585 = vpop.f32.mrf.mxu0
      %v4586 = vadd.f32 0.0, %v4585
      %v4587 = vpop.f32.mrf.mxu0
      %v4588 = vadd.f32 0.0, %v4587
      %v4589 = vpop.f32.mrf.mxu0
      %v4590 = vadd.f32 0.0, %v4589
      %v4591 = vpop.f32.mrf.mxu0
      %v4592 = vadd.f32 0.0, %v4591
      %4593 = vmatprep.mubr.bf16.mxu0 %v3810
      %4594 = vmatmul.mubr.bf16.gmra.mxu0 %v3809
      %v4595 = vpop.f32.mrf.mxu0
      %v4596 = vadd.f32 0.0, %v4595
      %v4597 = vpop.f32.mrf.mxu0
      %v4598 = vadd.f32 0.0, %v4597
      %v4599 = vpop.f32.mrf.mxu0
      %v4600 = vadd.f32 0.0, %v4599
      %v4601 = vpop.f32.mrf.mxu0
      %v4602 = vadd.f32 0.0, %v4601
      %4603 = vmatprep.mubr.bf16.mxu0 %v3819
      %4604 = vmatmul.mubr.bf16.gmra.mxu0 %v3818
      %v4605 = vpop.f32.mrf.mxu0
      %v4606 = vadd.f32 0.0, %v4605
      %v4607 = vpop.f32.mrf.mxu0
      %v4608 = vadd.f32 0.0, %v4607
      %v4609 = vpop.f32.mrf.mxu0
      %v4610 = vadd.f32 0.0, %v4609
      %v4611 = vpop.f32.mrf.mxu0
      %v4612 = vadd.f32 0.0, %v4611
      %4613 = vmatprep.mubr.bf16.mxu0 %v3828
      %4614 = vmatmul.mubr.bf16.gmra.mxu0 %v3827
      %v4615 = vpop.f32.mrf.mxu0
      %v4616 = vadd.f32 0.0, %v4615
      %v4617 = vpop.f32.mrf.mxu0
      %v4618 = vadd.f32 0.0, %v4617
      %v4619 = vpop.f32.mrf.mxu0
      %v4620 = vadd.f32 0.0, %v4619
      %v4621 = vpop.f32.mrf.mxu0
      %v4622 = vadd.f32 0.0, %v4621
      %4623 = vmatprep.mubr.bf16.mxu0 %v3837
      %4624 = vmatmul.mubr.bf16.gmra.mxu0 %v3836
      %v4625 = vpop.f32.mrf.mxu0
      %v4626 = vadd.f32 0.0, %v4625
      %v4627 = vpop.f32.mrf.mxu0
      %v4628 = vadd.f32 0.0, %v4627
      %v4629 = vpop.f32.mrf.mxu0
      %v4630 = vadd.f32 0.0, %v4629
      %v4631 = vpop.f32.mrf.mxu0
      %v4632 = vadd.f32 0.0, %v4631
      %4633 = vmatprep.mubr.bf16.mxu0 %v3846
      %4634 = vmatmul.mubr.bf16.gmra.mxu0 %v3845
      %v4635 = vpop.f32.mrf.mxu0
      %v4636 = vadd.f32 0.0, %v4635
      %v4637 = vpop.f32.mrf.mxu0
      %v4638 = vadd.f32 0.0, %v4637
      %v4639 = vpop.f32.mrf.mxu0
      %v4640 = vadd.f32 0.0, %v4639
      %v4641 = vpop.f32.mrf.mxu0
      %v4642 = vadd.f32 0.0, %v4641
      %4643 = vdwg.mxu0
      %4644 = vmatprep.subr.bf16.mxu0 %v1366
      %4645 = vmatpush1.bf16.msra.mxu0 %v1314
      %4646 = vmatprep.subr.bf16.mxu0 %v1362
      %4647 = vmatpush1.bf16.msra.mxu0 %v1310
      %4648 = vmatprep.subr.bf16.mxu0 %v1358
      %4649 = vmatpush1.bf16.msra.mxu0 %v1306
      %4650 = vmatprep.subr.bf16.mxu0 %v1354
      %4651 = vmatpush1.bf16.msra.mxu0 %v1302
      %4652 = vmatprep.subr.bf16.mxu0 %v1350
      %4653 = vmatpush1.bf16.msra.mxu0 %v1298
      %4654 = vmatprep.subr.bf16.mxu0 %v1346
      %4655 = vmatpush1.bf16.msra.mxu0 %v1294
      %4656 = vmatprep.subr.bf16.mxu0 %v1342
      %4657 = vmatpush1.bf16.msra.mxu0 %v1290
      %4658 = vmatprep.subr.bf16.mxu0 %v1338
      %4659 = vmatpush1.bf16.msra.mxu0 %v1286
      %4660 = vmatprep.subr.bf16.mxu0 %v1634
      %4661 = vmatpush2.bf16.msra.mxu0 %v1582
      %4662 = vmatprep.subr.bf16.mxu0 %v1630
      %4663 = vmatpush2.bf16.msra.mxu0 %v1578
      %4664 = vmatprep.subr.bf16.mxu0 %v1626
      %4665 = vmatpush2.bf16.msra.mxu0 %v1574
      %4666 = vmatprep.subr.bf16.mxu0 %v1622
      %4667 = vmatpush2.bf16.msra.mxu0 %v1570
      %4668 = vmatprep.subr.bf16.mxu0 %v1618
      %4669 = vmatpush2.bf16.msra.mxu0 %v1566
      %4670 = vmatprep.subr.bf16.mxu0 %v1614
      %4671 = vmatpush2.bf16.msra.mxu0 %v1562
      %4672 = vmatprep.subr.bf16.mxu0 %v1374
      %4673 = vmatpush2.bf16.msra.mxu0 %v1322
      %4674 = vmatprep.subr.bf16.mxu0 %v1370
      %4675 = vmatpush2.bf16.msra.mxu0 %v1318
      %4676 = vmatprep.mubr.bf16.mxu0 %v3533
      %4677 = vmatmul.mubr.bf16.gmra.mxu0 %v3532
      %v4678 = vpop.f32.mrf.mxu0
      %v4679 = vadd.f32 %v4286, %v4678
      %v4680 = vpop.f32.mrf.mxu0
      %v4681 = vadd.f32 %v4288, %v4680
      %v4682 = vpop.f32.mrf.mxu0
      %v4683 = vadd.f32 %v4290, %v4682
      %v4684 = vpop.f32.mrf.mxu0
      %v4685 = vadd.f32 %v4292, %v4684
      %4686 = vmatprep.mubr.bf16.mxu0 %v3542
      %4687 = vmatmul.mubr.bf16.gmra.mxu0 %v3541
      %v4688 = vpop.f32.mrf.mxu0
      %v4689 = vadd.f32 %v4296, %v4688
      %v4690 = vpop.f32.mrf.mxu0
      %v4691 = vadd.f32 %v4298, %v4690
      %v4692 = vpop.f32.mrf.mxu0
      %v4693 = vadd.f32 %v4300, %v4692
      %v4694 = vpop.f32.mrf.mxu0
      %v4695 = vadd.f32 %v4302, %v4694
      %4696 = vmatprep.mubr.bf16.mxu0 %v3551
      %4697 = vmatmul.mubr.bf16.gmra.mxu0 %v3550
      %v4698 = vpop.f32.mrf.mxu0
      %v4699 = vadd.f32 %v4306, %v4698
      %v4700 = vpop.f32.mrf.mxu0
      %v4701 = vadd.f32 %v4308, %v4700
      %v4702 = vpop.f32.mrf.mxu0
      %v4703 = vadd.f32 %v4310, %v4702
      %v4704 = vpop.f32.mrf.mxu0
      %v4705 = vadd.f32 %v4312, %v4704
      %4706 = vmatprep.mubr.bf16.mxu0 %v3560
      %4707 = vmatmul.mubr.bf16.gmra.mxu0 %v3559
      %v4708 = vpop.f32.mrf.mxu0
      %v4709 = vadd.f32 %v4316, %v4708
      %v4710 = vpop.f32.mrf.mxu0
      %v4711 = vadd.f32 %v4318, %v4710
      %v4712 = vpop.f32.mrf.mxu0
      %v4713 = vadd.f32 %v4320, %v4712
      %v4714 = vpop.f32.mrf.mxu0
      %v4715 = vadd.f32 %v4322, %v4714
      %4716 = vmatprep.mubr.bf16.mxu0 %v3569
      %4717 = vmatmul.mubr.bf16.gmra.mxu0 %v3568
      %v4718 = vpop.f32.mrf.mxu0
      %v4719 = vadd.f32 %v4326, %v4718
      %v4720 = vpop.f32.mrf.mxu0
      %v4721 = vadd.f32 %v4328, %v4720
      %v4722 = vpop.f32.mrf.mxu0
      %v4723 = vadd.f32 %v4330, %v4722
      %v4724 = vpop.f32.mrf.mxu0
      %v4725 = vadd.f32 %v4332, %v4724
      %4726 = vmatprep.mubr.bf16.mxu0 %v3578
      %4727 = vmatmul.mubr.bf16.gmra.mxu0 %v3577
      %v4728 = vpop.f32.mrf.mxu0
      %v4729 = vadd.f32 %v4336, %v4728
      %v4730 = vpop.f32.mrf.mxu0
      %v4731 = vadd.f32 %v4338, %v4730
      %v4732 = vpop.f32.mrf.mxu0
      %v4733 = vadd.f32 %v4340, %v4732
      %v4734 = vpop.f32.mrf.mxu0
      %v4735 = vadd.f32 %v4342, %v4734
      %4736 = vmatprep.mubr.bf16.mxu0 %v3587
      %4737 = vmatmul.mubr.bf16.gmra.mxu0 %v3586
      %v4738 = vpop.f32.mrf.mxu0
      %v4739 = vadd.f32 %v4346, %v4738
      %v4740 = vpop.f32.mrf.mxu0
      %v4741 = vadd.f32 %v4348, %v4740
      %v4742 = vpop.f32.mrf.mxu0
      %v4743 = vadd.f32 %v4350, %v4742
      %v4744 = vpop.f32.mrf.mxu0
      %v4745 = vadd.f32 %v4352, %v4744
      %4746 = vmatprep.mubr.bf16.mxu0 %v3596
      %4747 = vmatmul.mubr.bf16.gmra.mxu0 %v3595
      %v4748 = vpop.f32.mrf.mxu0
      %v4749 = vadd.f32 %v4356, %v4748
      %v4750 = vpop.f32.mrf.mxu0
      %v4751 = vadd.f32 %v4358, %v4750
      %v4752 = vpop.f32.mrf.mxu0
      %v4753 = vadd.f32 %v4360, %v4752
      %v4754 = vpop.f32.mrf.mxu0
      %v4755 = vadd.f32 %v4362, %v4754
      %4756 = vmatprep.mubr.bf16.mxu0 %v3605
      %4757 = vmatmul.mubr.bf16.gmra.mxu0 %v3604
      %v4758 = vpop.f32.mrf.mxu0
      %v4759 = vadd.f32 %v4366, %v4758
      %v4760 = vpop.f32.mrf.mxu0
      %v4761 = vadd.f32 %v4368, %v4760
      %v4762 = vpop.f32.mrf.mxu0
      %v4763 = vadd.f32 %v4370, %v4762
      %v4764 = vpop.f32.mrf.mxu0
      %v4765 = vadd.f32 %v4372, %v4764
      %4766 = vmatprep.mubr.bf16.mxu0 %v3614
      %4767 = vmatmul.mubr.bf16.gmra.mxu0 %v3613
      %v4768 = vpop.f32.mrf.mxu0
      %v4769 = vadd.f32 %v4376, %v4768
      %v4770 = vpop.f32.mrf.mxu0
      %v4771 = vadd.f32 %v4378, %v4770
      %v4772 = vpop.f32.mrf.mxu0
      %v4773 = vadd.f32 %v4380, %v4772
      %v4774 = vpop.f32.mrf.mxu0
      %v4775 = vadd.f32 %v4382, %v4774
      %4776 = vmatprep.mubr.bf16.mxu0 %v3623
      %4777 = vmatmul.mubr.bf16.gmra.mxu0 %v3622
      %v4778 = vpop.f32.mrf.mxu0
      %v4779 = vadd.f32 %v4386, %v4778
      %v4780 = vpop.f32.mrf.mxu0
      %v4781 = vadd.f32 %v4388, %v4780
      %v4782 = vpop.f32.mrf.mxu0
      %v4783 = vadd.f32 %v4390, %v4782
      %v4784 = vpop.f32.mrf.mxu0
      %v4785 = vadd.f32 %v4392, %v4784
      %4786 = vmatprep.mubr.bf16.mxu0 %v3632
      %4787 = vmatmul.mubr.bf16.gmra.mxu0 %v3631
      %v4788 = vpop.f32.mrf.mxu0
      %v4789 = vadd.f32 %v4396, %v4788
      %v4790 = vpop.f32.mrf.mxu0
      %v4791 = vadd.f32 %v4398, %v4790
      %v4792 = vpop.f32.mrf.mxu0
      %v4793 = vadd.f32 %v4400, %v4792
      %v4794 = vpop.f32.mrf.mxu0
      %v4795 = vadd.f32 %v4402, %v4794
      %4796 = vmatprep.mubr.bf16.mxu0 %v3641
      %4797 = vmatmul.mubr.bf16.gmra.mxu0 %v3640
      %v4798 = vpop.f32.mrf.mxu0
      %v4799 = vadd.f32 %v4406, %v4798
      %v4800 = vpop.f32.mrf.mxu0
      %v4801 = vadd.f32 %v4408, %v4800
      %v4802 = vpop.f32.mrf.mxu0
      %v4803 = vadd.f32 %v4410, %v4802
      %v4804 = vpop.f32.mrf.mxu0
      %v4805 = vadd.f32 %v4412, %v4804
      %4806 = vmatprep.mubr.bf16.mxu0 %v3650
      %4807 = vmatmul.mubr.bf16.gmra.mxu0 %v3649
      %v4808 = vpop.f32.mrf.mxu0
      %v4809 = vadd.f32 %v4416, %v4808
      %v4810 = vpop.f32.mrf.mxu0
      %v4811 = vadd.f32 %v4418, %v4810
      %v4812 = vpop.f32.mrf.mxu0
      %v4813 = vadd.f32 %v4420, %v4812
      %v4814 = vpop.f32.mrf.mxu0
      %v4815 = vadd.f32 %v4422, %v4814
      %4816 = vmatprep.mubr.bf16.mxu0 %v3659
      %4817 = vmatmul.mubr.bf16.gmra.mxu0 %v3658
      %v4818 = vpop.f32.mrf.mxu0
      %v4819 = vadd.f32 %v4426, %v4818
      %v4820 = vpop.f32.mrf.mxu0
      %v4821 = vadd.f32 %v4428, %v4820
      %v4822 = vpop.f32.mrf.mxu0
      %v4823 = vadd.f32 %v4430, %v4822
      %v4824 = vpop.f32.mrf.mxu0
      %v4825 = vadd.f32 %v4432, %v4824
      %4826 = vmatprep.mubr.bf16.mxu0 %v3668
      %4827 = vmatmul.mubr.bf16.gmra.mxu0 %v3667
      %v4828 = vpop.f32.mrf.mxu0
      %v4829 = vadd.f32 %v4436, %v4828
      %v4830 = vpop.f32.mrf.mxu0
      %v4831 = vadd.f32 %v4438, %v4830
      %v4832 = vpop.f32.mrf.mxu0
      %v4833 = vadd.f32 %v4440, %v4832
      %v4834 = vpop.f32.mrf.mxu0
      %v4835 = vadd.f32 %v4442, %v4834
      %4836 = vmatprep.mubr.bf16.mxu0 %v3677
      %4837 = vmatmul.mubr.bf16.gmra.mxu0 %v3676
      %v4838 = vpop.f32.mrf.mxu0
      %v4839 = vadd.f32 %v4446, %v4838
      %v4840 = vpop.f32.mrf.mxu0
      %v4841 = vadd.f32 %v4448, %v4840
      %v4842 = vpop.f32.mrf.mxu0
      %v4843 = vadd.f32 %v4450, %v4842
      %v4844 = vpop.f32.mrf.mxu0
      %v4845 = vadd.f32 %v4452, %v4844
      %4846 = vmatprep.mubr.bf16.mxu0 %v3686
      %4847 = vmatmul.mubr.bf16.gmra.mxu0 %v3685
      %v4848 = vpop.f32.mrf.mxu0
      %v4849 = vadd.f32 %v4456, %v4848
      %v4850 = vpop.f32.mrf.mxu0
      %v4851 = vadd.f32 %v4458, %v4850
      %v4852 = vpop.f32.mrf.mxu0
      %v4853 = vadd.f32 %v4460, %v4852
      %v4854 = vpop.f32.mrf.mxu0
      %v4855 = vadd.f32 %v4462, %v4854
      %4856 = vmatprep.mubr.bf16.mxu0 %v3695
      %4857 = vmatmul.mubr.bf16.gmra.mxu0 %v3694
      %v4858 = vpop.f32.mrf.mxu0
      %v4859 = vadd.f32 %v4466, %v4858
      %v4860 = vpop.f32.mrf.mxu0
      %v4861 = vadd.f32 %v4468, %v4860
      %v4862 = vpop.f32.mrf.mxu0
      %v4863 = vadd.f32 %v4470, %v4862
      %v4864 = vpop.f32.mrf.mxu0
      %v4865 = vadd.f32 %v4472, %v4864
      %4866 = vmatprep.mubr.bf16.mxu0 %v3704
      %4867 = vmatmul.mubr.bf16.gmra.mxu0 %v3703
      %v4868 = vpop.f32.mrf.mxu0
      %v4869 = vadd.f32 %v4476, %v4868
      %v4870 = vpop.f32.mrf.mxu0
      %v4871 = vadd.f32 %v4478, %v4870
      %v4872 = vpop.f32.mrf.mxu0
      %v4873 = vadd.f32 %v4480, %v4872
      %v4874 = vpop.f32.mrf.mxu0
      %v4875 = vadd.f32 %v4482, %v4874
      %4876 = vmatprep.mubr.bf16.mxu0 %v3713
      %4877 = vmatmul.mubr.bf16.gmra.mxu0 %v3712
      %v4878 = vpop.f32.mrf.mxu0
      %v4879 = vadd.f32 %v4486, %v4878
      %v4880 = vpop.f32.mrf.mxu0
      %v4881 = vadd.f32 %v4488, %v4880
      %v4882 = vpop.f32.mrf.mxu0
      %v4883 = vadd.f32 %v4490, %v4882
      %v4884 = vpop.f32.mrf.mxu0
      %v4885 = vadd.f32 %v4492, %v4884
      %4886 = vmatprep.mubr.bf16.mxu0 %v3722
      %4887 = vmatmul.mubr.bf16.gmra.mxu0 %v3721
      %v4888 = vpop.f32.mrf.mxu0
      %v4889 = vadd.f32 %v4496, %v4888
      %v4890 = vpop.f32.mrf.mxu0
      %v4891 = vadd.f32 %v4498, %v4890
      %v4892 = vpop.f32.mrf.mxu0
      %v4893 = vadd.f32 %v4500, %v4892
      %v4894 = vpop.f32.mrf.mxu0
      %v4895 = vadd.f32 %v4502, %v4894
      %4896 = vmatprep.mubr.bf16.mxu0 %v3731
      %4897 = vmatmul.mubr.bf16.gmra.mxu0 %v3730
      %v4898 = vpop.f32.mrf.mxu0
      %v4899 = vadd.f32 %v4506, %v4898
      %v4900 = vpop.f32.mrf.mxu0
      %v4901 = vadd.f32 %v4508, %v4900
      %v4902 = vpop.f32.mrf.mxu0
      %v4903 = vadd.f32 %v4510, %v4902
      %v4904 = vpop.f32.mrf.mxu0
      %v4905 = vadd.f32 %v4512, %v4904
      %4906 = vmatprep.mubr.bf16.mxu0 %v3740
      %4907 = vmatmul.mubr.bf16.gmra.mxu0 %v3739
      %v4908 = vpop.f32.mrf.mxu0
      %v4909 = vadd.f32 %v4516, %v4908
      %v4910 = vpop.f32.mrf.mxu0
      %v4911 = vadd.f32 %v4518, %v4910
      %v4912 = vpop.f32.mrf.mxu0
      %v4913 = vadd.f32 %v4520, %v4912
      %v4914 = vpop.f32.mrf.mxu0
      %v4915 = vadd.f32 %v4522, %v4914
      %4916 = vmatprep.mubr.bf16.mxu0 %v3749
      %4917 = vmatmul.mubr.bf16.gmra.mxu0 %v3748
      %v4918 = vpop.f32.mrf.mxu0
      %v4919 = vadd.f32 %v4526, %v4918
      %v4920 = vpop.f32.mrf.mxu0
      %v4921 = vadd.f32 %v4528, %v4920
      %v4922 = vpop.f32.mrf.mxu0
      %v4923 = vadd.f32 %v4530, %v4922
      %v4924 = vpop.f32.mrf.mxu0
      %v4925 = vadd.f32 %v4532, %v4924
      %4926 = vmatprep.mubr.bf16.mxu0 %v3758
      %4927 = vmatmul.mubr.bf16.gmra.mxu0 %v3757
      %v4928 = vpop.f32.mrf.mxu0
      %v4929 = vadd.f32 %v4536, %v4928
      %v4930 = vpop.f32.mrf.mxu0
      %v4931 = vadd.f32 %v4538, %v4930
      %v4932 = vpop.f32.mrf.mxu0
      %v4933 = vadd.f32 %v4540, %v4932
      %v4934 = vpop.f32.mrf.mxu0
      %v4935 = vadd.f32 %v4542, %v4934
      %4936 = vmatprep.mubr.bf16.mxu0 %v3767
      %4937 = vmatmul.mubr.bf16.gmra.mxu0 %v3766
      %v4938 = vpop.f32.mrf.mxu0
      %v4939 = vadd.f32 %v4546, %v4938
      %v4940 = vpop.f32.mrf.mxu0
      %v4941 = vadd.f32 %v4548, %v4940
      %v4942 = vpop.f32.mrf.mxu0
      %v4943 = vadd.f32 %v4550, %v4942
      %v4944 = vpop.f32.mrf.mxu0
      %v4945 = vadd.f32 %v4552, %v4944
      %4946 = vmatprep.mubr.bf16.mxu0 %v3776
      %4947 = vmatmul.mubr.bf16.gmra.mxu0 %v3775
      %v4948 = vpop.f32.mrf.mxu0
      %v4949 = vadd.f32 %v4556, %v4948
      %v4950 = vpop.f32.mrf.mxu0
      %v4951 = vadd.f32 %v4558, %v4950
      %v4952 = vpop.f32.mrf.mxu0
      %v4953 = vadd.f32 %v4560, %v4952
      %v4954 = vpop.f32.mrf.mxu0
      %v4955 = vadd.f32 %v4562, %v4954
      %4956 = vmatprep.mubr.bf16.mxu0 %v3785
      %4957 = vmatmul.mubr.bf16.gmra.mxu0 %v3784
      %v4958 = vpop.f32.mrf.mxu0
      %v4959 = vadd.f32 %v4566, %v4958
      %v4960 = vpop.f32.mrf.mxu0
      %v4961 = vadd.f32 %v4568, %v4960
      %v4962 = vpop.f32.mrf.mxu0
      %v4963 = vadd.f32 %v4570, %v4962
      %v4964 = vpop.f32.mrf.mxu0
      %v4965 = vadd.f32 %v4572, %v4964
      %4966 = vmatprep.mubr.bf16.mxu0 %v3794
      %4967 = vmatmul.mubr.bf16.gmra.mxu0 %v3793
      %v4968 = vpop.f32.mrf.mxu0
      %v4969 = vadd.f32 %v4576, %v4968
      %v4970 = vpop.f32.mrf.mxu0
      %v4971 = vadd.f32 %v4578, %v4970
      %v4972 = vpop.f32.mrf.mxu0
      %v4973 = vadd.f32 %v4580, %v4972
      %v4974 = vpop.f32.mrf.mxu0
      %v4975 = vadd.f32 %v4582, %v4974
      %4976 = vmatprep.mubr.bf16.mxu0 %v3803
      %4977 = vmatmul.mubr.bf16.gmra.mxu0 %v3802
      %v4978 = vpop.f32.mrf.mxu0
      %v4979 = vadd.f32 %v4586, %v4978
      %v4980 = vpop.f32.mrf.mxu0
      %v4981 = vadd.f32 %v4588, %v4980
      %v4982 = vpop.f32.mrf.mxu0
      %v4983 = vadd.f32 %v4590, %v4982
      %v4984 = vpop.f32.mrf.mxu0
      %v4985 = vadd.f32 %v4592, %v4984
      %4986 = vmatprep.mubr.bf16.mxu0 %v3812
      %4987 = vmatmul.mubr.bf16.gmra.mxu0 %v3811
      %v4988 = vpop.f32.mrf.mxu0
      %v4989 = vadd.f32 %v4596, %v4988
      %v4990 = vpop.f32.mrf.mxu0
      %v4991 = vadd.f32 %v4598, %v4990
      %v4992 = vpop.f32.mrf.mxu0
      %v4993 = vadd.f32 %v4600, %v4992
      %v4994 = vpop.f32.mrf.mxu0
      %v4995 = vadd.f32 %v4602, %v4994
      %4996 = vmatprep.mubr.bf16.mxu0 %v3821
      %4997 = vmatmul.mubr.bf16.gmra.mxu0 %v3820
      %v4998 = vpop.f32.mrf.mxu0
      %v4999 = vadd.f32 %v4606, %v4998
      %v5000 = vpop.f32.mrf.mxu0
      %v5001 = vadd.f32 %v4608, %v5000
      %v5002 = vpop.f32.mrf.mxu0
      %v5003 = vadd.f32 %v4610, %v5002
      %v5004 = vpop.f32.mrf.mxu0
      %v5005 = vadd.f32 %v4612, %v5004
      %5006 = vmatprep.mubr.bf16.mxu0 %v3830
      %5007 = vmatmul.mubr.bf16.gmra.mxu0 %v3829
      %v5008 = vpop.f32.mrf.mxu0
      %v5009 = vadd.f32 %v4616, %v5008
      %v5010 = vpop.f32.mrf.mxu0
      %v5011 = vadd.f32 %v4618, %v5010
      %v5012 = vpop.f32.mrf.mxu0
      %v5013 = vadd.f32 %v4620, %v5012
      %v5014 = vpop.f32.mrf.mxu0
      %v5015 = vadd.f32 %v4622, %v5014
      %5016 = vmatprep.mubr.bf16.mxu0 %v3839
      %5017 = vmatmul.mubr.bf16.gmra.mxu0 %v3838
      %v5018 = vpop.f32.mrf.mxu0
      %v5019 = vadd.f32 %v4626, %v5018
      %v5020 = vpop.f32.mrf.mxu0
      %v5021 = vadd.f32 %v4628, %v5020
      %v5022 = vpop.f32.mrf.mxu0
      %v5023 = vadd.f32 %v4630, %v5022
      %v5024 = vpop.f32.mrf.mxu0
      %v5025 = vadd.f32 %v4632, %v5024
      %5026 = vmatprep.mubr.bf16.mxu0 %v3848
      %5027 = vmatmul.mubr.bf16.gmra.mxu0 %v3847
      %v5028 = vpop.f32.mrf.mxu0
      %v5029 = vadd.f32 %v4636, %v5028
      %v5030 = vpop.f32.mrf.mxu0
      %v5031 = vadd.f32 %v4638, %v5030
      %v5032 = vpop.f32.mrf.mxu0
      %v5033 = vadd.f32 %v4640, %v5032
      %v5034 = vpop.f32.mrf.mxu0
      %v5035 = vadd.f32 %v4642, %v5034
      %5036 = vdwg.mxu0
      %5037 = vmatprep.subr.bf16.mxu0 %v1902
      %5038 = vmatpush1.bf16.msra.mxu0 %v1850
      %5039 = vmatprep.subr.bf16.mxu0 %v1662
      %5040 = vmatpush1.bf16.msra.mxu0 %v1610
      %5041 = vmatprep.subr.bf16.mxu0 %v1658
      %5042 = vmatpush1.bf16.msra.mxu0 %v1606
      %5043 = vmatprep.subr.bf16.mxu0 %v1654
      %5044 = vmatpush1.bf16.msra.mxu0 %v1602
      %5045 = vmatprep.subr.bf16.mxu0 %v1650
      %5046 = vmatpush1.bf16.msra.mxu0 %v1598
      %5047 = vmatprep.subr.bf16.mxu0 %v1646
      %5048 = vmatpush1.bf16.msra.mxu0 %v1594
      %5049 = vmatprep.subr.bf16.mxu0 %v1642
      %5050 = vmatpush1.bf16.msra.mxu0 %v1590
      %5051 = vmatprep.subr.bf16.mxu0 %v1638
      %5052 = vmatpush1.bf16.msra.mxu0 %v1586
      %5053 = vmatprep.subr.bf16.mxu0 %v1934
      %5054 = vmatpush2.bf16.msra.mxu0 %v1882
      %5055 = vmatprep.subr.bf16.mxu0 %v1930
      %5056 = vmatpush2.bf16.msra.mxu0 %v1878
      %5057 = vmatprep.subr.bf16.mxu0 %v1926
      %5058 = vmatpush2.bf16.msra.mxu0 %v1874
      %5059 = vmatprep.subr.bf16.mxu0 %v1922
      %5060 = vmatpush2.bf16.msra.mxu0 %v1870
      %5061 = vmatprep.subr.bf16.mxu0 %v1918
      %5062 = vmatpush2.bf16.msra.mxu0 %v1866
      %5063 = vmatprep.subr.bf16.mxu0 %v1914
      %5064 = vmatpush2.bf16.msra.mxu0 %v1862
      %5065 = vmatprep.subr.bf16.mxu0 %v1910
      %5066 = vmatpush2.bf16.msra.mxu0 %v1858
      %5067 = vmatprep.subr.bf16.mxu0 %v1906
      %5068 = vmatpush2.bf16.msra.mxu0 %v1854
      %5069 = vmatprep.mubr.bf16.mxu0 %v3535
      %5070 = vmatmul.mubr.bf16.gmra.mxu0 %v3534
      %v5071 = vpop.f32.mrf.mxu0
      %v5072 = vadd.f32 %v4679, %v5071
      %v5073 = vpop.f32.mrf.mxu0
      %v5074 = vadd.f32 %v4681, %v5073
      %v5075 = vpop.f32.mrf.mxu0
      %v5076 = vadd.f32 %v4683, %v5075
      %v5077 = vpop.f32.mrf.mxu0
      %v5078 = vadd.f32 %v4685, %v5077
      %5079 = vmatprep.mubr.bf16.mxu0 %v3544
      %5080 = vmatmul.mubr.bf16.gmra.mxu0 %v3543
      %v5081 = vpop.f32.mrf.mxu0
      %v5082 = vadd.f32 %v4689, %v5081
      %v5083 = vpop.f32.mrf.mxu0
      %v5084 = vadd.f32 %v4691, %v5083
      %v5085 = vpop.f32.mrf.mxu0
      %v5086 = vadd.f32 %v4693, %v5085
      %v5087 = vpop.f32.mrf.mxu0
      %v5088 = vadd.f32 %v4695, %v5087
      %5089 = vmatprep.mubr.bf16.mxu0 %v3553
      %5090 = vmatmul.mubr.bf16.gmra.mxu0 %v3552
      %v5091 = vpop.f32.mrf.mxu0
      %v5092 = vadd.f32 %v4699, %v5091
      %v5093 = vpop.f32.mrf.mxu0
      %v5094 = vadd.f32 %v4701, %v5093
      %v5095 = vpop.f32.mrf.mxu0
      %v5096 = vadd.f32 %v4703, %v5095
      %v5097 = vpop.f32.mrf.mxu0
      %v5098 = vadd.f32 %v4705, %v5097
      %5099 = vmatprep.mubr.bf16.mxu0 %v3562
      %5100 = vmatmul.mubr.bf16.gmra.mxu0 %v3561
      %v5101 = vpop.f32.mrf.mxu0
      %v5102 = vadd.f32 %v4709, %v5101
      %v5103 = vpop.f32.mrf.mxu0
      %v5104 = vadd.f32 %v4711, %v5103
      %v5105 = vpop.f32.mrf.mxu0
      %v5106 = vadd.f32 %v4713, %v5105
      %v5107 = vpop.f32.mrf.mxu0
      %v5108 = vadd.f32 %v4715, %v5107
      %5109 = vmatprep.mubr.bf16.mxu0 %v3571
      %5110 = vmatmul.mubr.bf16.gmra.mxu0 %v3570
      %v5111 = vpop.f32.mrf.mxu0
      %v5112 = vadd.f32 %v4719, %v5111
      %v5113 = vpop.f32.mrf.mxu0
      %v5114 = vadd.f32 %v4721, %v5113
      %v5115 = vpop.f32.mrf.mxu0
      %v5116 = vadd.f32 %v4723, %v5115
      %v5117 = vpop.f32.mrf.mxu0
      %v5118 = vadd.f32 %v4725, %v5117
      %5119 = vmatprep.mubr.bf16.mxu0 %v3580
      %5120 = vmatmul.mubr.bf16.gmra.mxu0 %v3579
      %v5121 = vpop.f32.mrf.mxu0
      %v5122 = vadd.f32 %v4729, %v5121
      %v5123 = vpop.f32.mrf.mxu0
      %v5124 = vadd.f32 %v4731, %v5123
      %v5125 = vpop.f32.mrf.mxu0
      %v5126 = vadd.f32 %v4733, %v5125
      %v5127 = vpop.f32.mrf.mxu0
      %v5128 = vadd.f32 %v4735, %v5127
      %5129 = vmatprep.mubr.bf16.mxu0 %v3589
      %5130 = vmatmul.mubr.bf16.gmra.mxu0 %v3588
      %v5131 = vpop.f32.mrf.mxu0
      %v5132 = vadd.f32 %v4739, %v5131
      %v5133 = vpop.f32.mrf.mxu0
      %v5134 = vadd.f32 %v4741, %v5133
      %v5135 = vpop.f32.mrf.mxu0
      %v5136 = vadd.f32 %v4743, %v5135
      %v5137 = vpop.f32.mrf.mxu0
      %v5138 = vadd.f32 %v4745, %v5137
      %5139 = vmatprep.mubr.bf16.mxu0 %v3598
      %5140 = vmatmul.mubr.bf16.gmra.mxu0 %v3597
      %v5141 = vpop.f32.mrf.mxu0
      %v5142 = vadd.f32 %v4749, %v5141
      %v5143 = vpop.f32.mrf.mxu0
      %v5144 = vadd.f32 %v4751, %v5143
      %v5145 = vpop.f32.mrf.mxu0
      %v5146 = vadd.f32 %v4753, %v5145
      %v5147 = vpop.f32.mrf.mxu0
      %v5148 = vadd.f32 %v4755, %v5147
      %5149 = vmatprep.mubr.bf16.mxu0 %v3607
      %5150 = vmatmul.mubr.bf16.gmra.mxu0 %v3606
      %v5151 = vpop.f32.mrf.mxu0
      %v5152 = vadd.f32 %v4759, %v5151
      %v5153 = vpop.f32.mrf.mxu0
      %v5154 = vadd.f32 %v4761, %v5153
      %v5155 = vpop.f32.mrf.mxu0
      %v5156 = vadd.f32 %v4763, %v5155
      %v5157 = vpop.f32.mrf.mxu0
      %v5158 = vadd.f32 %v4765, %v5157
      %5159 = vmatprep.mubr.bf16.mxu0 %v3616
      %5160 = vmatmul.mubr.bf16.gmra.mxu0 %v3615
      %v5161 = vpop.f32.mrf.mxu0
      %v5162 = vadd.f32 %v4769, %v5161
      %v5163 = vpop.f32.mrf.mxu0
      %v5164 = vadd.f32 %v4771, %v5163
      %v5165 = vpop.f32.mrf.mxu0
      %v5166 = vadd.f32 %v4773, %v5165
      %v5167 = vpop.f32.mrf.mxu0
      %v5168 = vadd.f32 %v4775, %v5167
      %5169 = vmatprep.mubr.bf16.mxu0 %v3625
      %5170 = vmatmul.mubr.bf16.gmra.mxu0 %v3624
      %v5171 = vpop.f32.mrf.mxu0
      %v5172 = vadd.f32 %v4779, %v5171
      %v5173 = vpop.f32.mrf.mxu0
      %v5174 = vadd.f32 %v4781, %v5173
      %v5175 = vpop.f32.mrf.mxu0
      %v5176 = vadd.f32 %v4783, %v5175
      %v5177 = vpop.f32.mrf.mxu0
      %v5178 = vadd.f32 %v4785, %v5177
      %5179 = vmatprep.mubr.bf16.mxu0 %v3634
      %5180 = vmatmul.mubr.bf16.gmra.mxu0 %v3633
      %v5181 = vpop.f32.mrf.mxu0
      %v5182 = vadd.f32 %v4789, %v5181
      %v5183 = vpop.f32.mrf.mxu0
      %v5184 = vadd.f32 %v4791, %v5183
      %v5185 = vpop.f32.mrf.mxu0
      %v5186 = vadd.f32 %v4793, %v5185
      %v5187 = vpop.f32.mrf.mxu0
      %v5188 = vadd.f32 %v4795, %v5187
      %5189 = vmatprep.mubr.bf16.mxu0 %v3643
      %5190 = vmatmul.mubr.bf16.gmra.mxu0 %v3642
      %v5191 = vpop.f32.mrf.mxu0
      %v5192 = vadd.f32 %v4799, %v5191
      %v5193 = vpop.f32.mrf.mxu0
      %v5194 = vadd.f32 %v4801, %v5193
      %v5195 = vpop.f32.mrf.mxu0
      %v5196 = vadd.f32 %v4803, %v5195
      %v5197 = vpop.f32.mrf.mxu0
      %v5198 = vadd.f32 %v4805, %v5197
      %5199 = vmatprep.mubr.bf16.mxu0 %v3652
      %5200 = vmatmul.mubr.bf16.gmra.mxu0 %v3651
      %v5201 = vpop.f32.mrf.mxu0
      %v5202 = vadd.f32 %v4809, %v5201
      %v5203 = vpop.f32.mrf.mxu0
      %v5204 = vadd.f32 %v4811, %v5203
      %v5205 = vpop.f32.mrf.mxu0
      %v5206 = vadd.f32 %v4813, %v5205
      %v5207 = vpop.f32.mrf.mxu0
      %v5208 = vadd.f32 %v4815, %v5207
      %5209 = vmatprep.mubr.bf16.mxu0 %v3661
      %5210 = vmatmul.mubr.bf16.gmra.mxu0 %v3660
      %v5211 = vpop.f32.mrf.mxu0
      %v5212 = vadd.f32 %v4819, %v5211
      %v5213 = vpop.f32.mrf.mxu0
      %v5214 = vadd.f32 %v4821, %v5213
      %v5215 = vpop.f32.mrf.mxu0
      %v5216 = vadd.f32 %v4823, %v5215
      %v5217 = vpop.f32.mrf.mxu0
      %v5218 = vadd.f32 %v4825, %v5217
      %5219 = vmatprep.mubr.bf16.mxu0 %v3670
      %5220 = vmatmul.mubr.bf16.gmra.mxu0 %v3669
      %v5221 = vpop.f32.mrf.mxu0
      %v5222 = vadd.f32 %v4829, %v5221
      %v5223 = vpop.f32.mrf.mxu0
      %v5224 = vadd.f32 %v4831, %v5223
      %v5225 = vpop.f32.mrf.mxu0
      %v5226 = vadd.f32 %v4833, %v5225
      %v5227 = vpop.f32.mrf.mxu0
      %v5228 = vadd.f32 %v4835, %v5227
      %5229 = vmatprep.mubr.bf16.mxu0 %v3679
      %5230 = vmatmul.mubr.bf16.gmra.mxu0 %v3678
      %v5231 = vpop.f32.mrf.mxu0
      %v5232 = vadd.f32 %v4839, %v5231
      %v5233 = vpop.f32.mrf.mxu0
      %v5234 = vadd.f32 %v4841, %v5233
      %v5235 = vpop.f32.mrf.mxu0
      %v5236 = vadd.f32 %v4843, %v5235
      %v5237 = vpop.f32.mrf.mxu0
      %v5238 = vadd.f32 %v4845, %v5237
      %5239 = vmatprep.mubr.bf16.mxu0 %v3688
      %5240 = vmatmul.mubr.bf16.gmra.mxu0 %v3687
      %v5241 = vpop.f32.mrf.mxu0
      %v5242 = vadd.f32 %v4849, %v5241
      %v5243 = vpop.f32.mrf.mxu0
      %v5244 = vadd.f32 %v4851, %v5243
      %v5245 = vpop.f32.mrf.mxu0
      %v5246 = vadd.f32 %v4853, %v5245
      %v5247 = vpop.f32.mrf.mxu0
      %v5248 = vadd.f32 %v4855, %v5247
      %5249 = vmatprep.mubr.bf16.mxu0 %v3697
      %5250 = vmatmul.mubr.bf16.gmra.mxu0 %v3696
      %v5251 = vpop.f32.mrf.mxu0
      %v5252 = vadd.f32 %v4859, %v5251
      %v5253 = vpop.f32.mrf.mxu0
      %v5254 = vadd.f32 %v4861, %v5253
      %v5255 = vpop.f32.mrf.mxu0
      %v5256 = vadd.f32 %v4863, %v5255
      %v5257 = vpop.f32.mrf.mxu0
      %v5258 = vadd.f32 %v4865, %v5257
      %5259 = vmatprep.mubr.bf16.mxu0 %v3706
      %5260 = vmatmul.mubr.bf16.gmra.mxu0 %v3705
      %v5261 = vpop.f32.mrf.mxu0
      %v5262 = vadd.f32 %v4869, %v5261
      %v5263 = vpop.f32.mrf.mxu0
      %v5264 = vadd.f32 %v4871, %v5263
      %v5265 = vpop.f32.mrf.mxu0
      %v5266 = vadd.f32 %v4873, %v5265
      %v5267 = vpop.f32.mrf.mxu0
      %v5268 = vadd.f32 %v4875, %v5267
      %5269 = vmatprep.mubr.bf16.mxu0 %v3715
      %5270 = vmatmul.mubr.bf16.gmra.mxu0 %v3714
      %v5271 = vpop.f32.mrf.mxu0
      %v5272 = vadd.f32 %v4879, %v5271
      %v5273 = vpop.f32.mrf.mxu0
      %v5274 = vadd.f32 %v4881, %v5273
      %v5275 = vpop.f32.mrf.mxu0
      %v5276 = vadd.f32 %v4883, %v5275
      %v5277 = vpop.f32.mrf.mxu0
      %v5278 = vadd.f32 %v4885, %v5277
      %5279 = vmatprep.mubr.bf16.mxu0 %v3724
      %5280 = vmatmul.mubr.bf16.gmra.mxu0 %v3723
      %v5281 = vpop.f32.mrf.mxu0
      %v5282 = vadd.f32 %v4889, %v5281
      %v5283 = vpop.f32.mrf.mxu0
      %v5284 = vadd.f32 %v4891, %v5283
      %v5285 = vpop.f32.mrf.mxu0
      %v5286 = vadd.f32 %v4893, %v5285
      %v5287 = vpop.f32.mrf.mxu0
      %v5288 = vadd.f32 %v4895, %v5287
      %5289 = vmatprep.mubr.bf16.mxu0 %v3733
      %5290 = vmatmul.mubr.bf16.gmra.mxu0 %v3732
      %v5291 = vpop.f32.mrf.mxu0
      %v5292 = vadd.f32 %v4899, %v5291
      %v5293 = vpop.f32.mrf.mxu0
      %v5294 = vadd.f32 %v4901, %v5293
      %v5295 = vpop.f32.mrf.mxu0
      %v5296 = vadd.f32 %v4903, %v5295
      %v5297 = vpop.f32.mrf.mxu0
      %v5298 = vadd.f32 %v4905, %v5297
      %5299 = vmatprep.mubr.bf16.mxu0 %v3742
      %5300 = vmatmul.mubr.bf16.gmra.mxu0 %v3741
      %v5301 = vpop.f32.mrf.mxu0
      %v5302 = vadd.f32 %v4909, %v5301
      %v5303 = vpop.f32.mrf.mxu0
      %v5304 = vadd.f32 %v4911, %v5303
      %v5305 = vpop.f32.mrf.mxu0
      %v5306 = vadd.f32 %v4913, %v5305
      %v5307 = vpop.f32.mrf.mxu0
      %v5308 = vadd.f32 %v4915, %v5307
      %5309 = vmatprep.mubr.bf16.mxu0 %v3751
      %5310 = vmatmul.mubr.bf16.gmra.mxu0 %v3750
      %v5311 = vpop.f32.mrf.mxu0
      %v5312 = vadd.f32 %v4919, %v5311
      %v5313 = vpop.f32.mrf.mxu0
      %v5314 = vadd.f32 %v4921, %v5313
      %v5315 = vpop.f32.mrf.mxu0
      %v5316 = vadd.f32 %v4923, %v5315
      %v5317 = vpop.f32.mrf.mxu0
      %v5318 = vadd.f32 %v4925, %v5317
      %5319 = vmatprep.mubr.bf16.mxu0 %v3760
      %5320 = vmatmul.mubr.bf16.gmra.mxu0 %v3759
      %v5321 = vpop.f32.mrf.mxu0
      %v5322 = vadd.f32 %v4929, %v5321
      %v5323 = vpop.f32.mrf.mxu0
      %v5324 = vadd.f32 %v4931, %v5323
      %v5325 = vpop.f32.mrf.mxu0
      %v5326 = vadd.f32 %v4933, %v5325
      %v5327 = vpop.f32.mrf.mxu0
      %v5328 = vadd.f32 %v4935, %v5327
      %5329 = vmatprep.mubr.bf16.mxu0 %v3769
      %5330 = vmatmul.mubr.bf16.gmra.mxu0 %v3768
      %v5331 = vpop.f32.mrf.mxu0
      %v5332 = vadd.f32 %v4939, %v5331
      %v5333 = vpop.f32.mrf.mxu0
      %v5334 = vadd.f32 %v4941, %v5333
      %v5335 = vpop.f32.mrf.mxu0
      %v5336 = vadd.f32 %v4943, %v5335
      %v5337 = vpop.f32.mrf.mxu0
      %v5338 = vadd.f32 %v4945, %v5337
      %5339 = vmatprep.mubr.bf16.mxu0 %v3778
      %5340 = vmatmul.mubr.bf16.gmra.mxu0 %v3777
      %v5341 = vpop.f32.mrf.mxu0
      %v5342 = vadd.f32 %v4949, %v5341
      %v5343 = vpop.f32.mrf.mxu0
      %v5344 = vadd.f32 %v4951, %v5343
      %v5345 = vpop.f32.mrf.mxu0
      %v5346 = vadd.f32 %v4953, %v5345
      %v5347 = vpop.f32.mrf.mxu0
      %v5348 = vadd.f32 %v4955, %v5347
      %5349 = vmatprep.mubr.bf16.mxu0 %v3787
      %5350 = vmatmul.mubr.bf16.gmra.mxu0 %v3786
      %v5351 = vpop.f32.mrf.mxu0
      %v5352 = vadd.f32 %v4959, %v5351
      %v5353 = vpop.f32.mrf.mxu0
      %v5354 = vadd.f32 %v4961, %v5353
      %v5355 = vpop.f32.mrf.mxu0
      %v5356 = vadd.f32 %v4963, %v5355
      %v5357 = vpop.f32.mrf.mxu0
      %v5358 = vadd.f32 %v4965, %v5357
      %5359 = vmatprep.mubr.bf16.mxu0 %v3796
      %5360 = vmatmul.mubr.bf16.gmra.mxu0 %v3795
      %v5361 = vpop.f32.mrf.mxu0
      %v5362 = vadd.f32 %v4969, %v5361
      %v5363 = vpop.f32.mrf.mxu0
      %v5364 = vadd.f32 %v4971, %v5363
      %v5365 = vpop.f32.mrf.mxu0
      %v5366 = vadd.f32 %v4973, %v5365
      %v5367 = vpop.f32.mrf.mxu0
      %v5368 = vadd.f32 %v4975, %v5367
      %5369 = vmatprep.mubr.bf16.mxu0 %v3805
      %5370 = vmatmul.mubr.bf16.gmra.mxu0 %v3804
      %v5371 = vpop.f32.mrf.mxu0
      %v5372 = vadd.f32 %v4979, %v5371
      %v5373 = vpop.f32.mrf.mxu0
      %v5374 = vadd.f32 %v4981, %v5373
      %v5375 = vpop.f32.mrf.mxu0
      %v5376 = vadd.f32 %v4983, %v5375
      %v5377 = vpop.f32.mrf.mxu0
      %v5378 = vadd.f32 %v4985, %v5377
      %5379 = vmatprep.mubr.bf16.mxu0 %v3814
      %5380 = vmatmul.mubr.bf16.gmra.mxu0 %v3813
      %v5381 = vpop.f32.mrf.mxu0
      %v5382 = vadd.f32 %v4989, %v5381
      %v5383 = vpop.f32.mrf.mxu0
      %v5384 = vadd.f32 %v4991, %v5383
      %v5385 = vpop.f32.mrf.mxu0
      %v5386 = vadd.f32 %v4993, %v5385
      %v5387 = vpop.f32.mrf.mxu0
      %v5388 = vadd.f32 %v4995, %v5387
      %5389 = vmatprep.mubr.bf16.mxu0 %v3823
      %5390 = vmatmul.mubr.bf16.gmra.mxu0 %v3822
      %v5391 = vpop.f32.mrf.mxu0
      %v5392 = vadd.f32 %v4999, %v5391
      %v5393 = vpop.f32.mrf.mxu0
      %v5394 = vadd.f32 %v5001, %v5393
      %v5395 = vpop.f32.mrf.mxu0
      %v5396 = vadd.f32 %v5003, %v5395
      %v5397 = vpop.f32.mrf.mxu0
      %v5398 = vadd.f32 %v5005, %v5397
      %5399 = vmatprep.mubr.bf16.mxu0 %v3832
      %5400 = vmatmul.mubr.bf16.gmra.mxu0 %v3831
      %v5401 = vpop.f32.mrf.mxu0
      %v5402 = vadd.f32 %v5009, %v5401
      %v5403 = vpop.f32.mrf.mxu0
      %v5404 = vadd.f32 %v5011, %v5403
      %v5405 = vpop.f32.mrf.mxu0
      %v5406 = vadd.f32 %v5013, %v5405
      %v5407 = vpop.f32.mrf.mxu0
      %v5408 = vadd.f32 %v5015, %v5407
      %5409 = vmatprep.mubr.bf16.mxu0 %v3841
      %5410 = vmatmul.mubr.bf16.gmra.mxu0 %v3840
      %v5411 = vpop.f32.mrf.mxu0
      %v5412 = vadd.f32 %v5019, %v5411
      %v5413 = vpop.f32.mrf.mxu0
      %v5414 = vadd.f32 %v5021, %v5413
      %v5415 = vpop.f32.mrf.mxu0
      %v5416 = vadd.f32 %v5023, %v5415
      %v5417 = vpop.f32.mrf.mxu0
      %v5418 = vadd.f32 %v5025, %v5417
      %5419 = vmatprep.mubr.bf16.mxu0 %v3850
      %5420 = vmatmul.mubr.bf16.gmra.mxu0 %v3849
      %v5421 = vpop.f32.mrf.mxu0
      %v5422 = vadd.f32 %v5029, %v5421
      %v5423 = vpop.f32.mrf.mxu0
      %v5424 = vadd.f32 %v5031, %v5423
      %v5425 = vpop.f32.mrf.mxu0
      %v5426 = vadd.f32 %v5033, %v5425
      %v5427 = vpop.f32.mrf.mxu0
      %v5428 = vadd.f32 %v5035, %v5427
      %5429 = vdwg.mxu0
      %5430 = vmatprep.subr.bf16.mxu0 %v2124
      %5431 = vmatpush1.bf16.msra.mxu0 %v2072
      %5432 = vmatprep.subr.bf16.mxu0 %v2120
      %5433 = vmatpush1.bf16.msra.mxu0 %v2068
      %5434 = vmatprep.subr.bf16.mxu0 %v2116
      %5435 = vmatpush1.bf16.msra.mxu0 %v2064
      %5436 = vmatprep.subr.bf16.mxu0 %v2112
      %5437 = vmatpush1.bf16.msra.mxu0 %v2060
      %5438 = vmatprep.subr.bf16.mxu0 %v1950
      %5439 = vmatpush1.bf16.msra.mxu0 %v1898
      %5440 = vmatprep.subr.bf16.mxu0 %v1946
      %5441 = vmatpush1.bf16.msra.mxu0 %v1894
      %5442 = vmatprep.subr.bf16.mxu0 %v1942
      %5443 = vmatpush1.bf16.msra.mxu0 %v1890
      %5444 = vmatprep.subr.bf16.mxu0 %v1938
      %5445 = vmatpush1.bf16.msra.mxu0 %v1886
      %5446 = vmatprep.subr.bf16.mxu0 %v2156
      %5447 = vmatpush2.bf16.msra.mxu0 %v2104
      %5448 = vmatprep.subr.bf16.mxu0 %v2152
      %5449 = vmatpush2.bf16.msra.mxu0 %v2100
      %5450 = vmatprep.subr.bf16.mxu0 %v2148
      %5451 = vmatpush2.bf16.msra.mxu0 %v2096
      %5452 = vmatprep.subr.bf16.mxu0 %v2144
      %5453 = vmatpush2.bf16.msra.mxu0 %v2092
      %5454 = vmatprep.subr.bf16.mxu0 %v2140
      %5455 = vmatpush2.bf16.msra.mxu0 %v2088
      %5456 = vmatprep.subr.bf16.mxu0 %v2136
      %5457 = vmatpush2.bf16.msra.mxu0 %v2084
      %5458 = vmatprep.subr.bf16.mxu0 %v2132
      %5459 = vmatpush2.bf16.msra.mxu0 %v2080
      %5460 = vmatprep.subr.bf16.mxu0 %v2128
      %5461 = vmatpush2.bf16.msra.mxu0 %v2076
      %5462 = vmatprep.mubr.bf16.mxu0 %v3537
      %5463 = vmatmul.mubr.bf16.gmra.mxu0 %v3536
      %v5464 = vpop.f32.mrf.mxu0
      %v5465 = vadd.f32 %v5072, %v5464
      %v5466 = vpop.f32.mrf.mxu0
      %v5467 = vadd.f32 %v5074, %v5466
      %v5468 = vpop.f32.mrf.mxu0
      %v5469 = vadd.f32 %v5076, %v5468
      %v5470 = vpop.f32.mrf.mxu0
      %v5471 = vadd.f32 %v5078, %v5470
      %5472 = vmatprep.mubr.bf16.mxu0 %v3546
      %5473 = vmatmul.mubr.bf16.gmra.mxu0 %v3545
      %v5474 = vpop.f32.mrf.mxu0
      %v5475 = vadd.f32 %v5082, %v5474
      %v5476 = vpop.f32.mrf.mxu0
      %v5477 = vadd.f32 %v5084, %v5476
      %v5478 = vpop.f32.mrf.mxu0
      %v5479 = vadd.f32 %v5086, %v5478
      %v5480 = vpop.f32.mrf.mxu0
      %v5481 = vadd.f32 %v5088, %v5480
      %5482 = vmatprep.mubr.bf16.mxu0 %v3555
      %5483 = vmatmul.mubr.bf16.gmra.mxu0 %v3554
      %v5484 = vpop.f32.mrf.mxu0
      %v5485 = vadd.f32 %v5092, %v5484
      %v5486 = vpop.f32.mrf.mxu0
      %v5487 = vadd.f32 %v5094, %v5486
      %v5488 = vpop.f32.mrf.mxu0
      %v5489 = vadd.f32 %v5096, %v5488
      %v5490 = vpop.f32.mrf.mxu0
      %v5491 = vadd.f32 %v5098, %v5490
      %5492 = vmatprep.mubr.bf16.mxu0 %v3564
      %5493 = vmatmul.mubr.bf16.gmra.mxu0 %v3563
      %v5494 = vpop.f32.mrf.mxu0
      %v5495 = vadd.f32 %v5102, %v5494
      %v5496 = vpop.f32.mrf.mxu0
      %v5497 = vadd.f32 %v5104, %v5496
      %v5498 = vpop.f32.mrf.mxu0
      %v5499 = vadd.f32 %v5106, %v5498
      %v5500 = vpop.f32.mrf.mxu0
      %v5501 = vadd.f32 %v5108, %v5500
      %5502 = vmatprep.mubr.bf16.mxu0 %v3573
      %5503 = vmatmul.mubr.bf16.gmra.mxu0 %v3572
      %v5504 = vpop.f32.mrf.mxu0
      %v5505 = vadd.f32 %v5112, %v5504
      %v5506 = vpop.f32.mrf.mxu0
      %v5507 = vadd.f32 %v5114, %v5506
      %v5508 = vpop.f32.mrf.mxu0
      %v5509 = vadd.f32 %v5116, %v5508
      %v5510 = vpop.f32.mrf.mxu0
      %v5511 = vadd.f32 %v5118, %v5510
      %5512 = vmatprep.mubr.bf16.mxu0 %v3582
      %5513 = vmatmul.mubr.bf16.gmra.mxu0 %v3581
      %v5514 = vpop.f32.mrf.mxu0
      %v5515 = vadd.f32 %v5122, %v5514
      %v5516 = vpop.f32.mrf.mxu0
      %v5517 = vadd.f32 %v5124, %v5516
      %v5518 = vpop.f32.mrf.mxu0
      %v5519 = vadd.f32 %v5126, %v5518
      %v5520 = vpop.f32.mrf.mxu0
      %v5521 = vadd.f32 %v5128, %v5520
      %5522 = vmatprep.mubr.bf16.mxu0 %v3591
      %5523 = vmatmul.mubr.bf16.gmra.mxu0 %v3590
      %v5524 = vpop.f32.mrf.mxu0
      %v5525 = vadd.f32 %v5132, %v5524
      %v5526 = vpop.f32.mrf.mxu0
      %v5527 = vadd.f32 %v5134, %v5526
      %v5528 = vpop.f32.mrf.mxu0
      %v5529 = vadd.f32 %v5136, %v5528
      %v5530 = vpop.f32.mrf.mxu0
      %v5531 = vadd.f32 %v5138, %v5530
      %5532 = vmatprep.mubr.bf16.mxu0 %v3600
      %5533 = vmatmul.mubr.bf16.gmra.mxu0 %v3599
      %v5534 = vpop.f32.mrf.mxu0
      %v5535 = vadd.f32 %v5142, %v5534
      %v5536 = vpop.f32.mrf.mxu0
      %v5537 = vadd.f32 %v5144, %v5536
      %v5538 = vpop.f32.mrf.mxu0
      %v5539 = vadd.f32 %v5146, %v5538
      %v5540 = vpop.f32.mrf.mxu0
      %v5541 = vadd.f32 %v5148, %v5540
      %5542 = vmatprep.mubr.bf16.mxu0 %v3609
      %5543 = vmatmul.mubr.bf16.gmra.mxu0 %v3608
      %v5544 = vpop.f32.mrf.mxu0
      %v5545 = vadd.f32 %v5152, %v5544
      %v5546 = vpop.f32.mrf.mxu0
      %v5547 = vadd.f32 %v5154, %v5546
      %v5548 = vpop.f32.mrf.mxu0
      %v5549 = vadd.f32 %v5156, %v5548
      %v5550 = vpop.f32.mrf.mxu0
      %v5551 = vadd.f32 %v5158, %v5550
      %5552 = vmatprep.mubr.bf16.mxu0 %v3618
      %5553 = vmatmul.mubr.bf16.gmra.mxu0 %v3617
      %v5554 = vpop.f32.mrf.mxu0
      %v5555 = vadd.f32 %v5162, %v5554
      %v5556 = vpop.f32.mrf.mxu0
      %v5557 = vadd.f32 %v5164, %v5556
      %v5558 = vpop.f32.mrf.mxu0
      %v5559 = vadd.f32 %v5166, %v5558
      %v5560 = vpop.f32.mrf.mxu0
      %v5561 = vadd.f32 %v5168, %v5560
      %5562 = vmatprep.mubr.bf16.mxu0 %v3627
      %5563 = vmatmul.mubr.bf16.gmra.mxu0 %v3626
      %v5564 = vpop.f32.mrf.mxu0
      %v5565 = vadd.f32 %v5172, %v5564
      %v5566 = vpop.f32.mrf.mxu0
      %v5567 = vadd.f32 %v5174, %v5566
      %v5568 = vpop.f32.mrf.mxu0
      %v5569 = vadd.f32 %v5176, %v5568
      %v5570 = vpop.f32.mrf.mxu0
      %v5571 = vadd.f32 %v5178, %v5570
      %5572 = vmatprep.mubr.bf16.mxu0 %v3636
      %5573 = vmatmul.mubr.bf16.gmra.mxu0 %v3635
      %v5574 = vpop.f32.mrf.mxu0
      %v5575 = vadd.f32 %v5182, %v5574
      %v5576 = vpop.f32.mrf.mxu0
      %v5577 = vadd.f32 %v5184, %v5576
      %v5578 = vpop.f32.mrf.mxu0
      %v5579 = vadd.f32 %v5186, %v5578
      %v5580 = vpop.f32.mrf.mxu0
      %v5581 = vadd.f32 %v5188, %v5580
      %5582 = vmatprep.mubr.bf16.mxu0 %v3645
      %5583 = vmatmul.mubr.bf16.gmra.mxu0 %v3644
      %v5584 = vpop.f32.mrf.mxu0
      %v5585 = vadd.f32 %v5192, %v5584
      %v5586 = vpop.f32.mrf.mxu0
      %v5587 = vadd.f32 %v5194, %v5586
      %v5588 = vpop.f32.mrf.mxu0
      %v5589 = vadd.f32 %v5196, %v5588
      %v5590 = vpop.f32.mrf.mxu0
      %v5591 = vadd.f32 %v5198, %v5590
      %5592 = vmatprep.mubr.bf16.mxu0 %v3654
      %5593 = vmatmul.mubr.bf16.gmra.mxu0 %v3653
      %v5594 = vpop.f32.mrf.mxu0
      %v5595 = vadd.f32 %v5202, %v5594
      %v5596 = vpop.f32.mrf.mxu0
      %v5597 = vadd.f32 %v5204, %v5596
      %v5598 = vpop.f32.mrf.mxu0
      %v5599 = vadd.f32 %v5206, %v5598
      %v5600 = vpop.f32.mrf.mxu0
      %v5601 = vadd.f32 %v5208, %v5600
      %5602 = vmatprep.mubr.bf16.mxu0 %v3663
      %5603 = vmatmul.mubr.bf16.gmra.mxu0 %v3662
      %v5604 = vpop.f32.mrf.mxu0
      %v5605 = vadd.f32 %v5212, %v5604
      %v5606 = vpop.f32.mrf.mxu0
      %v5607 = vadd.f32 %v5214, %v5606
      %v5608 = vpop.f32.mrf.mxu0
      %v5609 = vadd.f32 %v5216, %v5608
      %v5610 = vpop.f32.mrf.mxu0
      %v5611 = vadd.f32 %v5218, %v5610
      %5612 = vmatprep.mubr.bf16.mxu0 %v3672
      %5613 = vmatmul.mubr.bf16.gmra.mxu0 %v3671
      %v5614 = vpop.f32.mrf.mxu0
      %v5615 = vadd.f32 %v5222, %v5614
      %v5616 = vpop.f32.mrf.mxu0
      %v5617 = vadd.f32 %v5224, %v5616
      %v5618 = vpop.f32.mrf.mxu0
      %v5619 = vadd.f32 %v5226, %v5618
      %v5620 = vpop.f32.mrf.mxu0
      %v5621 = vadd.f32 %v5228, %v5620
      %5622 = vmatprep.mubr.bf16.mxu0 %v3681
      %5623 = vmatmul.mubr.bf16.gmra.mxu0 %v3680
      %v5624 = vpop.f32.mrf.mxu0
      %v5625 = vadd.f32 %v5232, %v5624
      %v5626 = vpop.f32.mrf.mxu0
      %v5627 = vadd.f32 %v5234, %v5626
      %v5628 = vpop.f32.mrf.mxu0
      %v5629 = vadd.f32 %v5236, %v5628
      %v5630 = vpop.f32.mrf.mxu0
      %v5631 = vadd.f32 %v5238, %v5630
      %5632 = vmatprep.mubr.bf16.mxu0 %v3690
      %5633 = vmatmul.mubr.bf16.gmra.mxu0 %v3689
      %v5634 = vpop.f32.mrf.mxu0
      %v5635 = vadd.f32 %v5242, %v5634
      %v5636 = vpop.f32.mrf.mxu0
      %v5637 = vadd.f32 %v5244, %v5636
      %v5638 = vpop.f32.mrf.mxu0
      %v5639 = vadd.f32 %v5246, %v5638
      %v5640 = vpop.f32.mrf.mxu0
      %v5641 = vadd.f32 %v5248, %v5640
      %5642 = vmatprep.mubr.bf16.mxu0 %v3699
      %5643 = vmatmul.mubr.bf16.gmra.mxu0 %v3698
      %v5644 = vpop.f32.mrf.mxu0
      %v5645 = vadd.f32 %v5252, %v5644
      %v5646 = vpop.f32.mrf.mxu0
      %v5647 = vadd.f32 %v5254, %v5646
      %v5648 = vpop.f32.mrf.mxu0
      %v5649 = vadd.f32 %v5256, %v5648
      %v5650 = vpop.f32.mrf.mxu0
      %v5651 = vadd.f32 %v5258, %v5650
      %5652 = vmatprep.mubr.bf16.mxu0 %v3708
      %5653 = vmatmul.mubr.bf16.gmra.mxu0 %v3707
      %v5654 = vpop.f32.mrf.mxu0
      %v5655 = vadd.f32 %v5262, %v5654
      %v5656 = vpop.f32.mrf.mxu0
      %v5657 = vadd.f32 %v5264, %v5656
      %v5658 = vpop.f32.mrf.mxu0
      %v5659 = vadd.f32 %v5266, %v5658
      %v5660 = vpop.f32.mrf.mxu0
      %v5661 = vadd.f32 %v5268, %v5660
      %5662 = vmatprep.mubr.bf16.mxu0 %v3717
      %5663 = vmatmul.mubr.bf16.gmra.mxu0 %v3716
      %v5664 = vpop.f32.mrf.mxu0
      %v5665 = vadd.f32 %v5272, %v5664
      %v5666 = vpop.f32.mrf.mxu0
      %v5667 = vadd.f32 %v5274, %v5666
      %v5668 = vpop.f32.mrf.mxu0
      %v5669 = vadd.f32 %v5276, %v5668
      %v5670 = vpop.f32.mrf.mxu0
      %v5671 = vadd.f32 %v5278, %v5670
      %5672 = vmatprep.mubr.bf16.mxu0 %v3726
      %5673 = vmatmul.mubr.bf16.gmra.mxu0 %v3725
      %v5674 = vpop.f32.mrf.mxu0
      %v5675 = vadd.f32 %v5282, %v5674
      %v5676 = vpop.f32.mrf.mxu0
      %v5677 = vadd.f32 %v5284, %v5676
      %v5678 = vpop.f32.mrf.mxu0
      %v5679 = vadd.f32 %v5286, %v5678
      %v5680 = vpop.f32.mrf.mxu0
      %v5681 = vadd.f32 %v5288, %v5680
      %5682 = vmatprep.mubr.bf16.mxu0 %v3735
      %5683 = vmatmul.mubr.bf16.gmra.mxu0 %v3734
      %v5684 = vpop.f32.mrf.mxu0
      %v5685 = vadd.f32 %v5292, %v5684
      %v5686 = vpop.f32.mrf.mxu0
      %v5687 = vadd.f32 %v5294, %v5686
      %v5688 = vpop.f32.mrf.mxu0
      %v5689 = vadd.f32 %v5296, %v5688
      %v5690 = vpop.f32.mrf.mxu0
      %v5691 = vadd.f32 %v5298, %v5690
      %5692 = vmatprep.mubr.bf16.mxu0 %v3744
      %5693 = vmatmul.mubr.bf16.gmra.mxu0 %v3743
      %v5694 = vpop.f32.mrf.mxu0
      %v5695 = vadd.f32 %v5302, %v5694
      %v5696 = vpop.f32.mrf.mxu0
      %v5697 = vadd.f32 %v5304, %v5696
      %v5698 = vpop.f32.mrf.mxu0
      %v5699 = vadd.f32 %v5306, %v5698
      %v5700 = vpop.f32.mrf.mxu0
      %v5701 = vadd.f32 %v5308, %v5700
      %5702 = vmatprep.mubr.bf16.mxu0 %v3753
      %5703 = vmatmul.mubr.bf16.gmra.mxu0 %v3752
      %v5704 = vpop.f32.mrf.mxu0
      %v5705 = vadd.f32 %v5312, %v5704
      %v5706 = vpop.f32.mrf.mxu0
      %v5707 = vadd.f32 %v5314, %v5706
      %v5708 = vpop.f32.mrf.mxu0
      %v5709 = vadd.f32 %v5316, %v5708
      %v5710 = vpop.f32.mrf.mxu0
      %v5711 = vadd.f32 %v5318, %v5710
      %5712 = vmatprep.mubr.bf16.mxu0 %v3762
      %5713 = vmatmul.mubr.bf16.gmra.mxu0 %v3761
      %v5714 = vpop.f32.mrf.mxu0
      %v5715 = vadd.f32 %v5322, %v5714
      %v5716 = vpop.f32.mrf.mxu0
      %v5717 = vadd.f32 %v5324, %v5716
      %v5718 = vpop.f32.mrf.mxu0
      %v5719 = vadd.f32 %v5326, %v5718
      %v5720 = vpop.f32.mrf.mxu0
      %v5721 = vadd.f32 %v5328, %v5720
      %5722 = vmatprep.mubr.bf16.mxu0 %v3771
      %5723 = vmatmul.mubr.bf16.gmra.mxu0 %v3770
      %v5724 = vpop.f32.mrf.mxu0
      %v5725 = vadd.f32 %v5332, %v5724
      %v5726 = vpop.f32.mrf.mxu0
      %v5727 = vadd.f32 %v5334, %v5726
      %v5728 = vpop.f32.mrf.mxu0
      %v5729 = vadd.f32 %v5336, %v5728
      %v5730 = vpop.f32.mrf.mxu0
      %v5731 = vadd.f32 %v5338, %v5730
      %5732 = vmatprep.mubr.bf16.mxu0 %v3780
      %5733 = vmatmul.mubr.bf16.gmra.mxu0 %v3779
      %v5734 = vpop.f32.mrf.mxu0
      %v5735 = vadd.f32 %v5342, %v5734
      %v5736 = vpop.f32.mrf.mxu0
      %v5737 = vadd.f32 %v5344, %v5736
      %v5738 = vpop.f32.mrf.mxu0
      %v5739 = vadd.f32 %v5346, %v5738
      %v5740 = vpop.f32.mrf.mxu0
      %v5741 = vadd.f32 %v5348, %v5740
      %5742 = vmatprep.mubr.bf16.mxu0 %v3789
      %5743 = vmatmul.mubr.bf16.gmra.mxu0 %v3788
      %v5744 = vpop.f32.mrf.mxu0
      %v5745 = vadd.f32 %v5352, %v5744
      %v5746 = vpop.f32.mrf.mxu0
      %v5747 = vadd.f32 %v5354, %v5746
      %v5748 = vpop.f32.mrf.mxu0
      %v5749 = vadd.f32 %v5356, %v5748
      %v5750 = vpop.f32.mrf.mxu0
      %v5751 = vadd.f32 %v5358, %v5750
      %5752 = vmatprep.mubr.bf16.mxu0 %v3798
      %5753 = vmatmul.mubr.bf16.gmra.mxu0 %v3797
      %v5754 = vpop.f32.mrf.mxu0
      %v5755 = vadd.f32 %v5362, %v5754
      %v5756 = vpop.f32.mrf.mxu0
      %v5757 = vadd.f32 %v5364, %v5756
      %v5758 = vpop.f32.mrf.mxu0
      %v5759 = vadd.f32 %v5366, %v5758
      %v5760 = vpop.f32.mrf.mxu0
      %v5761 = vadd.f32 %v5368, %v5760
      %5762 = vmatprep.mubr.bf16.mxu0 %v3807
      %5763 = vmatmul.mubr.bf16.gmra.mxu0 %v3806
      %v5764 = vpop.f32.mrf.mxu0
      %v5765 = vadd.f32 %v5372, %v5764
      %v5766 = vpop.f32.mrf.mxu0
      %v5767 = vadd.f32 %v5374, %v5766
      %v5768 = vpop.f32.mrf.mxu0
      %v5769 = vadd.f32 %v5376, %v5768
      %v5770 = vpop.f32.mrf.mxu0
      %v5771 = vadd.f32 %v5378, %v5770
      %5772 = vmatprep.mubr.bf16.mxu0 %v3816
      %5773 = vmatmul.mubr.bf16.gmra.mxu0 %v3815
      %v5774 = vpop.f32.mrf.mxu0
      %v5775 = vadd.f32 %v5382, %v5774
      %v5776 = vpop.f32.mrf.mxu0
      %v5777 = vadd.f32 %v5384, %v5776
      %v5778 = vpop.f32.mrf.mxu0
      %v5779 = vadd.f32 %v5386, %v5778
      %v5780 = vpop.f32.mrf.mxu0
      %v5781 = vadd.f32 %v5388, %v5780
      %5782 = vmatprep.mubr.bf16.mxu0 %v3825
      %5783 = vmatmul.mubr.bf16.gmra.mxu0 %v3824
      %v5784 = vpop.f32.mrf.mxu0
      %v5785 = vadd.f32 %v5392, %v5784
      %v5786 = vpop.f32.mrf.mxu0
      %v5787 = vadd.f32 %v5394, %v5786
      %v5788 = vpop.f32.mrf.mxu0
      %v5789 = vadd.f32 %v5396, %v5788
      %v5790 = vpop.f32.mrf.mxu0
      %v5791 = vadd.f32 %v5398, %v5790
      %5792 = vmatprep.mubr.bf16.mxu0 %v3834
      %5793 = vmatmul.mubr.bf16.gmra.mxu0 %v3833
      %v5794 = vpop.f32.mrf.mxu0
      %v5795 = vadd.f32 %v5402, %v5794
      %v5796 = vpop.f32.mrf.mxu0
      %v5797 = vadd.f32 %v5404, %v5796
      %v5798 = vpop.f32.mrf.mxu0
      %v5799 = vadd.f32 %v5406, %v5798
      %v5800 = vpop.f32.mrf.mxu0
      %v5801 = vadd.f32 %v5408, %v5800
      %5802 = vmatprep.mubr.bf16.mxu0 %v3843
      %5803 = vmatmul.mubr.bf16.gmra.mxu0 %v3842
      %v5804 = vpop.f32.mrf.mxu0
      %v5805 = vadd.f32 %v5412, %v5804
      %v5806 = vpop.f32.mrf.mxu0
      %v5807 = vadd.f32 %v5414, %v5806
      %v5808 = vpop.f32.mrf.mxu0
      %v5809 = vadd.f32 %v5416, %v5808
      %v5810 = vpop.f32.mrf.mxu0
      %v5811 = vadd.f32 %v5418, %v5810
      %5812 = vmatprep.mubr.bf16.mxu0 %v3852
      %5813 = vmatmul.mubr.bf16.gmra.mxu0 %v3851
      %v5814 = vpop.f32.mrf.mxu0
      %v5815 = vadd.f32 %v5422, %v5814
      %v5816 = vpop.f32.mrf.mxu0
      %v5817 = vadd.f32 %v5424, %v5816
      %v5818 = vpop.f32.mrf.mxu0
      %v5819 = vadd.f32 %v5426, %v5818
      %v5820 = vpop.f32.mrf.mxu0
      %v5821 = vadd.f32 %v5428, %v5820
      %5822 = vdwg.mxu0
      %5823 = vmatprep.subr.bf16.mxu0 0
      %5824 = vmatpush1.bf16.msra.mxu0 0
      %5825 = vmatprep.subr.bf16.mxu0 0
      %5826 = vmatpush1.bf16.msra.mxu0 0
      %5827 = vmatprep.subr.bf16.mxu0 0
      %5828 = vmatpush1.bf16.msra.mxu0 0
      %5829 = vmatprep.subr.bf16.mxu0 0
      %5830 = vmatpush1.bf16.msra.mxu0 0
      %5831 = vmatprep.subr.bf16.mxu0 0
      %5832 = vmatpush1.bf16.msra.mxu0 0
      %5833 = vmatprep.subr.bf16.mxu0 0
      %5834 = vmatpush1.bf16.msra.mxu0 0
      %5835 = vmatprep.subr.bf16.mxu0 0
      %5836 = vmatpush1.bf16.msra.mxu0 0
      %5837 = vmatprep.subr.bf16.mxu0 %v2160
      %5838 = vmatpush1.bf16.msra.mxu0 %v2108
      %5839 = vmatprep.subr.bf16.mxu0 0
      %5840 = vmatpush2.bf16.msra.mxu0 0
      %5841 = vmatprep.subr.bf16.mxu0 0
      %5842 = vmatpush2.bf16.msra.mxu0 0
      %5843 = vmatprep.subr.bf16.mxu0 0
      %5844 = vmatpush2.bf16.msra.mxu0 0
      %5845 = vmatprep.subr.bf16.mxu0 0
      %5846 = vmatpush2.bf16.msra.mxu0 0
      %5847 = vmatprep.subr.bf16.mxu0 0
      %5848 = vmatpush2.bf16.msra.mxu0 0
      %5849 = vmatprep.subr.bf16.mxu0 0
      %5850 = vmatpush2.bf16.msra.mxu0 0
      %5851 = vmatprep.subr.bf16.mxu0 0
      %5852 = vmatpush2.bf16.msra.mxu0 0
      %5853 = vmatprep.subr.bf16.mxu0 0
      %5854 = vmatpush2.bf16.msra.mxu0 0
      %5855 = vmatprep.mubr.bf16.mxu0 0
      %5856 = vmatmul.mubr.bf16.gmra.mxu0 %v4144
      %v5857 = vpop.f32.mrf.mxu0
      %v5858 = vadd.f32 %v5465, %v5857
      %v5859 = vpop.f32.mrf.mxu0
      %v5860 = vadd.f32 %v5467, %v5859
      %v5861 = vpop.f32.mrf.mxu0
      %v5862 = vadd.f32 %v5469, %v5861
      %v5863 = vpop.f32.mrf.mxu0
      %v5864 = vadd.f32 %v5471, %v5863
      %5865 = vmatprep.mubr.bf16.mxu0 0
      %5866 = vmatmul.mubr.bf16.gmra.mxu0 %v4147
      %v5867 = vpop.f32.mrf.mxu0
      %v5868 = vadd.f32 %v5475, %v5867
      %v5869 = vpop.f32.mrf.mxu0
      %v5870 = vadd.f32 %v5477, %v5869
      %v5871 = vpop.f32.mrf.mxu0
      %v5872 = vadd.f32 %v5479, %v5871
      %v5873 = vpop.f32.mrf.mxu0
      %v5874 = vadd.f32 %v5481, %v5873
      %5875 = vmatprep.mubr.bf16.mxu0 0
      %5876 = vmatmul.mubr.bf16.gmra.mxu0 %v4150
      %v5877 = vpop.f32.mrf.mxu0
      %v5878 = vadd.f32 %v5485, %v5877
      %v5879 = vpop.f32.mrf.mxu0
      %v5880 = vadd.f32 %v5487, %v5879
      %v5881 = vpop.f32.mrf.mxu0
      %v5882 = vadd.f32 %v5489, %v5881
      %v5883 = vpop.f32.mrf.mxu0
      %v5884 = vadd.f32 %v5491, %v5883
      %5885 = vmatprep.mubr.bf16.mxu0 0
      %5886 = vmatmul.mubr.bf16.gmra.mxu0 %v4153
      %v5887 = vpop.f32.mrf.mxu0
      %v5888 = vadd.f32 %v5495, %v5887
      %v5889 = vpop.f32.mrf.mxu0
      %v5890 = vadd.f32 %v5497, %v5889
      %v5891 = vpop.f32.mrf.mxu0
      %v5892 = vadd.f32 %v5499, %v5891
      %v5893 = vpop.f32.mrf.mxu0
      %v5894 = vadd.f32 %v5501, %v5893
      %5895 = vmatprep.mubr.bf16.mxu0 0
      %5896 = vmatmul.mubr.bf16.gmra.mxu0 %v4156
      %v5897 = vpop.f32.mrf.mxu0
      %v5898 = vadd.f32 %v5505, %v5897
      %v5899 = vpop.f32.mrf.mxu0
      %v5900 = vadd.f32 %v5507, %v5899
      %v5901 = vpop.f32.mrf.mxu0
      %v5902 = vadd.f32 %v5509, %v5901
      %v5903 = vpop.f32.mrf.mxu0
      %v5904 = vadd.f32 %v5511, %v5903
      %5905 = vmatprep.mubr.bf16.mxu0 0
      %5906 = vmatmul.mubr.bf16.gmra.mxu0 %v4159
      %v5907 = vpop.f32.mrf.mxu0
      %v5908 = vadd.f32 %v5515, %v5907
      %v5909 = vpop.f32.mrf.mxu0
      %v5910 = vadd.f32 %v5517, %v5909
      %v5911 = vpop.f32.mrf.mxu0
      %v5912 = vadd.f32 %v5519, %v5911
      %v5913 = vpop.f32.mrf.mxu0
      %v5914 = vadd.f32 %v5521, %v5913
      %5915 = vmatprep.mubr.bf16.mxu0 0
      %5916 = vmatmul.mubr.bf16.gmra.mxu0 %v4162
      %v5917 = vpop.f32.mrf.mxu0
      %v5918 = vadd.f32 %v5525, %v5917
      %v5919 = vpop.f32.mrf.mxu0
      %v5920 = vadd.f32 %v5527, %v5919
      %v5921 = vpop.f32.mrf.mxu0
      %v5922 = vadd.f32 %v5529, %v5921
      %v5923 = vpop.f32.mrf.mxu0
      %v5924 = vadd.f32 %v5531, %v5923
      %5925 = vmatprep.mubr.bf16.mxu0 0
      %5926 = vmatmul.mubr.bf16.gmra.mxu0 %v4165
      %v5927 = vpop.f32.mrf.mxu0
      %v5928 = vadd.f32 %v5535, %v5927
      %v5929 = vpop.f32.mrf.mxu0
      %v5930 = vadd.f32 %v5537, %v5929
      %v5931 = vpop.f32.mrf.mxu0
      %v5932 = vadd.f32 %v5539, %v5931
      %v5933 = vpop.f32.mrf.mxu0
      %v5934 = vadd.f32 %v5541, %v5933
      %5935 = vmatprep.mubr.bf16.mxu0 0
      %5936 = vmatmul.mubr.bf16.gmra.mxu0 %v4168
      %v5937 = vpop.f32.mrf.mxu0
      %v5938 = vadd.f32 %v5545, %v5937
      %v5939 = vpop.f32.mrf.mxu0
      %v5940 = vadd.f32 %v5547, %v5939
      %v5941 = vpop.f32.mrf.mxu0
      %v5942 = vadd.f32 %v5549, %v5941
      %v5943 = vpop.f32.mrf.mxu0
      %v5944 = vadd.f32 %v5551, %v5943
      %5945 = vmatprep.mubr.bf16.mxu0 0
      %5946 = vmatmul.mubr.bf16.gmra.mxu0 %v4171
      %v5947 = vpop.f32.mrf.mxu0
      %v5948 = vadd.f32 %v5555, %v5947
      %v5949 = vpop.f32.mrf.mxu0
      %v5950 = vadd.f32 %v5557, %v5949
      %v5951 = vpop.f32.mrf.mxu0
      %v5952 = vadd.f32 %v5559, %v5951
      %v5953 = vpop.f32.mrf.mxu0
      %v5954 = vadd.f32 %v5561, %v5953
      %5955 = vmatprep.mubr.bf16.mxu0 0
      %5956 = vmatmul.mubr.bf16.gmra.mxu0 %v4174
      %v5957 = vpop.f32.mrf.mxu0
      %v5958 = vadd.f32 %v5565, %v5957
      %v5959 = vpop.f32.mrf.mxu0
      %v5960 = vadd.f32 %v5567, %v5959
      %v5961 = vpop.f32.mrf.mxu0
      %v5962 = vadd.f32 %v5569, %v5961
      %v5963 = vpop.f32.mrf.mxu0
      %v5964 = vadd.f32 %v5571, %v5963
      %5965 = vmatprep.mubr.bf16.mxu0 0
      %5966 = vmatmul.mubr.bf16.gmra.mxu0 %v4177
      %v5967 = vpop.f32.mrf.mxu0
      %v5968 = vadd.f32 %v5575, %v5967
      %v5969 = vpop.f32.mrf.mxu0
      %v5970 = vadd.f32 %v5577, %v5969
      %v5971 = vpop.f32.mrf.mxu0
      %v5972 = vadd.f32 %v5579, %v5971
      %v5973 = vpop.f32.mrf.mxu0
      %v5974 = vadd.f32 %v5581, %v5973
      %5975 = vmatprep.mubr.bf16.mxu0 0
      %5976 = vmatmul.mubr.bf16.gmra.mxu0 %v4180
      %v5977 = vpop.f32.mrf.mxu0
      %v5978 = vadd.f32 %v5585, %v5977
      %v5979 = vpop.f32.mrf.mxu0
      %v5980 = vadd.f32 %v5587, %v5979
      %v5981 = vpop.f32.mrf.mxu0
      %v5982 = vadd.f32 %v5589, %v5981
      %v5983 = vpop.f32.mrf.mxu0
      %v5984 = vadd.f32 %v5591, %v5983
      %5985 = vmatprep.mubr.bf16.mxu0 0
      %5986 = vmatmul.mubr.bf16.gmra.mxu0 %v4183
      %v5987 = vpop.f32.mrf.mxu0
      %v5988 = vadd.f32 %v5595, %v5987
      %v5989 = vpop.f32.mrf.mxu0
      %v5990 = vadd.f32 %v5597, %v5989
      %v5991 = vpop.f32.mrf.mxu0
      %v5992 = vadd.f32 %v5599, %v5991
      %v5993 = vpop.f32.mrf.mxu0
      %v5994 = vadd.f32 %v5601, %v5993
      %5995 = vmatprep.mubr.bf16.mxu0 0
      %5996 = vmatmul.mubr.bf16.gmra.mxu0 %v4186
      %v5997 = vpop.f32.mrf.mxu0
      %v5998 = vadd.f32 %v5605, %v5997
      %v5999 = vpop.f32.mrf.mxu0
      %v6000 = vadd.f32 %v5607, %v5999
      %v6001 = vpop.f32.mrf.mxu0
      %v6002 = vadd.f32 %v5609, %v6001
      %v6003 = vpop.f32.mrf.mxu0
      %v6004 = vadd.f32 %v5611, %v6003
      %6005 = vmatprep.mubr.bf16.mxu0 0
      %6006 = vmatmul.mubr.bf16.gmra.mxu0 %v4189
      %v6007 = vpop.f32.mrf.mxu0
      %v6008 = vadd.f32 %v5615, %v6007
      %v6009 = vpop.f32.mrf.mxu0
      %v6010 = vadd.f32 %v5617, %v6009
      %v6011 = vpop.f32.mrf.mxu0
      %v6012 = vadd.f32 %v5619, %v6011
      %v6013 = vpop.f32.mrf.mxu0
      %v6014 = vadd.f32 %v5621, %v6013
      %6015 = vmatprep.mubr.bf16.mxu0 0
      %6016 = vmatmul.mubr.bf16.gmra.mxu0 %v4192
      %v6017 = vpop.f32.mrf.mxu0
      %v6018 = vadd.f32 %v5625, %v6017
      %v6019 = vpop.f32.mrf.mxu0
      %v6020 = vadd.f32 %v5627, %v6019
      %v6021 = vpop.f32.mrf.mxu0
      %v6022 = vadd.f32 %v5629, %v6021
      %v6023 = vpop.f32.mrf.mxu0
      %v6024 = vadd.f32 %v5631, %v6023
      %6025 = vmatprep.mubr.bf16.mxu0 0
      %6026 = vmatmul.mubr.bf16.gmra.mxu0 %v4195
      %v6027 = vpop.f32.mrf.mxu0
      %v6028 = vadd.f32 %v5635, %v6027
      %v6029 = vpop.f32.mrf.mxu0
      %v6030 = vadd.f32 %v5637, %v6029
      %v6031 = vpop.f32.mrf.mxu0
      %v6032 = vadd.f32 %v5639, %v6031
      %v6033 = vpop.f32.mrf.mxu0
      %v6034 = vadd.f32 %v5641, %v6033
      %6035 = vmatprep.mubr.bf16.mxu0 0
      %6036 = vmatmul.mubr.bf16.gmra.mxu0 %v4198
      %v6037 = vpop.f32.mrf.mxu0
      %v6038 = vadd.f32 %v5645, %v6037
      %v6039 = vpop.f32.mrf.mxu0
      %v6040 = vadd.f32 %v5647, %v6039
      %v6041 = vpop.f32.mrf.mxu0
      %v6042 = vadd.f32 %v5649, %v6041
      %v6043 = vpop.f32.mrf.mxu0
      %v6044 = vadd.f32 %v5651, %v6043
      %6045 = vmatprep.mubr.bf16.mxu0 0
      %6046 = vmatmul.mubr.bf16.gmra.mxu0 %v4201
      %v6047 = vpop.f32.mrf.mxu0
      %v6048 = vadd.f32 %v5655, %v6047
      %v6049 = vpop.f32.mrf.mxu0
      %v6050 = vadd.f32 %v5657, %v6049
      %v6051 = vpop.f32.mrf.mxu0
      %v6052 = vadd.f32 %v5659, %v6051
      %v6053 = vpop.f32.mrf.mxu0
      %v6054 = vadd.f32 %v5661, %v6053
      %6055 = vmatprep.mubr.bf16.mxu0 0
      %6056 = vmatmul.mubr.bf16.gmra.mxu0 %v4204
      %v6057 = vpop.f32.mrf.mxu0
      %v6058 = vadd.f32 %v5665, %v6057
      %v6059 = vpop.f32.mrf.mxu0
      %v6060 = vadd.f32 %v5667, %v6059
      %v6061 = vpop.f32.mrf.mxu0
      %v6062 = vadd.f32 %v5669, %v6061
      %v6063 = vpop.f32.mrf.mxu0
      %v6064 = vadd.f32 %v5671, %v6063
      %6065 = vmatprep.mubr.bf16.mxu0 0
      %6066 = vmatmul.mubr.bf16.gmra.mxu0 %v4207
      %v6067 = vpop.f32.mrf.mxu0
      %v6068 = vadd.f32 %v5675, %v6067
      %v6069 = vpop.f32.mrf.mxu0
      %v6070 = vadd.f32 %v5677, %v6069
      %v6071 = vpop.f32.mrf.mxu0
      %v6072 = vadd.f32 %v5679, %v6071
      %v6073 = vpop.f32.mrf.mxu0
      %v6074 = vadd.f32 %v5681, %v6073
      %6075 = vmatprep.mubr.bf16.mxu0 0
      %6076 = vmatmul.mubr.bf16.gmra.mxu0 %v4210
      %v6077 = vpop.f32.mrf.mxu0
      %v6078 = vadd.f32 %v5685, %v6077
      %v6079 = vpop.f32.mrf.mxu0
      %v6080 = vadd.f32 %v5687, %v6079
      %v6081 = vpop.f32.mrf.mxu0
      %v6082 = vadd.f32 %v5689, %v6081
      %v6083 = vpop.f32.mrf.mxu0
      %v6084 = vadd.f32 %v5691, %v6083
      %6085 = vmatprep.mubr.bf16.mxu0 0
      %6086 = vmatmul.mubr.bf16.gmra.mxu0 %v4213
      %v6087 = vpop.f32.mrf.mxu0
      %v6088 = vadd.f32 %v5695, %v6087
      %v6089 = vpop.f32.mrf.mxu0
      %v6090 = vadd.f32 %v5697, %v6089
      %v6091 = vpop.f32.mrf.mxu0
      %v6092 = vadd.f32 %v5699, %v6091
      %v6093 = vpop.f32.mrf.mxu0
      %v6094 = vadd.f32 %v5701, %v6093
      %6095 = vmatprep.mubr.bf16.mxu0 0
      %6096 = vmatmul.mubr.bf16.gmra.mxu0 %v4216
      %v6097 = vpop.f32.mrf.mxu0
      %v6098 = vadd.f32 %v5705, %v6097
      %v6099 = vpop.f32.mrf.mxu0
      %v6100 = vadd.f32 %v5707, %v6099
      %v6101 = vpop.f32.mrf.mxu0
      %v6102 = vadd.f32 %v5709, %v6101
      %v6103 = vpop.f32.mrf.mxu0
      %v6104 = vadd.f32 %v5711, %v6103
      %6105 = vmatprep.mubr.bf16.mxu0 0
      %6106 = vmatmul.mubr.bf16.gmra.mxu0 %v4219
      %v6107 = vpop.f32.mrf.mxu0
      %v6108 = vadd.f32 %v5715, %v6107
      %v6109 = vpop.f32.mrf.mxu0
      %v6110 = vadd.f32 %v5717, %v6109
      %v6111 = vpop.f32.mrf.mxu0
      %v6112 = vadd.f32 %v5719, %v6111
      %v6113 = vpop.f32.mrf.mxu0
      %v6114 = vadd.f32 %v5721, %v6113
      %6115 = vmatprep.mubr.bf16.mxu0 0
      %6116 = vmatmul.mubr.bf16.gmra.mxu0 %v4222
      %v6117 = vpop.f32.mrf.mxu0
      %v6118 = vadd.f32 %v5725, %v6117
      %v6119 = vpop.f32.mrf.mxu0
      %v6120 = vadd.f32 %v5727, %v6119
      %v6121 = vpop.f32.mrf.mxu0
      %v6122 = vadd.f32 %v5729, %v6121
      %v6123 = vpop.f32.mrf.mxu0
      %v6124 = vadd.f32 %v5731, %v6123
      %6125 = vmatprep.mubr.bf16.mxu0 0
      %6126 = vmatmul.mubr.bf16.gmra.mxu0 %v4225
      %v6127 = vpop.f32.mrf.mxu0
      %v6128 = vadd.f32 %v5735, %v6127
      %v6129 = vpop.f32.mrf.mxu0
      %v6130 = vadd.f32 %v5737, %v6129
      %v6131 = vpop.f32.mrf.mxu0
      %v6132 = vadd.f32 %v5739, %v6131
      %v6133 = vpop.f32.mrf.mxu0
      %v6134 = vadd.f32 %v5741, %v6133
      %6135 = vmatprep.mubr.bf16.mxu0 0
      %6136 = vmatmul.mubr.bf16.gmra.mxu0 %v4228
      %v6137 = vpop.f32.mrf.mxu0
      %v6138 = vadd.f32 %v5745, %v6137
      %v6139 = vpop.f32.mrf.mxu0
      %v6140 = vadd.f32 %v5747, %v6139
      %v6141 = vpop.f32.mrf.mxu0
      %v6142 = vadd.f32 %v5749, %v6141
      %v6143 = vpop.f32.mrf.mxu0
      %v6144 = vadd.f32 %v5751, %v6143
      %6145 = vmatprep.mubr.bf16.mxu0 0
      %6146 = vmatmul.mubr.bf16.gmra.mxu0 %v4231
      %v6147 = vpop.f32.mrf.mxu0
      %v6148 = vadd.f32 %v5755, %v6147
      %v6149 = vpop.f32.mrf.mxu0
      %v6150 = vadd.f32 %v5757, %v6149
      %v6151 = vpop.f32.mrf.mxu0
      %v6152 = vadd.f32 %v5759, %v6151
      %v6153 = vpop.f32.mrf.mxu0
      %v6154 = vadd.f32 %v5761, %v6153
      %6155 = vmatprep.mubr.bf16.mxu0 0
      %6156 = vmatmul.mubr.bf16.gmra.mxu0 %v4234
      %v6157 = vpop.f32.mrf.mxu0
      %v6158 = vadd.f32 %v5765, %v6157
      %v6159 = vpop.f32.mrf.mxu0
      %v6160 = vadd.f32 %v5767, %v6159
      %v6161 = vpop.f32.mrf.mxu0
      %v6162 = vadd.f32 %v5769, %v6161
      %v6163 = vpop.f32.mrf.mxu0
      %v6164 = vadd.f32 %v5771, %v6163
      %6165 = vmatprep.mubr.bf16.mxu0 0
      %6166 = vmatmul.mubr.bf16.gmra.mxu0 %v4237
      %v6167 = vpop.f32.mrf.mxu0
      %v6168 = vadd.f32 %v5775, %v6167
      %v6169 = vpop.f32.mrf.mxu0
      %v6170 = vadd.f32 %v5777, %v6169
      %v6171 = vpop.f32.mrf.mxu0
      %v6172 = vadd.f32 %v5779, %v6171
      %v6173 = vpop.f32.mrf.mxu0
      %v6174 = vadd.f32 %v5781, %v6173
      %6175 = vmatprep.mubr.bf16.mxu0 0
      %6176 = vmatmul.mubr.bf16.gmra.mxu0 %v4240
      %v6177 = vpop.f32.mrf.mxu0
      %v6178 = vadd.f32 %v5785, %v6177
      %v6179 = vpop.f32.mrf.mxu0
      %v6180 = vadd.f32 %v5787, %v6179
      %v6181 = vpop.f32.mrf.mxu0
      %v6182 = vadd.f32 %v5789, %v6181
      %v6183 = vpop.f32.mrf.mxu0
      %v6184 = vadd.f32 %v5791, %v6183
      %6185 = vmatprep.mubr.bf16.mxu0 0
      %6186 = vmatmul.mubr.bf16.gmra.mxu0 %v4243
      %v6187 = vpop.f32.mrf.mxu0
      %v6188 = vadd.f32 %v5795, %v6187
      %v6189 = vpop.f32.mrf.mxu0
      %v6190 = vadd.f32 %v5797, %v6189
      %v6191 = vpop.f32.mrf.mxu0
      %v6192 = vadd.f32 %v5799, %v6191
      %v6193 = vpop.f32.mrf.mxu0
      %v6194 = vadd.f32 %v5801, %v6193
      %6195 = vmatprep.mubr.bf16.mxu0 0
      %6196 = vmatmul.mubr.bf16.gmra.mxu0 %v4246
      %v6197 = vpop.f32.mrf.mxu0
      %v6198 = vadd.f32 %v5805, %v6197
      %v6199 = vpop.f32.mrf.mxu0
      %v6200 = vadd.f32 %v5807, %v6199
      %v6201 = vpop.f32.mrf.mxu0
      %v6202 = vadd.f32 %v5809, %v6201
      %v6203 = vpop.f32.mrf.mxu0
      %v6204 = vadd.f32 %v5811, %v6203
      %6205 = vmatprep.mubr.bf16.mxu0 0
      %6206 = vmatmul.mubr.bf16.gmra.mxu0 %v4249
      %v6207 = vpop.f32.mrf.mxu0
      %v6208 = vadd.f32 %v5815, %v6207
      %v6209 = vpop.f32.mrf.mxu0
      %v6210 = vadd.f32 %v5817, %v6209
      %v6211 = vpop.f32.mrf.mxu0
      %v6212 = vadd.f32 %v5819, %v6211
      %v6213 = vpop.f32.mrf.mxu0
      %v6214 = vadd.f32 %v5821, %v6213
      %6215 = vdwg.mxu0
      %v6216 = vmax.f32 %v5858, %v6038
      %v6217 = vmax.f32 %v5860, %v6040
      %v6218 = vmax.f32 %v5862, %v6042
      %v6219 = vmax.f32 %v5864, %v6044
      %v6220 = vmax.f32 %v5868, %v6048
      %v6221 = vmax.f32 %v5870, %v6050
      %v6222 = vmax.f32 %v5872, %v6052
      %v6223 = vmax.f32 %v5874, %v6054
      %v6224 = vmax.f32 %v5878, %v6058
      %v6225 = vmax.f32 %v5880, %v6060
      %v6226 = vmax.f32 %v5882, %v6062
      %v6227 = vmax.f32 %v5884, %v6064
      %v6228 = vmax.f32 %v5888, %v6068
      %v6229 = vmax.f32 %v5890, %v6070
      %v6230 = vmax.f32 %v5892, %v6072
      %v6231 = vmax.f32 %v5894, %v6074
      %v6232 = vmax.f32 %v5898, %v6078
      %v6233 = vmax.f32 %v5900, %v6080
      %v6234 = vmax.f32 %v5902, %v6082
      %v6235 = vmax.f32 %v5904, %v6084
      %v6236 = vmax.f32 %v5908, %v6088
      %v6237 = vmax.f32 %v5910, %v6090
      %v6238 = vmax.f32 %v5912, %v6092
      %v6239 = vmax.f32 %v5914, %v6094
      %v6240 = vmax.f32 %v5918, %v6098
      %v6241 = vmax.f32 %v5920, %v6100
      %v6242 = vmax.f32 %v5922, %v6102
      %v6243 = vmax.f32 %v5924, %v6104
      %v6244 = vmax.f32 %v5928, %v6108
      %v6245 = vmax.f32 %v5930, %v6110
      %v6246 = vmax.f32 %v5932, %v6112
      %v6247 = vmax.f32 %v5934, %v6114
      %v6248 = vmax.f32 %v5938, %v6118
      %v6249 = vmax.f32 %v5940, %v6120
      %v6250 = vmax.f32 %v5942, %v6122
      %v6251 = vmax.f32 %v5944, %v6124
      %v6252 = vmax.f32 %v5948, %v6128
      %v6253 = vmax.f32 %v5950, %v6130
      %v6254 = vmax.f32 %v5952, %v6132
      %v6255 = vmax.f32 %v5954, %v6134
      %v6256 = vmax.f32 %v5958, %v6138
      %v6257 = vmax.f32 %v5960, %v6140
      %v6258 = vmax.f32 %v5962, %v6142
      %v6259 = vmax.f32 %v5964, %v6144
      %v6260 = vmax.f32 %v5968, %v6148
      %v6261 = vmax.f32 %v5970, %v6150
      %v6262 = vmax.f32 %v5972, %v6152
      %v6263 = vmax.f32 %v5974, %v6154
      %v6264 = vmax.f32 %v5978, %v6158
      %v6265 = vmax.f32 %v5980, %v6160
      %v6266 = vmax.f32 %v5982, %v6162
      %v6267 = vmax.f32 %v5984, %v6164
      %v6268 = vmax.f32 %v5988, %v6168
      %v6269 = vmax.f32 %v5990, %v6170
      %v6270 = vmax.f32 %v5992, %v6172
      %v6271 = vmax.f32 %v5994, %v6174
      %v6272 = vmax.f32 %v5998, %v6178
      %v6273 = vmax.f32 %v6000, %v6180
      %v6274 = vmax.f32 %v6002, %v6182
      %v6275 = vmax.f32 %v6004, %v6184
      %v6276 = vmax.f32 %v6008, %v6188
      %v6277 = vmax.f32 %v6010, %v6190
      %v6278 = vmax.f32 %v6012, %v6192
      %v6279 = vmax.f32 %v6014, %v6194
      %v6280 = vmax.f32 %v6018, %v6198
      %v6281 = vmax.f32 %v6020, %v6200
      %v6282 = vmax.f32 %v6022, %v6202
      %v6283 = vmax.f32 %v6024, %v6204
      %v6284 = vmax.f32 %v6028, %v6208
      %v6285 = vmax.f32 %v6030, %v6210
      %v6286 = vmax.f32 %v6032, %v6212
      %v6287 = vmax.f32 %v6034, %v6214
      %v6288 = vld [vmem:[%s2] sm:$0xff]
      %v6289 = vld [vmem:[%s2 + $0x8] sm:$0xff]
      %v6290 = vld [vmem:[%s2 + $0x10] sm:$0xff]
      %v6291 = vld [vmem:[%s2 + $0x18] sm:$0xff]
      %v6292 = vld [vmem:[%s2 + $0x20] sm:$0xff]
      %v6293 = vld [vmem:[%s2 + $0x28] sm:$0xff]
      %v6294 = vld [vmem:[%s2 + $0x30] sm:$0xff]
      %v6295 = vld [vmem:[%s2 + $0x38] sm:$0xff]
      %v6296 = vld [vmem:[%s2 + $0x40] sm:$0xff]
      %v6297 = vld [vmem:[%s2 + $0x48] sm:$0xff]
      %v6298 = vld [vmem:[%s2 + $0x50] sm:$0xff]
      %v6299 = vld [vmem:[%s2 + $0x58] sm:$0xff]
      %v6300 = vld [vmem:[%s2 + $0x60] sm:$0xff]
      %v6301 = vld [vmem:[%s2 + $0x68] sm:$0xff]
      %v6302 = vld [vmem:[%s2 + $0x70] sm:$0xff]
      %v6303 = vld [vmem:[%s2 + $0x78] sm:$0xff]
      %v6304 = vld [vmem:[%s2 + $0x80] sm:$0xff]
      %v6305 = vld [vmem:[%s2 + $0x88] sm:$0xff]
      %v6306 = vld [vmem:[%s2 + $0x90] sm:$0xff]
      %v6307 = vld [vmem:[%s2 + $0x98] sm:$0xff]
      %v6308 = vld [vmem:[%s2 + $0xa0] sm:$0xff]
      %v6309 = vld [vmem:[%s2 + $0xa8] sm:$0xff]
      %v6310 = vld [vmem:[%s2 + $0xb0] sm:$0xff]
      %v6311 = vld [vmem:[%s2 + $0xb8] sm:$0xff]
      %v6312 = vld [vmem:[%s2 + $0xc0] sm:$0xff]
      %v6313 = vld [vmem:[%s2 + $0xc8] sm:$0xff]
      %v6314 = vld [vmem:[%s2 + $0xd0] sm:$0xff]
      %v6315 = vld [vmem:[%s2 + $0xd8] sm:$0xff]
      %v6316 = vld [vmem:[%s2 + $0xe0] sm:$0xff]
      %v6317 = vld [vmem:[%s2 + $0xe8] sm:$0xff]
      %v6318 = vld [vmem:[%s2 + $0xf0] sm:$0xff]
      %v6319 = vld [vmem:[%s2 + $0xf8] sm:$0xff]
      %v6320 = vld [vmem:[%s2 + $0x100] sm:$0xff]
      %v6321 = vld [vmem:[%s2 + $0x108] sm:$0xff]
      %v6322 = vld [vmem:[%s2 + $0x110] sm:$0xff]
      %v6323 = vld [vmem:[%s2 + $0x118] sm:$0xff]
      %6325 = vset.pattern.permute.xlu0 0
      %6326 = vperm.xlu0 %6325, %v6288
      %v6327 = vpop.permute.xlu0 %6326
      %6330 = vset.pattern.permute.xlu0 0
      %6331 = vperm.xlu0 %6330, %v6289
      %v6332 = vpop.permute.xlu0 %6331
      %6335 = vset.pattern.permute.xlu0 0
      %6336 = vperm.xlu0 %6335, %v6290
      %v6337 = vpop.permute.xlu0 %6336
      %6340 = vset.pattern.permute.xlu0 0
      %6341 = vperm.xlu0 %6340, %v6291
      %v6342 = vpop.permute.xlu0 %6341
      %6345 = vset.pattern.permute.xlu0 0
      %6346 = vperm.xlu0 %6345, %v6292
      %v6347 = vpop.permute.xlu0 %6346
      %6350 = vset.pattern.permute.xlu0 0
      %6351 = vperm.xlu0 %6350, %v6293
      %v6352 = vpop.permute.xlu0 %6351
      %6355 = vset.pattern.permute.xlu0 0
      %6356 = vperm.xlu0 %6355, %v6294
      %v6357 = vpop.permute.xlu0 %6356
      %6360 = vset.pattern.permute.xlu0 0
      %6361 = vperm.xlu0 %6360, %v6295
      %v6362 = vpop.permute.xlu0 %6361
      %6365 = vset.pattern.permute.xlu0 0
      %6366 = vperm.xlu0 %6365, %v6296
      %v6367 = vpop.permute.xlu0 %6366
      %6370 = vset.pattern.permute.xlu0 0
      %6371 = vperm.xlu0 %6370, %v6297
      %v6372 = vpop.permute.xlu0 %6371
      %6375 = vset.pattern.permute.xlu0 0
      %6376 = vperm.xlu0 %6375, %v6298
      %v6377 = vpop.permute.xlu0 %6376
      %6380 = vset.pattern.permute.xlu0 0
      %6381 = vperm.xlu0 %6380, %v6299
      %v6382 = vpop.permute.xlu0 %6381
      %6385 = vset.pattern.permute.xlu0 0
      %6386 = vperm.xlu0 %6385, %v6300
      %v6387 = vpop.permute.xlu0 %6386
      %6390 = vset.pattern.permute.xlu0 0
      %6391 = vperm.xlu0 %6390, %v6301
      %v6392 = vpop.permute.xlu0 %6391
      %6395 = vset.pattern.permute.xlu0 0
      %6396 = vperm.xlu0 %6395, %v6302
      %v6397 = vpop.permute.xlu0 %6396
      %6400 = vset.pattern.permute.xlu0 0
      %6401 = vperm.xlu0 %6400, %v6303
      %v6402 = vpop.permute.xlu0 %6401
      %6405 = vset.pattern.permute.xlu0 0
      %6406 = vperm.xlu0 %6405, %v6304
      %v6407 = vpop.permute.xlu0 %6406
      %6410 = vset.pattern.permute.xlu0 0
      %6411 = vperm.xlu0 %6410, %v6305
      %v6412 = vpop.permute.xlu0 %6411
      %6415 = vset.pattern.permute.xlu0 0
      %6416 = vperm.xlu0 %6415, %v6306
      %v6417 = vpop.permute.xlu0 %6416
      %6420 = vset.pattern.permute.xlu0 0
      %6421 = vperm.xlu0 %6420, %v6307
      %v6422 = vpop.permute.xlu0 %6421
      %6425 = vset.pattern.permute.xlu0 0
      %6426 = vperm.xlu0 %6425, %v6308
      %v6427 = vpop.permute.xlu0 %6426
      %6430 = vset.pattern.permute.xlu0 0
      %6431 = vperm.xlu0 %6430, %v6309
      %v6432 = vpop.permute.xlu0 %6431
      %6435 = vset.pattern.permute.xlu0 0
      %6436 = vperm.xlu0 %6435, %v6310
      %v6437 = vpop.permute.xlu0 %6436
      %6440 = vset.pattern.permute.xlu0 0
      %6441 = vperm.xlu0 %6440, %v6311
      %v6442 = vpop.permute.xlu0 %6441
      %6445 = vset.pattern.permute.xlu0 0
      %6446 = vperm.xlu0 %6445, %v6312
      %v6447 = vpop.permute.xlu0 %6446
      %6450 = vset.pattern.permute.xlu0 0
      %6451 = vperm.xlu0 %6450, %v6313
      %v6452 = vpop.permute.xlu0 %6451
      %6455 = vset.pattern.permute.xlu0 0
      %6456 = vperm.xlu0 %6455, %v6314
      %v6457 = vpop.permute.xlu0 %6456
      %6460 = vset.pattern.permute.xlu0 0
      %6461 = vperm.xlu0 %6460, %v6315
      %v6462 = vpop.permute.xlu0 %6461
      %6465 = vset.pattern.permute.xlu0 0
      %6466 = vperm.xlu0 %6465, %v6316
      %v6467 = vpop.permute.xlu0 %6466
      %6470 = vset.pattern.permute.xlu0 0
      %6471 = vperm.xlu0 %6470, %v6317
      %v6472 = vpop.permute.xlu0 %6471
      %6475 = vset.pattern.permute.xlu0 0
      %6476 = vperm.xlu0 %6475, %v6318
      %v6477 = vpop.permute.xlu0 %6476
      %6480 = vset.pattern.permute.xlu0 0
      %6481 = vperm.xlu0 %6480, %v6319
      %v6482 = vpop.permute.xlu0 %6481
      %6485 = vset.pattern.permute.xlu0 0
      %6486 = vperm.xlu0 %6485, %v6320
      %v6487 = vpop.permute.xlu0 %6486
      %6490 = vset.pattern.permute.xlu0 0
      %6491 = vperm.xlu0 %6490, %v6321
      %v6492 = vpop.permute.xlu0 %6491
      %6495 = vset.pattern.permute.xlu0 0
      %6496 = vperm.xlu0 %6495, %v6322
      %v6497 = vpop.permute.xlu0 %6496
      %6500 = vset.pattern.permute.xlu0 0
      %6501 = vperm.xlu0 %6500, %v6323
      %v6502 = vpop.permute.xlu0 %6501
      %v6504 = vadd.f32 %v6216, %v6327
      %v6505 = vadd.f32 %v6217, %v6327
      %v6506 = vadd.f32 %v6218, %v6332
      %v6507 = vadd.f32 %v6219, %v6332
      %v6508 = vadd.f32 %v6220, %v6337
      %v6509 = vadd.f32 %v6221, %v6337
      %v6510 = vadd.f32 %v6222, %v6342
      %v6511 = vadd.f32 %v6223, %v6342
      %v6512 = vadd.f32 %v6224, %v6347
      %v6513 = vadd.f32 %v6225, %v6347
      %v6514 = vadd.f32 %v6226, %v6352
      %v6515 = vadd.f32 %v6227, %v6352
      %v6516 = vadd.f32 %v6228, %v6357
      %v6517 = vadd.f32 %v6229, %v6357
      %v6518 = vadd.f32 %v6230, %v6362
      %v6519 = vadd.f32 %v6231, %v6362
      %v6520 = vadd.f32 %v6232, %v6367
      %v6521 = vadd.f32 %v6233, %v6367
      %v6522 = vadd.f32 %v6234, %v6372
      %v6523 = vadd.f32 %v6235, %v6372
      %v6524 = vadd.f32 %v6236, %v6377
      %v6525 = vadd.f32 %v6237, %v6377
      %v6526 = vadd.f32 %v6238, %v6382
      %v6527 = vadd.f32 %v6239, %v6382
      %v6528 = vadd.f32 %v6240, %v6387
      %v6529 = vadd.f32 %v6241, %v6387
      %v6530 = vadd.f32 %v6242, %v6392
      %v6531 = vadd.f32 %v6243, %v6392
      %v6532 = vadd.f32 %v6244, %v6397
      %v6533 = vadd.f32 %v6245, %v6397
      %v6534 = vadd.f32 %v6246, %v6402
      %v6535 = vadd.f32 %v6247, %v6402
      %v6536 = vadd.f32 %v6248, %v6407
      %v6537 = vadd.f32 %v6249, %v6407
      %v6538 = vadd.f32 %v6250, %v6412
      %v6539 = vadd.f32 %v6251, %v6412
      %v6540 = vadd.f32 %v6252, %v6417
      %v6541 = vadd.f32 %v6253, %v6417
      %v6542 = vadd.f32 %v6254, %v6422
      %v6543 = vadd.f32 %v6255, %v6422
      %v6544 = vadd.f32 %v6256, %v6427
      %v6545 = vadd.f32 %v6257, %v6427
      %v6546 = vadd.f32 %v6258, %v6432
      %v6547 = vadd.f32 %v6259, %v6432
      %v6548 = vadd.f32 %v6260, %v6437
      %v6549 = vadd.f32 %v6261, %v6437
      %v6550 = vadd.f32 %v6262, %v6442
      %v6551 = vadd.f32 %v6263, %v6442
      %v6552 = vadd.f32 %v6264, %v6447
      %v6553 = vadd.f32 %v6265, %v6447
      %v6554 = vadd.f32 %v6266, %v6452
      %v6555 = vadd.f32 %v6267, %v6452
      %v6556 = vadd.f32 %v6268, %v6457
      %v6557 = vadd.f32 %v6269, %v6457
      %v6558 = vadd.f32 %v6270, %v6462
      %v6559 = vadd.f32 %v6271, %v6462
      %v6560 = vadd.f32 %v6272, %v6467
      %v6561 = vadd.f32 %v6273, %v6467
      %v6562 = vadd.f32 %v6274, %v6472
      %v6563 = vadd.f32 %v6275, %v6472
      %v6564 = vadd.f32 %v6276, %v6477
      %v6565 = vadd.f32 %v6277, %v6477
      %v6566 = vadd.f32 %v6278, %v6482
      %v6567 = vadd.f32 %v6279, %v6482
      %v6568 = vadd.f32 %v6280, %v6487
      %v6569 = vadd.f32 %v6281, %v6487
      %v6570 = vadd.f32 %v6282, %v6492
      %v6571 = vadd.f32 %v6283, %v6492
      %v6572 = vadd.f32 %v6284, %v6497
      %v6573 = vadd.f32 %v6285, %v6497
      %v6574 = vadd.f32 %v6286, %v6502
      %v6575 = vadd.f32 %v6287, %v6502
      %v6576 = vmax.f32 %v6504, 0.0
      %v6577 = vmax.f32 %v6505, 0.0
      %v6578 = vmax.f32 %v6506, 0.0
      %v6579 = vmax.f32 %v6507, 0.0
      %v6580 = vmax.f32 %v6508, 0.0
      %v6581 = vmax.f32 %v6509, 0.0
      %v6582 = vmax.f32 %v6510, 0.0
      %v6583 = vmax.f32 %v6511, 0.0
      %v6584 = vmax.f32 %v6512, 0.0
      %v6585 = vmax.f32 %v6513, 0.0
      %v6586 = vmax.f32 %v6514, 0.0
      %v6587 = vmax.f32 %v6515, 0.0
      %v6588 = vmax.f32 %v6516, 0.0
      %v6589 = vmax.f32 %v6517, 0.0
      %v6590 = vmax.f32 %v6518, 0.0
      %v6591 = vmax.f32 %v6519, 0.0
      %v6592 = vmax.f32 %v6520, 0.0
      %v6593 = vmax.f32 %v6521, 0.0
      %v6594 = vmax.f32 %v6522, 0.0
      %v6595 = vmax.f32 %v6523, 0.0
      %v6596 = vmax.f32 %v6524, 0.0
      %v6597 = vmax.f32 %v6525, 0.0
      %v6598 = vmax.f32 %v6526, 0.0
      %v6599 = vmax.f32 %v6527, 0.0
      %v6600 = vmax.f32 %v6528, 0.0
      %v6601 = vmax.f32 %v6529, 0.0
      %v6602 = vmax.f32 %v6530, 0.0
      %v6603 = vmax.f32 %v6531, 0.0
      %v6604 = vmax.f32 %v6532, 0.0
      %v6605 = vmax.f32 %v6533, 0.0
      %v6606 = vmax.f32 %v6534, 0.0
      %v6607 = vmax.f32 %v6535, 0.0
      %v6608 = vmax.f32 %v6536, 0.0
      %v6609 = vmax.f32 %v6537, 0.0
      %v6610 = vmax.f32 %v6538, 0.0
      %v6611 = vmax.f32 %v6539, 0.0
      %v6612 = vmax.f32 %v6540, 0.0
      %v6613 = vmax.f32 %v6541, 0.0
      %v6614 = vmax.f32 %v6542, 0.0
      %v6615 = vmax.f32 %v6543, 0.0
      %v6616 = vmax.f32 %v6544, 0.0
      %v6617 = vmax.f32 %v6545, 0.0
      %v6618 = vmax.f32 %v6546, 0.0
      %v6619 = vmax.f32 %v6547, 0.0
      %v6620 = vmax.f32 %v6548, 0.0
      %v6621 = vmax.f32 %v6549, 0.0
      %v6622 = vmax.f32 %v6550, 0.0
      %v6623 = vmax.f32 %v6551, 0.0
      %v6624 = vmax.f32 %v6552, 0.0
      %v6625 = vmax.f32 %v6553, 0.0
      %v6626 = vmax.f32 %v6554, 0.0
      %v6627 = vmax.f32 %v6555, 0.0
      %v6628 = vmax.f32 %v6556, 0.0
      %v6629 = vmax.f32 %v6557, 0.0
      %v6630 = vmax.f32 %v6558, 0.0
      %v6631 = vmax.f32 %v6559, 0.0
      %v6632 = vmax.f32 %v6560, 0.0
      %v6633 = vmax.f32 %v6561, 0.0
      %v6634 = vmax.f32 %v6562, 0.0
      %v6635 = vmax.f32 %v6563, 0.0
      %v6636 = vmax.f32 %v6564, 0.0
      %v6637 = vmax.f32 %v6565, 0.0
      %v6638 = vmax.f32 %v6566, 0.0
      %v6639 = vmax.f32 %v6567, 0.0
      %v6640 = vmax.f32 %v6568, 0.0
      %v6641 = vmax.f32 %v6569, 0.0
      %v6642 = vmax.f32 %v6570, 0.0
      %v6643 = vmax.f32 %v6571, 0.0
      %v6644 = vmax.f32 %v6572, 0.0
      %v6645 = vmax.f32 %v6573, 0.0
      %v6646 = vmax.f32 %v6574, 0.0
      %v6647 = vmax.f32 %v6575, 0.0
      %v6648 = vpack.c.bf16 %v6578, %v6576
      %v6649 = vpack.c.bf16 %v6579, %v6577
      %v6650 = vpack.c.bf16 %v6582, %v6580
      %v6651 = vpack.c.bf16 %v6583, %v6581
      %v6652 = vpack.c.bf16 %v6586, %v6584
      %v6653 = vpack.c.bf16 %v6587, %v6585
      %v6654 = vpack.c.bf16 %v6590, %v6588
      %v6655 = vpack.c.bf16 %v6591, %v6589
      %v6656 = vpack.c.bf16 %v6594, %v6592
      %v6657 = vpack.c.bf16 %v6595, %v6593
      %v6658 = vpack.c.bf16 %v6598, %v6596
      %v6659 = vpack.c.bf16 %v6599, %v6597
      %v6660 = vpack.c.bf16 %v6602, %v6600
      %v6661 = vpack.c.bf16 %v6603, %v6601
      %v6662 = vpack.c.bf16 %v6606, %v6604
      %v6663 = vpack.c.bf16 %v6607, %v6605
      %v6664 = vpack.c.bf16 %v6610, %v6608
      %v6665 = vpack.c.bf16 %v6611, %v6609
      %v6666 = vpack.c.bf16 %v6614, %v6612
      %v6667 = vpack.c.bf16 %v6615, %v6613
      %v6668 = vpack.c.bf16 %v6618, %v6616
      %v6669 = vpack.c.bf16 %v6619, %v6617
      %v6670 = vpack.c.bf16 %v6622, %v6620
      %v6671 = vpack.c.bf16 %v6623, %v6621
      %v6672 = vpack.c.bf16 %v6626, %v6624
      %v6673 = vpack.c.bf16 %v6627, %v6625
      %v6674 = vpack.c.bf16 %v6630, %v6628
      %v6675 = vpack.c.bf16 %v6631, %v6629
      %v6676 = vpack.c.bf16 %v6634, %v6632
      %v6677 = vpack.c.bf16 %v6635, %v6633
      %v6678 = vpack.c.bf16 %v6638, %v6636
      %v6679 = vpack.c.bf16 %v6639, %v6637
      %v6680 = vpack.c.bf16 %v6642, %v6640
      %v6681 = vpack.c.bf16 %v6643, %v6641
      %v6682 = vpack.c.bf16 %v6646, %v6644
      %v6683 = vpack.c.bf16 %v6647, %v6645
      %v6684 = vld [vmem:[%s3] sm:$0xf]
      %v6685 = vld [vmem:[%s3 + $0x4] sm:$0xf]
      %v6686 = vld [vmem:[%s3 + $0x8] sm:$0xf]
      %v6687 = vld [vmem:[%s3 + $0xc] sm:$0xf]
      %v6688 = vld [vmem:[%s3 + $0x10] sm:$0xf]
      %v6689 = vld [vmem:[%s3 + $0x14] sm:$0xf]
      %v6690 = vld [vmem:[%s3 + $0x18] sm:$0xf]
      %v6691 = vld [vmem:[%s3 + $0x1c] sm:$0xf]
      %v6692 = vld [vmem:[%s3 + $0x20] sm:$0xf]
      %v6693 = vld [vmem:[%s3 + $0x24] sm:$0xf]
      %v6694 = vld [vmem:[%s3 + $0x28] sm:$0xf]
      %v6695 = vld [vmem:[%s3 + $0x2c] sm:$0xf]
      %v6696 = vld [vmem:[%s3 + $0x30] sm:$0xf]
      %v6697 = vld [vmem:[%s3 + $0x34] sm:$0xf]
      %v6698 = vld [vmem:[%s3 + $0x38] sm:$0xf]
      %v6699 = vld [vmem:[%s3 + $0x3c] sm:$0xf]
      %v6700 = vld [vmem:[%s3 + $0x40] sm:$0xf]
      %v6701 = vld [vmem:[%s3 + $0x44] sm:$0xf]
      %v6702 = vld [vmem:[%s3 + $0x48] sm:$0xf]
      %v6703 = vld [vmem:[%s3 + $0x4c] sm:$0xf]
      %v6704 = vld [vmem:[%s3 + $0x50] sm:$0xf]
      %v6705 = vld [vmem:[%s3 + $0x54] sm:$0xf]
      %v6706 = vld [vmem:[%s3 + $0x58] sm:$0xf]
      %v6707 = vld [vmem:[%s3 + $0x5c] sm:$0xf]
      %v6708 = vld [vmem:[%s3 + $0x60] sm:$0xf]
      %v6709 = vld [vmem:[%s3 + $0x64] sm:$0xf]
      %v6710 = vld [vmem:[%s3 + $0x68] sm:$0xf]
      %v6711 = vld [vmem:[%s3 + $0x6c] sm:$0xf]
      %v6712 = vld [vmem:[%s3 + $0x70] sm:$0xf]
      %v6713 = vld [vmem:[%s3 + $0x74] sm:$0xf]
      %v6714 = vld [vmem:[%s3 + $0x78] sm:$0xf]
      %v6715 = vld [vmem:[%s3 + $0x7c] sm:$0xf]
      %v6748 = vunpack.c.l.b16 %v6684
      %v6749 = vunpack.c.l.b16 %v6685
      %v6750 = vunpack.c.l.b16 %v6686
      %v6751 = vunpack.c.l.b16 %v6687
      %v6752 = vunpack.c.l.b16 %v6688
      %v6753 = vunpack.c.l.b16 %v6689
      %v6754 = vunpack.c.l.b16 %v6690
      %v6755 = vunpack.c.l.b16 %v6691
      %v6756 = vunpack.c.l.b16 %v6692
      %v6757 = vunpack.c.l.b16 %v6693
      %v6758 = vunpack.c.l.b16 %v6694
      %v6759 = vunpack.c.l.b16 %v6695
      %v6760 = vunpack.c.l.b16 %v6696
      %v6761 = vunpack.c.l.b16 %v6697
      %v6762 = vunpack.c.l.b16 %v6698
      %v6763 = vunpack.c.l.b16 %v6699
      %v6764 = vunpack.c.l.b16 %v6700
      %v6765 = vunpack.c.l.b16 %v6701
      %v6766 = vunpack.c.l.b16 %v6702
      %v6767 = vunpack.c.l.b16 %v6703
      %v6768 = vunpack.c.l.b16 %v6704
      %v6769 = vunpack.c.l.b16 %v6705
      %v6770 = vunpack.c.l.b16 %v6706
      %v6771 = vunpack.c.l.b16 %v6707
      %v6772 = vunpack.c.l.b16 %v6708
      %v6773 = vunpack.c.l.b16 %v6709
      %v6774 = vunpack.c.l.b16 %v6710
      %v6775 = vunpack.c.l.b16 %v6711
      %v6776 = vunpack.c.l.b16 %v6712
      %v6777 = vunpack.c.l.b16 %v6713
      %v6778 = vunpack.c.l.b16 %v6714
      %v6779 = vunpack.c.l.b16 %v6715
      %v6780 = vpack.c.b16 %v6749, %v6748
      %v6781 = vpack.c.b16 %v6751, %v6750
      %v6782 = vpack.c.b16 %v6753, %v6752
      %v6783 = vpack.c.b16 %v6755, %v6754
      %v6784 = vpack.c.b16 %v6757, %v6756
      %v6785 = vpack.c.b16 %v6759, %v6758
      %v6786 = vpack.c.b16 %v6761, %v6760
      %v6787 = vpack.c.b16 %v6763, %v6762
      %v6788 = vpack.c.b16 %v6765, %v6764
      %v6789 = vpack.c.b16 %v6767, %v6766
      %v6790 = vpack.c.b16 %v6769, %v6768
      %v6791 = vpack.c.b16 %v6771, %v6770
      %v6792 = vpack.c.b16 %v6773, %v6772
      %v6793 = vpack.c.b16 %v6775, %v6774
      %v6794 = vpack.c.b16 %v6777, %v6776
      %v6795 = vpack.c.b16 %v6779, %v6778
      %6812 = vmatprep.subr.bf16.mxu0 0
      %6813 = vmatpush1.bf16.msra.mxu0 %v6787
      %6814 = vmatprep.subr.bf16.mxu0 0
      %6815 = vmatpush1.bf16.msra.mxu0 %v6786
      %6816 = vmatprep.subr.bf16.mxu0 0
      %6817 = vmatpush1.bf16.msra.mxu0 %v6785
      %6818 = vmatprep.subr.bf16.mxu0 0
      %6819 = vmatpush1.bf16.msra.mxu0 %v6784
      %6820 = vmatprep.subr.bf16.mxu0 0
      %6821 = vmatpush1.bf16.msra.mxu0 %v6783
      %6822 = vmatprep.subr.bf16.mxu0 0
      %6823 = vmatpush1.bf16.msra.mxu0 %v6782
      %6824 = vmatprep.subr.bf16.mxu0 0
      %6825 = vmatpush1.bf16.msra.mxu0 %v6781
      %6826 = vmatprep.subr.bf16.mxu0 0
      %6827 = vmatpush1.bf16.msra.mxu0 %v6780
      %6828 = vmatprep.subr.bf16.mxu0 0
      %6829 = vmatpush2.bf16.msra.mxu0 %v6795
      %6830 = vmatprep.subr.bf16.mxu0 0
      %6831 = vmatpush2.bf16.msra.mxu0 %v6794
      %6832 = vmatprep.subr.bf16.mxu0 0
      %6833 = vmatpush2.bf16.msra.mxu0 %v6793
      %6834 = vmatprep.subr.bf16.mxu0 0
      %6835 = vmatpush2.bf16.msra.mxu0 %v6792
      %6836 = vmatprep.subr.bf16.mxu0 0
      %6837 = vmatpush2.bf16.msra.mxu0 %v6791
      %6838 = vmatprep.subr.bf16.mxu0 0
      %6839 = vmatpush2.bf16.msra.mxu0 %v6790
      %6840 = vmatprep.subr.bf16.mxu0 0
      %6841 = vmatpush2.bf16.msra.mxu0 %v6789
      %6842 = vmatprep.subr.bf16.mxu0 0
      %6843 = vmatpush2.bf16.msra.mxu0 %v6788
      %6844 = vmatprep.mubr.bf16.mxu0 %v6649
      %6845 = vmatmul.mubr.bf16.gmra.mxu0 %v6648
      %v6846 = vpop.f32.mrf.mxu0
      %v6847 = vadd.f32 0.0, %v6846
      %v6848 = vpop.f32.mrf.mxu0
      %v6849 = vpop.f32.mrf.mxu0
      %v6850 = vadd.f32 0.0, %v6849
      %v6851 = vpop.f32.mrf.mxu0
      %6852 = vmatprep.mubr.bf16.mxu0 %v6651
      %6853 = vmatmul.mubr.bf16.gmra.mxu0 %v6650
      %v6854 = vpop.f32.mrf.mxu0
      %v6855 = vadd.f32 0.0, %v6854
      %v6856 = vpop.f32.mrf.mxu0
      %v6857 = vpop.f32.mrf.mxu0
      %v6858 = vadd.f32 0.0, %v6857
      %v6859 = vpop.f32.mrf.mxu0
      %6860 = vmatprep.mubr.bf16.mxu0 %v6653
      %6861 = vmatmul.mubr.bf16.gmra.mxu0 %v6652
      %v6862 = vpop.f32.mrf.mxu0
      %v6863 = vadd.f32 0.0, %v6862
      %v6864 = vpop.f32.mrf.mxu0
      %v6865 = vpop.f32.mrf.mxu0
      %v6866 = vadd.f32 0.0, %v6865
      %v6867 = vpop.f32.mrf.mxu0
      %6868 = vmatprep.mubr.bf16.mxu0 %v6655
      %6869 = vmatmul.mubr.bf16.gmra.mxu0 %v6654
      %v6870 = vpop.f32.mrf.mxu0
      %v6871 = vadd.f32 0.0, %v6870
      %v6872 = vpop.f32.mrf.mxu0
      %v6873 = vpop.f32.mrf.mxu0
      %v6874 = vadd.f32 0.0, %v6873
      %v6875 = vpop.f32.mrf.mxu0
      %6876 = vmatprep.mubr.bf16.mxu0 %v6657
      %6877 = vmatmul.mubr.bf16.gmra.mxu0 %v6656
      %v6878 = vpop.f32.mrf.mxu0
      %v6879 = vadd.f32 0.0, %v6878
      %v6880 = vpop.f32.mrf.mxu0
      %v6881 = vpop.f32.mrf.mxu0
      %v6882 = vadd.f32 0.0, %v6881
      %v6883 = vpop.f32.mrf.mxu0
      %6884 = vmatprep.mubr.bf16.mxu0 %v6659
      %6885 = vmatmul.mubr.bf16.gmra.mxu0 %v6658
      %v6886 = vpop.f32.mrf.mxu0
      %v6887 = vadd.f32 0.0, %v6886
      %v6888 = vpop.f32.mrf.mxu0
      %v6889 = vpop.f32.mrf.mxu0
      %v6890 = vadd.f32 0.0, %v6889
      %v6891 = vpop.f32.mrf.mxu0
      %6892 = vmatprep.mubr.bf16.mxu0 %v6661
      %6893 = vmatmul.mubr.bf16.gmra.mxu0 %v6660
      %v6894 = vpop.f32.mrf.mxu0
      %v6895 = vadd.f32 0.0, %v6894
      %v6896 = vpop.f32.mrf.mxu0
      %v6897 = vpop.f32.mrf.mxu0
      %v6898 = vadd.f32 0.0, %v6897
      %v6899 = vpop.f32.mrf.mxu0
      %6900 = vmatprep.mubr.bf16.mxu0 %v6663
      %6901 = vmatmul.mubr.bf16.gmra.mxu0 %v6662
      %v6902 = vpop.f32.mrf.mxu0
      %v6903 = vadd.f32 0.0, %v6902
      %v6904 = vpop.f32.mrf.mxu0
      %v6905 = vpop.f32.mrf.mxu0
      %v6906 = vadd.f32 0.0, %v6905
      %v6907 = vpop.f32.mrf.mxu0
      %6908 = vmatprep.mubr.bf16.mxu0 %v6665
      %6909 = vmatmul.mubr.bf16.gmra.mxu0 %v6664
      %v6910 = vpop.f32.mrf.mxu0
      %v6911 = vadd.f32 0.0, %v6910
      %v6912 = vpop.f32.mrf.mxu0
      %v6913 = vpop.f32.mrf.mxu0
      %v6914 = vadd.f32 0.0, %v6913
      %v6915 = vpop.f32.mrf.mxu0
      %6916 = vmatprep.mubr.bf16.mxu0 %v6667
      %6917 = vmatmul.mubr.bf16.gmra.mxu0 %v6666
      %v6918 = vpop.f32.mrf.mxu0
      %v6919 = vadd.f32 0.0, %v6918
      %v6920 = vpop.f32.mrf.mxu0
      %v6921 = vpop.f32.mrf.mxu0
      %v6922 = vadd.f32 0.0, %v6921
      %v6923 = vpop.f32.mrf.mxu0
      %6924 = vmatprep.mubr.bf16.mxu0 %v6669
      %6925 = vmatmul.mubr.bf16.gmra.mxu0 %v6668
      %v6926 = vpop.f32.mrf.mxu0
      %v6927 = vadd.f32 0.0, %v6926
      %v6928 = vpop.f32.mrf.mxu0
      %v6929 = vpop.f32.mrf.mxu0
      %v6930 = vadd.f32 0.0, %v6929
      %v6931 = vpop.f32.mrf.mxu0
      %6932 = vmatprep.mubr.bf16.mxu0 %v6671
      %6933 = vmatmul.mubr.bf16.gmra.mxu0 %v6670
      %v6934 = vpop.f32.mrf.mxu0
      %v6935 = vadd.f32 0.0, %v6934
      %v6936 = vpop.f32.mrf.mxu0
      %v6937 = vpop.f32.mrf.mxu0
      %v6938 = vadd.f32 0.0, %v6937
      %v6939 = vpop.f32.mrf.mxu0
      %6940 = vmatprep.mubr.bf16.mxu0 %v6673
      %6941 = vmatmul.mubr.bf16.gmra.mxu0 %v6672
      %v6942 = vpop.f32.mrf.mxu0
      %v6943 = vadd.f32 0.0, %v6942
      %v6944 = vpop.f32.mrf.mxu0
      %v6945 = vpop.f32.mrf.mxu0
      %v6946 = vadd.f32 0.0, %v6945
      %v6947 = vpop.f32.mrf.mxu0
      %6948 = vmatprep.mubr.bf16.mxu0 %v6675
      %6949 = vmatmul.mubr.bf16.gmra.mxu0 %v6674
      %v6950 = vpop.f32.mrf.mxu0
      %v6951 = vadd.f32 0.0, %v6950
      %v6952 = vpop.f32.mrf.mxu0
      %v6953 = vpop.f32.mrf.mxu0
      %v6954 = vadd.f32 0.0, %v6953
      %v6955 = vpop.f32.mrf.mxu0
      %6956 = vmatprep.mubr.bf16.mxu0 %v6677
      %6957 = vmatmul.mubr.bf16.gmra.mxu0 %v6676
      %v6958 = vpop.f32.mrf.mxu0
      %v6959 = vadd.f32 0.0, %v6958
      %v6960 = vpop.f32.mrf.mxu0
      %v6961 = vpop.f32.mrf.mxu0
      %v6962 = vadd.f32 0.0, %v6961
      %v6963 = vpop.f32.mrf.mxu0
      %6964 = vmatprep.mubr.bf16.mxu0 %v6679
      %6965 = vmatmul.mubr.bf16.gmra.mxu0 %v6678
      %v6966 = vpop.f32.mrf.mxu0
      %v6967 = vadd.f32 0.0, %v6966
      %v6968 = vpop.f32.mrf.mxu0
      %v6969 = vpop.f32.mrf.mxu0
      %v6970 = vadd.f32 0.0, %v6969
      %v6971 = vpop.f32.mrf.mxu0
      %6972 = vmatprep.mubr.bf16.mxu0 %v6681
      %6973 = vmatmul.mubr.bf16.gmra.mxu0 %v6680
      %v6974 = vpop.f32.mrf.mxu0
      %v6975 = vadd.f32 0.0, %v6974
      %v6976 = vpop.f32.mrf.mxu0
      %v6977 = vpop.f32.mrf.mxu0
      %v6978 = vadd.f32 0.0, %v6977
      %v6979 = vpop.f32.mrf.mxu0
      %6980 = vmatprep.mubr.bf16.mxu0 %v6683
      %6981 = vmatmul.mubr.bf16.gmra.mxu0 %v6682
      %v6982 = vpop.f32.mrf.mxu0
      %v6983 = vadd.f32 0.0, %v6982
      %v6984 = vpop.f32.mrf.mxu0
      %v6985 = vpop.f32.mrf.mxu0
      %v6986 = vadd.f32 0.0, %v6985
      %v6987 = vpop.f32.mrf.mxu0
      %6988 = vdwg.mxu0
      %v6989 = vld [vmem:[%s4] sm:$0xf]
      %v6990 = vld [vmem:[%s4 + $0x4] sm:$0xf]
      %v6991 = vld [vmem:[%s4 + $0x8] sm:$0xf]
      %v6992 = vld [vmem:[%s4 + $0xc] sm:$0xf]
      %v6993 = vld [vmem:[%s4 + $0x10] sm:$0xf]
      %v6994 = vld [vmem:[%s4 + $0x14] sm:$0xf]
      %v6995 = vld [vmem:[%s4 + $0x18] sm:$0xf]
      %v6996 = vld [vmem:[%s4 + $0x1c] sm:$0xf]
      %v6997 = vld [vmem:[%s4 + $0x20] sm:$0xf]
      %v6998 = vld [vmem:[%s4 + $0x24] sm:$0xf]
      %v6999 = vld [vmem:[%s4 + $0x28] sm:$0xf]
      %v7000 = vld [vmem:[%s4 + $0x2c] sm:$0xf]
      %v7001 = vld [vmem:[%s4 + $0x30] sm:$0xf]
      %v7002 = vld [vmem:[%s4 + $0x34] sm:$0xf]
      %v7003 = vld [vmem:[%s4 + $0x38] sm:$0xf]
      %v7004 = vld [vmem:[%s4 + $0x3c] sm:$0xf]
      %v7005 = vld [vmem:[%s4 + $0x40] sm:$0xf]
      %v7006 = vld [vmem:[%s4 + $0x44] sm:$0xf]
      %v7007 = vld [vmem:[%s4 + $0x48] sm:$0xf]
      %v7008 = vld [vmem:[%s4 + $0x4c] sm:$0xf]
      %v7009 = vld [vmem:[%s4 + $0x50] sm:$0xf]
      %v7010 = vld [vmem:[%s4 + $0x54] sm:$0xf]
      %v7011 = vld [vmem:[%s4 + $0x58] sm:$0xf]
      %v7012 = vld [vmem:[%s4 + $0x5c] sm:$0xf]
      %v7013 = vld [vmem:[%s4 + $0x60] sm:$0xf]
      %v7014 = vld [vmem:[%s4 + $0x64] sm:$0xf]
      %v7015 = vld [vmem:[%s4 + $0x68] sm:$0xf]
      %v7016 = vld [vmem:[%s4 + $0x6c] sm:$0xf]
      %v7017 = vld [vmem:[%s4 + $0x70] sm:$0xf]
      %v7018 = vld [vmem:[%s4 + $0x74] sm:$0xf]
      %v7019 = vld [vmem:[%s4 + $0x78] sm:$0xf]
      %v7020 = vld [vmem:[%s4 + $0x7c] sm:$0xf]
      %v7053 = vunpack.c.l.b16 %v6989
      %v7054 = vunpack.c.l.b16 %v6990
      %v7055 = vunpack.c.l.b16 %v6991
      %v7056 = vunpack.c.l.b16 %v6992
      %v7057 = vunpack.c.l.b16 %v6993
      %v7058 = vunpack.c.l.b16 %v6994
      %v7059 = vunpack.c.l.b16 %v6995
      %v7060 = vunpack.c.l.b16 %v6996
      %v7061 = vunpack.c.l.b16 %v6997
      %v7062 = vunpack.c.l.b16 %v6998
      %v7063 = vunpack.c.l.b16 %v6999
      %v7064 = vunpack.c.l.b16 %v7000
      %v7065 = vunpack.c.l.b16 %v7001
      %v7066 = vunpack.c.l.b16 %v7002
      %v7067 = vunpack.c.l.b16 %v7003
      %v7068 = vunpack.c.l.b16 %v7004
      %v7069 = vunpack.c.l.b16 %v7005
      %v7070 = vunpack.c.l.b16 %v7006
      %v7071 = vunpack.c.l.b16 %v7007
      %v7072 = vunpack.c.l.b16 %v7008
      %v7073 = vunpack.c.l.b16 %v7009
      %v7074 = vunpack.c.l.b16 %v7010
      %v7075 = vunpack.c.l.b16 %v7011
      %v7076 = vunpack.c.l.b16 %v7012
      %v7077 = vunpack.c.l.b16 %v7013
      %v7078 = vunpack.c.l.b16 %v7014
      %v7079 = vunpack.c.l.b16 %v7015
      %v7080 = vunpack.c.l.b16 %v7016
      %v7081 = vunpack.c.l.b16 %v7017
      %v7082 = vunpack.c.l.b16 %v7018
      %v7083 = vunpack.c.l.b16 %v7019
      %v7084 = vunpack.c.l.b16 %v7020
      %v7085 = vpack.c.b16 %v7054, %v7053
      %v7086 = vpack.c.b16 %v7056, %v7055
      %v7087 = vpack.c.b16 %v7058, %v7057
      %v7088 = vpack.c.b16 %v7060, %v7059
      %v7089 = vpack.c.b16 %v7062, %v7061
      %v7090 = vpack.c.b16 %v7064, %v7063
      %v7091 = vpack.c.b16 %v7066, %v7065
      %v7092 = vpack.c.b16 %v7068, %v7067
      %v7093 = vpack.c.b16 %v7070, %v7069
      %v7094 = vpack.c.b16 %v7072, %v7071
      %v7095 = vpack.c.b16 %v7074, %v7073
      %v7096 = vpack.c.b16 %v7076, %v7075
      %v7097 = vpack.c.b16 %v7078, %v7077
      %v7098 = vpack.c.b16 %v7080, %v7079
      %v7099 = vpack.c.b16 %v7082, %v7081
      %v7100 = vpack.c.b16 %v7084, %v7083
      %7117 = vmatprep.subr.bf16.mxu0 0
      %7118 = vmatpush1.bf16.msra.mxu0 %v7092
      %7119 = vmatprep.subr.bf16.mxu0 0
      %7120 = vmatpush1.bf16.msra.mxu0 %v7091
      %7121 = vmatprep.subr.bf16.mxu0 0
      %7122 = vmatpush1.bf16.msra.mxu0 %v7090
      %7123 = vmatprep.subr.bf16.mxu0 0
      %7124 = vmatpush1.bf16.msra.mxu0 %v7089
      %7125 = vmatprep.subr.bf16.mxu0 0
      %7126 = vmatpush1.bf16.msra.mxu0 %v7088
      %7127 = vmatprep.subr.bf16.mxu0 0
      %7128 = vmatpush1.bf16.msra.mxu0 %v7087
      %7129 = vmatprep.subr.bf16.mxu0 0
      %7130 = vmatpush1.bf16.msra.mxu0 %v7086
      %7131 = vmatprep.subr.bf16.mxu0 0
      %7132 = vmatpush1.bf16.msra.mxu0 %v7085
      %7133 = vmatprep.subr.bf16.mxu0 0
      %7134 = vmatpush2.bf16.msra.mxu0 %v7100
      %7135 = vmatprep.subr.bf16.mxu0 0
      %7136 = vmatpush2.bf16.msra.mxu0 %v7099
      %7137 = vmatprep.subr.bf16.mxu0 0
      %7138 = vmatpush2.bf16.msra.mxu0 %v7098
      %7139 = vmatprep.subr.bf16.mxu0 0
      %7140 = vmatpush2.bf16.msra.mxu0 %v7097
      %7141 = vmatprep.subr.bf16.mxu0 0
      %7142 = vmatpush2.bf16.msra.mxu0 %v7096
      %7143 = vmatprep.subr.bf16.mxu0 0
      %7144 = vmatpush2.bf16.msra.mxu0 %v7095
      %7145 = vmatprep.subr.bf16.mxu0 0
      %7146 = vmatpush2.bf16.msra.mxu0 %v7094
      %7147 = vmatprep.subr.bf16.mxu0 0
      %7148 = vmatpush2.bf16.msra.mxu0 %v7093
      %7149 = vmatprep.mubr.bf16.mxu0 %v6649
      %7150 = vmatmul.mubr.bf16.gmra.mxu0 %v6648
      %v7151 = vpop.f32.mrf.mxu0
      %v7152 = vadd.f32 0.0, %v7151
      %v7153 = vpop.f32.mrf.mxu0
      %v7154 = vpop.f32.mrf.mxu0
      %v7155 = vadd.f32 0.0, %v7154
      %v7156 = vpop.f32.mrf.mxu0
      %7157 = vmatprep.mubr.bf16.mxu0 %v6651
      %7158 = vmatmul.mubr.bf16.gmra.mxu0 %v6650
      %v7159 = vpop.f32.mrf.mxu0
      %v7160 = vadd.f32 0.0, %v7159
      %v7161 = vpop.f32.mrf.mxu0
      %v7162 = vpop.f32.mrf.mxu0
      %v7163 = vadd.f32 0.0, %v7162
      %v7164 = vpop.f32.mrf.mxu0
      %7165 = vmatprep.mubr.bf16.mxu0 %v6653
      %7166 = vmatmul.mubr.bf16.gmra.mxu0 %v6652
      %v7167 = vpop.f32.mrf.mxu0
      %v7168 = vadd.f32 0.0, %v7167
      %v7169 = vpop.f32.mrf.mxu0
      %v7170 = vpop.f32.mrf.mxu0
      %v7171 = vadd.f32 0.0, %v7170
      %v7172 = vpop.f32.mrf.mxu0
      %7173 = vmatprep.mubr.bf16.mxu0 %v6655
      %7174 = vmatmul.mubr.bf16.gmra.mxu0 %v6654
      %v7175 = vpop.f32.mrf.mxu0
      %v7176 = vadd.f32 0.0, %v7175
      %v7177 = vpop.f32.mrf.mxu0
      %v7178 = vpop.f32.mrf.mxu0
      %v7179 = vadd.f32 0.0, %v7178
      %v7180 = vpop.f32.mrf.mxu0
      %7181 = vmatprep.mubr.bf16.mxu0 %v6657
      %7182 = vmatmul.mubr.bf16.gmra.mxu0 %v6656
      %v7183 = vpop.f32.mrf.mxu0
      %v7184 = vadd.f32 0.0, %v7183
      %v7185 = vpop.f32.mrf.mxu0
      %v7186 = vpop.f32.mrf.mxu0
      %v7187 = vadd.f32 0.0, %v7186
      %v7188 = vpop.f32.mrf.mxu0
      %7189 = vmatprep.mubr.bf16.mxu0 %v6659
      %7190 = vmatmul.mubr.bf16.gmra.mxu0 %v6658
      %v7191 = vpop.f32.mrf.mxu0
      %v7192 = vadd.f32 0.0, %v7191
      %v7193 = vpop.f32.mrf.mxu0
      %v7194 = vpop.f32.mrf.mxu0
      %v7195 = vadd.f32 0.0, %v7194
      %v7196 = vpop.f32.mrf.mxu0
      %7197 = vmatprep.mubr.bf16.mxu0 %v6661
      %7198 = vmatmul.mubr.bf16.gmra.mxu0 %v6660
      %v7199 = vpop.f32.mrf.mxu0
      %v7200 = vadd.f32 0.0, %v7199
      %v7201 = vpop.f32.mrf.mxu0
      %v7202 = vpop.f32.mrf.mxu0
      %v7203 = vadd.f32 0.0, %v7202
      %v7204 = vpop.f32.mrf.mxu0
      %7205 = vmatprep.mubr.bf16.mxu0 %v6663
      %7206 = vmatmul.mubr.bf16.gmra.mxu0 %v6662
      %v7207 = vpop.f32.mrf.mxu0
      %v7208 = vadd.f32 0.0, %v7207
      %v7209 = vpop.f32.mrf.mxu0
      %v7210 = vpop.f32.mrf.mxu0
      %v7211 = vadd.f32 0.0, %v7210
      %v7212 = vpop.f32.mrf.mxu0
      %7213 = vmatprep.mubr.bf16.mxu0 %v6665
      %7214 = vmatmul.mubr.bf16.gmra.mxu0 %v6664
      %v7215 = vpop.f32.mrf.mxu0
      %v7216 = vadd.f32 0.0, %v7215
      %v7217 = vpop.f32.mrf.mxu0
      %v7218 = vpop.f32.mrf.mxu0
      %v7219 = vadd.f32 0.0, %v7218
      %v7220 = vpop.f32.mrf.mxu0
      %7221 = vmatprep.mubr.bf16.mxu0 %v6667
      %7222 = vmatmul.mubr.bf16.gmra.mxu0 %v6666
      %v7223 = vpop.f32.mrf.mxu0
      %v7224 = vadd.f32 0.0, %v7223
      %v7225 = vpop.f32.mrf.mxu0
      %v7226 = vpop.f32.mrf.mxu0
      %v7227 = vadd.f32 0.0, %v7226
      %v7228 = vpop.f32.mrf.mxu0
      %7229 = vmatprep.mubr.bf16.mxu0 %v6669
      %7230 = vmatmul.mubr.bf16.gmra.mxu0 %v6668
      %v7231 = vpop.f32.mrf.mxu0
      %v7232 = vadd.f32 0.0, %v7231
      %v7233 = vpop.f32.mrf.mxu0
      %v7234 = vpop.f32.mrf.mxu0
      %v7235 = vadd.f32 0.0, %v7234
      %v7236 = vpop.f32.mrf.mxu0
      %7237 = vmatprep.mubr.bf16.mxu0 %v6671
      %7238 = vmatmul.mubr.bf16.gmra.mxu0 %v6670
      %v7239 = vpop.f32.mrf.mxu0
      %v7240 = vadd.f32 0.0, %v7239
      %v7241 = vpop.f32.mrf.mxu0
      %v7242 = vpop.f32.mrf.mxu0
      %v7243 = vadd.f32 0.0, %v7242
      %v7244 = vpop.f32.mrf.mxu0
      %7245 = vmatprep.mubr.bf16.mxu0 %v6673
      %7246 = vmatmul.mubr.bf16.gmra.mxu0 %v6672
      %v7247 = vpop.f32.mrf.mxu0
      %v7248 = vadd.f32 0.0, %v7247
      %v7249 = vpop.f32.mrf.mxu0
      %v7250 = vpop.f32.mrf.mxu0
      %v7251 = vadd.f32 0.0, %v7250
      %v7252 = vpop.f32.mrf.mxu0
      %7253 = vmatprep.mubr.bf16.mxu0 %v6675
      %7254 = vmatmul.mubr.bf16.gmra.mxu0 %v6674
      %v7255 = vpop.f32.mrf.mxu0
      %v7256 = vadd.f32 0.0, %v7255
      %v7257 = vpop.f32.mrf.mxu0
      %v7258 = vpop.f32.mrf.mxu0
      %v7259 = vadd.f32 0.0, %v7258
      %v7260 = vpop.f32.mrf.mxu0
      %7261 = vmatprep.mubr.bf16.mxu0 %v6677
      %7262 = vmatmul.mubr.bf16.gmra.mxu0 %v6676
      %v7263 = vpop.f32.mrf.mxu0
      %v7264 = vadd.f32 0.0, %v7263
      %v7265 = vpop.f32.mrf.mxu0
      %v7266 = vpop.f32.mrf.mxu0
      %v7267 = vadd.f32 0.0, %v7266
      %v7268 = vpop.f32.mrf.mxu0
      %7269 = vmatprep.mubr.bf16.mxu0 %v6679
      %7270 = vmatmul.mubr.bf16.gmra.mxu0 %v6678
      %v7271 = vpop.f32.mrf.mxu0
      %v7272 = vadd.f32 0.0, %v7271
      %v7273 = vpop.f32.mrf.mxu0
      %v7274 = vpop.f32.mrf.mxu0
      %v7275 = vadd.f32 0.0, %v7274
      %v7276 = vpop.f32.mrf.mxu0
      %7277 = vmatprep.mubr.bf16.mxu0 %v6681
      %7278 = vmatmul.mubr.bf16.gmra.mxu0 %v6680
      %v7279 = vpop.f32.mrf.mxu0
      %v7280 = vadd.f32 0.0, %v7279
      %v7281 = vpop.f32.mrf.mxu0
      %v7282 = vpop.f32.mrf.mxu0
      %v7283 = vadd.f32 0.0, %v7282
      %v7284 = vpop.f32.mrf.mxu0
      %7285 = vmatprep.mubr.bf16.mxu0 %v6683
      %7286 = vmatmul.mubr.bf16.gmra.mxu0 %v6682
      %v7287 = vpop.f32.mrf.mxu0
      %v7288 = vadd.f32 0.0, %v7287
      %v7289 = vpop.f32.mrf.mxu0
      %v7290 = vpop.f32.mrf.mxu0
      %v7291 = vadd.f32 0.0, %v7290
      %v7292 = vpop.f32.mrf.mxu0
      %7293 = vdwg.mxu0
      %v7294 = vmax.f32 %v6847, %v7152
      %v7295 = vmax.f32 %v6850, %v7155
      %v7296 = vmax.f32 %v6855, %v7160
      %v7297 = vmax.f32 %v6858, %v7163
      %v7298 = vmax.f32 %v6863, %v7168
      %v7299 = vmax.f32 %v6866, %v7171
      %v7300 = vmax.f32 %v6871, %v7176
      %v7301 = vmax.f32 %v6874, %v7179
      %v7302 = vmax.f32 %v6879, %v7184
      %v7303 = vmax.f32 %v6882, %v7187
      %v7304 = vmax.f32 %v6887, %v7192
      %v7305 = vmax.f32 %v6890, %v7195
      %v7306 = vmax.f32 %v6895, %v7200
      %v7307 = vmax.f32 %v6898, %v7203
      %v7308 = vmax.f32 %v6903, %v7208
      %v7309 = vmax.f32 %v6906, %v7211
      %v7310 = vmax.f32 %v6911, %v7216
      %v7311 = vmax.f32 %v6914, %v7219
      %v7312 = vmax.f32 %v6919, %v7224
      %v7313 = vmax.f32 %v6922, %v7227
      %v7314 = vmax.f32 %v6927, %v7232
      %v7315 = vmax.f32 %v6930, %v7235
      %v7316 = vmax.f32 %v6935, %v7240
      %v7317 = vmax.f32 %v6938, %v7243
      %v7318 = vmax.f32 %v6943, %v7248
      %v7319 = vmax.f32 %v6946, %v7251
      %v7320 = vmax.f32 %v6951, %v7256
      %v7321 = vmax.f32 %v6954, %v7259
      %v7322 = vmax.f32 %v6959, %v7264
      %v7323 = vmax.f32 %v6962, %v7267
      %v7324 = vmax.f32 %v6967, %v7272
      %v7325 = vmax.f32 %v6970, %v7275
      %v7326 = vmax.f32 %v6975, %v7280
      %v7327 = vmax.f32 %v6978, %v7283
      %v7328 = vmax.f32 %v6983, %v7288
      %v7329 = vmax.f32 %v6986, %v7291
      %v7330 = vpack.c.bf16 %v7295, %v7294
      %v7331 = vpack.c.bf16 %v7297, %v7296
      %v7332 = vpack.c.bf16 %v7299, %v7298
      %v7333 = vpack.c.bf16 %v7301, %v7300
      %v7334 = vpack.c.bf16 %v7303, %v7302
      %v7335 = vpack.c.bf16 %v7305, %v7304
      %v7336 = vpack.c.bf16 %v7307, %v7306
      %v7337 = vpack.c.bf16 %v7309, %v7308
      %v7338 = vpack.c.bf16 %v7311, %v7310
      %v7339 = vpack.c.bf16 %v7313, %v7312
      %v7340 = vpack.c.bf16 %v7315, %v7314
      %v7341 = vpack.c.bf16 %v7317, %v7316
      %v7342 = vpack.c.bf16 %v7319, %v7318
      %v7343 = vpack.c.bf16 %v7321, %v7320
      %v7344 = vpack.c.bf16 %v7323, %v7322
      %v7345 = vpack.c.bf16 %v7325, %v7324
      %v7346 = vpack.c.bf16 %v7327, %v7326
      %v7347 = vpack.c.bf16 %v7329, %v7328
      %7366 = vrot.lane.b32.xlu0 %v7330, 124
      %v7367 = vpop.permute.xlu0 %7366
      %7368 = vrot.lane.b32.xlu0 %v7331, 124
      %v7369 = vpop.permute.xlu0 %7368
      %7370 = vrot.lane.b32.xlu0 %v7332, 124
      %v7371 = vpop.permute.xlu0 %7370
      %7372 = vrot.lane.b32.xlu0 %v7333, 124
      %v7373 = vpop.permute.xlu0 %7372
      %7374 = vrot.lane.b32.xlu0 %v7334, 124
      %v7375 = vpop.permute.xlu0 %7374
      %7376 = vrot.lane.b32.xlu0 %v7335, 124
      %v7377 = vpop.permute.xlu0 %7376
      %7378 = vrot.lane.b32.xlu0 %v7336, 124
      %v7379 = vpop.permute.xlu0 %7378
      %7380 = vrot.lane.b32.xlu0 %v7337, 124
      %v7381 = vpop.permute.xlu0 %7380
      %7382 = vrot.lane.b32.xlu0 %v7338, 124
      %v7383 = vpop.permute.xlu0 %7382
      %7384 = vrot.lane.b32.xlu0 %v7339, 124
      %v7385 = vpop.permute.xlu0 %7384
      %7386 = vrot.lane.b32.xlu0 %v7340, 124
      %v7387 = vpop.permute.xlu0 %7386
      %7388 = vrot.lane.b32.xlu0 %v7341, 124
      %v7389 = vpop.permute.xlu0 %7388
      %7390 = vrot.lane.b32.xlu0 %v7342, 124
      %v7391 = vpop.permute.xlu0 %7390
      %7392 = vrot.lane.b32.xlu0 %v7343, 124
      %v7393 = vpop.permute.xlu0 %7392
      %7394 = vrot.lane.b32.xlu0 %v7344, 124
      %v7395 = vpop.permute.xlu0 %7394
      %7396 = vrot.lane.b32.xlu0 %v7345, 124
      %v7397 = vpop.permute.xlu0 %7396
      %7398 = vrot.lane.b32.xlu0 %v7346, 124
      %v7399 = vpop.permute.xlu0 %7398
      %7400 = vrot.lane.b32.xlu0 %v7347, 124
      %v7401 = vpop.permute.xlu0 %7400
      %7402 = vrot.lane.b32.xlu0 %v7330, 120
      %v7403 = vpop.permute.xlu0 %7402
      %7404 = vrot.lane.b32.xlu0 %v7331, 120
      %v7405 = vpop.permute.xlu0 %7404
      %7406 = vrot.lane.b32.xlu0 %v7332, 120
      %v7407 = vpop.permute.xlu0 %7406
      %7408 = vrot.lane.b32.xlu0 %v7333, 120
      %v7409 = vpop.permute.xlu0 %7408
      %7410 = vrot.lane.b32.xlu0 %v7334, 120
      %v7411 = vpop.permute.xlu0 %7410
      %7412 = vrot.lane.b32.xlu0 %v7335, 120
      %v7413 = vpop.permute.xlu0 %7412
      %7414 = vrot.lane.b32.xlu0 %v7336, 120
      %v7415 = vpop.permute.xlu0 %7414
      %7416 = vrot.lane.b32.xlu0 %v7337, 120
      %v7417 = vpop.permute.xlu0 %7416
      %7418 = vrot.lane.b32.xlu0 %v7338, 120
      %v7419 = vpop.permute.xlu0 %7418
      %7420 = vrot.lane.b32.xlu0 %v7339, 120
      %v7421 = vpop.permute.xlu0 %7420
      %7422 = vrot.lane.b32.xlu0 %v7340, 120
      %v7423 = vpop.permute.xlu0 %7422
      %7424 = vrot.lane.b32.xlu0 %v7341, 120
      %v7425 = vpop.permute.xlu0 %7424
      %7426 = vrot.lane.b32.xlu0 %v7342, 120
      %v7427 = vpop.permute.xlu0 %7426
      %7428 = vrot.lane.b32.xlu0 %v7343, 120
      %v7429 = vpop.permute.xlu0 %7428
      %7430 = vrot.lane.b32.xlu0 %v7344, 120
      %v7431 = vpop.permute.xlu0 %7430
      %7432 = vrot.lane.b32.xlu0 %v7345, 120
      %v7433 = vpop.permute.xlu0 %7432
      %7434 = vrot.lane.b32.xlu0 %v7346, 120
      %v7435 = vpop.permute.xlu0 %7434
      %7436 = vrot.lane.b32.xlu0 %v7347, 120
      %v7437 = vpop.permute.xlu0 %7436
      %7438 = vrot.lane.b32.xlu0 %v7330, 116
      %v7439 = vpop.permute.xlu0 %7438
      %7440 = vrot.lane.b32.xlu0 %v7331, 116
      %v7441 = vpop.permute.xlu0 %7440
      %7442 = vrot.lane.b32.xlu0 %v7332, 116
      %v7443 = vpop.permute.xlu0 %7442
      %7444 = vrot.lane.b32.xlu0 %v7333, 116
      %v7445 = vpop.permute.xlu0 %7444
      %7446 = vrot.lane.b32.xlu0 %v7334, 116
      %v7447 = vpop.permute.xlu0 %7446
      %7448 = vrot.lane.b32.xlu0 %v7335, 116
      %v7449 = vpop.permute.xlu0 %7448
      %7450 = vrot.lane.b32.xlu0 %v7336, 116
      %v7451 = vpop.permute.xlu0 %7450
      %7452 = vrot.lane.b32.xlu0 %v7337, 116
      %v7453 = vpop.permute.xlu0 %7452
      %7454 = vrot.lane.b32.xlu0 %v7338, 116
      %v7455 = vpop.permute.xlu0 %7454
      %7456 = vrot.lane.b32.xlu0 %v7339, 116
      %v7457 = vpop.permute.xlu0 %7456
      %7458 = vrot.lane.b32.xlu0 %v7340, 116
      %v7459 = vpop.permute.xlu0 %7458
      %7460 = vrot.lane.b32.xlu0 %v7341, 116
      %v7461 = vpop.permute.xlu0 %7460
      %7462 = vrot.lane.b32.xlu0 %v7342, 116
      %v7463 = vpop.permute.xlu0 %7462
      %7464 = vrot.lane.b32.xlu0 %v7343, 116
      %v7465 = vpop.permute.xlu0 %7464
      %7466 = vrot.lane.b32.xlu0 %v7344, 116
      %v7467 = vpop.permute.xlu0 %7466
      %7468 = vrot.lane.b32.xlu0 %v7345, 116
      %v7469 = vpop.permute.xlu0 %7468
      %7470 = vrot.lane.b32.xlu0 %v7346, 116
      %v7471 = vpop.permute.xlu0 %7470
      %7472 = vrot.lane.b32.xlu0 %v7347, 116
      %v7473 = vpop.permute.xlu0 %7472
      %vm7474 = vcmask 228352
      %v7477 = vsel %vm7474, %v7330, %v7367
      %v7480 = vsel %vm7474, %v7331, %v7369
      %v7483 = vsel %vm7474, %v7332, %v7371
      %v7486 = vsel %vm7474, %v7333, %v7373
      %v7489 = vsel %vm7474, %v7334, %v7375
      %v7492 = vsel %vm7474, %v7335, %v7377
      %v7495 = vsel %vm7474, %v7336, %v7379
      %v7498 = vsel %vm7474, %v7337, %v7381
      %v7501 = vsel %vm7474, %v7338, %v7383
      %v7504 = vsel %vm7474, %v7339, %v7385
      %v7507 = vsel %vm7474, %v7340, %v7387
      %v7510 = vsel %vm7474, %v7341, %v7389
      %v7513 = vsel %vm7474, %v7342, %v7391
      %v7516 = vsel %vm7474, %v7343, %v7393
      %v7519 = vsel %vm7474, %v7344, %v7395
      %v7522 = vsel %vm7474, %v7345, %v7397
      %v7525 = vsel %vm7474, %v7346, %v7399
      %v7528 = vsel %vm7474, %v7347, %v7401
      %vm7529 = vcmask 457728
      %v7531 = vsel %vm7529, %v7477, %v7403
      %v7533 = vsel %vm7529, %v7480, %v7405
      %v7535 = vsel %vm7529, %v7483, %v7407
      %v7537 = vsel %vm7529, %v7486, %v7409
      %v7539 = vsel %vm7529, %v7489, %v7411
      %v7541 = vsel %vm7529, %v7492, %v7413
      %v7543 = vsel %vm7529, %v7495, %v7415
      %v7545 = vsel %vm7529, %v7498, %v7417
      %v7547 = vsel %vm7529, %v7501, %v7419
      %v7549 = vsel %vm7529, %v7504, %v7421
      %v7551 = vsel %vm7529, %v7507, %v7423
      %v7553 = vsel %vm7529, %v7510, %v7425
      %v7555 = vsel %vm7529, %v7513, %v7427
      %v7557 = vsel %vm7529, %v7516, %v7429
      %v7559 = vsel %vm7529, %v7519, %v7431
      %v7561 = vsel %vm7529, %v7522, %v7433
      %v7563 = vsel %vm7529, %v7525, %v7435
      %v7565 = vsel %vm7529, %v7528, %v7437
      %vm7566 = vcmask 687104
      %v7568 = vsel %vm7566, %v7531, %v7439
      %v7571 = vsel %vm7566, %v7533, %v7441
      %v7574 = vsel %vm7566, %v7535, %v7443
      %v7577 = vsel %vm7566, %v7537, %v7445
      %v7580 = vsel %vm7566, %v7539, %v7447
      %v7583 = vsel %vm7566, %v7541, %v7449
      %v7586 = vsel %vm7566, %v7543, %v7451
      %v7589 = vsel %vm7566, %v7545, %v7453
      %v7592 = vsel %vm7566, %v7547, %v7455
      %v7595 = vsel %vm7566, %v7549, %v7457
      %v7598 = vsel %vm7566, %v7551, %v7459
      %v7601 = vsel %vm7566, %v7553, %v7461
      %v7604 = vsel %vm7566, %v7555, %v7463
      %v7607 = vsel %vm7566, %v7557, %v7465
      %v7610 = vsel %vm7566, %v7559, %v7467
      %v7613 = vsel %vm7566, %v7561, %v7469
      %v7616 = vsel %vm7566, %v7563, %v7471
      %v7619 = vsel %vm7566, %v7565, %v7473
      %7621 = vrot.lane.b32.xlu0 %v7330, 127
      %v7622 = vpop.permute.xlu0 %7621
      %7623 = vrot.lane.b32.xlu0 %v7331, 127
      %v7624 = vpop.permute.xlu0 %7623
      %7625 = vrot.lane.b32.xlu0 %v7332, 127
      %v7626 = vpop.permute.xlu0 %7625
      %7627 = vrot.lane.b32.xlu0 %v7333, 127
      %v7628 = vpop.permute.xlu0 %7627
      %7629 = vrot.lane.b32.xlu0 %v7334, 127
      %v7630 = vpop.permute.xlu0 %7629
      %7631 = vrot.lane.b32.xlu0 %v7335, 127
      %v7632 = vpop.permute.xlu0 %7631
      %7633 = vrot.lane.b32.xlu0 %v7336, 127
      %v7634 = vpop.permute.xlu0 %7633
      %7635 = vrot.lane.b32.xlu0 %v7337, 127
      %v7636 = vpop.permute.xlu0 %7635
      %7637 = vrot.lane.b32.xlu0 %v7338, 127
      %v7638 = vpop.permute.xlu0 %7637
      %7639 = vrot.lane.b32.xlu0 %v7339, 127
      %v7640 = vpop.permute.xlu0 %7639
      %7641 = vrot.lane.b32.xlu0 %v7340, 127
      %v7642 = vpop.permute.xlu0 %7641
      %7643 = vrot.lane.b32.xlu0 %v7341, 127
      %v7644 = vpop.permute.xlu0 %7643
      %7645 = vrot.lane.b32.xlu0 %v7342, 127
      %v7646 = vpop.permute.xlu0 %7645
      %7647 = vrot.lane.b32.xlu0 %v7343, 127
      %v7648 = vpop.permute.xlu0 %7647
      %7649 = vrot.lane.b32.xlu0 %v7344, 127
      %v7650 = vpop.permute.xlu0 %7649
      %7651 = vrot.lane.b32.xlu0 %v7345, 127
      %v7652 = vpop.permute.xlu0 %7651
      %7653 = vrot.lane.b32.xlu0 %v7346, 127
      %v7654 = vpop.permute.xlu0 %7653
      %7655 = vrot.lane.b32.xlu0 %v7347, 127
      %v7656 = vpop.permute.xlu0 %7655
      %7657 = vrot.lane.b32.xlu0 %v7330, 123
      %v7658 = vpop.permute.xlu0 %7657
      %7659 = vrot.lane.b32.xlu0 %v7331, 123
      %v7660 = vpop.permute.xlu0 %7659
      %7661 = vrot.lane.b32.xlu0 %v7332, 123
      %v7662 = vpop.permute.xlu0 %7661
      %7663 = vrot.lane.b32.xlu0 %v7333, 123
      %v7664 = vpop.permute.xlu0 %7663
      %7665 = vrot.lane.b32.xlu0 %v7334, 123
      %v7666 = vpop.permute.xlu0 %7665
      %7667 = vrot.lane.b32.xlu0 %v7335, 123
      %v7668 = vpop.permute.xlu0 %7667
      %7669 = vrot.lane.b32.xlu0 %v7336, 123
      %v7670 = vpop.permute.xlu0 %7669
      %7671 = vrot.lane.b32.xlu0 %v7337, 123
      %v7672 = vpop.permute.xlu0 %7671
      %7673 = vrot.lane.b32.xlu0 %v7338, 123
      %v7674 = vpop.permute.xlu0 %7673
      %7675 = vrot.lane.b32.xlu0 %v7339, 123
      %v7676 = vpop.permute.xlu0 %7675
      %7677 = vrot.lane.b32.xlu0 %v7340, 123
      %v7678 = vpop.permute.xlu0 %7677
      %7679 = vrot.lane.b32.xlu0 %v7341, 123
      %v7680 = vpop.permute.xlu0 %7679
      %7681 = vrot.lane.b32.xlu0 %v7342, 123
      %v7682 = vpop.permute.xlu0 %7681
      %7683 = vrot.lane.b32.xlu0 %v7343, 123
      %v7684 = vpop.permute.xlu0 %7683
      %7685 = vrot.lane.b32.xlu0 %v7344, 123
      %v7686 = vpop.permute.xlu0 %7685
      %7687 = vrot.lane.b32.xlu0 %v7345, 123
      %v7688 = vpop.permute.xlu0 %7687
      %7689 = vrot.lane.b32.xlu0 %v7346, 123
      %v7690 = vpop.permute.xlu0 %7689
      %7691 = vrot.lane.b32.xlu0 %v7347, 123
      %v7692 = vpop.permute.xlu0 %7691
      %7693 = vrot.lane.b32.xlu0 %v7330, 119
      %v7694 = vpop.permute.xlu0 %7693
      %7695 = vrot.lane.b32.xlu0 %v7331, 119
      %v7696 = vpop.permute.xlu0 %7695
      %7697 = vrot.lane.b32.xlu0 %v7332, 119
      %v7698 = vpop.permute.xlu0 %7697
      %7699 = vrot.lane.b32.xlu0 %v7333, 119
      %v7700 = vpop.permute.xlu0 %7699
      %7701 = vrot.lane.b32.xlu0 %v7334, 119
      %v7702 = vpop.permute.xlu0 %7701
      %7703 = vrot.lane.b32.xlu0 %v7335, 119
      %v7704 = vpop.permute.xlu0 %7703
      %7705 = vrot.lane.b32.xlu0 %v7336, 119
      %v7706 = vpop.permute.xlu0 %7705
      %7707 = vrot.lane.b32.xlu0 %v7337, 119
      %v7708 = vpop.permute.xlu0 %7707
      %7709 = vrot.lane.b32.xlu0 %v7338, 119
      %v7710 = vpop.permute.xlu0 %7709
      %7711 = vrot.lane.b32.xlu0 %v7339, 119
      %v7712 = vpop.permute.xlu0 %7711
      %7713 = vrot.lane.b32.xlu0 %v7340, 119
      %v7714 = vpop.permute.xlu0 %7713
      %7715 = vrot.lane.b32.xlu0 %v7341, 119
      %v7716 = vpop.permute.xlu0 %7715
      %7717 = vrot.lane.b32.xlu0 %v7342, 119
      %v7718 = vpop.permute.xlu0 %7717
      %7719 = vrot.lane.b32.xlu0 %v7343, 119
      %v7720 = vpop.permute.xlu0 %7719
      %7721 = vrot.lane.b32.xlu0 %v7344, 119
      %v7722 = vpop.permute.xlu0 %7721
      %7723 = vrot.lane.b32.xlu0 %v7345, 119
      %v7724 = vpop.permute.xlu0 %7723
      %7725 = vrot.lane.b32.xlu0 %v7346, 119
      %v7726 = vpop.permute.xlu0 %7725
      %7727 = vrot.lane.b32.xlu0 %v7347, 119
      %v7728 = vpop.permute.xlu0 %7727
      %7729 = vrot.lane.b32.xlu0 %v7330, 115
      %v7730 = vpop.permute.xlu0 %7729
      %7731 = vrot.lane.b32.xlu0 %v7331, 115
      %v7732 = vpop.permute.xlu0 %7731
      %7733 = vrot.lane.b32.xlu0 %v7332, 115
      %v7734 = vpop.permute.xlu0 %7733
      %7735 = vrot.lane.b32.xlu0 %v7333, 115
      %v7736 = vpop.permute.xlu0 %7735
      %7737 = vrot.lane.b32.xlu0 %v7334, 115
      %v7738 = vpop.permute.xlu0 %7737
      %7739 = vrot.lane.b32.xlu0 %v7335, 115
      %v7740 = vpop.permute.xlu0 %7739
      %7741 = vrot.lane.b32.xlu0 %v7336, 115
      %v7742 = vpop.permute.xlu0 %7741
      %7743 = vrot.lane.b32.xlu0 %v7337, 115
      %v7744 = vpop.permute.xlu0 %7743
      %7745 = vrot.lane.b32.xlu0 %v7338, 115
      %v7746 = vpop.permute.xlu0 %7745
      %7747 = vrot.lane.b32.xlu0 %v7339, 115
      %v7748 = vpop.permute.xlu0 %7747
      %7749 = vrot.lane.b32.xlu0 %v7340, 115
      %v7750 = vpop.permute.xlu0 %7749
      %7751 = vrot.lane.b32.xlu0 %v7341, 115
      %v7752 = vpop.permute.xlu0 %7751
      %7753 = vrot.lane.b32.xlu0 %v7342, 115
      %v7754 = vpop.permute.xlu0 %7753
      %7755 = vrot.lane.b32.xlu0 %v7343, 115
      %v7756 = vpop.permute.xlu0 %7755
      %7757 = vrot.lane.b32.xlu0 %v7344, 115
      %v7758 = vpop.permute.xlu0 %7757
      %7759 = vrot.lane.b32.xlu0 %v7345, 115
      %v7760 = vpop.permute.xlu0 %7759
      %7761 = vrot.lane.b32.xlu0 %v7346, 115
      %v7762 = vpop.permute.xlu0 %7761
      %7763 = vrot.lane.b32.xlu0 %v7347, 115
      %v7764 = vpop.permute.xlu0 %7763
      %v7767 = vsel %vm7474, %v7622, %v7658
      %v7770 = vsel %vm7474, %v7624, %v7660
      %v7773 = vsel %vm7474, %v7626, %v7662
      %v7776 = vsel %vm7474, %v7628, %v7664
      %v7779 = vsel %vm7474, %v7630, %v7666
      %v7782 = vsel %vm7474, %v7632, %v7668
      %v7785 = vsel %vm7474, %v7634, %v7670
      %v7788 = vsel %vm7474, %v7636, %v7672
      %v7791 = vsel %vm7474, %v7638, %v7674
      %v7794 = vsel %vm7474, %v7640, %v7676
      %v7797 = vsel %vm7474, %v7642, %v7678
      %v7800 = vsel %vm7474, %v7644, %v7680
      %v7803 = vsel %vm7474, %v7646, %v7682
      %v7806 = vsel %vm7474, %v7648, %v7684
      %v7809 = vsel %vm7474, %v7650, %v7686
      %v7812 = vsel %vm7474, %v7652, %v7688
      %v7815 = vsel %vm7474, %v7654, %v7690
      %v7818 = vsel %vm7474, %v7656, %v7692
      %v7820 = vsel %vm7529, %v7767, %v7694
      %v7822 = vsel %vm7529, %v7770, %v7696
      %v7824 = vsel %vm7529, %v7773, %v7698
      %v7826 = vsel %vm7529, %v7776, %v7700
      %v7828 = vsel %vm7529, %v7779, %v7702
      %v7830 = vsel %vm7529, %v7782, %v7704
      %v7832 = vsel %vm7529, %v7785, %v7706
      %v7834 = vsel %vm7529, %v7788, %v7708
      %v7836 = vsel %vm7529, %v7791, %v7710
      %v7838 = vsel %vm7529, %v7794, %v7712
      %v7840 = vsel %vm7529, %v7797, %v7714
      %v7842 = vsel %vm7529, %v7800, %v7716
      %v7844 = vsel %vm7529, %v7803, %v7718
      %v7846 = vsel %vm7529, %v7806, %v7720
      %v7848 = vsel %vm7529, %v7809, %v7722
      %v7850 = vsel %vm7529, %v7812, %v7724
      %v7852 = vsel %vm7529, %v7815, %v7726
      %v7854 = vsel %vm7529, %v7818, %v7728
      %v7856 = vsel %vm7566, %v7820, %v7730
      %v7859 = vsel %vm7566, %v7822, %v7732
      %v7862 = vsel %vm7566, %v7824, %v7734
      %v7865 = vsel %vm7566, %v7826, %v7736
      %v7868 = vsel %vm7566, %v7828, %v7738
      %v7871 = vsel %vm7566, %v7830, %v7740
      %v7874 = vsel %vm7566, %v7832, %v7742
      %v7877 = vsel %vm7566, %v7834, %v7744
      %v7880 = vsel %vm7566, %v7836, %v7746
      %v7883 = vsel %vm7566, %v7838, %v7748
      %v7886 = vsel %vm7566, %v7840, %v7750
      %v7889 = vsel %vm7566, %v7842, %v7752
      %v7892 = vsel %vm7566, %v7844, %v7754
      %v7895 = vsel %vm7566, %v7846, %v7756
      %v7898 = vsel %vm7566, %v7848, %v7758
      %v7901 = vsel %vm7566, %v7850, %v7760
      %v7904 = vsel %vm7566, %v7852, %v7762
      %v7907 = vsel %vm7566, %v7854, %v7764
      %7909 = vrot.lane.b32.xlu0 %v7330, 126
      %v7910 = vpop.permute.xlu0 %7909
      %7911 = vrot.lane.b32.xlu0 %v7331, 126
      %v7912 = vpop.permute.xlu0 %7911
      %7913 = vrot.lane.b32.xlu0 %v7332, 126
      %v7914 = vpop.permute.xlu0 %7913
      %7915 = vrot.lane.b32.xlu0 %v7333, 126
      %v7916 = vpop.permute.xlu0 %7915
      %7917 = vrot.lane.b32.xlu0 %v7334, 126
      %v7918 = vpop.permute.xlu0 %7917
      %7919 = vrot.lane.b32.xlu0 %v7335, 126
      %v7920 = vpop.permute.xlu0 %7919
      %7921 = vrot.lane.b32.xlu0 %v7336, 126
      %v7922 = vpop.permute.xlu0 %7921
      %7923 = vrot.lane.b32.xlu0 %v7337, 126
      %v7924 = vpop.permute.xlu0 %7923
      %7925 = vrot.lane.b32.xlu0 %v7338, 126
      %v7926 = vpop.permute.xlu0 %7925
      %7927 = vrot.lane.b32.xlu0 %v7339, 126
      %v7928 = vpop.permute.xlu0 %7927
      %7929 = vrot.lane.b32.xlu0 %v7340, 126
      %v7930 = vpop.permute.xlu0 %7929
      %7931 = vrot.lane.b32.xlu0 %v7341, 126
      %v7932 = vpop.permute.xlu0 %7931
      %7933 = vrot.lane.b32.xlu0 %v7342, 126
      %v7934 = vpop.permute.xlu0 %7933
      %7935 = vrot.lane.b32.xlu0 %v7343, 126
      %v7936 = vpop.permute.xlu0 %7935
      %7937 = vrot.lane.b32.xlu0 %v7344, 126
      %v7938 = vpop.permute.xlu0 %7937
      %7939 = vrot.lane.b32.xlu0 %v7345, 126
      %v7940 = vpop.permute.xlu0 %7939
      %7941 = vrot.lane.b32.xlu0 %v7346, 126
      %v7942 = vpop.permute.xlu0 %7941
      %7943 = vrot.lane.b32.xlu0 %v7347, 126
      %v7944 = vpop.permute.xlu0 %7943
      %7945 = vrot.lane.b32.xlu0 %v7330, 122
      %v7946 = vpop.permute.xlu0 %7945
      %7947 = vrot.lane.b32.xlu0 %v7331, 122
      %v7948 = vpop.permute.xlu0 %7947
      %7949 = vrot.lane.b32.xlu0 %v7332, 122
      %v7950 = vpop.permute.xlu0 %7949
      %7951 = vrot.lane.b32.xlu0 %v7333, 122
      %v7952 = vpop.permute.xlu0 %7951
      %7953 = vrot.lane.b32.xlu0 %v7334, 122
      %v7954 = vpop.permute.xlu0 %7953
      %7955 = vrot.lane.b32.xlu0 %v7335, 122
      %v7956 = vpop.permute.xlu0 %7955
      %7957 = vrot.lane.b32.xlu0 %v7336, 122
      %v7958 = vpop.permute.xlu0 %7957
      %7959 = vrot.lane.b32.xlu0 %v7337, 122
      %v7960 = vpop.permute.xlu0 %7959
      %7961 = vrot.lane.b32.xlu0 %v7338, 122
      %v7962 = vpop.permute.xlu0 %7961
      %7963 = vrot.lane.b32.xlu0 %v7339, 122
      %v7964 = vpop.permute.xlu0 %7963
      %7965 = vrot.lane.b32.xlu0 %v7340, 122
      %v7966 = vpop.permute.xlu0 %7965
      %7967 = vrot.lane.b32.xlu0 %v7341, 122
      %v7968 = vpop.permute.xlu0 %7967
      %7969 = vrot.lane.b32.xlu0 %v7342, 122
      %v7970 = vpop.permute.xlu0 %7969
      %7971 = vrot.lane.b32.xlu0 %v7343, 122
      %v7972 = vpop.permute.xlu0 %7971
      %7973 = vrot.lane.b32.xlu0 %v7344, 122
      %v7974 = vpop.permute.xlu0 %7973
      %7975 = vrot.lane.b32.xlu0 %v7345, 122
      %v7976 = vpop.permute.xlu0 %7975
      %7977 = vrot.lane.b32.xlu0 %v7346, 122
      %v7978 = vpop.permute.xlu0 %7977
      %7979 = vrot.lane.b32.xlu0 %v7347, 122
      %v7980 = vpop.permute.xlu0 %7979
      %7981 = vrot.lane.b32.xlu0 %v7330, 118
      %v7982 = vpop.permute.xlu0 %7981
      %7983 = vrot.lane.b32.xlu0 %v7331, 118
      %v7984 = vpop.permute.xlu0 %7983
      %7985 = vrot.lane.b32.xlu0 %v7332, 118
      %v7986 = vpop.permute.xlu0 %7985
      %7987 = vrot.lane.b32.xlu0 %v7333, 118
      %v7988 = vpop.permute.xlu0 %7987
      %7989 = vrot.lane.b32.xlu0 %v7334, 118
      %v7990 = vpop.permute.xlu0 %7989
      %7991 = vrot.lane.b32.xlu0 %v7335, 118
      %v7992 = vpop.permute.xlu0 %7991
      %7993 = vrot.lane.b32.xlu0 %v7336, 118
      %v7994 = vpop.permute.xlu0 %7993
      %7995 = vrot.lane.b32.xlu0 %v7337, 118
      %v7996 = vpop.permute.xlu0 %7995
      %7997 = vrot.lane.b32.xlu0 %v7338, 118
      %v7998 = vpop.permute.xlu0 %7997
      %7999 = vrot.lane.b32.xlu0 %v7339, 118
      %v8000 = vpop.permute.xlu0 %7999
      %8001 = vrot.lane.b32.xlu0 %v7340, 118
      %v8002 = vpop.permute.xlu0 %8001
      %8003 = vrot.lane.b32.xlu0 %v7341, 118
      %v8004 = vpop.permute.xlu0 %8003
      %8005 = vrot.lane.b32.xlu0 %v7342, 118
      %v8006 = vpop.permute.xlu0 %8005
      %8007 = vrot.lane.b32.xlu0 %v7343, 118
      %v8008 = vpop.permute.xlu0 %8007
      %8009 = vrot.lane.b32.xlu0 %v7344, 118
      %v8010 = vpop.permute.xlu0 %8009
      %8011 = vrot.lane.b32.xlu0 %v7345, 118
      %v8012 = vpop.permute.xlu0 %8011
      %8013 = vrot.lane.b32.xlu0 %v7346, 118
      %v8014 = vpop.permute.xlu0 %8013
      %8015 = vrot.lane.b32.xlu0 %v7347, 118
      %v8016 = vpop.permute.xlu0 %8015
      %8017 = vrot.lane.b32.xlu0 %v7330, 114
      %v8018 = vpop.permute.xlu0 %8017
      %8019 = vrot.lane.b32.xlu0 %v7331, 114
      %v8020 = vpop.permute.xlu0 %8019
      %8021 = vrot.lane.b32.xlu0 %v7332, 114
      %v8022 = vpop.permute.xlu0 %8021
      %8023 = vrot.lane.b32.xlu0 %v7333, 114
      %v8024 = vpop.permute.xlu0 %8023
      %8025 = vrot.lane.b32.xlu0 %v7334, 114
      %v8026 = vpop.permute.xlu0 %8025
      %8027 = vrot.lane.b32.xlu0 %v7335, 114
      %v8028 = vpop.permute.xlu0 %8027
      %8029 = vrot.lane.b32.xlu0 %v7336, 114
      %v8030 = vpop.permute.xlu0 %8029
      %8031 = vrot.lane.b32.xlu0 %v7337, 114
      %v8032 = vpop.permute.xlu0 %8031
      %8033 = vrot.lane.b32.xlu0 %v7338, 114
      %v8034 = vpop.permute.xlu0 %8033
      %8035 = vrot.lane.b32.xlu0 %v7339, 114
      %v8036 = vpop.permute.xlu0 %8035
      %8037 = vrot.lane.b32.xlu0 %v7340, 114
      %v8038 = vpop.permute.xlu0 %8037
      %8039 = vrot.lane.b32.xlu0 %v7341, 114
      %v8040 = vpop.permute.xlu0 %8039
      %8041 = vrot.lane.b32.xlu0 %v7342, 114
      %v8042 = vpop.permute.xlu0 %8041
      %8043 = vrot.lane.b32.xlu0 %v7343, 114
      %v8044 = vpop.permute.xlu0 %8043
      %8045 = vrot.lane.b32.xlu0 %v7344, 114
      %v8046 = vpop.permute.xlu0 %8045
      %8047 = vrot.lane.b32.xlu0 %v7345, 114
      %v8048 = vpop.permute.xlu0 %8047
      %8049 = vrot.lane.b32.xlu0 %v7346, 114
      %v8050 = vpop.permute.xlu0 %8049
      %8051 = vrot.lane.b32.xlu0 %v7347, 114
      %v8052 = vpop.permute.xlu0 %8051
      %v8055 = vsel %vm7474, %v7910, %v7946
      %v8058 = vsel %vm7474, %v7912, %v7948
      %v8061 = vsel %vm7474, %v7914, %v7950
      %v8064 = vsel %vm7474, %v7916, %v7952
      %v8067 = vsel %vm7474, %v7918, %v7954
      %v8070 = vsel %vm7474, %v7920, %v7956
      %v8073 = vsel %vm7474, %v7922, %v7958
      %v8076 = vsel %vm7474, %v7924, %v7960
      %v8079 = vsel %vm7474, %v7926, %v7962
      %v8082 = vsel %vm7474, %v7928, %v7964
      %v8085 = vsel %vm7474, %v7930, %v7966
      %v8088 = vsel %vm7474, %v7932, %v7968
      %v8091 = vsel %vm7474, %v7934, %v7970
      %v8094 = vsel %vm7474, %v7936, %v7972
      %v8097 = vsel %vm7474, %v7938, %v7974
      %v8100 = vsel %vm7474, %v7940, %v7976
      %v8103 = vsel %vm7474, %v7942, %v7978
      %v8106 = vsel %vm7474, %v7944, %v7980
      %v8108 = vsel %vm7529, %v8055, %v7982
      %v8110 = vsel %vm7529, %v8058, %v7984
      %v8112 = vsel %vm7529, %v8061, %v7986
      %v8114 = vsel %vm7529, %v8064, %v7988
      %v8116 = vsel %vm7529, %v8067, %v7990
      %v8118 = vsel %vm7529, %v8070, %v7992
      %v8120 = vsel %vm7529, %v8073, %v7994
      %v8122 = vsel %vm7529, %v8076, %v7996
      %v8124 = vsel %vm7529, %v8079, %v7998
      %v8126 = vsel %vm7529, %v8082, %v8000
      %v8128 = vsel %vm7529, %v8085, %v8002
      %v8130 = vsel %vm7529, %v8088, %v8004
      %v8132 = vsel %vm7529, %v8091, %v8006
      %v8134 = vsel %vm7529, %v8094, %v8008
      %v8136 = vsel %vm7529, %v8097, %v8010
      %v8138 = vsel %vm7529, %v8100, %v8012
      %v8140 = vsel %vm7529, %v8103, %v8014
      %v8142 = vsel %vm7529, %v8106, %v8016
      %v8144 = vsel %vm7566, %v8108, %v8018
      %v8147 = vsel %vm7566, %v8110, %v8020
      %v8150 = vsel %vm7566, %v8112, %v8022
      %v8153 = vsel %vm7566, %v8114, %v8024
      %v8156 = vsel %vm7566, %v8116, %v8026
      %v8159 = vsel %vm7566, %v8118, %v8028
      %v8162 = vsel %vm7566, %v8120, %v8030
      %v8165 = vsel %vm7566, %v8122, %v8032
      %v8168 = vsel %vm7566, %v8124, %v8034
      %v8171 = vsel %vm7566, %v8126, %v8036
      %v8174 = vsel %vm7566, %v8128, %v8038
      %v8177 = vsel %vm7566, %v8130, %v8040
      %v8180 = vsel %vm7566, %v8132, %v8042
      %v8183 = vsel %vm7566, %v8134, %v8044
      %v8186 = vsel %vm7566, %v8136, %v8046
      %v8189 = vsel %vm7566, %v8138, %v8048
      %v8192 = vsel %vm7566, %v8140, %v8050
      %v8195 = vsel %vm7566, %v8142, %v8052
      %8197 = vrot.lane.b32.xlu0 %v7330, 125
      %v8198 = vpop.permute.xlu0 %8197
      %8199 = vrot.lane.b32.xlu0 %v7331, 125
      %v8200 = vpop.permute.xlu0 %8199
      %8201 = vrot.lane.b32.xlu0 %v7332, 125
      %v8202 = vpop.permute.xlu0 %8201
      %8203 = vrot.lane.b32.xlu0 %v7333, 125
      %v8204 = vpop.permute.xlu0 %8203
      %8205 = vrot.lane.b32.xlu0 %v7334, 125
      %v8206 = vpop.permute.xlu0 %8205
      %8207 = vrot.lane.b32.xlu0 %v7335, 125
      %v8208 = vpop.permute.xlu0 %8207
      %8209 = vrot.lane.b32.xlu0 %v7336, 125
      %v8210 = vpop.permute.xlu0 %8209
      %8211 = vrot.lane.b32.xlu0 %v7337, 125
      %v8212 = vpop.permute.xlu0 %8211
      %8213 = vrot.lane.b32.xlu0 %v7338, 125
      %v8214 = vpop.permute.xlu0 %8213
      %8215 = vrot.lane.b32.xlu0 %v7339, 125
      %v8216 = vpop.permute.xlu0 %8215
      %8217 = vrot.lane.b32.xlu0 %v7340, 125
      %v8218 = vpop.permute.xlu0 %8217
      %8219 = vrot.lane.b32.xlu0 %v7341, 125
      %v8220 = vpop.permute.xlu0 %8219
      %8221 = vrot.lane.b32.xlu0 %v7342, 125
      %v8222 = vpop.permute.xlu0 %8221
      %8223 = vrot.lane.b32.xlu0 %v7343, 125
      %v8224 = vpop.permute.xlu0 %8223
      %8225 = vrot.lane.b32.xlu0 %v7344, 125
      %v8226 = vpop.permute.xlu0 %8225
      %8227 = vrot.lane.b32.xlu0 %v7345, 125
      %v8228 = vpop.permute.xlu0 %8227
      %8229 = vrot.lane.b32.xlu0 %v7346, 125
      %v8230 = vpop.permute.xlu0 %8229
      %8231 = vrot.lane.b32.xlu0 %v7347, 125
      %v8232 = vpop.permute.xlu0 %8231
      %8233 = vrot.lane.b32.xlu0 %v7330, 121
      %v8234 = vpop.permute.xlu0 %8233
      %8235 = vrot.lane.b32.xlu0 %v7331, 121
      %v8236 = vpop.permute.xlu0 %8235
      %8237 = vrot.lane.b32.xlu0 %v7332, 121
      %v8238 = vpop.permute.xlu0 %8237
      %8239 = vrot.lane.b32.xlu0 %v7333, 121
      %v8240 = vpop.permute.xlu0 %8239
      %8241 = vrot.lane.b32.xlu0 %v7334, 121
      %v8242 = vpop.permute.xlu0 %8241
      %8243 = vrot.lane.b32.xlu0 %v7335, 121
      %v8244 = vpop.permute.xlu0 %8243
      %8245 = vrot.lane.b32.xlu0 %v7336, 121
      %v8246 = vpop.permute.xlu0 %8245
      %8247 = vrot.lane.b32.xlu0 %v7337, 121
      %v8248 = vpop.permute.xlu0 %8247
      %8249 = vrot.lane.b32.xlu0 %v7338, 121
      %v8250 = vpop.permute.xlu0 %8249
      %8251 = vrot.lane.b32.xlu0 %v7339, 121
      %v8252 = vpop.permute.xlu0 %8251
      %8253 = vrot.lane.b32.xlu0 %v7340, 121
      %v8254 = vpop.permute.xlu0 %8253
      %8255 = vrot.lane.b32.xlu0 %v7341, 121
      %v8256 = vpop.permute.xlu0 %8255
      %8257 = vrot.lane.b32.xlu0 %v7342, 121
      %v8258 = vpop.permute.xlu0 %8257
      %8259 = vrot.lane.b32.xlu0 %v7343, 121
      %v8260 = vpop.permute.xlu0 %8259
      %8261 = vrot.lane.b32.xlu0 %v7344, 121
      %v8262 = vpop.permute.xlu0 %8261
      %8263 = vrot.lane.b32.xlu0 %v7345, 121
      %v8264 = vpop.permute.xlu0 %8263
      %8265 = vrot.lane.b32.xlu0 %v7346, 121
      %v8266 = vpop.permute.xlu0 %8265
      %8267 = vrot.lane.b32.xlu0 %v7347, 121
      %v8268 = vpop.permute.xlu0 %8267
      %8269 = vrot.lane.b32.xlu0 %v7330, 117
      %v8270 = vpop.permute.xlu0 %8269
      %8271 = vrot.lane.b32.xlu0 %v7331, 117
      %v8272 = vpop.permute.xlu0 %8271
      %8273 = vrot.lane.b32.xlu0 %v7332, 117
      %v8274 = vpop.permute.xlu0 %8273
      %8275 = vrot.lane.b32.xlu0 %v7333, 117
      %v8276 = vpop.permute.xlu0 %8275
      %8277 = vrot.lane.b32.xlu0 %v7334, 117
      %v8278 = vpop.permute.xlu0 %8277
      %8279 = vrot.lane.b32.xlu0 %v7335, 117
      %v8280 = vpop.permute.xlu0 %8279
      %8281 = vrot.lane.b32.xlu0 %v7336, 117
      %v8282 = vpop.permute.xlu0 %8281
      %8283 = vrot.lane.b32.xlu0 %v7337, 117
      %v8284 = vpop.permute.xlu0 %8283
      %8285 = vrot.lane.b32.xlu0 %v7338, 117
      %v8286 = vpop.permute.xlu0 %8285
      %8287 = vrot.lane.b32.xlu0 %v7339, 117
      %v8288 = vpop.permute.xlu0 %8287
      %8289 = vrot.lane.b32.xlu0 %v7340, 117
      %v8290 = vpop.permute.xlu0 %8289
      %8291 = vrot.lane.b32.xlu0 %v7341, 117
      %v8292 = vpop.permute.xlu0 %8291
      %8293 = vrot.lane.b32.xlu0 %v7342, 117
      %v8294 = vpop.permute.xlu0 %8293
      %8295 = vrot.lane.b32.xlu0 %v7343, 117
      %v8296 = vpop.permute.xlu0 %8295
      %8297 = vrot.lane.b32.xlu0 %v7344, 117
      %v8298 = vpop.permute.xlu0 %8297
      %8299 = vrot.lane.b32.xlu0 %v7345, 117
      %v8300 = vpop.permute.xlu0 %8299
      %8301 = vrot.lane.b32.xlu0 %v7346, 117
      %v8302 = vpop.permute.xlu0 %8301
      %8303 = vrot.lane.b32.xlu0 %v7347, 117
      %v8304 = vpop.permute.xlu0 %8303
      %8305 = vrot.lane.b32.xlu0 %v7330, 113
      %v8306 = vpop.permute.xlu0 %8305
      %8307 = vrot.lane.b32.xlu0 %v7331, 113
      %v8308 = vpop.permute.xlu0 %8307
      %8309 = vrot.lane.b32.xlu0 %v7332, 113
      %v8310 = vpop.permute.xlu0 %8309
      %8311 = vrot.lane.b32.xlu0 %v7333, 113
      %v8312 = vpop.permute.xlu0 %8311
      %8313 = vrot.lane.b32.xlu0 %v7334, 113
      %v8314 = vpop.permute.xlu0 %8313
      %8315 = vrot.lane.b32.xlu0 %v7335, 113
      %v8316 = vpop.permute.xlu0 %8315
      %8317 = vrot.lane.b32.xlu0 %v7336, 113
      %v8318 = vpop.permute.xlu0 %8317
      %8319 = vrot.lane.b32.xlu0 %v7337, 113
      %v8320 = vpop.permute.xlu0 %8319
      %8321 = vrot.lane.b32.xlu0 %v7338, 113
      %v8322 = vpop.permute.xlu0 %8321
      %8323 = vrot.lane.b32.xlu0 %v7339, 113
      %v8324 = vpop.permute.xlu0 %8323
      %8325 = vrot.lane.b32.xlu0 %v7340, 113
      %v8326 = vpop.permute.xlu0 %8325
      %8327 = vrot.lane.b32.xlu0 %v7341, 113
      %v8328 = vpop.permute.xlu0 %8327
      %8329 = vrot.lane.b32.xlu0 %v7342, 113
      %v8330 = vpop.permute.xlu0 %8329
      %8331 = vrot.lane.b32.xlu0 %v7343, 113
      %v8332 = vpop.permute.xlu0 %8331
      %8333 = vrot.lane.b32.xlu0 %v7344, 113
      %v8334 = vpop.permute.xlu0 %8333
      %8335 = vrot.lane.b32.xlu0 %v7345, 113
      %v8336 = vpop.permute.xlu0 %8335
      %8337 = vrot.lane.b32.xlu0 %v7346, 113
      %v8338 = vpop.permute.xlu0 %8337
      %8339 = vrot.lane.b32.xlu0 %v7347, 113
      %v8340 = vpop.permute.xlu0 %8339
      %v8343 = vsel %vm7474, %v8198, %v8234
      %v8346 = vsel %vm7474, %v8200, %v8236
      %v8349 = vsel %vm7474, %v8202, %v8238
      %v8352 = vsel %vm7474, %v8204, %v8240
      %v8355 = vsel %vm7474, %v8206, %v8242
      %v8358 = vsel %vm7474, %v8208, %v8244
      %v8361 = vsel %vm7474, %v8210, %v8246
      %v8364 = vsel %vm7474, %v8212, %v8248
      %v8367 = vsel %vm7474, %v8214, %v8250
      %v8370 = vsel %vm7474, %v8216, %v8252
      %v8373 = vsel %vm7474, %v8218, %v8254
      %v8376 = vsel %vm7474, %v8220, %v8256
      %v8379 = vsel %vm7474, %v8222, %v8258
      %v8382 = vsel %vm7474, %v8224, %v8260
      %v8385 = vsel %vm7474, %v8226, %v8262
      %v8388 = vsel %vm7474, %v8228, %v8264
      %v8391 = vsel %vm7474, %v8230, %v8266
      %v8394 = vsel %vm7474, %v8232, %v8268
      %v8396 = vsel %vm7529, %v8343, %v8270
      %v8398 = vsel %vm7529, %v8346, %v8272
      %v8400 = vsel %vm7529, %v8349, %v8274
      %v8402 = vsel %vm7529, %v8352, %v8276
      %v8404 = vsel %vm7529, %v8355, %v8278
      %v8406 = vsel %vm7529, %v8358, %v8280
      %v8408 = vsel %vm7529, %v8361, %v8282
      %v8410 = vsel %vm7529, %v8364, %v8284
      %v8412 = vsel %vm7529, %v8367, %v8286
      %v8414 = vsel %vm7529, %v8370, %v8288
      %v8416 = vsel %vm7529, %v8373, %v8290
      %v8418 = vsel %vm7529, %v8376, %v8292
      %v8420 = vsel %vm7529, %v8379, %v8294
      %v8422 = vsel %vm7529, %v8382, %v8296
      %v8424 = vsel %vm7529, %v8385, %v8298
      %v8426 = vsel %vm7529, %v8388, %v8300
      %v8428 = vsel %vm7529, %v8391, %v8302
      %v8430 = vsel %vm7529, %v8394, %v8304
      %v8432 = vsel %vm7566, %v8396, %v8306
      %v8435 = vsel %vm7566, %v8398, %v8308
      %v8438 = vsel %vm7566, %v8400, %v8310
      %v8441 = vsel %vm7566, %v8402, %v8312
      %v8444 = vsel %vm7566, %v8404, %v8314
      %v8447 = vsel %vm7566, %v8406, %v8316
      %v8450 = vsel %vm7566, %v8408, %v8318
      %v8453 = vsel %vm7566, %v8410, %v8320
      %v8456 = vsel %vm7566, %v8412, %v8322
      %v8459 = vsel %vm7566, %v8414, %v8324
      %v8462 = vsel %vm7566, %v8416, %v8326
      %v8465 = vsel %vm7566, %v8418, %v8328
      %v8468 = vsel %vm7566, %v8420, %v8330
      %v8471 = vsel %vm7566, %v8422, %v8332
      %v8474 = vsel %vm7566, %v8424, %v8334
      %v8477 = vsel %vm7566, %v8426, %v8336
      %v8480 = vsel %vm7566, %v8428, %v8338
      %v8483 = vsel %vm7566, %v8430, %v8340
      %8485 = vrot.lane.b32.xlu0 %v7330, 112
      %v8486 = vpop.permute.xlu0 %8485
      %8487 = vrot.lane.b32.xlu0 %v7331, 112
      %v8488 = vpop.permute.xlu0 %8487
      %8489 = vrot.lane.b32.xlu0 %v7332, 112
      %v8490 = vpop.permute.xlu0 %8489
      %8491 = vrot.lane.b32.xlu0 %v7333, 112
      %v8492 = vpop.permute.xlu0 %8491
      %8493 = vrot.lane.b32.xlu0 %v7334, 112
      %v8494 = vpop.permute.xlu0 %8493
      %8495 = vrot.lane.b32.xlu0 %v7335, 112
      %v8496 = vpop.permute.xlu0 %8495
      %8497 = vrot.lane.b32.xlu0 %v7336, 112
      %v8498 = vpop.permute.xlu0 %8497
      %8499 = vrot.lane.b32.xlu0 %v7337, 112
      %v8500 = vpop.permute.xlu0 %8499
      %8501 = vrot.lane.b32.xlu0 %v7338, 112
      %v8502 = vpop.permute.xlu0 %8501
      %8503 = vrot.lane.b32.xlu0 %v7339, 112
      %v8504 = vpop.permute.xlu0 %8503
      %8505 = vrot.lane.b32.xlu0 %v7340, 112
      %v8506 = vpop.permute.xlu0 %8505
      %8507 = vrot.lane.b32.xlu0 %v7341, 112
      %v8508 = vpop.permute.xlu0 %8507
      %8509 = vrot.lane.b32.xlu0 %v7342, 112
      %v8510 = vpop.permute.xlu0 %8509
      %8511 = vrot.lane.b32.xlu0 %v7343, 112
      %v8512 = vpop.permute.xlu0 %8511
      %8513 = vrot.lane.b32.xlu0 %v7344, 112
      %v8514 = vpop.permute.xlu0 %8513
      %8515 = vrot.lane.b32.xlu0 %v7345, 112
      %v8516 = vpop.permute.xlu0 %8515
      %8517 = vrot.lane.b32.xlu0 %v7346, 112
      %v8518 = vpop.permute.xlu0 %8517
      %8519 = vrot.lane.b32.xlu0 %v7347, 112
      %v8520 = vpop.permute.xlu0 %8519
      %v8521 = vsel %vm7474, %v7367, %v7403
      %v8522 = vsel %vm7474, %v7369, %v7405
      %v8523 = vsel %vm7474, %v7371, %v7407
      %v8524 = vsel %vm7474, %v7373, %v7409
      %v8525 = vsel %vm7474, %v7375, %v7411
      %v8526 = vsel %vm7474, %v7377, %v7413
      %v8527 = vsel %vm7474, %v7379, %v7415
      %v8528 = vsel %vm7474, %v7381, %v7417
      %v8529 = vsel %vm7474, %v7383, %v7419
      %v8530 = vsel %vm7474, %v7385, %v7421
      %v8531 = vsel %vm7474, %v7387, %v7423
      %v8532 = vsel %vm7474, %v7389, %v7425
      %v8533 = vsel %vm7474, %v7391, %v7427
      %v8534 = vsel %vm7474, %v7393, %v7429
      %v8535 = vsel %vm7474, %v7395, %v7431
      %v8536 = vsel %vm7474, %v7397, %v7433
      %v8537 = vsel %vm7474, %v7399, %v7435
      %v8538 = vsel %vm7474, %v7401, %v7437
      %v8539 = vsel %vm7529, %v8521, %v7439
      %v8540 = vsel %vm7529, %v8522, %v7441
      %v8541 = vsel %vm7529, %v8523, %v7443
      %v8542 = vsel %vm7529, %v8524, %v7445
      %v8543 = vsel %vm7529, %v8525, %v7447
      %v8544 = vsel %vm7529, %v8526, %v7449
      %v8545 = vsel %vm7529, %v8527, %v7451
      %v8546 = vsel %vm7529, %v8528, %v7453
      %v8547 = vsel %vm7529, %v8529, %v7455
      %v8548 = vsel %vm7529, %v8530, %v7457
      %v8549 = vsel %vm7529, %v8531, %v7459
      %v8550 = vsel %vm7529, %v8532, %v7461
      %v8551 = vsel %vm7529, %v8533, %v7463
      %v8552 = vsel %vm7529, %v8534, %v7465
      %v8553 = vsel %vm7529, %v8535, %v7467
      %v8554 = vsel %vm7529, %v8536, %v7469
      %v8555 = vsel %vm7529, %v8537, %v7471
      %v8556 = vsel %vm7529, %v8538, %v7473
      %v8558 = vsel %vm7566, %v8539, %v8486
      %v8561 = vsel %vm7566, %v8540, %v8488
      %v8564 = vsel %vm7566, %v8541, %v8490
      %v8567 = vsel %vm7566, %v8542, %v8492
      %v8570 = vsel %vm7566, %v8543, %v8494
      %v8573 = vsel %vm7566, %v8544, %v8496
      %v8576 = vsel %vm7566, %v8545, %v8498
      %v8579 = vsel %vm7566, %v8546, %v8500
      %v8582 = vsel %vm7566, %v8547, %v8502
      %v8585 = vsel %vm7566, %v8548, %v8504
      %v8588 = vsel %vm7566, %v8549, %v8506
      %v8591 = vsel %vm7566, %v8550, %v8508
      %v8594 = vsel %vm7566, %v8551, %v8510
      %v8597 = vsel %vm7566, %v8552, %v8512
      %v8600 = vsel %vm7566, %v8553, %v8514
      %v8603 = vsel %vm7566, %v8554, %v8516
      %v8606 = vsel %vm7566, %v8555, %v8518
      %v8609 = vsel %vm7566, %v8556, %v8520
      %v8611 = vld [vmem:[%s5] sm:$0xff]
      %v8612 = vld [vmem:[%s5 + $0x8] sm:$0xff]
      %v8613 = vld [vmem:[%s5 + $0x10] sm:$0xff]
      %v8614 = vld [vmem:[%s5 + $0x18] sm:$0xff]
      %v8615 = vld [vmem:[%s5 + $0x20] sm:$0xff]
      %v8616 = vld [vmem:[%s5 + $0x28] sm:$0xff]
      %v8617 = vld [vmem:[%s5 + $0x30] sm:$0xff]
      %v8618 = vld [vmem:[%s5 + $0x38] sm:$0xff]
      %v8619 = vld [vmem:[%s5 + $0x40] sm:$0xff]
      %v8620 = vld [vmem:[%s5 + $0x48] sm:$0xff]
      %v8621 = vld [vmem:[%s5 + $0x50] sm:$0xff]
      %v8622 = vld [vmem:[%s5 + $0x58] sm:$0xff]
      %v8623 = vld [vmem:[%s5 + $0x60] sm:$0xff]
      %v8624 = vld [vmem:[%s5 + $0x68] sm:$0xff]
      %v8625 = vld [vmem:[%s5 + $0x70] sm:$0xff]
      %v8626 = vld [vmem:[%s5 + $0x78] sm:$0xff]
      %v8627 = vld [vmem:[%s5 + $0x80] sm:$0xff]
      %v8628 = vld [vmem:[%s5 + $0x88] sm:$0xff]
      %v8629 = vld [vmem:[%s5 + $0x90] sm:$0xff]
      %v8630 = vld [vmem:[%s5 + $0x98] sm:$0xff]
      %v8631 = vld [vmem:[%s5 + $0xa0] sm:$0xff]
      %v8632 = vld [vmem:[%s5 + $0xa8] sm:$0xff]
      %v8633 = vld [vmem:[%s5 + $0xb0] sm:$0xff]
      %v8634 = vld [vmem:[%s5 + $0xb8] sm:$0xff]
      %v8635 = vld [vmem:[%s5 + $0xc0] sm:$0xff]
      %v8636 = vld [vmem:[%s5 + $0xc8] sm:$0xff]
      %v8637 = vld [vmem:[%s5 + $0xd0] sm:$0xff]
      %v8638 = vld [vmem:[%s5 + $0xd8] sm:$0xff]
      %v8639 = vld [vmem:[%s5 + $0xe0] sm:$0xff]
      %v8640 = vld [vmem:[%s5 + $0xe8] sm:$0xff]
      %v8641 = vld [vmem:[%s5 + $0xf0] sm:$0xff]
      %v8642 = vld [vmem:[%s5 + $0xf8] sm:$0xff]
      %v8643 = vld [vmem:[%s5 + $0x100] sm:$0xff]
      %v8644 = vld [vmem:[%s5 + $0x108] sm:$0xff]
      %v8645 = vld [vmem:[%s5 + $0x110] sm:$0xff]
      %v8646 = vld [vmem:[%s5 + $0x118] sm:$0xff]
      %v8647 = vld [vmem:[%s5 + $0x120] sm:$0xff]
      %v8648 = vld [vmem:[%s5 + $0x128] sm:$0xff]
      %v8649 = vld [vmem:[%s5 + $0x130] sm:$0xff]
      %v8650 = vld [vmem:[%s5 + $0x138] sm:$0xff]
      %v8651 = vld [vmem:[%s5 + $0x140] sm:$0xff]
      %v8652 = vld [vmem:[%s5 + $0x148] sm:$0xff]
      %v8653 = vld [vmem:[%s5 + $0x150] sm:$0xff]
      %v8654 = vld [vmem:[%s5 + $0x158] sm:$0xff]
      %v8655 = vld [vmem:[%s5 + $0x160] sm:$0xff]
      %v8656 = vld [vmem:[%s5 + $0x168] sm:$0xff]
      %v8657 = vld [vmem:[%s5 + $0x170] sm:$0xff]
      %v8658 = vld [vmem:[%s5 + $0x178] sm:$0xff]
      %v8659 = vld [vmem:[%s5 + $0x180] sm:$0xff]
      %v8660 = vld [vmem:[%s5 + $0x188] sm:$0xff]
      %v8661 = vld [vmem:[%s5 + $0x190] sm:$0xff]
      %v8662 = vld [vmem:[%s5 + $0x198] sm:$0xff]
      %v8663 = vld [vmem:[%s5 + $0x1a0] sm:$0xff]
      %v8664 = vld [vmem:[%s5 + $0x1a8] sm:$0xff]
      %v8665 = vld [vmem:[%s5 + $0x1b0] sm:$0xff]
      %v8666 = vld [vmem:[%s5 + $0x1b8] sm:$0xff]
      %v8667 = vld [vmem:[%s5 + $0x1c0] sm:$0xff]
      %v8668 = vld [vmem:[%s5 + $0x1c8] sm:$0xff]
      %v8669 = vld [vmem:[%s5 + $0x1d0] sm:$0xff]
      %v8670 = vld [vmem:[%s5 + $0x1d8] sm:$0xff]
      %v8671 = vld [vmem:[%s5 + $0x1e0] sm:$0xff]
      %v8672 = vld [vmem:[%s5 + $0x1e8] sm:$0xff]
      %v8673 = vld [vmem:[%s5 + $0x1f0] sm:$0xff]
      %v8674 = vld [vmem:[%s5 + $0x1f8] sm:$0xff]
      %v8675 = vld [vmem:[%s5 + $0x200] sm:$0xff]
      %v8676 = vld [vmem:[%s5 + $0x208] sm:$0xff]
      %v8677 = vld [vmem:[%s5 + $0x210] sm:$0xff]
      %v8678 = vld [vmem:[%s5 + $0x218] sm:$0xff]
      %v8679 = vld [vmem:[%s5 + $0x220] sm:$0xff]
      %v8680 = vld [vmem:[%s5 + $0x228] sm:$0xff]
      %v8681 = vld [vmem:[%s5 + $0x230] sm:$0xff]
      %v8682 = vld [vmem:[%s5 + $0x238] sm:$0xff]
      %v8683 = vld [vmem:[%s5 + $0x240] sm:$0xff]
      %v8684 = vld [vmem:[%s5 + $0x248] sm:$0xff]
      %v8685 = vld [vmem:[%s5 + $0x250] sm:$0xff]
      %v8686 = vld [vmem:[%s5 + $0x258] sm:$0xff]
      %v8687 = vld [vmem:[%s5 + $0x260] sm:$0xff]
      %v8688 = vld [vmem:[%s5 + $0x268] sm:$0xff]
      %v8689 = vld [vmem:[%s5 + $0x270] sm:$0xff]
      %v8690 = vld [vmem:[%s5 + $0x278] sm:$0xff]
      %v8691 = vld [vmem:[%s5 + $0x280] sm:$0xff]
      %v8692 = vld [vmem:[%s5 + $0x288] sm:$0xff]
      %v8693 = vld [vmem:[%s5 + $0x290] sm:$0xff]
      %v8694 = vld [vmem:[%s5 + $0x298] sm:$0xff]
      %v8695 = vld [vmem:[%s5 + $0x2a0] sm:$0xff]
      %v8696 = vld [vmem:[%s5 + $0x2a8] sm:$0xff]
      %v8697 = vld [vmem:[%s5 + $0x2b0] sm:$0xff]
      %v8698 = vld [vmem:[%s5 + $0x2b8] sm:$0xff]
      %v8699 = vld [vmem:[%s5 + $0x2c0] sm:$0xff]
      %v8700 = vld [vmem:[%s5 + $0x2c8] sm:$0xff]
      %v8701 = vld [vmem:[%s5 + $0x2d0] sm:$0xff]
      %v8702 = vld [vmem:[%s5 + $0x2d8] sm:$0xff]
      %v8703 = vld [vmem:[%s5 + $0x2e0] sm:$0xff]
      %v8704 = vld [vmem:[%s5 + $0x2e8] sm:$0xff]
      %v8705 = vld [vmem:[%s5 + $0x2f0] sm:$0xff]
      %v8706 = vld [vmem:[%s5 + $0x2f8] sm:$0xff]
      %v8707 = vld [vmem:[%s5 + $0x300] sm:$0xff]
      %v8708 = vld [vmem:[%s5 + $0x308] sm:$0xff]
      %v8709 = vld [vmem:[%s5 + $0x310] sm:$0xff]
      %v8710 = vld [vmem:[%s5 + $0x318] sm:$0xff]
      %v8711 = vld [vmem:[%s5 + $0x320] sm:$0xff]
      %v8712 = vld [vmem:[%s5 + $0x328] sm:$0xff]
      %v8713 = vld [vmem:[%s5 + $0x330] sm:$0xff]
      %v8714 = vld [vmem:[%s5 + $0x338] sm:$0xff]
      %v8715 = vld [vmem:[%s5 + $0x340] sm:$0xff]
      %v8716 = vld [vmem:[%s5 + $0x348] sm:$0xff]
      %v8717 = vld [vmem:[%s5 + $0x350] sm:$0xff]
      %v8718 = vld [vmem:[%s5 + $0x358] sm:$0xff]
      %v8719 = vld [vmem:[%s5 + $0x360] sm:$0xff]
      %v8720 = vld [vmem:[%s5 + $0x368] sm:$0xff]
      %v8721 = vld [vmem:[%s5 + $0x370] sm:$0xff]
      %v8722 = vld [vmem:[%s5 + $0x378] sm:$0xff]
      %v8723 = vld [vmem:[%s5 + $0x380] sm:$0xff]
      %v8724 = vld [vmem:[%s5 + $0x388] sm:$0xff]
      %v8725 = vld [vmem:[%s5 + $0x390] sm:$0xff]
      %v8726 = vld [vmem:[%s5 + $0x398] sm:$0xff]
      %v8727 = vld [vmem:[%s5 + $0x3a0] sm:$0xff]
      %v8728 = vld [vmem:[%s5 + $0x3a8] sm:$0xff]
      %v8729 = vld [vmem:[%s5 + $0x3b0] sm:$0xff]
      %v8730 = vld [vmem:[%s5 + $0x3b8] sm:$0xff]
      %v8731 = vld [vmem:[%s5 + $0x3c0] sm:$0xff]
      %v8732 = vld [vmem:[%s5 + $0x3c8] sm:$0xff]
      %v8733 = vld [vmem:[%s5 + $0x3d0] sm:$0xff]
      %v8734 = vld [vmem:[%s5 + $0x3d8] sm:$0xff]
      %v8735 = vld [vmem:[%s5 + $0x3e0] sm:$0xff]
      %v8736 = vld [vmem:[%s5 + $0x3e8] sm:$0xff]
      %v8737 = vld [vmem:[%s5 + $0x3f0] sm:$0xff]
      %v8738 = vld [vmem:[%s5 + $0x3f8] sm:$0xff]
      %v8739 = vld [vmem:[%s5 + $0x400] sm:$0xff]
      %v8740 = vld [vmem:[%s5 + $0x408] sm:$0xff]
      %v8741 = vld [vmem:[%s5 + $0x410] sm:$0xff]
      %v8742 = vld [vmem:[%s5 + $0x418] sm:$0xff]
      %v8875 = vunpack.c.l.b16 %v8611
      %v8876 = vunpack.c.h.b16 %v8611
      %v8877 = vunpack.c.l.b16 %v8612
      %v8878 = vunpack.c.h.b16 %v8612
      %v8879 = vunpack.c.l.b16 %v8613
      %v8880 = vunpack.c.h.b16 %v8613
      %v8881 = vunpack.c.l.b16 %v8614
      %v8882 = vunpack.c.h.b16 %v8614
      %v8883 = vunpack.c.l.b16 %v8615
      %v8884 = vunpack.c.h.b16 %v8615
      %v8885 = vunpack.c.l.b16 %v8616
      %v8886 = vunpack.c.h.b16 %v8616
      %v8887 = vunpack.c.l.b16 %v8617
      %v8888 = vunpack.c.h.b16 %v8617
      %v8889 = vunpack.c.l.b16 %v8618
      %v8890 = vunpack.c.h.b16 %v8618
      %v8891 = vunpack.c.l.b16 %v8619
      %v8892 = vunpack.c.h.b16 %v8619
      %v8893 = vunpack.c.l.b16 %v8620
      %v8894 = vunpack.c.h.b16 %v8620
      %v8895 = vunpack.c.l.b16 %v8621
      %v8896 = vunpack.c.h.b16 %v8621
      %v8897 = vunpack.c.l.b16 %v8622
      %v8898 = vunpack.c.h.b16 %v8622
      %v8899 = vunpack.c.l.b16 %v8623
      %v8900 = vunpack.c.h.b16 %v8623
      %v8901 = vunpack.c.l.b16 %v8624
      %v8902 = vunpack.c.h.b16 %v8624
      %v8903 = vunpack.c.l.b16 %v8625
      %v8904 = vunpack.c.h.b16 %v8625
      %v8905 = vunpack.c.l.b16 %v8626
      %v8906 = vunpack.c.h.b16 %v8626
      %v8907 = vunpack.c.l.b16 %v8627
      %v8908 = vunpack.c.h.b16 %v8627
      %v8909 = vunpack.c.l.b16 %v8628
      %v8910 = vunpack.c.h.b16 %v8628
      %v8911 = vunpack.c.l.b16 %v8629
      %v8912 = vunpack.c.h.b16 %v8629
      %v8913 = vunpack.c.l.b16 %v8630
      %v8914 = vunpack.c.h.b16 %v8630
      %v8915 = vunpack.c.l.b16 %v8631
      %v8916 = vunpack.c.h.b16 %v8631
      %v8917 = vunpack.c.l.b16 %v8632
      %v8918 = vunpack.c.h.b16 %v8632
      %v8919 = vunpack.c.l.b16 %v8633
      %v8920 = vunpack.c.h.b16 %v8633
      %v8921 = vunpack.c.l.b16 %v8634
      %v8922 = vunpack.c.h.b16 %v8634
      %v8923 = vunpack.c.l.b16 %v8635
      %v8924 = vunpack.c.h.b16 %v8635
      %v8925 = vunpack.c.l.b16 %v8636
      %v8926 = vunpack.c.h.b16 %v8636
      %v8927 = vunpack.c.l.b16 %v8637
      %v8928 = vunpack.c.h.b16 %v8637
      %v8929 = vunpack.c.l.b16 %v8638
      %v8930 = vunpack.c.h.b16 %v8638
      %v8931 = vunpack.c.l.b16 %v8639
      %v8932 = vunpack.c.h.b16 %v8639
      %v8933 = vunpack.c.l.b16 %v8640
      %v8934 = vunpack.c.h.b16 %v8640
      %v8935 = vunpack.c.l.b16 %v8641
      %v8936 = vunpack.c.h.b16 %v8641
      %v8937 = vunpack.c.l.b16 %v8642
      %v8938 = vunpack.c.h.b16 %v8642
      %v8939 = vunpack.c.l.b16 %v8643
      %v8940 = vunpack.c.h.b16 %v8643
      %v8941 = vunpack.c.l.b16 %v8644
      %v8942 = vunpack.c.h.b16 %v8644
      %v8943 = vunpack.c.l.b16 %v8645
      %v8944 = vunpack.c.h.b16 %v8645
      %v8945 = vunpack.c.l.b16 %v8646
      %v8946 = vunpack.c.h.b16 %v8646
      %v8947 = vunpack.c.l.b16 %v8647
      %v8948 = vunpack.c.h.b16 %v8647
      %v8949 = vunpack.c.l.b16 %v8648
      %v8950 = vunpack.c.h.b16 %v8648
      %v8951 = vunpack.c.l.b16 %v8649
      %v8952 = vunpack.c.h.b16 %v8649
      %v8953 = vunpack.c.l.b16 %v8650
      %v8954 = vunpack.c.h.b16 %v8650
      %v8955 = vunpack.c.l.b16 %v8651
      %v8956 = vunpack.c.h.b16 %v8651
      %v8957 = vunpack.c.l.b16 %v8652
      %v8958 = vunpack.c.h.b16 %v8652
      %v8959 = vunpack.c.l.b16 %v8653
      %v8960 = vunpack.c.h.b16 %v8653
      %v8961 = vunpack.c.l.b16 %v8654
      %v8962 = vunpack.c.h.b16 %v8654
      %v8963 = vunpack.c.l.b16 %v8655
      %v8964 = vunpack.c.h.b16 %v8655
      %v8965 = vunpack.c.l.b16 %v8656
      %v8966 = vunpack.c.h.b16 %v8656
      %v8967 = vunpack.c.l.b16 %v8657
      %v8968 = vunpack.c.h.b16 %v8657
      %v8969 = vunpack.c.l.b16 %v8658
      %v8970 = vunpack.c.h.b16 %v8658
      %v8971 = vunpack.c.l.b16 %v8659
      %v8972 = vunpack.c.h.b16 %v8659
      %v8973 = vunpack.c.l.b16 %v8660
      %v8974 = vunpack.c.h.b16 %v8660
      %v8975 = vunpack.c.l.b16 %v8661
      %v8976 = vunpack.c.h.b16 %v8661
      %v8977 = vunpack.c.l.b16 %v8662
      %v8978 = vunpack.c.h.b16 %v8662
      %v8979 = vunpack.c.l.b16 %v8663
      %v8980 = vunpack.c.h.b16 %v8663
      %v8981 = vunpack.c.l.b16 %v8664
      %v8982 = vunpack.c.h.b16 %v8664
      %v8983 = vunpack.c.l.b16 %v8665
      %v8984 = vunpack.c.h.b16 %v8665
      %v8985 = vunpack.c.l.b16 %v8666
      %v8986 = vunpack.c.h.b16 %v8666
      %v8987 = vunpack.c.l.b16 %v8667
      %v8988 = vunpack.c.h.b16 %v8667
      %v8989 = vunpack.c.l.b16 %v8668
      %v8990 = vunpack.c.h.b16 %v8668
      %v8991 = vunpack.c.l.b16 %v8669
      %v8992 = vunpack.c.h.b16 %v8669
      %v8993 = vunpack.c.l.b16 %v8670
      %v8994 = vunpack.c.h.b16 %v8670
      %v8995 = vunpack.c.l.b16 %v8671
      %v8996 = vunpack.c.h.b16 %v8671
      %v8997 = vunpack.c.l.b16 %v8672
      %v8998 = vunpack.c.h.b16 %v8672
      %v8999 = vunpack.c.l.b16 %v8673
      %v9000 = vunpack.c.h.b16 %v8673
      %v9001 = vunpack.c.l.b16 %v8674
      %v9002 = vunpack.c.h.b16 %v8674
      %v9003 = vunpack.c.l.b16 %v8675
      %v9004 = vunpack.c.h.b16 %v8675
      %v9005 = vunpack.c.l.b16 %v8676
      %v9006 = vunpack.c.h.b16 %v8676
      %v9007 = vunpack.c.l.b16 %v8677
      %v9008 = vunpack.c.h.b16 %v8677
      %v9009 = vunpack.c.l.b16 %v8678
      %v9010 = vunpack.c.h.b16 %v8678
      %v9011 = vunpack.c.l.b16 %v8679
      %v9012 = vunpack.c.h.b16 %v8679
      %v9013 = vunpack.c.l.b16 %v8680
      %v9014 = vunpack.c.h.b16 %v8680
      %v9015 = vunpack.c.l.b16 %v8681
      %v9016 = vunpack.c.h.b16 %v8681
      %v9017 = vunpack.c.l.b16 %v8682
      %v9018 = vunpack.c.h.b16 %v8682
      %v9019 = vunpack.c.l.b16 %v8683
      %v9020 = vunpack.c.h.b16 %v8683
      %v9021 = vunpack.c.l.b16 %v8684
      %v9022 = vunpack.c.h.b16 %v8684
      %v9023 = vunpack.c.l.b16 %v8685
      %v9024 = vunpack.c.h.b16 %v8685
      %v9025 = vunpack.c.l.b16 %v8686
      %v9026 = vunpack.c.h.b16 %v8686
      %v9027 = vunpack.c.l.b16 %v8687
      %v9028 = vunpack.c.h.b16 %v8687
      %v9029 = vunpack.c.l.b16 %v8688
      %v9030 = vunpack.c.h.b16 %v8688
      %v9031 = vunpack.c.l.b16 %v8689
      %v9032 = vunpack.c.h.b16 %v8689
      %v9033 = vunpack.c.l.b16 %v8690
      %v9034 = vunpack.c.h.b16 %v8690
      %v9035 = vunpack.c.l.b16 %v8691
      %v9036 = vunpack.c.h.b16 %v8691
      %v9037 = vunpack.c.l.b16 %v8692
      %v9038 = vunpack.c.h.b16 %v8692
      %v9039 = vunpack.c.l.b16 %v8693
      %v9040 = vunpack.c.h.b16 %v8693
      %v9041 = vunpack.c.l.b16 %v8694
      %v9042 = vunpack.c.h.b16 %v8694
      %v9043 = vunpack.c.l.b16 %v8695
      %v9044 = vunpack.c.h.b16 %v8695
      %v9045 = vunpack.c.l.b16 %v8696
      %v9046 = vunpack.c.h.b16 %v8696
      %v9047 = vunpack.c.l.b16 %v8697
      %v9048 = vunpack.c.h.b16 %v8697
      %v9049 = vunpack.c.l.b16 %v8698
      %v9050 = vunpack.c.h.b16 %v8698
      %v9051 = vunpack.c.l.b16 %v8699
      %v9052 = vunpack.c.h.b16 %v8699
      %v9053 = vunpack.c.l.b16 %v8700
      %v9054 = vunpack.c.h.b16 %v8700
      %v9055 = vunpack.c.l.b16 %v8701
      %v9056 = vunpack.c.h.b16 %v8701
      %v9057 = vunpack.c.l.b16 %v8702
      %v9058 = vunpack.c.h.b16 %v8702
      %v9059 = vunpack.c.l.b16 %v8703
      %v9060 = vunpack.c.h.b16 %v8703
      %v9061 = vunpack.c.l.b16 %v8704
      %v9062 = vunpack.c.h.b16 %v8704
      %v9063 = vunpack.c.l.b16 %v8705
      %v9064 = vunpack.c.h.b16 %v8705
      %v9065 = vunpack.c.l.b16 %v8706
      %v9066 = vunpack.c.h.b16 %v8706
      %v9067 = vunpack.c.l.b16 %v8707
      %v9068 = vunpack.c.h.b16 %v8707
      %v9069 = vunpack.c.l.b16 %v8708
      %v9070 = vunpack.c.h.b16 %v8708
      %v9071 = vunpack.c.l.b16 %v8709
      %v9072 = vunpack.c.h.b16 %v8709
      %v9073 = vunpack.c.l.b16 %v8710
      %v9074 = vunpack.c.h.b16 %v8710
      %v9075 = vunpack.c.l.b16 %v8711
      %v9076 = vunpack.c.h.b16 %v8711
      %v9077 = vunpack.c.l.b16 %v8712
      %v9078 = vunpack.c.h.b16 %v8712
      %v9079 = vunpack.c.l.b16 %v8713
      %v9080 = vunpack.c.h.b16 %v8713
      %v9081 = vunpack.c.l.b16 %v8714
      %v9082 = vunpack.c.h.b16 %v8714
      %v9083 = vunpack.c.l.b16 %v8715
      %v9084 = vunpack.c.h.b16 %v8715
      %v9085 = vunpack.c.l.b16 %v8716
      %v9086 = vunpack.c.h.b16 %v8716
      %v9087 = vunpack.c.l.b16 %v8717
      %v9088 = vunpack.c.h.b16 %v8717
      %v9089 = vunpack.c.l.b16 %v8718
      %v9090 = vunpack.c.h.b16 %v8718
      %v9091 = vunpack.c.l.b16 %v8719
      %v9092 = vunpack.c.h.b16 %v8719
      %v9093 = vunpack.c.l.b16 %v8720
      %v9094 = vunpack.c.h.b16 %v8720
      %v9095 = vunpack.c.l.b16 %v8721
      %v9096 = vunpack.c.h.b16 %v8721
      %v9097 = vunpack.c.l.b16 %v8722
      %v9098 = vunpack.c.h.b16 %v8722
      %v9099 = vunpack.c.l.b16 %v8723
      %v9100 = vunpack.c.h.b16 %v8723
      %v9101 = vunpack.c.l.b16 %v8724
      %v9102 = vunpack.c.h.b16 %v8724
      %v9103 = vunpack.c.l.b16 %v8725
      %v9104 = vunpack.c.h.b16 %v8725
      %v9105 = vunpack.c.l.b16 %v8726
      %v9106 = vunpack.c.h.b16 %v8726
      %v9107 = vunpack.c.l.b16 %v8727
      %v9108 = vunpack.c.h.b16 %v8727
      %v9109 = vunpack.c.l.b16 %v8728
      %v9110 = vunpack.c.h.b16 %v8728
      %v9111 = vunpack.c.l.b16 %v8729
      %v9112 = vunpack.c.h.b16 %v8729
      %v9113 = vunpack.c.l.b16 %v8730
      %v9114 = vunpack.c.h.b16 %v8730
      %v9115 = vunpack.c.l.b16 %v8731
      %v9116 = vunpack.c.h.b16 %v8731
      %v9117 = vunpack.c.l.b16 %v8732
      %v9118 = vunpack.c.h.b16 %v8732
      %v9119 = vunpack.c.l.b16 %v8733
      %v9120 = vunpack.c.h.b16 %v8733
      %v9121 = vunpack.c.l.b16 %v8734
      %v9122 = vunpack.c.h.b16 %v8734
      %v9123 = vunpack.c.l.b16 %v8735
      %v9124 = vunpack.c.h.b16 %v8735
      %v9125 = vunpack.c.l.b16 %v8736
      %v9126 = vunpack.c.h.b16 %v8736
      %v9127 = vunpack.c.l.b16 %v8737
      %v9128 = vunpack.c.h.b16 %v8737
      %v9129 = vunpack.c.l.b16 %v8738
      %v9130 = vunpack.c.h.b16 %v8738
      %v9131 = vunpack.c.l.b16 %v8739
      %v9132 = vunpack.c.h.b16 %v8739
      %v9133 = vunpack.c.l.b16 %v8740
      %v9134 = vunpack.c.h.b16 %v8740
      %v9135 = vunpack.c.l.b16 %v8741
      %v9136 = vunpack.c.h.b16 %v8741
      %v9137 = vunpack.c.l.b16 %v8742
      %v9138 = vunpack.c.h.b16 %v8742
      %v9139 = vpack.c.b16 %v8887, %v8875
      %v9140 = vpack.c.b16 %v8888, %v8876
      %v9141 = vpack.c.b16 %v8889, %v8877
      %v9142 = vpack.c.b16 %v8890, %v8878
      %v9143 = vpack.c.b16 %v8891, %v8879
      %v9144 = vpack.c.b16 %v8892, %v8880
      %v9145 = vpack.c.b16 %v8893, %v8881
      %v9146 = vpack.c.b16 %v8894, %v8882
      %v9147 = vpack.c.b16 %v8895, %v8883
      %v9148 = vpack.c.b16 %v8896, %v8884
      %v9149 = vpack.c.b16 %v8897, %v8885
      %v9150 = vpack.c.b16 %v8898, %v8886
      %v9151 = vpack.c.b16 %v8911, %v8899
      %v9152 = vpack.c.b16 %v8912, %v8900
      %v9153 = vpack.c.b16 %v8913, %v8901
      %v9154 = vpack.c.b16 %v8914, %v8902
      %v9155 = vpack.c.b16 %v8915, %v8903
      %v9156 = vpack.c.b16 %v8916, %v8904
      %v9157 = vpack.c.b16 %v8917, %v8905
      %v9158 = vpack.c.b16 %v8918, %v8906
      %v9159 = vpack.c.b16 %v8919, %v8907
      %v9160 = vpack.c.b16 %v8920, %v8908
      %v9161 = vpack.c.b16 %v8921, %v8909
      %v9162 = vpack.c.b16 %v8922, %v8910
      %v9163 = vpack.c.b16 %v8935, %v8923
      %v9164 = vpack.c.b16 %v8936, %v8924
      %v9165 = vpack.c.b16 %v8937, %v8925
      %v9166 = vpack.c.b16 %v8938, %v8926
      %v9167 = vpack.c.b16 %v8939, %v8927
      %v9168 = vpack.c.b16 %v8940, %v8928
      %v9169 = vpack.c.b16 %v8941, %v8929
      %v9170 = vpack.c.b16 %v8942, %v8930
      %v9171 = vpack.c.b16 %v8943, %v8931
      %v9172 = vpack.c.b16 %v8944, %v8932
      %v9173 = vpack.c.b16 %v8945, %v8933
      %v9174 = vpack.c.b16 %v8946, %v8934
      %v9175 = vpack.c.b16 %v8959, %v8947
      %v9176 = vpack.c.b16 %v8960, %v8948
      %v9177 = vpack.c.b16 %v8961, %v8949
      %v9178 = vpack.c.b16 %v8962, %v8950
      %v9179 = vpack.c.b16 %v8963, %v8951
      %v9180 = vpack.c.b16 %v8964, %v8952
      %v9181 = vpack.c.b16 %v8965, %v8953
      %v9182 = vpack.c.b16 %v8966, %v8954
      %v9183 = vpack.c.b16 %v8967, %v8955
      %v9184 = vpack.c.b16 %v8968, %v8956
      %v9185 = vpack.c.b16 %v8969, %v8957
      %v9186 = vpack.c.b16 %v8970, %v8958
      %v9187 = vpack.c.b16 %v8983, %v8971
      %v9188 = vpack.c.b16 %v8984, %v8972
      %v9189 = vpack.c.b16 %v8985, %v8973
      %v9190 = vpack.c.b16 %v8986, %v8974
      %v9191 = vpack.c.b16 %v8987, %v8975
      %v9192 = vpack.c.b16 %v8988, %v8976
      %v9193 = vpack.c.b16 %v8989, %v8977
      %v9194 = vpack.c.b16 %v8990, %v8978
      %v9195 = vpack.c.b16 %v8991, %v8979
      %v9196 = vpack.c.b16 %v8992, %v8980
      %v9197 = vpack.c.b16 %v8993, %v8981
      %v9198 = vpack.c.b16 %v8994, %v8982
      %v9199 = vpack.c.b16 %v9007, %v8995
      %v9200 = vpack.c.b16 %v9008, %v8996
      %v9201 = vpack.c.b16 %v9009, %v8997
      %v9202 = vpack.c.b16 %v9010, %v8998
      %v9203 = vpack.c.b16 %v9011, %v8999
      %v9204 = vpack.c.b16 %v9012, %v9000
      %v9205 = vpack.c.b16 %v9013, %v9001
      %v9206 = vpack.c.b16 %v9014, %v9002
      %v9207 = vpack.c.b16 %v9015, %v9003
      %v9208 = vpack.c.b16 %v9016, %v9004
      %v9209 = vpack.c.b16 %v9017, %v9005
      %v9210 = vpack.c.b16 %v9018, %v9006
      %v9211 = vpack.c.b16 %v9031, %v9019
      %v9212 = vpack.c.b16 %v9032, %v9020
      %v9213 = vpack.c.b16 %v9033, %v9021
      %v9214 = vpack.c.b16 %v9034, %v9022
      %v9215 = vpack.c.b16 %v9035, %v9023
      %v9216 = vpack.c.b16 %v9036, %v9024
      %v9217 = vpack.c.b16 %v9037, %v9025
      %v9218 = vpack.c.b16 %v9038, %v9026
      %v9219 = vpack.c.b16 %v9039, %v9027
      %v9220 = vpack.c.b16 %v9040, %v9028
      %v9221 = vpack.c.b16 %v9041, %v9029
      %v9222 = vpack.c.b16 %v9042, %v9030
      %v9223 = vpack.c.b16 %v9055, %v9043
      %v9224 = vpack.c.b16 %v9056, %v9044
      %v9225 = vpack.c.b16 %v9057, %v9045
      %v9226 = vpack.c.b16 %v9058, %v9046
      %v9227 = vpack.c.b16 %v9059, %v9047
      %v9228 = vpack.c.b16 %v9060, %v9048
      %v9229 = vpack.c.b16 %v9061, %v9049
      %v9230 = vpack.c.b16 %v9062, %v9050
      %v9231 = vpack.c.b16 %v9063, %v9051
      %v9232 = vpack.c.b16 %v9064, %v9052
      %v9233 = vpack.c.b16 %v9065, %v9053
      %v9234 = vpack.c.b16 %v9066, %v9054
      %v9235 = vpack.c.b16 %v9079, %v9067
      %v9236 = vpack.c.b16 %v9080, %v9068
      %v9237 = vpack.c.b16 %v9081, %v9069
      %v9238 = vpack.c.b16 %v9082, %v9070
      %v9239 = vpack.c.b16 %v9083, %v9071
      %v9240 = vpack.c.b16 %v9084, %v9072
      %v9241 = vpack.c.b16 %v9085, %v9073
      %v9242 = vpack.c.b16 %v9086, %v9074
      %v9243 = vpack.c.b16 %v9087, %v9075
      %v9244 = vpack.c.b16 %v9088, %v9076
      %v9245 = vpack.c.b16 %v9089, %v9077
      %v9246 = vpack.c.b16 %v9090, %v9078
      %v9247 = vpack.c.b16 %v9103, %v9091
      %v9248 = vpack.c.b16 %v9104, %v9092
      %v9249 = vpack.c.b16 %v9105, %v9093
      %v9250 = vpack.c.b16 %v9106, %v9094
      %v9251 = vpack.c.b16 %v9107, %v9095
      %v9252 = vpack.c.b16 %v9108, %v9096
      %v9253 = vpack.c.b16 %v9109, %v9097
      %v9254 = vpack.c.b16 %v9110, %v9098
      %v9255 = vpack.c.b16 %v9111, %v9099
      %v9256 = vpack.c.b16 %v9112, %v9100
      %v9257 = vpack.c.b16 %v9113, %v9101
      %v9258 = vpack.c.b16 %v9114, %v9102
      %v9259 = vpack.c.b16 %v9127, %v9115
      %v9260 = vpack.c.b16 %v9128, %v9116
      %v9261 = vpack.c.b16 %v9129, %v9117
      %v9262 = vpack.c.b16 %v9130, %v9118
      %v9263 = vpack.c.b16 %v9131, %v9119
      %v9264 = vpack.c.b16 %v9132, %v9120
      %v9265 = vpack.c.b16 %v9133, %v9121
      %v9266 = vpack.c.b16 %v9134, %v9122
      %v9267 = vpack.c.b16 %v9135, %v9123
      %v9268 = vpack.c.b16 %v9136, %v9124
      %v9269 = vpack.c.b16 %v9137, %v9125
      %v9270 = vpack.c.b16 %v9138, %v9126
      %vm9392 = vcmask 261120
      %v9394 = vsel %vm9392, %v9150, 0
      %v9397 = vsel %vm9392, %v9162, 0
      %v9400 = vsel %vm9392, %v9174, 0
      %v9403 = vsel %vm9392, %v9186, 0
      %v9406 = vsel %vm9392, %v9198, 0
      %v9409 = vsel %vm9392, %v9210, 0
      %v9412 = vsel %vm9392, %v9222, 0
      %v9415 = vsel %vm9392, %v9234, 0
      %v9418 = vsel %vm9392, %v9246, 0
      %v9421 = vsel %vm9392, %v9258, 0
      %v9424 = vsel %vm9392, %v9270, 0
      %9426 = vmatprep.subr.bf16.mxu0 0
      %9427 = vmatpush1.bf16.msra.mxu0 %v7589
      %9428 = vmatprep.subr.bf16.mxu0 0
      %9429 = vmatpush1.bf16.msra.mxu0 %v7586
      %9430 = vmatprep.subr.bf16.mxu0 0
      %9431 = vmatpush1.bf16.msra.mxu0 %v7583
      %9432 = vmatprep.subr.bf16.mxu0 0
      %9433 = vmatpush1.bf16.msra.mxu0 %v7580
      %9434 = vmatprep.subr.bf16.mxu0 0
      %9435 = vmatpush1.bf16.msra.mxu0 %v7577
      %9436 = vmatprep.subr.bf16.mxu0 0
      %9437 = vmatpush1.bf16.msra.mxu0 %v7574
      %9438 = vmatprep.subr.bf16.mxu0 0
      %9439 = vmatpush1.bf16.msra.mxu0 %v7571
      %9440 = vmatprep.subr.bf16.mxu0 0
      %9441 = vmatpush1.bf16.msra.mxu0 %v7568
      %9442 = vmatprep.subr.bf16.mxu0 0
      %9443 = vmatpush2.bf16.msra.mxu0 %v7613
      %9444 = vmatprep.subr.bf16.mxu0 0
      %9445 = vmatpush2.bf16.msra.mxu0 %v7610
      %9446 = vmatprep.subr.bf16.mxu0 0
      %9447 = vmatpush2.bf16.msra.mxu0 %v7607
      %9448 = vmatprep.subr.bf16.mxu0 0
      %9449 = vmatpush2.bf16.msra.mxu0 %v7604
      %9450 = vmatprep.subr.bf16.mxu0 0
      %9451 = vmatpush2.bf16.msra.mxu0 %v7601
      %9452 = vmatprep.subr.bf16.mxu0 0
      %9453 = vmatpush2.bf16.msra.mxu0 %v7598
      %9454 = vmatprep.subr.bf16.mxu0 0
      %9455 = vmatpush2.bf16.msra.mxu0 %v7595
      %9456 = vmatprep.subr.bf16.mxu0 0
      %9457 = vmatpush2.bf16.msra.mxu0 %v7592
      %9458 = vmatprep.mubr.bf16.mxu0 %v9140
      %9459 = vmatmul.mubr.bf16.gmra.mxu0 %v9139
      %v9460 = vpop.f32.mrf.mxu0
      %v9461 = vadd.f32 0.0, %v9460
      %v9462 = vpop.f32.mrf.mxu0
      %v9463 = vpop.f32.mrf.mxu0
      %v9464 = vadd.f32 0.0, %v9463
      %v9465 = vpop.f32.mrf.mxu0
      %9466 = vmatprep.mubr.bf16.mxu0 %v9152
      %9467 = vmatmul.mubr.bf16.gmra.mxu0 %v9151
      %v9468 = vpop.f32.mrf.mxu0
      %v9469 = vadd.f32 0.0, %v9468
      %v9470 = vpop.f32.mrf.mxu0
      %v9471 = vpop.f32.mrf.mxu0
      %v9472 = vadd.f32 0.0, %v9471
      %v9473 = vpop.f32.mrf.mxu0
      %9474 = vmatprep.mubr.bf16.mxu0 %v9164
      %9475 = vmatmul.mubr.bf16.gmra.mxu0 %v9163
      %v9476 = vpop.f32.mrf.mxu0
      %v9477 = vadd.f32 0.0, %v9476
      %v9478 = vpop.f32.mrf.mxu0
      %v9479 = vpop.f32.mrf.mxu0
      %v9480 = vadd.f32 0.0, %v9479
      %v9481 = vpop.f32.mrf.mxu0
      %9482 = vmatprep.mubr.bf16.mxu0 %v9176
      %9483 = vmatmul.mubr.bf16.gmra.mxu0 %v9175
      %v9484 = vpop.f32.mrf.mxu0
      %v9485 = vadd.f32 0.0, %v9484
      %v9486 = vpop.f32.mrf.mxu0
      %v9487 = vpop.f32.mrf.mxu0
      %v9488 = vadd.f32 0.0, %v9487
      %v9489 = vpop.f32.mrf.mxu0
      %9490 = vmatprep.mubr.bf16.mxu0 %v9188
      %9491 = vmatmul.mubr.bf16.gmra.mxu0 %v9187
      %v9492 = vpop.f32.mrf.mxu0
      %v9493 = vadd.f32 0.0, %v9492
      %v9494 = vpop.f32.mrf.mxu0
      %v9495 = vpop.f32.mrf.mxu0
      %v9496 = vadd.f32 0.0, %v9495
      %v9497 = vpop.f32.mrf.mxu0
      %9498 = vmatprep.mubr.bf16.mxu0 %v9200
      %9499 = vmatmul.mubr.bf16.gmra.mxu0 %v9199
      %v9500 = vpop.f32.mrf.mxu0
      %v9501 = vadd.f32 0.0, %v9500
      %v9502 = vpop.f32.mrf.mxu0
      %v9503 = vpop.f32.mrf.mxu0
      %v9504 = vadd.f32 0.0, %v9503
      %v9505 = vpop.f32.mrf.mxu0
      %9506 = vmatprep.mubr.bf16.mxu0 %v9212
      %9507 = vmatmul.mubr.bf16.gmra.mxu0 %v9211
      %v9508 = vpop.f32.mrf.mxu0
      %v9509 = vadd.f32 0.0, %v9508
      %v9510 = vpop.f32.mrf.mxu0
      %v9511 = vpop.f32.mrf.mxu0
      %v9512 = vadd.f32 0.0, %v9511
      %v9513 = vpop.f32.mrf.mxu0
      %9514 = vmatprep.mubr.bf16.mxu0 %v9224
      %9515 = vmatmul.mubr.bf16.gmra.mxu0 %v9223
      %v9516 = vpop.f32.mrf.mxu0
      %v9517 = vadd.f32 0.0, %v9516
      %v9518 = vpop.f32.mrf.mxu0
      %v9519 = vpop.f32.mrf.mxu0
      %v9520 = vadd.f32 0.0, %v9519
      %v9521 = vpop.f32.mrf.mxu0
      %9522 = vmatprep.mubr.bf16.mxu0 %v9236
      %9523 = vmatmul.mubr.bf16.gmra.mxu0 %v9235
      %v9524 = vpop.f32.mrf.mxu0
      %v9525 = vadd.f32 0.0, %v9524
      %v9526 = vpop.f32.mrf.mxu0
      %v9527 = vpop.f32.mrf.mxu0
      %v9528 = vadd.f32 0.0, %v9527
      %v9529 = vpop.f32.mrf.mxu0
      %9530 = vmatprep.mubr.bf16.mxu0 %v9248
      %9531 = vmatmul.mubr.bf16.gmra.mxu0 %v9247
      %v9532 = vpop.f32.mrf.mxu0
      %v9533 = vadd.f32 0.0, %v9532
      %v9534 = vpop.f32.mrf.mxu0
      %v9535 = vpop.f32.mrf.mxu0
      %v9536 = vadd.f32 0.0, %v9535
      %v9537 = vpop.f32.mrf.mxu0
      %9538 = vmatprep.mubr.bf16.mxu0 %v9260
      %9539 = vmatmul.mubr.bf16.gmra.mxu0 %v9259
      %v9540 = vpop.f32.mrf.mxu0
      %v9541 = vadd.f32 0.0, %v9540
      %v9542 = vpop.f32.mrf.mxu0
      %v9543 = vpop.f32.mrf.mxu0
      %v9544 = vadd.f32 0.0, %v9543
      %v9545 = vpop.f32.mrf.mxu0
      %9546 = vdwg.mxu0
      %9547 = vmatprep.subr.bf16.mxu0 0
      %9548 = vmatpush1.bf16.msra.mxu0 %v7871
      %9549 = vmatprep.subr.bf16.mxu0 0
      %9550 = vmatpush1.bf16.msra.mxu0 %v7868
      %9551 = vmatprep.subr.bf16.mxu0 0
      %9552 = vmatpush1.bf16.msra.mxu0 %v7865
      %9553 = vmatprep.subr.bf16.mxu0 0
      %9554 = vmatpush1.bf16.msra.mxu0 %v7862
      %9555 = vmatprep.subr.bf16.mxu0 0
      %9556 = vmatpush1.bf16.msra.mxu0 %v7859
      %9557 = vmatprep.subr.bf16.mxu0 0
      %9558 = vmatpush1.bf16.msra.mxu0 %v7856
      %9559 = vmatprep.subr.bf16.mxu0 0
      %9560 = vmatpush1.bf16.msra.mxu0 %v7619
      %9561 = vmatprep.subr.bf16.mxu0 0
      %9562 = vmatpush1.bf16.msra.mxu0 %v7616
      %9563 = vmatprep.subr.bf16.mxu0 0
      %9564 = vmatpush2.bf16.msra.mxu0 %v7895
      %9565 = vmatprep.subr.bf16.mxu0 0
      %9566 = vmatpush2.bf16.msra.mxu0 %v7892
      %9567 = vmatprep.subr.bf16.mxu0 0
      %9568 = vmatpush2.bf16.msra.mxu0 %v7889
      %9569 = vmatprep.subr.bf16.mxu0 0
      %9570 = vmatpush2.bf16.msra.mxu0 %v7886
      %9571 = vmatprep.subr.bf16.mxu0 0
      %9572 = vmatpush2.bf16.msra.mxu0 %v7883
      %9573 = vmatprep.subr.bf16.mxu0 0
      %9574 = vmatpush2.bf16.msra.mxu0 %v7880
      %9575 = vmatprep.subr.bf16.mxu0 0
      %9576 = vmatpush2.bf16.msra.mxu0 %v7877
      %9577 = vmatprep.subr.bf16.mxu0 0
      %9578 = vmatpush2.bf16.msra.mxu0 %v7874
      %9579 = vmatprep.mubr.bf16.mxu0 %v9142
      %9580 = vmatmul.mubr.bf16.gmra.mxu0 %v9141
      %v9581 = vpop.f32.mrf.mxu0
      %v9582 = vadd.f32 %v9461, %v9581
      %v9583 = vpop.f32.mrf.mxu0
      %v9584 = vpop.f32.mrf.mxu0
      %v9585 = vadd.f32 %v9464, %v9584
      %v9586 = vpop.f32.mrf.mxu0
      %9587 = vmatprep.mubr.bf16.mxu0 %v9154
      %9588 = vmatmul.mubr.bf16.gmra.mxu0 %v9153
      %v9589 = vpop.f32.mrf.mxu0
      %v9590 = vadd.f32 %v9469, %v9589
      %v9591 = vpop.f32.mrf.mxu0
      %v9592 = vpop.f32.mrf.mxu0
      %v9593 = vadd.f32 %v9472, %v9592
      %v9594 = vpop.f32.mrf.mxu0
      %9595 = vmatprep.mubr.bf16.mxu0 %v9166
      %9596 = vmatmul.mubr.bf16.gmra.mxu0 %v9165
      %v9597 = vpop.f32.mrf.mxu0
      %v9598 = vadd.f32 %v9477, %v9597
      %v9599 = vpop.f32.mrf.mxu0
      %v9600 = vpop.f32.mrf.mxu0
      %v9601 = vadd.f32 %v9480, %v9600
      %v9602 = vpop.f32.mrf.mxu0
      %9603 = vmatprep.mubr.bf16.mxu0 %v9178
      %9604 = vmatmul.mubr.bf16.gmra.mxu0 %v9177
      %v9605 = vpop.f32.mrf.mxu0
      %v9606 = vadd.f32 %v9485, %v9605
      %v9607 = vpop.f32.mrf.mxu0
      %v9608 = vpop.f32.mrf.mxu0
      %v9609 = vadd.f32 %v9488, %v9608
      %v9610 = vpop.f32.mrf.mxu0
      %9611 = vmatprep.mubr.bf16.mxu0 %v9190
      %9612 = vmatmul.mubr.bf16.gmra.mxu0 %v9189
      %v9613 = vpop.f32.mrf.mxu0
      %v9614 = vadd.f32 %v9493, %v9613
      %v9615 = vpop.f32.mrf.mxu0
      %v9616 = vpop.f32.mrf.mxu0
      %v9617 = vadd.f32 %v9496, %v9616
      %v9618 = vpop.f32.mrf.mxu0
      %9619 = vmatprep.mubr.bf16.mxu0 %v9202
      %9620 = vmatmul.mubr.bf16.gmra.mxu0 %v9201
      %v9621 = vpop.f32.mrf.mxu0
      %v9622 = vadd.f32 %v9501, %v9621
      %v9623 = vpop.f32.mrf.mxu0
      %v9624 = vpop.f32.mrf.mxu0
      %v9625 = vadd.f32 %v9504, %v9624
      %v9626 = vpop.f32.mrf.mxu0
      %9627 = vmatprep.mubr.bf16.mxu0 %v9214
      %9628 = vmatmul.mubr.bf16.gmra.mxu0 %v9213
      %v9629 = vpop.f32.mrf.mxu0
      %v9630 = vadd.f32 %v9509, %v9629
      %v9631 = vpop.f32.mrf.mxu0
      %v9632 = vpop.f32.mrf.mxu0
      %v9633 = vadd.f32 %v9512, %v9632
      %v9634 = vpop.f32.mrf.mxu0
      %9635 = vmatprep.mubr.bf16.mxu0 %v9226
      %9636 = vmatmul.mubr.bf16.gmra.mxu0 %v9225
      %v9637 = vpop.f32.mrf.mxu0
      %v9638 = vadd.f32 %v9517, %v9637
      %v9639 = vpop.f32.mrf.mxu0
      %v9640 = vpop.f32.mrf.mxu0
      %v9641 = vadd.f32 %v9520, %v9640
      %v9642 = vpop.f32.mrf.mxu0
      %9643 = vmatprep.mubr.bf16.mxu0 %v9238
      %9644 = vmatmul.mubr.bf16.gmra.mxu0 %v9237
      %v9645 = vpop.f32.mrf.mxu0
      %v9646 = vadd.f32 %v9525, %v9645
      %v9647 = vpop.f32.mrf.mxu0
      %v9648 = vpop.f32.mrf.mxu0
      %v9649 = vadd.f32 %v9528, %v9648
      %v9650 = vpop.f32.mrf.mxu0
      %9651 = vmatprep.mubr.bf16.mxu0 %v9250
      %9652 = vmatmul.mubr.bf16.gmra.mxu0 %v9249
      %v9653 = vpop.f32.mrf.mxu0
      %v9654 = vadd.f32 %v9533, %v9653
      %v9655 = vpop.f32.mrf.mxu0
      %v9656 = vpop.f32.mrf.mxu0
      %v9657 = vadd.f32 %v9536, %v9656
      %v9658 = vpop.f32.mrf.mxu0
      %9659 = vmatprep.mubr.bf16.mxu0 %v9262
      %9660 = vmatmul.mubr.bf16.gmra.mxu0 %v9261
      %v9661 = vpop.f32.mrf.mxu0
      %v9662 = vadd.f32 %v9541, %v9661
      %v9663 = vpop.f32.mrf.mxu0
      %v9664 = vpop.f32.mrf.mxu0
      %v9665 = vadd.f32 %v9544, %v9664
      %v9666 = vpop.f32.mrf.mxu0
      %9667 = vdwg.mxu0
      %9668 = vmatprep.subr.bf16.mxu0 0
      %9669 = vmatpush1.bf16.msra.mxu0 %v8153
      %9670 = vmatprep.subr.bf16.mxu0 0
      %9671 = vmatpush1.bf16.msra.mxu0 %v8150
      %9672 = vmatprep.subr.bf16.mxu0 0
      %9673 = vmatpush1.bf16.msra.mxu0 %v8147
      %9674 = vmatprep.subr.bf16.mxu0 0
      %9675 = vmatpush1.bf16.msra.mxu0 %v8144
      %9676 = vmatprep.subr.bf16.mxu0 0
      %9677 = vmatpush1.bf16.msra.mxu0 %v7907
      %9678 = vmatprep.subr.bf16.mxu0 0
      %9679 = vmatpush1.bf16.msra.mxu0 %v7904
      %9680 = vmatprep.subr.bf16.mxu0 0
      %9681 = vmatpush1.bf16.msra.mxu0 %v7901
      %9682 = vmatprep.subr.bf16.mxu0 0
      %9683 = vmatpush1.bf16.msra.mxu0 %v7898
      %9684 = vmatprep.subr.bf16.mxu0 0
      %9685 = vmatpush2.bf16.msra.mxu0 %v8177
      %9686 = vmatprep.subr.bf16.mxu0 0
      %9687 = vmatpush2.bf16.msra.mxu0 %v8174
      %9688 = vmatprep.subr.bf16.mxu0 0
      %9689 = vmatpush2.bf16.msra.mxu0 %v8171
      %9690 = vmatprep.subr.bf16.mxu0 0
      %9691 = vmatpush2.bf16.msra.mxu0 %v8168
      %9692 = vmatprep.subr.bf16.mxu0 0
      %9693 = vmatpush2.bf16.msra.mxu0 %v8165
      %9694 = vmatprep.subr.bf16.mxu0 0
      %9695 = vmatpush2.bf16.msra.mxu0 %v8162
      %9696 = vmatprep.subr.bf16.mxu0 0
      %9697 = vmatpush2.bf16.msra.mxu0 %v8159
      %9698 = vmatprep.subr.bf16.mxu0 0
      %9699 = vmatpush2.bf16.msra.mxu0 %v8156
      %9700 = vmatprep.mubr.bf16.mxu0 %v9144
      %9701 = vmatmul.mubr.bf16.gmra.mxu0 %v9143
      %v9702 = vpop.f32.mrf.mxu0
      %v9703 = vadd.f32 %v9582, %v9702
      %v9704 = vpop.f32.mrf.mxu0
      %v9705 = vpop.f32.mrf.mxu0
      %v9706 = vadd.f32 %v9585, %v9705
      %v9707 = vpop.f32.mrf.mxu0
      %9708 = vmatprep.mubr.bf16.mxu0 %v9156
      %9709 = vmatmul.mubr.bf16.gmra.mxu0 %v9155
      %v9710 = vpop.f32.mrf.mxu0
      %v9711 = vadd.f32 %v9590, %v9710
      %v9712 = vpop.f32.mrf.mxu0
      %v9713 = vpop.f32.mrf.mxu0
      %v9714 = vadd.f32 %v9593, %v9713
      %v9715 = vpop.f32.mrf.mxu0
      %9716 = vmatprep.mubr.bf16.mxu0 %v9168
      %9717 = vmatmul.mubr.bf16.gmra.mxu0 %v9167
      %v9718 = vpop.f32.mrf.mxu0
      %v9719 = vadd.f32 %v9598, %v9718
      %v9720 = vpop.f32.mrf.mxu0
      %v9721 = vpop.f32.mrf.mxu0
      %v9722 = vadd.f32 %v9601, %v9721
      %v9723 = vpop.f32.mrf.mxu0
      %9724 = vmatprep.mubr.bf16.mxu0 %v9180
      %9725 = vmatmul.mubr.bf16.gmra.mxu0 %v9179
      %v9726 = vpop.f32.mrf.mxu0
      %v9727 = vadd.f32 %v9606, %v9726
      %v9728 = vpop.f32.mrf.mxu0
      %v9729 = vpop.f32.mrf.mxu0
      %v9730 = vadd.f32 %v9609, %v9729
      %v9731 = vpop.f32.mrf.mxu0
      %9732 = vmatprep.mubr.bf16.mxu0 %v9192
      %9733 = vmatmul.mubr.bf16.gmra.mxu0 %v9191
      %v9734 = vpop.f32.mrf.mxu0
      %v9735 = vadd.f32 %v9614, %v9734
      %v9736 = vpop.f32.mrf.mxu0
      %v9737 = vpop.f32.mrf.mxu0
      %v9738 = vadd.f32 %v9617, %v9737
      %v9739 = vpop.f32.mrf.mxu0
      %9740 = vmatprep.mubr.bf16.mxu0 %v9204
      %9741 = vmatmul.mubr.bf16.gmra.mxu0 %v9203
      %v9742 = vpop.f32.mrf.mxu0
      %v9743 = vadd.f32 %v9622, %v9742
      %v9744 = vpop.f32.mrf.mxu0
      %v9745 = vpop.f32.mrf.mxu0
      %v9746 = vadd.f32 %v9625, %v9745
      %v9747 = vpop.f32.mrf.mxu0
      %9748 = vmatprep.mubr.bf16.mxu0 %v9216
      %9749 = vmatmul.mubr.bf16.gmra.mxu0 %v9215
      %v9750 = vpop.f32.mrf.mxu0
      %v9751 = vadd.f32 %v9630, %v9750
      %v9752 = vpop.f32.mrf.mxu0
      %v9753 = vpop.f32.mrf.mxu0
      %v9754 = vadd.f32 %v9633, %v9753
      %v9755 = vpop.f32.mrf.mxu0
      %9756 = vmatprep.mubr.bf16.mxu0 %v9228
      %9757 = vmatmul.mubr.bf16.gmra.mxu0 %v9227
      %v9758 = vpop.f32.mrf.mxu0
      %v9759 = vadd.f32 %v9638, %v9758
      %v9760 = vpop.f32.mrf.mxu0
      %v9761 = vpop.f32.mrf.mxu0
      %v9762 = vadd.f32 %v9641, %v9761
      %v9763 = vpop.f32.mrf.mxu0
      %9764 = vmatprep.mubr.bf16.mxu0 %v9240
      %9765 = vmatmul.mubr.bf16.gmra.mxu0 %v9239
      %v9766 = vpop.f32.mrf.mxu0
      %v9767 = vadd.f32 %v9646, %v9766
      %v9768 = vpop.f32.mrf.mxu0
      %v9769 = vpop.f32.mrf.mxu0
      %v9770 = vadd.f32 %v9649, %v9769
      %v9771 = vpop.f32.mrf.mxu0
      %9772 = vmatprep.mubr.bf16.mxu0 %v9252
      %9773 = vmatmul.mubr.bf16.gmra.mxu0 %v9251
      %v9774 = vpop.f32.mrf.mxu0
      %v9775 = vadd.f32 %v9654, %v9774
      %v9776 = vpop.f32.mrf.mxu0
      %v9777 = vpop.f32.mrf.mxu0
      %v9778 = vadd.f32 %v9657, %v9777
      %v9779 = vpop.f32.mrf.mxu0
      %9780 = vmatprep.mubr.bf16.mxu0 %v9264
      %9781 = vmatmul.mubr.bf16.gmra.mxu0 %v9263
      %v9782 = vpop.f32.mrf.mxu0
      %v9783 = vadd.f32 %v9662, %v9782
      %v9784 = vpop.f32.mrf.mxu0
      %v9785 = vpop.f32.mrf.mxu0
      %v9786 = vadd.f32 %v9665, %v9785
      %v9787 = vpop.f32.mrf.mxu0
      %9788 = vdwg.mxu0
      %9789 = vmatprep.subr.bf16.mxu0 0
      %9790 = vmatpush1.bf16.msra.mxu0 %v8435
      %9791 = vmatprep.subr.bf16.mxu0 0
      %9792 = vmatpush1.bf16.msra.mxu0 %v8432
      %9793 = vmatprep.subr.bf16.mxu0 0
      %9794 = vmatpush1.bf16.msra.mxu0 %v8195
      %9795 = vmatprep.subr.bf16.mxu0 0
      %9796 = vmatpush1.bf16.msra.mxu0 %v8192
      %9797 = vmatprep.subr.bf16.mxu0 0
      %9798 = vmatpush1.bf16.msra.mxu0 %v8189
      %9799 = vmatprep.subr.bf16.mxu0 0
      %9800 = vmatpush1.bf16.msra.mxu0 %v8186
      %9801 = vmatprep.subr.bf16.mxu0 0
      %9802 = vmatpush1.bf16.msra.mxu0 %v8183
      %9803 = vmatprep.subr.bf16.mxu0 0
      %9804 = vmatpush1.bf16.msra.mxu0 %v8180
      %9805 = vmatprep.subr.bf16.mxu0 0
      %9806 = vmatpush2.bf16.msra.mxu0 %v8459
      %9807 = vmatprep.subr.bf16.mxu0 0
      %9808 = vmatpush2.bf16.msra.mxu0 %v8456
      %9809 = vmatprep.subr.bf16.mxu0 0
      %9810 = vmatpush2.bf16.msra.mxu0 %v8453
      %9811 = vmatprep.subr.bf16.mxu0 0
      %9812 = vmatpush2.bf16.msra.mxu0 %v8450
      %9813 = vmatprep.subr.bf16.mxu0 0
      %9814 = vmatpush2.bf16.msra.mxu0 %v8447
      %9815 = vmatprep.subr.bf16.mxu0 0
      %9816 = vmatpush2.bf16.msra.mxu0 %v8444
      %9817 = vmatprep.subr.bf16.mxu0 0
      %9818 = vmatpush2.bf16.msra.mxu0 %v8441
      %9819 = vmatprep.subr.bf16.mxu0 0
      %9820 = vmatpush2.bf16.msra.mxu0 %v8438
      %9821 = vmatprep.mubr.bf16.mxu0 %v9146
      %9822 = vmatmul.mubr.bf16.gmra.mxu0 %v9145
      %v9823 = vpop.f32.mrf.mxu0
      %v9824 = vadd.f32 %v9703, %v9823
      %v9825 = vpop.f32.mrf.mxu0
      %v9826 = vpop.f32.mrf.mxu0
      %v9827 = vadd.f32 %v9706, %v9826
      %v9828 = vpop.f32.mrf.mxu0
      %9829 = vmatprep.mubr.bf16.mxu0 %v9158
      %9830 = vmatmul.mubr.bf16.gmra.mxu0 %v9157
      %v9831 = vpop.f32.mrf.mxu0
      %v9832 = vadd.f32 %v9711, %v9831
      %v9833 = vpop.f32.mrf.mxu0
      %v9834 = vpop.f32.mrf.mxu0
      %v9835 = vadd.f32 %v9714, %v9834
      %v9836 = vpop.f32.mrf.mxu0
      %9837 = vmatprep.mubr.bf16.mxu0 %v9170
      %9838 = vmatmul.mubr.bf16.gmra.mxu0 %v9169
      %v9839 = vpop.f32.mrf.mxu0
      %v9840 = vadd.f32 %v9719, %v9839
      %v9841 = vpop.f32.mrf.mxu0
      %v9842 = vpop.f32.mrf.mxu0
      %v9843 = vadd.f32 %v9722, %v9842
      %v9844 = vpop.f32.mrf.mxu0
      %9845 = vmatprep.mubr.bf16.mxu0 %v9182
      %9846 = vmatmul.mubr.bf16.gmra.mxu0 %v9181
      %v9847 = vpop.f32.mrf.mxu0
      %v9848 = vadd.f32 %v9727, %v9847
      %v9849 = vpop.f32.mrf.mxu0
      %v9850 = vpop.f32.mrf.mxu0
      %v9851 = vadd.f32 %v9730, %v9850
      %v9852 = vpop.f32.mrf.mxu0
      %9853 = vmatprep.mubr.bf16.mxu0 %v9194
      %9854 = vmatmul.mubr.bf16.gmra.mxu0 %v9193
      %v9855 = vpop.f32.mrf.mxu0
      %v9856 = vadd.f32 %v9735, %v9855
      %v9857 = vpop.f32.mrf.mxu0
      %v9858 = vpop.f32.mrf.mxu0
      %v9859 = vadd.f32 %v9738, %v9858
      %v9860 = vpop.f32.mrf.mxu0
      %9861 = vmatprep.mubr.bf16.mxu0 %v9206
      %9862 = vmatmul.mubr.bf16.gmra.mxu0 %v9205
      %v9863 = vpop.f32.mrf.mxu0
      %v9864 = vadd.f32 %v9743, %v9863
      %v9865 = vpop.f32.mrf.mxu0
      %v9866 = vpop.f32.mrf.mxu0
      %v9867 = vadd.f32 %v9746, %v9866
      %v9868 = vpop.f32.mrf.mxu0
      %9869 = vmatprep.mubr.bf16.mxu0 %v9218
      %9870 = vmatmul.mubr.bf16.gmra.mxu0 %v9217
      %v9871 = vpop.f32.mrf.mxu0
      %v9872 = vadd.f32 %v9751, %v9871
      %v9873 = vpop.f32.mrf.mxu0
      %v9874 = vpop.f32.mrf.mxu0
      %v9875 = vadd.f32 %v9754, %v9874
      %v9876 = vpop.f32.mrf.mxu0
      %9877 = vmatprep.mubr.bf16.mxu0 %v9230
      %9878 = vmatmul.mubr.bf16.gmra.mxu0 %v9229
      %v9879 = vpop.f32.mrf.mxu0
      %v9880 = vadd.f32 %v9759, %v9879
      %v9881 = vpop.f32.mrf.mxu0
      %v9882 = vpop.f32.mrf.mxu0
      %v9883 = vadd.f32 %v9762, %v9882
      %v9884 = vpop.f32.mrf.mxu0
      %9885 = vmatprep.mubr.bf16.mxu0 %v9242
      %9886 = vmatmul.mubr.bf16.gmra.mxu0 %v9241
      %v9887 = vpop.f32.mrf.mxu0
      %v9888 = vadd.f32 %v9767, %v9887
      %v9889 = vpop.f32.mrf.mxu0
      %v9890 = vpop.f32.mrf.mxu0
      %v9891 = vadd.f32 %v9770, %v9890
      %v9892 = vpop.f32.mrf.mxu0
      %9893 = vmatprep.mubr.bf16.mxu0 %v9254
      %9894 = vmatmul.mubr.bf16.gmra.mxu0 %v9253
      %v9895 = vpop.f32.mrf.mxu0
      %v9896 = vadd.f32 %v9775, %v9895
      %v9897 = vpop.f32.mrf.mxu0
      %v9898 = vpop.f32.mrf.mxu0
      %v9899 = vadd.f32 %v9778, %v9898
      %v9900 = vpop.f32.mrf.mxu0
      %9901 = vmatprep.mubr.bf16.mxu0 %v9266
      %9902 = vmatmul.mubr.bf16.gmra.mxu0 %v9265
      %v9903 = vpop.f32.mrf.mxu0
      %v9904 = vadd.f32 %v9783, %v9903
      %v9905 = vpop.f32.mrf.mxu0
      %v9906 = vpop.f32.mrf.mxu0
      %v9907 = vadd.f32 %v9786, %v9906
      %v9908 = vpop.f32.mrf.mxu0
      %9909 = vdwg.mxu0
      %9910 = vmatprep.subr.bf16.mxu0 0
      %9911 = vmatpush1.bf16.msra.mxu0 %v8483
      %9912 = vmatprep.subr.bf16.mxu0 0
      %9913 = vmatpush1.bf16.msra.mxu0 %v8480
      %9914 = vmatprep.subr.bf16.mxu0 0
      %9915 = vmatpush1.bf16.msra.mxu0 %v8477
      %9916 = vmatprep.subr.bf16.mxu0 0
      %9917 = vmatpush1.bf16.msra.mxu0 %v8474
      %9918 = vmatprep.subr.bf16.mxu0 0
      %9919 = vmatpush1.bf16.msra.mxu0 %v8471
      %9920 = vmatprep.subr.bf16.mxu0 0
      %9921 = vmatpush1.bf16.msra.mxu0 %v8468
      %9922 = vmatprep.subr.bf16.mxu0 0
      %9923 = vmatpush1.bf16.msra.mxu0 %v8465
      %9924 = vmatprep.subr.bf16.mxu0 0
      %9925 = vmatpush1.bf16.msra.mxu0 %v8462
      %9926 = vmatprep.subr.bf16.mxu0 0
      %9927 = vmatpush2.bf16.msra.mxu0 %v8579
      %9928 = vmatprep.subr.bf16.mxu0 0
      %9929 = vmatpush2.bf16.msra.mxu0 %v8576
      %9930 = vmatprep.subr.bf16.mxu0 0
      %9931 = vmatpush2.bf16.msra.mxu0 %v8573
      %9932 = vmatprep.subr.bf16.mxu0 0
      %9933 = vmatpush2.bf16.msra.mxu0 %v8570
      %9934 = vmatprep.subr.bf16.mxu0 0
      %9935 = vmatpush2.bf16.msra.mxu0 %v8567
      %9936 = vmatprep.subr.bf16.mxu0 0
      %9937 = vmatpush2.bf16.msra.mxu0 %v8564
      %9938 = vmatprep.subr.bf16.mxu0 0
      %9939 = vmatpush2.bf16.msra.mxu0 %v8561
      %9940 = vmatprep.subr.bf16.mxu0 0
      %9941 = vmatpush2.bf16.msra.mxu0 %v8558
      %9942 = vmatprep.mubr.bf16.mxu0 %v9148
      %9943 = vmatmul.mubr.bf16.gmra.mxu0 %v9147
      %v9944 = vpop.f32.mrf.mxu0
      %v9945 = vadd.f32 %v9824, %v9944
      %v9946 = vpop.f32.mrf.mxu0
      %v9947 = vpop.f32.mrf.mxu0
      %v9948 = vadd.f32 %v9827, %v9947
      %v9949 = vpop.f32.mrf.mxu0
      %9950 = vmatprep.mubr.bf16.mxu0 %v9160
      %9951 = vmatmul.mubr.bf16.gmra.mxu0 %v9159
      %v9952 = vpop.f32.mrf.mxu0
      %v9953 = vadd.f32 %v9832, %v9952
      %v9954 = vpop.f32.mrf.mxu0
      %v9955 = vpop.f32.mrf.mxu0
      %v9956 = vadd.f32 %v9835, %v9955
      %v9957 = vpop.f32.mrf.mxu0
      %9958 = vmatprep.mubr.bf16.mxu0 %v9172
      %9959 = vmatmul.mubr.bf16.gmra.mxu0 %v9171
      %v9960 = vpop.f32.mrf.mxu0
      %v9961 = vadd.f32 %v9840, %v9960
      %v9962 = vpop.f32.mrf.mxu0
      %v9963 = vpop.f32.mrf.mxu0
      %v9964 = vadd.f32 %v9843, %v9963
      %v9965 = vpop.f32.mrf.mxu0
      %9966 = vmatprep.mubr.bf16.mxu0 %v9184
      %9967 = vmatmul.mubr.bf16.gmra.mxu0 %v9183
      %v9968 = vpop.f32.mrf.mxu0
      %v9969 = vadd.f32 %v9848, %v9968
      %v9970 = vpop.f32.mrf.mxu0
      %v9971 = vpop.f32.mrf.mxu0
      %v9972 = vadd.f32 %v9851, %v9971
      %v9973 = vpop.f32.mrf.mxu0
      %9974 = vmatprep.mubr.bf16.mxu0 %v9196
      %9975 = vmatmul.mubr.bf16.gmra.mxu0 %v9195
      %v9976 = vpop.f32.mrf.mxu0
      %v9977 = vadd.f32 %v9856, %v9976
      %v9978 = vpop.f32.mrf.mxu0
      %v9979 = vpop.f32.mrf.mxu0
      %v9980 = vadd.f32 %v9859, %v9979
      %v9981 = vpop.f32.mrf.mxu0
      %9982 = vmatprep.mubr.bf16.mxu0 %v9208
      %9983 = vmatmul.mubr.bf16.gmra.mxu0 %v9207
      %v9984 = vpop.f32.mrf.mxu0
      %v9985 = vadd.f32 %v9864, %v9984
      %v9986 = vpop.f32.mrf.mxu0
      %v9987 = vpop.f32.mrf.mxu0
      %v9988 = vadd.f32 %v9867, %v9987
      %v9989 = vpop.f32.mrf.mxu0
      %9990 = vmatprep.mubr.bf16.mxu0 %v9220
      %9991 = vmatmul.mubr.bf16.gmra.mxu0 %v9219
      %v9992 = vpop.f32.mrf.mxu0
      %v9993 = vadd.f32 %v9872, %v9992
      %v9994 = vpop.f32.mrf.mxu0
      %v9995 = vpop.f32.mrf.mxu0
      %v9996 = vadd.f32 %v9875, %v9995
      %v9997 = vpop.f32.mrf.mxu0
      %9998 = vmatprep.mubr.bf16.mxu0 %v9232
      %9999 = vmatmul.mubr.bf16.gmra.mxu0 %v9231
      %v10000 = vpop.f32.mrf.mxu0
      %v10001 = vadd.f32 %v9880, %v10000
      %v10002 = vpop.f32.mrf.mxu0
      %v10003 = vpop.f32.mrf.mxu0
      %v10004 = vadd.f32 %v9883, %v10003
      %v10005 = vpop.f32.mrf.mxu0
      %10006 = vmatprep.mubr.bf16.mxu0 %v9244
      %10007 = vmatmul.mubr.bf16.gmra.mxu0 %v9243
      %v10008 = vpop.f32.mrf.mxu0
      %v10009 = vadd.f32 %v9888, %v10008
      %v10010 = vpop.f32.mrf.mxu0
      %v10011 = vpop.f32.mrf.mxu0
      %v10012 = vadd.f32 %v9891, %v10011
      %v10013 = vpop.f32.mrf.mxu0
      %10014 = vmatprep.mubr.bf16.mxu0 %v9256
      %10015 = vmatmul.mubr.bf16.gmra.mxu0 %v9255
      %v10016 = vpop.f32.mrf.mxu0
      %v10017 = vadd.f32 %v9896, %v10016
      %v10018 = vpop.f32.mrf.mxu0
      %v10019 = vpop.f32.mrf.mxu0
      %v10020 = vadd.f32 %v9899, %v10019
      %v10021 = vpop.f32.mrf.mxu0
      %10022 = vmatprep.mubr.bf16.mxu0 %v9268
      %10023 = vmatmul.mubr.bf16.gmra.mxu0 %v9267
      %v10024 = vpop.f32.mrf.mxu0
      %v10025 = vadd.f32 %v9904, %v10024
      %v10026 = vpop.f32.mrf.mxu0
      %v10027 = vpop.f32.mrf.mxu0
      %v10028 = vadd.f32 %v9907, %v10027
      %v10029 = vpop.f32.mrf.mxu0
      %10030 = vdwg.mxu0
      %10031 = vmatprep.subr.bf16.mxu0 0
      %10032 = vmatpush1.bf16.msra.mxu0 %v8603
      %10033 = vmatprep.subr.bf16.mxu0 0
      %10034 = vmatpush1.bf16.msra.mxu0 %v8600
      %10035 = vmatprep.subr.bf16.mxu0 0
      %10036 = vmatpush1.bf16.msra.mxu0 %v8597
      %10037 = vmatprep.subr.bf16.mxu0 0
      %10038 = vmatpush1.bf16.msra.mxu0 %v8594
      %10039 = vmatprep.subr.bf16.mxu0 0
      %10040 = vmatpush1.bf16.msra.mxu0 %v8591
      %10041 = vmatprep.subr.bf16.mxu0 0
      %10042 = vmatpush1.bf16.msra.mxu0 %v8588
      %10043 = vmatprep.subr.bf16.mxu0 0
      %10044 = vmatpush1.bf16.msra.mxu0 %v8585
      %10045 = vmatprep.subr.bf16.mxu0 0
      %10046 = vmatpush1.bf16.msra.mxu0 %v8582
      %10047 = vmatprep.subr.bf16.mxu0 0
      %10048 = vmatpush2.bf16.msra.mxu0 0
      %10049 = vmatprep.subr.bf16.mxu0 0
      %10050 = vmatpush2.bf16.msra.mxu0 0
      %10051 = vmatprep.subr.bf16.mxu0 0
      %10052 = vmatpush2.bf16.msra.mxu0 0
      %10053 = vmatprep.subr.bf16.mxu0 0
      %10054 = vmatpush2.bf16.msra.mxu0 0
      %10055 = vmatprep.subr.bf16.mxu0 0
      %10056 = vmatpush2.bf16.msra.mxu0 0
      %10057 = vmatprep.subr.bf16.mxu0 0
      %10058 = vmatpush2.bf16.msra.mxu0 0
      %10059 = vmatprep.subr.bf16.mxu0 0
      %10060 = vmatpush2.bf16.msra.mxu0 %v8609
      %10061 = vmatprep.subr.bf16.mxu0 0
      %10062 = vmatpush2.bf16.msra.mxu0 %v8606
      %10063 = vmatprep.mubr.bf16.mxu0 %v9394
      %10064 = vmatmul.mubr.bf16.gmra.mxu0 %v9149
      %v10065 = vpop.f32.mrf.mxu0
      %v10066 = vadd.f32 %v9945, %v10065
      %v10067 = vpop.f32.mrf.mxu0
      %v10068 = vpop.f32.mrf.mxu0
      %v10069 = vadd.f32 %v9948, %v10068
      %v10070 = vpop.f32.mrf.mxu0
      %10071 = vmatprep.mubr.bf16.mxu0 %v9397
      %10072 = vmatmul.mubr.bf16.gmra.mxu0 %v9161
      %v10073 = vpop.f32.mrf.mxu0
      %v10074 = vadd.f32 %v9953, %v10073
      %v10075 = vpop.f32.mrf.mxu0
      %v10076 = vpop.f32.mrf.mxu0
      %v10077 = vadd.f32 %v9956, %v10076
      %v10078 = vpop.f32.mrf.mxu0
      %10079 = vmatprep.mubr.bf16.mxu0 %v9400
      %10080 = vmatmul.mubr.bf16.gmra.mxu0 %v9173
      %v10081 = vpop.f32.mrf.mxu0
      %v10082 = vadd.f32 %v9961, %v10081
      %v10083 = vpop.f32.mrf.mxu0
      %v10084 = vpop.f32.mrf.mxu0
      %v10085 = vadd.f32 %v9964, %v10084
      %v10086 = vpop.f32.mrf.mxu0
      %10087 = vmatprep.mubr.bf16.mxu0 %v9403
      %10088 = vmatmul.mubr.bf16.gmra.mxu0 %v9185
      %v10089 = vpop.f32.mrf.mxu0
      %v10090 = vadd.f32 %v9969, %v10089
      %v10091 = vpop.f32.mrf.mxu0
      %v10092 = vpop.f32.mrf.mxu0
      %v10093 = vadd.f32 %v9972, %v10092
      %v10094 = vpop.f32.mrf.mxu0
      %10095 = vmatprep.mubr.bf16.mxu0 %v9406
      %10096 = vmatmul.mubr.bf16.gmra.mxu0 %v9197
      %v10097 = vpop.f32.mrf.mxu0
      %v10098 = vadd.f32 %v9977, %v10097
      %v10099 = vpop.f32.mrf.mxu0
      %v10100 = vpop.f32.mrf.mxu0
      %v10101 = vadd.f32 %v9980, %v10100
      %v10102 = vpop.f32.mrf.mxu0
      %10103 = vmatprep.mubr.bf16.mxu0 %v9409
      %10104 = vmatmul.mubr.bf16.gmra.mxu0 %v9209
      %v10105 = vpop.f32.mrf.mxu0
      %v10106 = vadd.f32 %v9985, %v10105
      %v10107 = vpop.f32.mrf.mxu0
      %v10108 = vpop.f32.mrf.mxu0
      %v10109 = vadd.f32 %v9988, %v10108
      %v10110 = vpop.f32.mrf.mxu0
      %10111 = vmatprep.mubr.bf16.mxu0 %v9412
      %10112 = vmatmul.mubr.bf16.gmra.mxu0 %v9221
      %v10113 = vpop.f32.mrf.mxu0
      %v10114 = vadd.f32 %v9993, %v10113
      %v10115 = vpop.f32.mrf.mxu0
      %v10116 = vpop.f32.mrf.mxu0
      %v10117 = vadd.f32 %v9996, %v10116
      %v10118 = vpop.f32.mrf.mxu0
      %10119 = vmatprep.mubr.bf16.mxu0 %v9415
      %10120 = vmatmul.mubr.bf16.gmra.mxu0 %v9233
      %v10121 = vpop.f32.mrf.mxu0
      %v10122 = vadd.f32 %v10001, %v10121
      %v10123 = vpop.f32.mrf.mxu0
      %v10124 = vpop.f32.mrf.mxu0
      %v10125 = vadd.f32 %v10004, %v10124
      %v10126 = vpop.f32.mrf.mxu0
      %10127 = vmatprep.mubr.bf16.mxu0 %v9418
      %10128 = vmatmul.mubr.bf16.gmra.mxu0 %v9245
      %v10129 = vpop.f32.mrf.mxu0
      %v10130 = vadd.f32 %v10009, %v10129
      %v10131 = vpop.f32.mrf.mxu0
      %v10132 = vpop.f32.mrf.mxu0
      %v10133 = vadd.f32 %v10012, %v10132
      %v10134 = vpop.f32.mrf.mxu0
      %10135 = vmatprep.mubr.bf16.mxu0 %v9421
      %10136 = vmatmul.mubr.bf16.gmra.mxu0 %v9257
      %v10137 = vpop.f32.mrf.mxu0
      %v10138 = vadd.f32 %v10017, %v10137
      %v10139 = vpop.f32.mrf.mxu0
      %v10140 = vpop.f32.mrf.mxu0
      %v10141 = vadd.f32 %v10020, %v10140
      %v10142 = vpop.f32.mrf.mxu0
      %10143 = vmatprep.mubr.bf16.mxu0 %v9424
      %10144 = vmatmul.mubr.bf16.gmra.mxu0 %v9269
      %v10145 = vpop.f32.mrf.mxu0
      %v10146 = vadd.f32 %v10025, %v10145
      %v10147 = vpop.f32.mrf.mxu0
      %v10148 = vpop.f32.mrf.mxu0
      %v10149 = vadd.f32 %v10028, %v10148
      %v10150 = vpop.f32.mrf.mxu0
      %10151 = vdwg.mxu0
      %v10152 = vmax.f32 %v10066, %v10109
      %v10153 = vmax.f32 %v10069, %v10114
      %v10154 = vmax.f32 %v10074, %v10117
      %v10155 = vmax.f32 %v10077, %v10122
      %v10156 = vmax.f32 %v10082, %v10125
      %v10157 = vmax.f32 %v10085, %v10130
      %v10158 = vmax.f32 %v10090, %v10133
      %v10159 = vmax.f32 %v10093, %v10138
      %v10160 = vmax.f32 %v10098, %v10141
      %v10161 = vmax.f32 %v10101, %v10146
      %v10162 = vmax.f32 %v10106, %v10149
      %v10163 = vld [vmem:[%s6] sm:$0xff]
      %v10164 = vld [vmem:[%s6 + $0x8] sm:$0xff]
      %v10165 = vld [vmem:[%s6 + $0x10] sm:$0xff]
      %v10166 = vld [vmem:[%s6 + $0x18] sm:$0xff]
      %v10167 = vld [vmem:[%s6 + $0x20] sm:$0xff]
      %v10168 = vld [vmem:[%s6 + $0x28] sm:$0xff]
      %v10169 = vld [vmem:[%s6 + $0x30] sm:$0xff]
      %v10170 = vld [vmem:[%s6 + $0x38] sm:$0xff]
      %v10171 = vld [vmem:[%s6 + $0x40] sm:$0xff]
      %v10172 = vld [vmem:[%s6 + $0x48] sm:$0xff]
      %v10173 = vld [vmem:[%s6 + $0x50] sm:$0xff]
      %10175 = vset.pattern.permute.xlu0 0
      %10176 = vperm.xlu0 %10175, %v10163
      %v10177 = vpop.permute.xlu0 %10176
      %10180 = vset.pattern.permute.xlu0 0
      %10181 = vperm.xlu0 %10180, %v10164
      %v10182 = vpop.permute.xlu0 %10181
      %10185 = vset.pattern.permute.xlu0 0
      %10186 = vperm.xlu0 %10185, %v10165
      %v10187 = vpop.permute.xlu0 %10186
      %10190 = vset.pattern.permute.xlu0 0
      %10191 = vperm.xlu0 %10190, %v10166
      %v10192 = vpop.permute.xlu0 %10191
      %10195 = vset.pattern.permute.xlu0 0
      %10196 = vperm.xlu0 %10195, %v10167
      %v10197 = vpop.permute.xlu0 %10196
      %10200 = vset.pattern.permute.xlu0 0
      %10201 = vperm.xlu0 %10200, %v10168
      %v10202 = vpop.permute.xlu0 %10201
      %10205 = vset.pattern.permute.xlu0 0
      %10206 = vperm.xlu0 %10205, %v10169
      %v10207 = vpop.permute.xlu0 %10206
      %10210 = vset.pattern.permute.xlu0 0
      %10211 = vperm.xlu0 %10210, %v10170
      %v10212 = vpop.permute.xlu0 %10211
      %10215 = vset.pattern.permute.xlu0 0
      %10216 = vperm.xlu0 %10215, %v10171
      %v10217 = vpop.permute.xlu0 %10216
      %10220 = vset.pattern.permute.xlu0 0
      %10221 = vperm.xlu0 %10220, %v10172
      %v10222 = vpop.permute.xlu0 %10221
      %10225 = vset.pattern.permute.xlu0 0
      %10226 = vperm.xlu0 %10225, %v10173
      %v10227 = vpop.permute.xlu0 %10226
      %v10229 = vadd.f32 %v10152, %v10177
      %v10230 = vadd.f32 %v10153, %v10182
      %v10231 = vadd.f32 %v10154, %v10187
      %v10232 = vadd.f32 %v10155, %v10192
      %v10233 = vadd.f32 %v10156, %v10197
      %v10234 = vadd.f32 %v10157, %v10202
      %v10235 = vadd.f32 %v10158, %v10207
      %v10236 = vadd.f32 %v10159, %v10212
      %v10237 = vadd.f32 %v10160, %v10217
      %v10238 = vadd.f32 %v10161, %v10222
      %v10239 = vadd.f32 %v10162, %v10227
      %v10240 = vmax.f32 %v10229, 0.0
      %v10241 = vmax.f32 %v10230, 0.0
      %v10242 = vmax.f32 %v10231, 0.0
      %v10243 = vmax.f32 %v10232, 0.0
      %v10244 = vmax.f32 %v10233, 0.0
      %v10245 = vmax.f32 %v10234, 0.0
      %v10246 = vmax.f32 %v10235, 0.0
      %v10247 = vmax.f32 %v10236, 0.0
      %v10248 = vmax.f32 %v10237, 0.0
      %v10249 = vmax.f32 %v10238, 0.0
      %v10250 = vmax.f32 %v10239, 0.0
      %v10251 = vpack.c.bf16 %v10241, %v10240
      %v10252 = vpack.c.bf16 %v10243, %v10242
      %v10253 = vpack.c.bf16 %v10245, %v10244
      %v10254 = vpack.c.bf16 %v10247, %v10246
      %v10255 = vpack.c.bf16 %v10249, %v10248
      %v10256 = vpack.c.bf16 %v10250, %v10250
      %v10257 = vld [vmem:[%s7] sm:$0xf]
      %v10258 = vld [vmem:[%s7 + $0x4] sm:$0xf]
      %v10259 = vld [vmem:[%s7 + $0x8] sm:$0xf]
      %v10260 = vld [vmem:[%s7 + $0xc] sm:$0xf]
      %v10261 = vld [vmem:[%s7 + $0x10] sm:$0xf]
      %v10262 = vld [vmem:[%s7 + $0x14] sm:$0xf]
      %v10263 = vld [vmem:[%s7 + $0x18] sm:$0xf]
      %v10264 = vld [vmem:[%s7 + $0x1c] sm:$0xf]
      %v10265 = vld [vmem:[%s7 + $0x20] sm:$0xf]
      %v10266 = vld [vmem:[%s7 + $0x24] sm:$0xf]
      %v10267 = vld [vmem:[%s7 + $0x28] sm:$0xf]
      %v10268 = vld [vmem:[%s7 + $0x2c] sm:$0xf]
      %v10269 = vld [vmem:[%s7 + $0x30] sm:$0xf]
      %v10270 = vld [vmem:[%s7 + $0x34] sm:$0xf]
      %v10285 = vunpack.c.l.b16 %v10257
      %v10286 = vunpack.c.l.b16 %v10258
      %v10287 = vunpack.c.l.b16 %v10259
      %v10288 = vunpack.c.l.b16 %v10260
      %v10289 = vunpack.c.l.b16 %v10261
      %v10290 = vunpack.c.l.b16 %v10262
      %v10291 = vunpack.c.l.b16 %v10263
      %v10292 = vunpack.c.l.b16 %v10264
      %v10293 = vunpack.c.l.b16 %v10265
      %v10294 = vunpack.c.l.b16 %v10266
      %v10295 = vunpack.c.l.b16 %v10267
      %v10296 = vunpack.c.l.b16 %v10268
      %v10297 = vunpack.c.l.b16 %v10269
      %v10298 = vunpack.c.l.b16 %v10270
      %v10299 = vpack.c.b16 %v10286, %v10285
      %v10300 = vpack.c.b16 %v10288, %v10287
      %v10301 = vpack.c.b16 %v10290, %v10289
      %v10302 = vpack.c.b16 %v10292, %v10291
      %v10303 = vpack.c.b16 %v10294, %v10293
      %v10304 = vpack.c.b16 %v10296, %v10295
      %v10305 = vpack.c.b16 %v10298, %v10297
      %vm10313 = vcmask 916480
      %v10315 = vsel %vm10313, %v10251, 0
      %v10318 = vsel %vm10313, %v10252, 0
      %v10321 = vsel %vm10313, %v10253, 0
      %v10324 = vsel %vm10313, %v10254, 0
      %v10327 = vsel %vm10313, %v10255, 0
      %v10330 = vsel %vm10313, %v10256, 0
      %10332 = vmatprep.subr.bf16.mxu0 0
      %10333 = vmatpush1.bf16.msra.mxu0 0
      %10334 = vmatprep.subr.bf16.mxu0 0
      %10335 = vmatpush1.bf16.msra.mxu0 %v10305
      %10336 = vmatprep.subr.bf16.mxu0 0
      %10337 = vmatpush1.bf16.msra.mxu0 %v10304
      %10338 = vmatprep.subr.bf16.mxu0 0
      %10339 = vmatpush1.bf16.msra.mxu0 %v10303
      %10340 = vmatprep.subr.bf16.mxu0 0
      %10341 = vmatpush1.bf16.msra.mxu0 %v10302
      %10342 = vmatprep.subr.bf16.mxu0 0
      %10343 = vmatpush1.bf16.msra.mxu0 %v10301
      %10344 = vmatprep.subr.bf16.mxu0 0
      %10345 = vmatpush1.bf16.msra.mxu0 %v10300
      %10346 = vmatprep.subr.bf16.mxu0 0
      %10347 = vmatpush1.bf16.msra.mxu0 %v10299
      %10348 = vmatprep.subr.bf16.mxu0 0
      %10349 = vmatpush2.bf16.msra.mxu0 0
      %10350 = vmatprep.subr.bf16.mxu0 0
      %10351 = vmatpush2.bf16.msra.mxu0 0
      %10352 = vmatprep.subr.bf16.mxu0 0
      %10353 = vmatpush2.bf16.msra.mxu0 0
      %10354 = vmatprep.subr.bf16.mxu0 0
      %10355 = vmatpush2.bf16.msra.mxu0 0
      %10356 = vmatprep.subr.bf16.mxu0 0
      %10357 = vmatpush2.bf16.msra.mxu0 0
      %10358 = vmatprep.subr.bf16.mxu0 0
      %10359 = vmatpush2.bf16.msra.mxu0 0
      %10360 = vmatprep.subr.bf16.mxu0 0
      %10361 = vmatpush2.bf16.msra.mxu0 0
      %10362 = vmatprep.subr.bf16.mxu0 0
      %10363 = vmatpush2.bf16.msra.mxu0 0
      %10364 = vmatprep.mubr.bf16.mxu0 0
      %10365 = vmatmul.mubr.bf16.gmra.mxu0 %v10315
      %v10366 = vpop.f32.mrf.mxu0
      %v10367 = vadd.f32 0.0, %v10366
      %v10368 = vpop.f32.mrf.mxu0
      %v10369 = vpop.f32.mrf.mxu0
      %v10370 = vadd.f32 0.0, %v10369
      %v10371 = vpop.f32.mrf.mxu0
      %10372 = vmatprep.mubr.bf16.mxu0 0
      %10373 = vmatmul.mubr.bf16.gmra.mxu0 %v10318
      %v10374 = vpop.f32.mrf.mxu0
      %v10375 = vadd.f32 0.0, %v10374
      %v10376 = vpop.f32.mrf.mxu0
      %v10377 = vpop.f32.mrf.mxu0
      %v10378 = vadd.f32 0.0, %v10377
      %v10379 = vpop.f32.mrf.mxu0
      %10380 = vmatprep.mubr.bf16.mxu0 0
      %10381 = vmatmul.mubr.bf16.gmra.mxu0 %v10321
      %v10382 = vpop.f32.mrf.mxu0
      %v10383 = vadd.f32 0.0, %v10382
      %v10384 = vpop.f32.mrf.mxu0
      %v10385 = vpop.f32.mrf.mxu0
      %v10386 = vadd.f32 0.0, %v10385
      %v10387 = vpop.f32.mrf.mxu0
      %10388 = vmatprep.mubr.bf16.mxu0 0
      %10389 = vmatmul.mubr.bf16.gmra.mxu0 %v10324
      %v10390 = vpop.f32.mrf.mxu0
      %v10391 = vadd.f32 0.0, %v10390
      %v10392 = vpop.f32.mrf.mxu0
      %v10393 = vpop.f32.mrf.mxu0
      %v10394 = vadd.f32 0.0, %v10393
      %v10395 = vpop.f32.mrf.mxu0
      %10396 = vmatprep.mubr.bf16.mxu0 0
      %10397 = vmatmul.mubr.bf16.gmra.mxu0 %v10327
      %v10398 = vpop.f32.mrf.mxu0
      %v10399 = vadd.f32 0.0, %v10398
      %v10400 = vpop.f32.mrf.mxu0
      %v10401 = vpop.f32.mrf.mxu0
      %v10402 = vadd.f32 0.0, %v10401
      %v10403 = vpop.f32.mrf.mxu0
      %10404 = vmatprep.mubr.bf16.mxu0 0
      %10405 = vmatmul.mubr.bf16.gmra.mxu0 %v10330
      %v10406 = vpop.f32.mrf.mxu0
      %v10407 = vadd.f32 0.0, %v10406
      %v10408 = vpop.f32.mrf.mxu0
      %v10409 = vpop.f32.mrf.mxu0
      %v10410 = vpop.f32.mrf.mxu0
      %10411 = vdwg.mxu0
      %v10412 = vld [vmem:[%s8] sm:$0xf]
      %v10413 = vld [vmem:[%s8 + $0x4] sm:$0xf]
      %v10414 = vld [vmem:[%s8 + $0x8] sm:$0xf]
      %v10415 = vld [vmem:[%s8 + $0xc] sm:$0xf]
      %v10416 = vld [vmem:[%s8 + $0x10] sm:$0xf]
      %v10417 = vld [vmem:[%s8 + $0x14] sm:$0xf]
      %v10418 = vld [vmem:[%s8 + $0x18] sm:$0xf]
      %v10419 = vld [vmem:[%s8 + $0x1c] sm:$0xf]
      %v10420 = vld [vmem:[%s8 + $0x20] sm:$0xf]
      %v10421 = vld [vmem:[%s8 + $0x24] sm:$0xf]
      %v10422 = vld [vmem:[%s8 + $0x28] sm:$0xf]
      %v10423 = vld [vmem:[%s8 + $0x2c] sm:$0xf]
      %v10424 = vld [vmem:[%s8 + $0x30] sm:$0xf]
      %v10425 = vld [vmem:[%s8 + $0x34] sm:$0xf]
      %v10440 = vunpack.c.l.b16 %v10412
      %v10441 = vunpack.c.l.b16 %v10413
      %v10442 = vunpack.c.l.b16 %v10414
      %v10443 = vunpack.c.l.b16 %v10415
      %v10444 = vunpack.c.l.b16 %v10416
      %v10445 = vunpack.c.l.b16 %v10417
      %v10446 = vunpack.c.l.b16 %v10418
      %v10447 = vunpack.c.l.b16 %v10419
      %v10448 = vunpack.c.l.b16 %v10420
      %v10449 = vunpack.c.l.b16 %v10421
      %v10450 = vunpack.c.l.b16 %v10422
      %v10451 = vunpack.c.l.b16 %v10423
      %v10452 = vunpack.c.l.b16 %v10424
      %v10453 = vunpack.c.l.b16 %v10425
      %v10454 = vpack.c.b16 %v10441, %v10440
      %v10455 = vpack.c.b16 %v10443, %v10442
      %v10456 = vpack.c.b16 %v10445, %v10444
      %v10457 = vpack.c.b16 %v10447, %v10446
      %v10458 = vpack.c.b16 %v10449, %v10448
      %v10459 = vpack.c.b16 %v10451, %v10450
      %v10460 = vpack.c.b16 %v10453, %v10452
      %10468 = vmatprep.subr.bf16.mxu0 0
      %10469 = vmatpush1.bf16.msra.mxu0 0
      %10470 = vmatprep.subr.bf16.mxu0 0
      %10471 = vmatpush1.bf16.msra.mxu0 %v10460
      %10472 = vmatprep.subr.bf16.mxu0 0
      %10473 = vmatpush1.bf16.msra.mxu0 %v10459
      %10474 = vmatprep.subr.bf16.mxu0 0
      %10475 = vmatpush1.bf16.msra.mxu0 %v10458
      %10476 = vmatprep.subr.bf16.mxu0 0
      %10477 = vmatpush1.bf16.msra.mxu0 %v10457
      %10478 = vmatprep.subr.bf16.mxu0 0
      %10479 = vmatpush1.bf16.msra.mxu0 %v10456
      %10480 = vmatprep.subr.bf16.mxu0 0
      %10481 = vmatpush1.bf16.msra.mxu0 %v10455
      %10482 = vmatprep.subr.bf16.mxu0 0
      %10483 = vmatpush1.bf16.msra.mxu0 %v10454
      %10484 = vmatprep.subr.bf16.mxu0 0
      %10485 = vmatpush2.bf16.msra.mxu0 0
      %10486 = vmatprep.subr.bf16.mxu0 0
      %10487 = vmatpush2.bf16.msra.mxu0 0
      %10488 = vmatprep.subr.bf16.mxu0 0
      %10489 = vmatpush2.bf16.msra.mxu0 0
      %10490 = vmatprep.subr.bf16.mxu0 0
      %10491 = vmatpush2.bf16.msra.mxu0 0
      %10492 = vmatprep.subr.bf16.mxu0 0
      %10493 = vmatpush2.bf16.msra.mxu0 0
      %10494 = vmatprep.subr.bf16.mxu0 0
      %10495 = vmatpush2.bf16.msra.mxu0 0
      %10496 = vmatprep.subr.bf16.mxu0 0
      %10497 = vmatpush2.bf16.msra.mxu0 0
      %10498 = vmatprep.subr.bf16.mxu0 0
      %10499 = vmatpush2.bf16.msra.mxu0 0
      %10500 = vmatprep.mubr.bf16.mxu0 0
      %10501 = vmatmul.mubr.bf16.gmra.mxu0 %v10315
      %v10502 = vpop.f32.mrf.mxu0
      %v10503 = vadd.f32 0.0, %v10502
      %v10504 = vpop.f32.mrf.mxu0
      %v10505 = vpop.f32.mrf.mxu0
      %v10506 = vadd.f32 0.0, %v10505
      %v10507 = vpop.f32.mrf.mxu0
      %10508 = vmatprep.mubr.bf16.mxu0 0
      %10509 = vmatmul.mubr.bf16.gmra.mxu0 %v10318
      %v10510 = vpop.f32.mrf.mxu0
      %v10511 = vadd.f32 0.0, %v10510
      %v10512 = vpop.f32.mrf.mxu0
      %v10513 = vpop.f32.mrf.mxu0
      %v10514 = vadd.f32 0.0, %v10513
      %v10515 = vpop.f32.mrf.mxu0
      %10516 = vmatprep.mubr.bf16.mxu0 0
      %10517 = vmatmul.mubr.bf16.gmra.mxu0 %v10321
      %v10518 = vpop.f32.mrf.mxu0
      %v10519 = vadd.f32 0.0, %v10518
      %v10520 = vpop.f32.mrf.mxu0
      %v10521 = vpop.f32.mrf.mxu0
      %v10522 = vadd.f32 0.0, %v10521
      %v10523 = vpop.f32.mrf.mxu0
      %10524 = vmatprep.mubr.bf16.mxu0 0
      %10525 = vmatmul.mubr.bf16.gmra.mxu0 %v10324
      %v10526 = vpop.f32.mrf.mxu0
      %v10527 = vadd.f32 0.0, %v10526
      %v10528 = vpop.f32.mrf.mxu0
      %v10529 = vpop.f32.mrf.mxu0
      %v10530 = vadd.f32 0.0, %v10529
      %v10531 = vpop.f32.mrf.mxu0
      %10532 = vmatprep.mubr.bf16.mxu0 0
      %10533 = vmatmul.mubr.bf16.gmra.mxu0 %v10327
      %v10534 = vpop.f32.mrf.mxu0
      %v10535 = vadd.f32 0.0, %v10534
      %v10536 = vpop.f32.mrf.mxu0
      %v10537 = vpop.f32.mrf.mxu0
      %v10538 = vadd.f32 0.0, %v10537
      %v10539 = vpop.f32.mrf.mxu0
      %10540 = vmatprep.mubr.bf16.mxu0 0
      %10541 = vmatmul.mubr.bf16.gmra.mxu0 %v10330
      %v10542 = vpop.f32.mrf.mxu0
      %v10543 = vadd.f32 0.0, %v10542
      %v10544 = vpop.f32.mrf.mxu0
      %v10545 = vpop.f32.mrf.mxu0
      %v10546 = vpop.f32.mrf.mxu0
      %10547 = vdwg.mxu0
      %v10548 = vmax.f32 %v10367, %v10503
      %v10549 = vmax.f32 %v10370, %v10506
      %v10550 = vmax.f32 %v10375, %v10511
      %v10551 = vmax.f32 %v10378, %v10514
      %v10552 = vmax.f32 %v10383, %v10519
      %v10553 = vmax.f32 %v10386, %v10522
      %v10554 = vmax.f32 %v10391, %v10527
      %v10555 = vmax.f32 %v10394, %v10530
      %v10556 = vmax.f32 %v10399, %v10535
      %v10557 = vmax.f32 %v10402, %v10538
      %v10558 = vmax.f32 %v10407, %v10543
      %v10559 = vpack.c.bf16 %v10549, %v10548
      %v10560 = vpack.c.bf16 %v10551, %v10550
      %v10561 = vpack.c.bf16 %v10553, %v10552
      %v10562 = vpack.c.bf16 %v10555, %v10554
      %v10563 = vpack.c.bf16 %v10557, %v10556
      %v10564 = vpack.c.bf16 %v10558, %v10558
      %10571 = vrot.lane.b32.xlu0 %v10559, 124
      %v10572 = vpop.permute.xlu0 %10571
      %10573 = vrot.lane.b32.xlu0 %v10560, 124
      %v10574 = vpop.permute.xlu0 %10573
      %10575 = vrot.lane.b32.xlu0 %v10561, 124
      %v10576 = vpop.permute.xlu0 %10575
      %10577 = vrot.lane.b32.xlu0 %v10562, 124
      %v10578 = vpop.permute.xlu0 %10577
      %10579 = vrot.lane.b32.xlu0 %v10563, 124
      %v10580 = vpop.permute.xlu0 %10579
      %10581 = vrot.lane.b32.xlu0 %v10564, 124
      %v10582 = vpop.permute.xlu0 %10581
      %10583 = vrot.lane.b32.xlu0 %v10559, 120
      %v10584 = vpop.permute.xlu0 %10583
      %10585 = vrot.lane.b32.xlu0 %v10560, 120
      %v10586 = vpop.permute.xlu0 %10585
      %10587 = vrot.lane.b32.xlu0 %v10561, 120
      %v10588 = vpop.permute.xlu0 %10587
      %10589 = vrot.lane.b32.xlu0 %v10562, 120
      %v10590 = vpop.permute.xlu0 %10589
      %10591 = vrot.lane.b32.xlu0 %v10563, 120
      %v10592 = vpop.permute.xlu0 %10591
      %10593 = vrot.lane.b32.xlu0 %v10564, 120
      %v10594 = vpop.permute.xlu0 %10593
      %10595 = vrot.lane.b32.xlu0 %v10559, 116
      %v10596 = vpop.permute.xlu0 %10595
      %10597 = vrot.lane.b32.xlu0 %v10560, 116
      %v10598 = vpop.permute.xlu0 %10597
      %10599 = vrot.lane.b32.xlu0 %v10561, 116
      %v10600 = vpop.permute.xlu0 %10599
      %10601 = vrot.lane.b32.xlu0 %v10562, 116
      %v10602 = vpop.permute.xlu0 %10601
      %10603 = vrot.lane.b32.xlu0 %v10563, 116
      %v10604 = vpop.permute.xlu0 %10603
      %10605 = vrot.lane.b32.xlu0 %v10564, 116
      %v10606 = vpop.permute.xlu0 %10605
      %vm10607 = vcmask 80896
      %v10610 = vsel %vm10607, %v10559, %v10572
      %v10613 = vsel %vm10607, %v10560, %v10574
      %v10616 = vsel %vm10607, %v10561, %v10576
      %v10619 = vsel %vm10607, %v10562, %v10578
      %v10622 = vsel %vm10607, %v10563, %v10580
      %v10625 = vsel %vm10607, %v10564, %v10582
      %vm10626 = vcmask 162816
      %v10628 = vsel %vm10626, %v10610, %v10584
      %v10630 = vsel %vm10626, %v10613, %v10586
      %v10632 = vsel %vm10626, %v10616, %v10588
      %v10634 = vsel %vm10626, %v10619, %v10590
      %v10636 = vsel %vm10626, %v10622, %v10592
      %v10638 = vsel %vm10626, %v10625, %v10594
      %vm10639 = vcmask 244736
      %v10641 = vsel %vm10639, %v10628, %v10596
      %v10644 = vsel %vm10639, %v10630, %v10598
      %v10647 = vsel %vm10639, %v10632, %v10600
      %v10650 = vsel %vm10639, %v10634, %v10602
      %v10653 = vsel %vm10639, %v10636, %v10604
      %v10656 = vsel %vm10639, %v10638, %v10606
      %10657 = vrot.lane.b32.xlu0 %v10559, 127
      %v10658 = vpop.permute.xlu0 %10657
      %10659 = vrot.lane.b32.xlu0 %v10560, 127
      %v10660 = vpop.permute.xlu0 %10659
      %10661 = vrot.lane.b32.xlu0 %v10561, 127
      %v10662 = vpop.permute.xlu0 %10661
      %10663 = vrot.lane.b32.xlu0 %v10562, 127
      %v10664 = vpop.permute.xlu0 %10663
      %10665 = vrot.lane.b32.xlu0 %v10563, 127
      %v10666 = vpop.permute.xlu0 %10665
      %10667 = vrot.lane.b32.xlu0 %v10564, 127
      %v10668 = vpop.permute.xlu0 %10667
      %10669 = vrot.lane.b32.xlu0 %v10559, 123
      %v10670 = vpop.permute.xlu0 %10669
      %10671 = vrot.lane.b32.xlu0 %v10560, 123
      %v10672 = vpop.permute.xlu0 %10671
      %10673 = vrot.lane.b32.xlu0 %v10561, 123
      %v10674 = vpop.permute.xlu0 %10673
      %10675 = vrot.lane.b32.xlu0 %v10562, 123
      %v10676 = vpop.permute.xlu0 %10675
      %10677 = vrot.lane.b32.xlu0 %v10563, 123
      %v10678 = vpop.permute.xlu0 %10677
      %10679 = vrot.lane.b32.xlu0 %v10564, 123
      %v10680 = vpop.permute.xlu0 %10679
      %10681 = vrot.lane.b32.xlu0 %v10559, 119
      %v10682 = vpop.permute.xlu0 %10681
      %10683 = vrot.lane.b32.xlu0 %v10560, 119
      %v10684 = vpop.permute.xlu0 %10683
      %10685 = vrot.lane.b32.xlu0 %v10561, 119
      %v10686 = vpop.permute.xlu0 %10685
      %10687 = vrot.lane.b32.xlu0 %v10562, 119
      %v10688 = vpop.permute.xlu0 %10687
      %10689 = vrot.lane.b32.xlu0 %v10563, 119
      %v10690 = vpop.permute.xlu0 %10689
      %10691 = vrot.lane.b32.xlu0 %v10564, 119
      %v10692 = vpop.permute.xlu0 %10691
      %10693 = vrot.lane.b32.xlu0 %v10559, 115
      %v10694 = vpop.permute.xlu0 %10693
      %10695 = vrot.lane.b32.xlu0 %v10560, 115
      %v10696 = vpop.permute.xlu0 %10695
      %10697 = vrot.lane.b32.xlu0 %v10561, 115
      %v10698 = vpop.permute.xlu0 %10697
      %10699 = vrot.lane.b32.xlu0 %v10562, 115
      %v10700 = vpop.permute.xlu0 %10699
      %10701 = vrot.lane.b32.xlu0 %v10563, 115
      %v10702 = vpop.permute.xlu0 %10701
      %10703 = vrot.lane.b32.xlu0 %v10564, 115
      %v10704 = vpop.permute.xlu0 %10703
      %v10707 = vsel %vm10607, %v10658, %v10670
      %v10710 = vsel %vm10607, %v10660, %v10672
      %v10713 = vsel %vm10607, %v10662, %v10674
      %v10716 = vsel %vm10607, %v10664, %v10676
      %v10719 = vsel %vm10607, %v10666, %v10678
      %v10722 = vsel %vm10607, %v10668, %v10680
      %v10724 = vsel %vm10626, %v10707, %v10682
      %v10726 = vsel %vm10626, %v10710, %v10684
      %v10728 = vsel %vm10626, %v10713, %v10686
      %v10730 = vsel %vm10626, %v10716, %v10688
      %v10732 = vsel %vm10626, %v10719, %v10690
      %v10734 = vsel %vm10626, %v10722, %v10692
      %v10736 = vsel %vm10639, %v10724, %v10694
      %v10738 = vsel %vm10639, %v10726, %v10696
      %v10740 = vsel %vm10639, %v10728, %v10698
      %v10742 = vsel %vm10639, %v10730, %v10700
      %v10744 = vsel %vm10639, %v10732, %v10702
      %v10746 = vsel %vm10639, %v10734, %v10704
      %10747 = vrot.lane.b32.xlu0 %v10559, 126
      %v10748 = vpop.permute.xlu0 %10747
      %10749 = vrot.lane.b32.xlu0 %v10560, 126
      %v10750 = vpop.permute.xlu0 %10749
      %10751 = vrot.lane.b32.xlu0 %v10561, 126
      %v10752 = vpop.permute.xlu0 %10751
      %10753 = vrot.lane.b32.xlu0 %v10562, 126
      %v10754 = vpop.permute.xlu0 %10753
      %10755 = vrot.lane.b32.xlu0 %v10563, 126
      %v10756 = vpop.permute.xlu0 %10755
      %10757 = vrot.lane.b32.xlu0 %v10564, 126
      %v10758 = vpop.permute.xlu0 %10757
      %10759 = vrot.lane.b32.xlu0 %v10559, 122
      %v10760 = vpop.permute.xlu0 %10759
      %10761 = vrot.lane.b32.xlu0 %v10560, 122
      %v10762 = vpop.permute.xlu0 %10761
      %10763 = vrot.lane.b32.xlu0 %v10561, 122
      %v10764 = vpop.permute.xlu0 %10763
      %10765 = vrot.lane.b32.xlu0 %v10562, 122
      %v10766 = vpop.permute.xlu0 %10765
      %10767 = vrot.lane.b32.xlu0 %v10563, 122
      %v10768 = vpop.permute.xlu0 %10767
      %10769 = vrot.lane.b32.xlu0 %v10564, 122
      %v10770 = vpop.permute.xlu0 %10769
      %10771 = vrot.lane.b32.xlu0 %v10559, 118
      %v10772 = vpop.permute.xlu0 %10771
      %10773 = vrot.lane.b32.xlu0 %v10560, 118
      %v10774 = vpop.permute.xlu0 %10773
      %10775 = vrot.lane.b32.xlu0 %v10561, 118
      %v10776 = vpop.permute.xlu0 %10775
      %10777 = vrot.lane.b32.xlu0 %v10562, 118
      %v10778 = vpop.permute.xlu0 %10777
      %10779 = vrot.lane.b32.xlu0 %v10563, 118
      %v10780 = vpop.permute.xlu0 %10779
      %10781 = vrot.lane.b32.xlu0 %v10564, 118
      %v10782 = vpop.permute.xlu0 %10781
      %10783 = vrot.lane.b32.xlu0 %v10559, 114
      %v10784 = vpop.permute.xlu0 %10783
      %10785 = vrot.lane.b32.xlu0 %v10560, 114
      %v10786 = vpop.permute.xlu0 %10785
      %10787 = vrot.lane.b32.xlu0 %v10561, 114
      %v10788 = vpop.permute.xlu0 %10787
      %10789 = vrot.lane.b32.xlu0 %v10562, 114
      %v10790 = vpop.permute.xlu0 %10789
      %10791 = vrot.lane.b32.xlu0 %v10563, 114
      %v10792 = vpop.permute.xlu0 %10791
      %10793 = vrot.lane.b32.xlu0 %v10564, 114
      %v10794 = vpop.permute.xlu0 %10793
      %v10797 = vsel %vm10607, %v10748, %v10760
      %v10800 = vsel %vm10607, %v10750, %v10762
      %v10803 = vsel %vm10607, %v10752, %v10764
      %v10806 = vsel %vm10607, %v10754, %v10766
      %v10809 = vsel %vm10607, %v10756, %v10768
      %v10812 = vsel %vm10607, %v10758, %v10770
      %v10814 = vsel %vm10626, %v10797, %v10772
      %v10816 = vsel %vm10626, %v10800, %v10774
      %v10818 = vsel %vm10626, %v10803, %v10776
      %v10820 = vsel %vm10626, %v10806, %v10778
      %v10822 = vsel %vm10626, %v10809, %v10780
      %v10824 = vsel %vm10626, %v10812, %v10782
      %v10826 = vsel %vm10639, %v10814, %v10784
      %v10829 = vsel %vm10639, %v10816, %v10786
      %v10832 = vsel %vm10639, %v10818, %v10788
      %v10835 = vsel %vm10639, %v10820, %v10790
      %v10838 = vsel %vm10639, %v10822, %v10792
      %v10841 = vsel %vm10639, %v10824, %v10794
      %10842 = vrot.lane.b32.xlu0 %v10559, 125
      %v10843 = vpop.permute.xlu0 %10842
      %10844 = vrot.lane.b32.xlu0 %v10560, 125
      %v10845 = vpop.permute.xlu0 %10844
      %10846 = vrot.lane.b32.xlu0 %v10561, 125
      %v10847 = vpop.permute.xlu0 %10846
      %10848 = vrot.lane.b32.xlu0 %v10562, 125
      %v10849 = vpop.permute.xlu0 %10848
      %10850 = vrot.lane.b32.xlu0 %v10563, 125
      %v10851 = vpop.permute.xlu0 %10850
      %10852 = vrot.lane.b32.xlu0 %v10564, 125
      %v10853 = vpop.permute.xlu0 %10852
      %10854 = vrot.lane.b32.xlu0 %v10559, 121
      %v10855 = vpop.permute.xlu0 %10854
      %10856 = vrot.lane.b32.xlu0 %v10560, 121
      %v10857 = vpop.permute.xlu0 %10856
      %10858 = vrot.lane.b32.xlu0 %v10561, 121
      %v10859 = vpop.permute.xlu0 %10858
      %10860 = vrot.lane.b32.xlu0 %v10562, 121
      %v10861 = vpop.permute.xlu0 %10860
      %10862 = vrot.lane.b32.xlu0 %v10563, 121
      %v10863 = vpop.permute.xlu0 %10862
      %10864 = vrot.lane.b32.xlu0 %v10564, 121
      %v10865 = vpop.permute.xlu0 %10864
      %10866 = vrot.lane.b32.xlu0 %v10559, 117
      %v10867 = vpop.permute.xlu0 %10866
      %10868 = vrot.lane.b32.xlu0 %v10560, 117
      %v10869 = vpop.permute.xlu0 %10868
      %10870 = vrot.lane.b32.xlu0 %v10561, 117
      %v10871 = vpop.permute.xlu0 %10870
      %10872 = vrot.lane.b32.xlu0 %v10562, 117
      %v10873 = vpop.permute.xlu0 %10872
      %10874 = vrot.lane.b32.xlu0 %v10563, 117
      %v10875 = vpop.permute.xlu0 %10874
      %10876 = vrot.lane.b32.xlu0 %v10564, 117
      %v10877 = vpop.permute.xlu0 %10876
      %10878 = vrot.lane.b32.xlu0 %v10559, 113
      %v10879 = vpop.permute.xlu0 %10878
      %10880 = vrot.lane.b32.xlu0 %v10560, 113
      %v10881 = vpop.permute.xlu0 %10880
      %10882 = vrot.lane.b32.xlu0 %v10561, 113
      %v10883 = vpop.permute.xlu0 %10882
      %10884 = vrot.lane.b32.xlu0 %v10562, 113
      %v10885 = vpop.permute.xlu0 %10884
      %10886 = vrot.lane.b32.xlu0 %v10563, 113
      %v10887 = vpop.permute.xlu0 %10886
      %10888 = vrot.lane.b32.xlu0 %v10564, 113
      %v10889 = vpop.permute.xlu0 %10888
      %v10892 = vsel %vm10607, %v10843, %v10855
      %v10895 = vsel %vm10607, %v10845, %v10857
      %v10898 = vsel %vm10607, %v10847, %v10859
      %v10901 = vsel %vm10607, %v10849, %v10861
      %v10904 = vsel %vm10607, %v10851, %v10863
      %v10907 = vsel %vm10607, %v10853, %v10865
      %v10909 = vsel %vm10626, %v10892, %v10867
      %v10911 = vsel %vm10626, %v10895, %v10869
      %v10913 = vsel %vm10626, %v10898, %v10871
      %v10915 = vsel %vm10626, %v10901, %v10873
      %v10917 = vsel %vm10626, %v10904, %v10875
      %v10919 = vsel %vm10626, %v10907, %v10877
      %v10921 = vsel %vm10639, %v10909, %v10879
      %v10923 = vsel %vm10639, %v10911, %v10881
      %v10925 = vsel %vm10639, %v10913, %v10883
      %v10927 = vsel %vm10639, %v10915, %v10885
      %v10929 = vsel %vm10639, %v10917, %v10887
      %v10931 = vsel %vm10639, %v10919, %v10889
      %10932 = vrot.lane.b32.xlu0 %v10559, 112
      %v10933 = vpop.permute.xlu0 %10932
      %10934 = vrot.lane.b32.xlu0 %v10560, 112
      %v10935 = vpop.permute.xlu0 %10934
      %10936 = vrot.lane.b32.xlu0 %v10561, 112
      %v10937 = vpop.permute.xlu0 %10936
      %10938 = vrot.lane.b32.xlu0 %v10562, 112
      %v10939 = vpop.permute.xlu0 %10938
      %10940 = vrot.lane.b32.xlu0 %v10563, 112
      %v10941 = vpop.permute.xlu0 %10940
      %10942 = vrot.lane.b32.xlu0 %v10564, 112
      %v10943 = vpop.permute.xlu0 %10942
      %v10944 = vsel %vm10607, %v10572, %v10584
      %v10945 = vsel %vm10607, %v10574, %v10586
      %v10946 = vsel %vm10607, %v10576, %v10588
      %v10947 = vsel %vm10607, %v10578, %v10590
      %v10948 = vsel %vm10607, %v10580, %v10592
      %v10949 = vsel %vm10607, %v10582, %v10594
      %v10950 = vsel %vm10626, %v10944, %v10596
      %v10951 = vsel %vm10626, %v10945, %v10598
      %v10952 = vsel %vm10626, %v10946, %v10600
      %v10953 = vsel %vm10626, %v10947, %v10602
      %v10954 = vsel %vm10626, %v10948, %v10604
      %v10955 = vsel %vm10626, %v10949, %v10606
      %v10957 = vsel %vm10639, %v10950, %v10933
      %v10960 = vsel %vm10639, %v10951, %v10935
      %v10963 = vsel %vm10639, %v10952, %v10937
      %v10966 = vsel %vm10639, %v10953, %v10939
      %v10969 = vsel %vm10639, %v10954, %v10941
      %v10972 = vsel %vm10639, %v10955, %v10943
      %vm10979 = vcmask 1043456
      %v10980 = vrot.slane %v10736, 4
      %v10981 = vrot.slane %v10738, 4
      %v10982 = vsel %vm10979, %v10980, %v10981
      %v10983 = vrot.slane %v10740, 4
      %v10984 = vsel %vm10979, %v10981, %v10983
      %v10985 = vrot.slane %v10742, 4
      %v10986 = vsel %vm10979, %v10983, %v10985
      %v10987 = vrot.slane %v10744, 4
      %v10988 = vsel %vm10979, %v10985, %v10987
      %v10989 = vrot.slane %v10746, 4
      %v10990 = vsel %vm10979, %v10987, %v10989
      %v11002 = vrot.slane %v10921, 4
      %v11003 = vrot.slane %v10923, 4
      %v11004 = vsel %vm10979, %v11002, %v11003
      %v11005 = vrot.slane %v10925, 4
      %v11006 = vsel %vm10979, %v11003, %v11005
      %v11007 = vrot.slane %v10927, 4
      %v11008 = vsel %vm10979, %v11005, %v11007
      %v11009 = vrot.slane %v10929, 4
      %v11010 = vsel %vm10979, %v11007, %v11009
      %v11011 = vrot.slane %v10931, 4
      %v11012 = vsel %vm10979, %v11009, %v11011
      %vm11018 = vcmask 1043456
      %v11020 = vsel %vm11018, %v10656, %v10980
      %v11023 = vsel %vm11018, %v10841, %v11002
      %v11025 = vld [vmem:[%s9] sm:$0xff]
      %v11026 = vld [vmem:[%s9 + $0x8] sm:$0xff]
      %v11027 = vld [vmem:[%s9 + $0x10] sm:$0xff]
      %v11028 = vld [vmem:[%s9 + $0x18] sm:$0xff]
      %v11029 = vld [vmem:[%s9 + $0x20] sm:$0xff]
      %v11030 = vld [vmem:[%s9 + $0x28] sm:$0xff]
      %v11031 = vld [vmem:[%s9 + $0x30] sm:$0xff]
      %v11032 = vld [vmem:[%s9 + $0x38] sm:$0xff]
      %v11033 = vld [vmem:[%s9 + $0x40] sm:$0xff]
      %v11034 = vld [vmem:[%s9 + $0x48] sm:$0xff]
      %v11035 = vld [vmem:[%s9 + $0x50] sm:$0xff]
      %v11036 = vld [vmem:[%s9 + $0x58] sm:$0xff]
      %v11037 = vld [vmem:[%s9 + $0x60] sm:$0xff]
      %v11038 = vld [vmem:[%s9 + $0x68] sm:$0xff]
      %v11039 = vld [vmem:[%s9 + $0x70] sm:$0xff]
      %v11040 = vld [vmem:[%s9 + $0x78] sm:$0xff]
      %v11041 = vld [vmem:[%s9 + $0x80] sm:$0xff]
      %v11042 = vld [vmem:[%s9 + $0x88] sm:$0xff]
      %v11043 = vld [vmem:[%s9 + $0x90] sm:$0xff]
      %v11044 = vld [vmem:[%s9 + $0x98] sm:$0xff]
      %v11045 = vld [vmem:[%s9 + $0xa0] sm:$0xff]
      %v11046 = vld [vmem:[%s9 + $0xa8] sm:$0xff]
      %v11047 = vld [vmem:[%s9 + $0xb0] sm:$0xff]
      %v11048 = vld [vmem:[%s9 + $0xb8] sm:$0xff]
      %v11049 = vld [vmem:[%s9 + $0xc0] sm:$0xff]
      %v11050 = vld [vmem:[%s9 + $0xc8] sm:$0xff]
      %v11051 = vld [vmem:[%s9 + $0xd0] sm:$0xff]
      %v11052 = vld [vmem:[%s9 + $0xd8] sm:$0xff]
      %v11053 = vld [vmem:[%s9 + $0xe0] sm:$0xff]
      %v11054 = vld [vmem:[%s9 + $0xe8] sm:$0xff]
      %v11055 = vld [vmem:[%s9 + $0xf0] sm:$0xff]
      %v11056 = vld [vmem:[%s9 + $0xf8] sm:$0xff]
      %v11057 = vld [vmem:[%s9 + $0x100] sm:$0xff]
      %v11058 = vld [vmem:[%s9 + $0x108] sm:$0xff]
      %v11059 = vld [vmem:[%s9 + $0x110] sm:$0xff]
      %v11060 = vld [vmem:[%s9 + $0x118] sm:$0xff]
      %v11061 = vld [vmem:[%s9 + $0x120] sm:$0xff]
      %v11062 = vld [vmem:[%s9 + $0x128] sm:$0xff]
      %v11063 = vld [vmem:[%s9 + $0x130] sm:$0xff]
      %v11064 = vld [vmem:[%s9 + $0x138] sm:$0xff]
      %v11105 = vunpack.c.l.b16 %v11025
      %v11106 = vunpack.c.h.b16 %v11025
      %v11107 = vunpack.c.l.b16 %v11026
      %v11108 = vunpack.c.h.b16 %v11026
      %v11109 = vunpack.c.l.b16 %v11027
      %v11110 = vunpack.c.h.b16 %v11027
      %v11111 = vunpack.c.l.b16 %v11028
      %v11112 = vunpack.c.h.b16 %v11028
      %v11113 = vunpack.c.l.b16 %v11029
      %v11114 = vunpack.c.h.b16 %v11029
      %v11115 = vunpack.c.l.b16 %v11030
      %v11116 = vunpack.c.h.b16 %v11030
      %v11117 = vunpack.c.l.b16 %v11031
      %v11118 = vunpack.c.h.b16 %v11031
      %v11119 = vunpack.c.l.b16 %v11032
      %v11120 = vunpack.c.h.b16 %v11032
      %v11121 = vunpack.c.l.b16 %v11033
      %v11122 = vunpack.c.h.b16 %v11033
      %v11123 = vunpack.c.l.b16 %v11034
      %v11124 = vunpack.c.h.b16 %v11034
      %v11125 = vunpack.c.l.b16 %v11035
      %v11126 = vunpack.c.h.b16 %v11035
      %v11127 = vunpack.c.l.b16 %v11036
      %v11128 = vunpack.c.h.b16 %v11036
      %v11129 = vunpack.c.l.b16 %v11037
      %v11130 = vunpack.c.h.b16 %v11037
      %v11131 = vunpack.c.l.b16 %v11038
      %v11132 = vunpack.c.h.b16 %v11038
      %v11133 = vunpack.c.l.b16 %v11039
      %v11134 = vunpack.c.h.b16 %v11039
      %v11135 = vunpack.c.l.b16 %v11040
      %v11136 = vunpack.c.h.b16 %v11040
      %v11137 = vunpack.c.l.b16 %v11041
      %v11138 = vunpack.c.h.b16 %v11041
      %v11139 = vunpack.c.l.b16 %v11042
      %v11140 = vunpack.c.h.b16 %v11042
      %v11141 = vunpack.c.l.b16 %v11043
      %v11142 = vunpack.c.h.b16 %v11043
      %v11143 = vunpack.c.l.b16 %v11044
      %v11144 = vunpack.c.h.b16 %v11044
      %v11145 = vunpack.c.l.b16 %v11045
      %v11146 = vunpack.c.h.b16 %v11045
      %v11147 = vunpack.c.l.b16 %v11046
      %v11148 = vunpack.c.h.b16 %v11046
      %v11149 = vunpack.c.l.b16 %v11047
      %v11150 = vunpack.c.h.b16 %v11047
      %v11151 = vunpack.c.l.b16 %v11048
      %v11152 = vunpack.c.h.b16 %v11048
      %v11153 = vunpack.c.l.b16 %v11049
      %v11154 = vunpack.c.h.b16 %v11049
      %v11155 = vunpack.c.l.b16 %v11050
      %v11156 = vunpack.c.h.b16 %v11050
      %v11157 = vunpack.c.l.b16 %v11051
      %v11158 = vunpack.c.h.b16 %v11051
      %v11159 = vunpack.c.l.b16 %v11052
      %v11160 = vunpack.c.h.b16 %v11052
      %v11161 = vunpack.c.l.b16 %v11053
      %v11162 = vunpack.c.h.b16 %v11053
      %v11163 = vunpack.c.l.b16 %v11054
      %v11164 = vunpack.c.h.b16 %v11054
      %v11165 = vunpack.c.l.b16 %v11055
      %v11166 = vunpack.c.h.b16 %v11055
      %v11167 = vunpack.c.l.b16 %v11056
      %v11168 = vunpack.c.h.b16 %v11056
      %v11169 = vunpack.c.l.b16 %v11057
      %v11170 = vunpack.c.h.b16 %v11057
      %v11171 = vunpack.c.l.b16 %v11058
      %v11172 = vunpack.c.h.b16 %v11058
      %v11173 = vunpack.c.l.b16 %v11059
      %v11174 = vunpack.c.h.b16 %v11059
      %v11175 = vunpack.c.l.b16 %v11060
      %v11176 = vunpack.c.h.b16 %v11060
      %v11177 = vunpack.c.l.b16 %v11061
      %v11178 = vunpack.c.h.b16 %v11061
      %v11179 = vunpack.c.l.b16 %v11062
      %v11180 = vunpack.c.h.b16 %v11062
      %v11181 = vunpack.c.l.b16 %v11063
      %v11182 = vunpack.c.h.b16 %v11063
      %v11183 = vunpack.c.l.b16 %v11064
      %v11184 = vunpack.c.h.b16 %v11064
      %v11185 = vpack.c.b16 %v11109, %v11105
      %v11186 = vpack.c.b16 %v11110, %v11106
      %v11187 = vpack.c.b16 %v11111, %v11107
      %v11188 = vpack.c.b16 %v11112, %v11108
      %v11189 = vpack.c.b16 %v11117, %v11113
      %v11190 = vpack.c.b16 %v11118, %v11114
      %v11191 = vpack.c.b16 %v11119, %v11115
      %v11192 = vpack.c.b16 %v11120, %v11116
      %v11193 = vpack.c.b16 %v11125, %v11121
      %v11194 = vpack.c.b16 %v11126, %v11122
      %v11195 = vpack.c.b16 %v11127, %v11123
      %v11196 = vpack.c.b16 %v11128, %v11124
      %v11197 = vpack.c.b16 %v11133, %v11129
      %v11198 = vpack.c.b16 %v11134, %v11130
      %v11199 = vpack.c.b16 %v11135, %v11131
      %v11200 = vpack.c.b16 %v11136, %v11132
      %v11201 = vpack.c.b16 %v11141, %v11137
      %v11202 = vpack.c.b16 %v11142, %v11138
      %v11203 = vpack.c.b16 %v11143, %v11139
      %v11204 = vpack.c.b16 %v11144, %v11140
      %v11205 = vpack.c.b16 %v11149, %v11145
      %v11206 = vpack.c.b16 %v11150, %v11146
      %v11207 = vpack.c.b16 %v11151, %v11147
      %v11208 = vpack.c.b16 %v11152, %v11148
      %v11209 = vpack.c.b16 %v11157, %v11153
      %v11210 = vpack.c.b16 %v11158, %v11154
      %v11211 = vpack.c.b16 %v11159, %v11155
      %v11212 = vpack.c.b16 %v11160, %v11156
      %v11213 = vpack.c.b16 %v11165, %v11161
      %v11214 = vpack.c.b16 %v11166, %v11162
      %v11215 = vpack.c.b16 %v11167, %v11163
      %v11216 = vpack.c.b16 %v11168, %v11164
      %v11217 = vpack.c.b16 %v11173, %v11169
      %v11218 = vpack.c.b16 %v11174, %v11170
      %v11219 = vpack.c.b16 %v11175, %v11171
      %v11220 = vpack.c.b16 %v11176, %v11172
      %v11221 = vpack.c.b16 %v11181, %v11177
      %v11222 = vpack.c.b16 %v11182, %v11178
      %v11223 = vpack.c.b16 %v11183, %v11179
      %v11224 = vpack.c.b16 %v11184, %v11180
      %v11256 = vsel %vm7529, %v11188, 0
      %v11259 = vsel %vm7529, %v11192, 0
      %v11262 = vsel %vm7529, %v11196, 0
      %v11265 = vsel %vm7529, %v11200, 0
      %v11268 = vsel %vm7529, %v11204, 0
      %v11271 = vsel %vm7529, %v11208, 0
      %v11274 = vsel %vm7529, %v11212, 0
      %v11277 = vsel %vm7529, %v11216, 0
      %v11280 = vsel %vm7529, %v11220, 0
      %v11283 = vsel %vm7529, %v11224, 0
      %v11285 = vsel %vm11018, %v10972, 0
      %11287 = vmatprep.subr.bf16.mxu0 0
      %11288 = vmatpush1.bf16.msra.mxu0 %v10984
      %11289 = vmatprep.subr.bf16.mxu0 0
      %11290 = vmatpush1.bf16.msra.mxu0 %v10982
      %11291 = vmatprep.subr.bf16.mxu0 0
      %11292 = vmatpush1.bf16.msra.mxu0 %v11020
      %11293 = vmatprep.subr.bf16.mxu0 0
      %11294 = vmatpush1.bf16.msra.mxu0 %v10653
      %11295 = vmatprep.subr.bf16.mxu0 0
      %11296 = vmatpush1.bf16.msra.mxu0 %v10650
      %11297 = vmatprep.subr.bf16.mxu0 0
      %11298 = vmatpush1.bf16.msra.mxu0 %v10647
      %11299 = vmatprep.subr.bf16.mxu0 0
      %11300 = vmatpush1.bf16.msra.mxu0 %v10644
      %11301 = vmatprep.subr.bf16.mxu0 0
      %11302 = vmatpush1.bf16.msra.mxu0 %v10641
      %11303 = vmatprep.subr.bf16.mxu0 0
      %11304 = vmatpush2.bf16.msra.mxu0 %v10838
      %11305 = vmatprep.subr.bf16.mxu0 0
      %11306 = vmatpush2.bf16.msra.mxu0 %v10835
      %11307 = vmatprep.subr.bf16.mxu0 0
      %11308 = vmatpush2.bf16.msra.mxu0 %v10832
      %11309 = vmatprep.subr.bf16.mxu0 0
      %11310 = vmatpush2.bf16.msra.mxu0 %v10829
      %11311 = vmatprep.subr.bf16.mxu0 0
      %11312 = vmatpush2.bf16.msra.mxu0 %v10826
      %11313 = vmatprep.subr.bf16.mxu0 0
      %11314 = vmatpush2.bf16.msra.mxu0 %v10990
      %11315 = vmatprep.subr.bf16.mxu0 0
      %11316 = vmatpush2.bf16.msra.mxu0 %v10988
      %11317 = vmatprep.subr.bf16.mxu0 0
      %11318 = vmatpush2.bf16.msra.mxu0 %v10986
      %11319 = vmatprep.mubr.bf16.mxu0 %v11186
      %11320 = vmatmul.mubr.bf16.gmra.mxu0 %v11185
      %v11321 = vpop.f32.mrf.mxu0
      %v11322 = vadd.f32 0.0, %v11321
      %v11323 = vpop.f32.mrf.mxu0
      %v11324 = vpop.f32.mrf.mxu0
      %v11325 = vadd.f32 0.0, %v11324
      %v11326 = vpop.f32.mrf.mxu0
      %11327 = vmatprep.mubr.bf16.mxu0 %v11190
      %11328 = vmatmul.mubr.bf16.gmra.mxu0 %v11189
      %v11329 = vpop.f32.mrf.mxu0
      %v11330 = vadd.f32 0.0, %v11329
      %v11331 = vpop.f32.mrf.mxu0
      %v11332 = vpop.f32.mrf.mxu0
      %v11333 = vadd.f32 0.0, %v11332
      %v11334 = vpop.f32.mrf.mxu0
      %11335 = vmatprep.mubr.bf16.mxu0 %v11194
      %11336 = vmatmul.mubr.bf16.gmra.mxu0 %v11193
      %v11337 = vpop.f32.mrf.mxu0
      %v11338 = vadd.f32 0.0, %v11337
      %v11339 = vpop.f32.mrf.mxu0
      %v11340 = vpop.f32.mrf.mxu0
      %v11341 = vadd.f32 0.0, %v11340
      %v11342 = vpop.f32.mrf.mxu0
      %11343 = vmatprep.mubr.bf16.mxu0 %v11198
      %11344 = vmatmul.mubr.bf16.gmra.mxu0 %v11197
      %v11345 = vpop.f32.mrf.mxu0
      %v11346 = vadd.f32 0.0, %v11345
      %v11347 = vpop.f32.mrf.mxu0
      %v11348 = vpop.f32.mrf.mxu0
      %v11349 = vadd.f32 0.0, %v11348
      %v11350 = vpop.f32.mrf.mxu0
      %11351 = vmatprep.mubr.bf16.mxu0 %v11202
      %11352 = vmatmul.mubr.bf16.gmra.mxu0 %v11201
      %v11353 = vpop.f32.mrf.mxu0
      %v11354 = vadd.f32 0.0, %v11353
      %v11355 = vpop.f32.mrf.mxu0
      %v11356 = vpop.f32.mrf.mxu0
      %v11357 = vadd.f32 0.0, %v11356
      %v11358 = vpop.f32.mrf.mxu0
      %11359 = vmatprep.mubr.bf16.mxu0 %v11206
      %11360 = vmatmul.mubr.bf16.gmra.mxu0 %v11205
      %v11361 = vpop.f32.mrf.mxu0
      %v11362 = vadd.f32 0.0, %v11361
      %v11363 = vpop.f32.mrf.mxu0
      %v11364 = vpop.f32.mrf.mxu0
      %v11365 = vadd.f32 0.0, %v11364
      %v11366 = vpop.f32.mrf.mxu0
      %11367 = vmatprep.mubr.bf16.mxu0 %v11210
      %11368 = vmatmul.mubr.bf16.gmra.mxu0 %v11209
      %v11369 = vpop.f32.mrf.mxu0
      %v11370 = vadd.f32 0.0, %v11369
      %v11371 = vpop.f32.mrf.mxu0
      %v11372 = vpop.f32.mrf.mxu0
      %v11373 = vadd.f32 0.0, %v11372
      %v11374 = vpop.f32.mrf.mxu0
      %11375 = vmatprep.mubr.bf16.mxu0 %v11214
      %11376 = vmatmul.mubr.bf16.gmra.mxu0 %v11213
      %v11377 = vpop.f32.mrf.mxu0
      %v11378 = vadd.f32 0.0, %v11377
      %v11379 = vpop.f32.mrf.mxu0
      %v11380 = vpop.f32.mrf.mxu0
      %v11381 = vadd.f32 0.0, %v11380
      %v11382 = vpop.f32.mrf.mxu0
      %11383 = vmatprep.mubr.bf16.mxu0 %v11218
      %11384 = vmatmul.mubr.bf16.gmra.mxu0 %v11217
      %v11385 = vpop.f32.mrf.mxu0
      %v11386 = vadd.f32 0.0, %v11385
      %v11387 = vpop.f32.mrf.mxu0
      %v11388 = vpop.f32.mrf.mxu0
      %v11389 = vadd.f32 0.0, %v11388
      %v11390 = vpop.f32.mrf.mxu0
      %11391 = vmatprep.mubr.bf16.mxu0 %v11222
      %11392 = vmatmul.mubr.bf16.gmra.mxu0 %v11221
      %v11393 = vpop.f32.mrf.mxu0
      %v11394 = vadd.f32 0.0, %v11393
      %v11395 = vpop.f32.mrf.mxu0
      %v11396 = vpop.f32.mrf.mxu0
      %v11397 = vadd.f32 0.0, %v11396
      %v11398 = vpop.f32.mrf.mxu0
      %11399 = vdwg.mxu0
      %11400 = vmatprep.subr.bf16.mxu0 0
      %11401 = vmatpush1.bf16.msra.mxu0 %v10960
      %11402 = vmatprep.subr.bf16.mxu0 0
      %11403 = vmatpush1.bf16.msra.mxu0 %v10957
      %11404 = vmatprep.subr.bf16.mxu0 0
      %11405 = vmatpush1.bf16.msra.mxu0 %v11012
      %11406 = vmatprep.subr.bf16.mxu0 0
      %11407 = vmatpush1.bf16.msra.mxu0 %v11010
      %11408 = vmatprep.subr.bf16.mxu0 0
      %11409 = vmatpush1.bf16.msra.mxu0 %v11008
      %11410 = vmatprep.subr.bf16.mxu0 0
      %11411 = vmatpush1.bf16.msra.mxu0 %v11006
      %11412 = vmatprep.subr.bf16.mxu0 0
      %11413 = vmatpush1.bf16.msra.mxu0 %v11004
      %11414 = vmatprep.subr.bf16.mxu0 0
      %11415 = vmatpush1.bf16.msra.mxu0 %v11023
      %11416 = vmatprep.subr.bf16.mxu0 0
      %11417 = vmatpush2.bf16.msra.mxu0 0
      %11418 = vmatprep.subr.bf16.mxu0 0
      %11419 = vmatpush2.bf16.msra.mxu0 0
      %11420 = vmatprep.subr.bf16.mxu0 0
      %11421 = vmatpush2.bf16.msra.mxu0 0
      %11422 = vmatprep.subr.bf16.mxu0 0
      %11423 = vmatpush2.bf16.msra.mxu0 0
      %11424 = vmatprep.subr.bf16.mxu0 0
      %11425 = vmatpush2.bf16.msra.mxu0 %v11285
      %11426 = vmatprep.subr.bf16.mxu0 0
      %11427 = vmatpush2.bf16.msra.mxu0 %v10969
      %11428 = vmatprep.subr.bf16.mxu0 0
      %11429 = vmatpush2.bf16.msra.mxu0 %v10966
      %11430 = vmatprep.subr.bf16.mxu0 0
      %11431 = vmatpush2.bf16.msra.mxu0 %v10963
      %11432 = vmatprep.mubr.bf16.mxu0 %v11256
      %11433 = vmatmul.mubr.bf16.gmra.mxu0 %v11187
      %v11434 = vpop.f32.mrf.mxu0
      %v11435 = vadd.f32 %v11322, %v11434
      %v11436 = vpop.f32.mrf.mxu0
      %v11437 = vpop.f32.mrf.mxu0
      %v11438 = vadd.f32 %v11325, %v11437
      %v11439 = vpop.f32.mrf.mxu0
      %11440 = vmatprep.mubr.bf16.mxu0 %v11259
      %11441 = vmatmul.mubr.bf16.gmra.mxu0 %v11191
      %v11442 = vpop.f32.mrf.mxu0
      %v11443 = vadd.f32 %v11330, %v11442
      %v11444 = vpop.f32.mrf.mxu0
      %v11445 = vpop.f32.mrf.mxu0
      %v11446 = vadd.f32 %v11333, %v11445
      %v11447 = vpop.f32.mrf.mxu0
      %11448 = vmatprep.mubr.bf16.mxu0 %v11262
      %11449 = vmatmul.mubr.bf16.gmra.mxu0 %v11195
      %v11450 = vpop.f32.mrf.mxu0
      %v11451 = vadd.f32 %v11338, %v11450
      %v11452 = vpop.f32.mrf.mxu0
      %v11453 = vpop.f32.mrf.mxu0
      %v11454 = vadd.f32 %v11341, %v11453
      %v11455 = vpop.f32.mrf.mxu0
      %11456 = vmatprep.mubr.bf16.mxu0 %v11265
      %11457 = vmatmul.mubr.bf16.gmra.mxu0 %v11199
      %v11458 = vpop.f32.mrf.mxu0
      %v11459 = vadd.f32 %v11346, %v11458
      %v11460 = vpop.f32.mrf.mxu0
      %v11461 = vpop.f32.mrf.mxu0
      %v11462 = vadd.f32 %v11349, %v11461
      %v11463 = vpop.f32.mrf.mxu0
      %11464 = vmatprep.mubr.bf16.mxu0 %v11268
      %11465 = vmatmul.mubr.bf16.gmra.mxu0 %v11203
      %v11466 = vpop.f32.mrf.mxu0
      %v11467 = vadd.f32 %v11354, %v11466
      %v11468 = vpop.f32.mrf.mxu0
      %v11469 = vpop.f32.mrf.mxu0
      %v11470 = vadd.f32 %v11357, %v11469
      %v11471 = vpop.f32.mrf.mxu0
      %11472 = vmatprep.mubr.bf16.mxu0 %v11271
      %11473 = vmatmul.mubr.bf16.gmra.mxu0 %v11207
      %v11474 = vpop.f32.mrf.mxu0
      %v11475 = vadd.f32 %v11362, %v11474
      %v11476 = vpop.f32.mrf.mxu0
      %v11477 = vpop.f32.mrf.mxu0
      %v11478 = vadd.f32 %v11365, %v11477
      %v11479 = vpop.f32.mrf.mxu0
      %11480 = vmatprep.mubr.bf16.mxu0 %v11274
      %11481 = vmatmul.mubr.bf16.gmra.mxu0 %v11211
      %v11482 = vpop.f32.mrf.mxu0
      %v11483 = vadd.f32 %v11370, %v11482
      %v11484 = vpop.f32.mrf.mxu0
      %v11485 = vpop.f32.mrf.mxu0
      %v11486 = vadd.f32 %v11373, %v11485
      %v11487 = vpop.f32.mrf.mxu0
      %11488 = vmatprep.mubr.bf16.mxu0 %v11277
      %11489 = vmatmul.mubr.bf16.gmra.mxu0 %v11215
      %v11490 = vpop.f32.mrf.mxu0
      %v11491 = vadd.f32 %v11378, %v11490
      %v11492 = vpop.f32.mrf.mxu0
      %v11493 = vpop.f32.mrf.mxu0
      %v11494 = vadd.f32 %v11381, %v11493
      %v11495 = vpop.f32.mrf.mxu0
      %11496 = vmatprep.mubr.bf16.mxu0 %v11280
      %11497 = vmatmul.mubr.bf16.gmra.mxu0 %v11219
      %v11498 = vpop.f32.mrf.mxu0
      %v11499 = vadd.f32 %v11386, %v11498
      %v11500 = vpop.f32.mrf.mxu0
      %v11501 = vpop.f32.mrf.mxu0
      %v11502 = vadd.f32 %v11389, %v11501
      %v11503 = vpop.f32.mrf.mxu0
      %11504 = vmatprep.mubr.bf16.mxu0 %v11283
      %11505 = vmatmul.mubr.bf16.gmra.mxu0 %v11223
      %v11506 = vpop.f32.mrf.mxu0
      %v11507 = vadd.f32 %v11394, %v11506
      %v11508 = vpop.f32.mrf.mxu0
      %v11509 = vpop.f32.mrf.mxu0
      %v11510 = vadd.f32 %v11397, %v11509
      %v11511 = vpop.f32.mrf.mxu0
      %11512 = vdwg.mxu0
      %v11513 = vmax.f32 %v11435, %v11475
      %v11514 = vmax.f32 %v11438, %v11478
      %v11515 = vmax.f32 %v11443, %v11483
      %v11516 = vmax.f32 %v11446, %v11486
      %v11517 = vmax.f32 %v11451, %v11491
      %v11518 = vmax.f32 %v11454, %v11494
      %v11519 = vmax.f32 %v11459, %v11499
      %v11520 = vmax.f32 %v11462, %v11502
      %v11521 = vmax.f32 %v11467, %v11507
      %v11522 = vmax.f32 %v11470, %v11510
      %v11523 = vld [vmem:[%s10] sm:$0xff]
      %v11524 = vld [vmem:[%s10 + $0x8] sm:$0xff]
      %v11525 = vld [vmem:[%s10 + $0x10] sm:$0xff]
      %v11526 = vld [vmem:[%s10 + $0x18] sm:$0xff]
      %v11527 = vld [vmem:[%s10 + $0x20] sm:$0xff]
      %v11528 = vld [vmem:[%s10 + $0x28] sm:$0xff]
      %v11529 = vld [vmem:[%s10 + $0x30] sm:$0xff]
      %v11530 = vld [vmem:[%s10 + $0x38] sm:$0xff]
      %v11531 = vld [vmem:[%s10 + $0x40] sm:$0xff]
      %v11532 = vld [vmem:[%s10 + $0x48] sm:$0xff]
      %11534 = vset.pattern.permute.xlu0 0
      %11535 = vperm.xlu0 %11534, %v11523
      %v11536 = vpop.permute.xlu0 %11535
      %11539 = vset.pattern.permute.xlu0 0
      %11540 = vperm.xlu0 %11539, %v11524
      %v11541 = vpop.permute.xlu0 %11540
      %11544 = vset.pattern.permute.xlu0 0
      %11545 = vperm.xlu0 %11544, %v11525
      %v11546 = vpop.permute.xlu0 %11545
      %11549 = vset.pattern.permute.xlu0 0
      %11550 = vperm.xlu0 %11549, %v11526
      %v11551 = vpop.permute.xlu0 %11550
      %11554 = vset.pattern.permute.xlu0 0
      %11555 = vperm.xlu0 %11554, %v11527
      %v11556 = vpop.permute.xlu0 %11555
      %11559 = vset.pattern.permute.xlu0 0
      %11560 = vperm.xlu0 %11559, %v11528
      %v11561 = vpop.permute.xlu0 %11560
      %11564 = vset.pattern.permute.xlu0 0
      %11565 = vperm.xlu0 %11564, %v11529
      %v11566 = vpop.permute.xlu0 %11565
      %11569 = vset.pattern.permute.xlu0 0
      %11570 = vperm.xlu0 %11569, %v11530
      %v11571 = vpop.permute.xlu0 %11570
      %11574 = vset.pattern.permute.xlu0 0
      %11575 = vperm.xlu0 %11574, %v11531
      %v11576 = vpop.permute.xlu0 %11575
      %11579 = vset.pattern.permute.xlu0 0
      %11580 = vperm.xlu0 %11579, %v11532
      %v11581 = vpop.permute.xlu0 %11580
      %v11583 = vadd.f32 %v11513, %v11536
      %v11584 = vadd.f32 %v11514, %v11541
      %v11585 = vadd.f32 %v11515, %v11546
      %v11586 = vadd.f32 %v11516, %v11551
      %v11587 = vadd.f32 %v11517, %v11556
      %v11588 = vadd.f32 %v11518, %v11561
      %v11589 = vadd.f32 %v11519, %v11566
      %v11590 = vadd.f32 %v11520, %v11571
      %v11591 = vadd.f32 %v11521, %v11576
      %v11592 = vadd.f32 %v11522, %v11581
      %v11593 = vmax.f32 %v11583, 0.0
      %v11594 = vmax.f32 %v11584, 0.0
      %v11595 = vmax.f32 %v11585, 0.0
      %v11596 = vmax.f32 %v11586, 0.0
      %v11597 = vmax.f32 %v11587, 0.0
      %v11598 = vmax.f32 %v11588, 0.0
      %v11599 = vmax.f32 %v11589, 0.0
      %v11600 = vmax.f32 %v11590, 0.0
      %v11601 = vmax.f32 %v11591, 0.0
      %v11602 = vmax.f32 %v11592, 0.0
      %v11603 = vld [vmem:[%s11] sm:$0xff]
      %v11604 = vld [vmem:[%s11 + $0x8] sm:$0xff]
      %v11605 = vld [vmem:[%s11 + $0x10] sm:$0xff]
      %v11606 = vld [vmem:[%s11 + $0x18] sm:$0xff]
      %v11607 = vld [vmem:[%s11 + $0x20] sm:$0xff]
      %vm11608 = vcmask 326656
      %v11610 = vsel %vm11608, %v11593, 0
      %v11613 = vsel %vm11608, %v11594, 0
      %v11616 = vsel %vm11608, %v11595, 0
      %v11619 = vsel %vm11608, %v11596, 0
      %v11622 = vsel %vm11608, %v11597, 0
      %v11625 = vsel %vm11608, %v11598, 0
      %v11628 = vsel %vm11608, %v11599, 0
      %v11631 = vsel %vm11608, %v11600, 0
      %v11634 = vsel %vm11608, %v11601, 0
      %v11637 = vsel %vm11608, %v11602, 0
      %11639 = vmatprep.subr.mxu0 0.0
      %11640 = vmatpush1.msra.mxu0 0.0
      %11641 = vmatprep.subr.mxu0 0.0
      %11642 = vmatpush1.msra.mxu0 0.0
      %11643 = vmatprep.subr.mxu0 0.0
      %11644 = vmatpush1.msra.mxu0 0.0
      %11645 = vmatprep.subr.mxu0 0.0
      %11646 = vmatpush1.msra.mxu0 0.0
      %11647 = vmatprep.subr.mxu0 0.0
      %11648 = vmatpush1.msra.mxu0 0.0
      %11649 = vmatprep.subr.mxu0 0.0
      %11650 = vmatpush1.msra.mxu0 0.0
      %11651 = vmatprep.subr.mxu0 0.0
      %11652 = vmatpush1.msra.mxu0 0.0
      %11653 = vmatprep.subr.mxu0 0.0
      %11654 = vmatpush1.msra.mxu0 0.0
      %11655 = vmatprep.subr.mxu0 0.0
      %11656 = vmatpush1.msra.mxu0 0.0
      %11657 = vmatprep.subr.mxu0 0.0
      %11658 = vmatpush1.msra.mxu0 0.0
      %11659 = vmatprep.subr.mxu0 0.0
      %11660 = vmatpush1.msra.mxu0 0.0
      %11661 = vmatprep.subr.mxu0 0.0
      %11662 = vmatpush1.msra.mxu0 %v11607
      %11663 = vmatprep.subr.mxu0 0.0
      %11664 = vmatpush1.msra.mxu0 %v11606
      %11665 = vmatprep.subr.mxu0 0.0
      %11666 = vmatpush1.msra.mxu0 %v11605
      %11667 = vmatprep.subr.mxu0 0.0
      %11668 = vmatpush1.msra.mxu0 %v11604
      %11669 = vmatprep.subr.mxu0 0.0
      %11670 = vmatpush1.msra.mxu0 %v11603
      %11671 = vmatprep.subr.mxu0 0.0
      %11672 = vmatpush2.msra.mxu0 0.0
      %11673 = vmatprep.subr.mxu0 0.0
      %11674 = vmatpush2.msra.mxu0 0.0
      %11675 = vmatprep.subr.mxu0 0.0
      %11676 = vmatpush2.msra.mxu0 0.0
      %11677 = vmatprep.subr.mxu0 0.0
      %11678 = vmatpush2.msra.mxu0 0.0
      %11679 = vmatprep.subr.mxu0 0.0
      %11680 = vmatpush2.msra.mxu0 0.0
      %11681 = vmatprep.subr.mxu0 0.0
      %11682 = vmatpush2.msra.mxu0 0.0
      %11683 = vmatprep.subr.mxu0 0.0
      %11684 = vmatpush2.msra.mxu0 0.0
      %11685 = vmatprep.subr.mxu0 0.0
      %11686 = vmatpush2.msra.mxu0 0.0
      %11687 = vmatprep.subr.mxu0 0.0
      %11688 = vmatpush2.msra.mxu0 0.0
      %11689 = vmatprep.subr.mxu0 0.0
      %11690 = vmatpush2.msra.mxu0 0.0
      %11691 = vmatprep.subr.mxu0 0.0
      %11692 = vmatpush2.msra.mxu0 0.0
      %11693 = vmatprep.subr.mxu0 0.0
      %11694 = vmatpush2.msra.mxu0 0.0
      %11695 = vmatprep.subr.mxu0 0.0
      %11696 = vmatpush2.msra.mxu0 0.0
      %11697 = vmatprep.subr.mxu0 0.0
      %11698 = vmatpush2.msra.mxu0 0.0
      %11699 = vmatprep.subr.mxu0 0.0
      %11700 = vmatpush2.msra.mxu0 0.0
      %11701 = vmatprep.subr.mxu0 0.0
      %11702 = vmatpush2.msra.mxu0 0.0
      %11703 = vmatprep.mubr.f32.mxu0 0.0
      %11704 = vmatmul.mubr.f32.gmra.mxu0 %v11610
      %v11705 = vpop.f32.mrf.mxu0
      %v11706 = vadd.f32 0.0, %v11705
      %v11707 = vpop.f32.mrf.mxu0
      %11708 = vmatprep.mubr.f32.mxu0 0.0
      %11709 = vmatmul.mubr.f32.gmra.mxu0 %v11613
      %v11710 = vpop.f32.mrf.mxu0
      %v11711 = vadd.f32 0.0, %v11710
      %v11712 = vpop.f32.mrf.mxu0
      %11713 = vmatprep.mubr.f32.mxu0 0.0
      %11714 = vmatmul.mubr.f32.gmra.mxu0 %v11616
      %v11715 = vpop.f32.mrf.mxu0
      %v11716 = vadd.f32 0.0, %v11715
      %v11717 = vpop.f32.mrf.mxu0
      %11718 = vmatprep.mubr.f32.mxu0 0.0
      %11719 = vmatmul.mubr.f32.gmra.mxu0 %v11619
      %v11720 = vpop.f32.mrf.mxu0
      %v11721 = vadd.f32 0.0, %v11720
      %v11722 = vpop.f32.mrf.mxu0
      %11723 = vmatprep.mubr.f32.mxu0 0.0
      %11724 = vmatmul.mubr.f32.gmra.mxu0 %v11622
      %v11725 = vpop.f32.mrf.mxu0
      %v11726 = vadd.f32 0.0, %v11725
      %v11727 = vpop.f32.mrf.mxu0
      %11728 = vmatprep.mubr.f32.mxu0 0.0
      %11729 = vmatmul.mubr.f32.gmra.mxu0 %v11625
      %v11730 = vpop.f32.mrf.mxu0
      %v11731 = vadd.f32 0.0, %v11730
      %v11732 = vpop.f32.mrf.mxu0
      %11733 = vmatprep.mubr.f32.mxu0 0.0
      %11734 = vmatmul.mubr.f32.gmra.mxu0 %v11628
      %v11735 = vpop.f32.mrf.mxu0
      %v11736 = vadd.f32 0.0, %v11735
      %v11737 = vpop.f32.mrf.mxu0
      %11738 = vmatprep.mubr.f32.mxu0 0.0
      %11739 = vmatmul.mubr.f32.gmra.mxu0 %v11631
      %v11740 = vpop.f32.mrf.mxu0
      %v11741 = vadd.f32 0.0, %v11740
      %v11742 = vpop.f32.mrf.mxu0
      %11743 = vmatprep.mubr.f32.mxu0 0.0
      %11744 = vmatmul.mubr.f32.gmra.mxu0 %v11634
      %v11745 = vpop.f32.mrf.mxu0
      %v11746 = vadd.f32 0.0, %v11745
      %v11747 = vpop.f32.mrf.mxu0
      %11748 = vmatprep.mubr.f32.mxu0 0.0
      %11749 = vmatmul.mubr.f32.gmra.mxu0 %v11637
      %v11750 = vpop.f32.mrf.mxu0
      %v11751 = vadd.f32 0.0, %v11750
      %v11752 = vpop.f32.mrf.mxu0
      %11753 = vdwg.mxu0
      %v11754 = vld [vmem:[%s12] sm:$0xff]
      %v11755 = vld [vmem:[%s12 + $0x8] sm:$0xff]
      %v11756 = vld [vmem:[%s12 + $0x10] sm:$0xff]
      %v11757 = vld [vmem:[%s12 + $0x18] sm:$0xff]
      %v11758 = vld [vmem:[%s12 + $0x20] sm:$0xff]
      %11759 = vmatprep.subr.mxu0 0.0
      %11760 = vmatpush1.msra.mxu0 0.0
      %11761 = vmatprep.subr.mxu0 0.0
      %11762 = vmatpush1.msra.mxu0 0.0
      %11763 = vmatprep.subr.mxu0 0.0
      %11764 = vmatpush1.msra.mxu0 0.0
      %11765 = vmatprep.subr.mxu0 0.0
      %11766 = vmatpush1.msra.mxu0 0.0
      %11767 = vmatprep.subr.mxu0 0.0
      %11768 = vmatpush1.msra.mxu0 0.0
      %11769 = vmatprep.subr.mxu0 0.0
      %11770 = vmatpush1.msra.mxu0 0.0
      %11771 = vmatprep.subr.mxu0 0.0
      %11772 = vmatpush1.msra.mxu0 0.0
      %11773 = vmatprep.subr.mxu0 0.0
      %11774 = vmatpush1.msra.mxu0 0.0
      %11775 = vmatprep.subr.mxu0 0.0
      %11776 = vmatpush1.msra.mxu0 0.0
      %11777 = vmatprep.subr.mxu0 0.0
      %11778 = vmatpush1.msra.mxu0 0.0
      %11779 = vmatprep.subr.mxu0 0.0
      %11780 = vmatpush1.msra.mxu0 0.0
      %11781 = vmatprep.subr.mxu0 0.0
      %11782 = vmatpush1.msra.mxu0 %v11758
      %11783 = vmatprep.subr.mxu0 0.0
      %11784 = vmatpush1.msra.mxu0 %v11757
      %11785 = vmatprep.subr.mxu0 0.0
      %11786 = vmatpush1.msra.mxu0 %v11756
      %11787 = vmatprep.subr.mxu0 0.0
      %11788 = vmatpush1.msra.mxu0 %v11755
      %11789 = vmatprep.subr.mxu0 0.0
      %11790 = vmatpush1.msra.mxu0 %v11754
      %11791 = vmatprep.subr.mxu0 0.0
      %11792 = vmatpush2.msra.mxu0 0.0
      %11793 = vmatprep.subr.mxu0 0.0
      %11794 = vmatpush2.msra.mxu0 0.0
      %11795 = vmatprep.subr.mxu0 0.0
      %11796 = vmatpush2.msra.mxu0 0.0
      %11797 = vmatprep.subr.mxu0 0.0
      %11798 = vmatpush2.msra.mxu0 0.0
      %11799 = vmatprep.subr.mxu0 0.0
      %11800 = vmatpush2.msra.mxu0 0.0
      %11801 = vmatprep.subr.mxu0 0.0
      %11802 = vmatpush2.msra.mxu0 0.0
      %11803 = vmatprep.subr.mxu0 0.0
      %11804 = vmatpush2.msra.mxu0 0.0
      %11805 = vmatprep.subr.mxu0 0.0
      %11806 = vmatpush2.msra.mxu0 0.0
      %11807 = vmatprep.subr.mxu0 0.0
      %11808 = vmatpush2.msra.mxu0 0.0
      %11809 = vmatprep.subr.mxu0 0.0
      %11810 = vmatpush2.msra.mxu0 0.0
      %11811 = vmatprep.subr.mxu0 0.0
      %11812 = vmatpush2.msra.mxu0 0.0
      %11813 = vmatprep.subr.mxu0 0.0
      %11814 = vmatpush2.msra.mxu0 0.0
      %11815 = vmatprep.subr.mxu0 0.0
      %11816 = vmatpush2.msra.mxu0 0.0
      %11817 = vmatprep.subr.mxu0 0.0
      %11818 = vmatpush2.msra.mxu0 0.0
      %11819 = vmatprep.subr.mxu0 0.0
      %11820 = vmatpush2.msra.mxu0 0.0
      %11821 = vmatprep.subr.mxu0 0.0
      %11822 = vmatpush2.msra.mxu0 0.0
      %11823 = vmatprep.mubr.f32.mxu0 0.0
      %11824 = vmatmul.mubr.f32.gmra.mxu0 %v11610
      %v11825 = vpop.f32.mrf.mxu0
      %v11826 = vadd.f32 0.0, %v11825
      %v11827 = vpop.f32.mrf.mxu0
      %11828 = vmatprep.mubr.f32.mxu0 0.0
      %11829 = vmatmul.mubr.f32.gmra.mxu0 %v11613
      %v11830 = vpop.f32.mrf.mxu0
      %v11831 = vadd.f32 0.0, %v11830
      %v11832 = vpop.f32.mrf.mxu0
      %11833 = vmatprep.mubr.f32.mxu0 0.0
      %11834 = vmatmul.mubr.f32.gmra.mxu0 %v11616
      %v11835 = vpop.f32.mrf.mxu0
      %v11836 = vadd.f32 0.0, %v11835
      %v11837 = vpop.f32.mrf.mxu0
      %11838 = vmatprep.mubr.f32.mxu0 0.0
      %11839 = vmatmul.mubr.f32.gmra.mxu0 %v11619
      %v11840 = vpop.f32.mrf.mxu0
      %v11841 = vadd.f32 0.0, %v11840
      %v11842 = vpop.f32.mrf.mxu0
      %11843 = vmatprep.mubr.f32.mxu0 0.0
      %11844 = vmatmul.mubr.f32.gmra.mxu0 %v11622
      %v11845 = vpop.f32.mrf.mxu0
      %v11846 = vadd.f32 0.0, %v11845
      %v11847 = vpop.f32.mrf.mxu0
      %11848 = vmatprep.mubr.f32.mxu0 0.0
      %11849 = vmatmul.mubr.f32.gmra.mxu0 %v11625
      %v11850 = vpop.f32.mrf.mxu0
      %v11851 = vadd.f32 0.0, %v11850
      %v11852 = vpop.f32.mrf.mxu0
      %11853 = vmatprep.mubr.f32.mxu0 0.0
      %11854 = vmatmul.mubr.f32.gmra.mxu0 %v11628
      %v11855 = vpop.f32.mrf.mxu0
      %v11856 = vadd.f32 0.0, %v11855
      %v11857 = vpop.f32.mrf.mxu0
      %11858 = vmatprep.mubr.f32.mxu0 0.0
      %11859 = vmatmul.mubr.f32.gmra.mxu0 %v11631
      %v11860 = vpop.f32.mrf.mxu0
      %v11861 = vadd.f32 0.0, %v11860
      %v11862 = vpop.f32.mrf.mxu0
      %11863 = vmatprep.mubr.f32.mxu0 0.0
      %11864 = vmatmul.mubr.f32.gmra.mxu0 %v11634
      %v11865 = vpop.f32.mrf.mxu0
      %v11866 = vadd.f32 0.0, %v11865
      %v11867 = vpop.f32.mrf.mxu0
      %11868 = vmatprep.mubr.f32.mxu0 0.0
      %11869 = vmatmul.mubr.f32.gmra.mxu0 %v11637
      %v11870 = vpop.f32.mrf.mxu0
      %v11871 = vadd.f32 0.0, %v11870
      %v11872 = vpop.f32.mrf.mxu0
      %11873 = vdwg.mxu0
      %v11874 = vmax.f32 %v11706, %v11826
      %v11875 = vmax.f32 %v11711, %v11831
      %v11876 = vmax.f32 %v11716, %v11836
      %v11877 = vmax.f32 %v11721, %v11841
      %v11878 = vmax.f32 %v11726, %v11846
      %v11879 = vmax.f32 %v11731, %v11851
      %v11880 = vmax.f32 %v11736, %v11856
      %v11881 = vmax.f32 %v11741, %v11861
      %v11882 = vmax.f32 %v11746, %v11866
      %v11883 = vmax.f32 %v11751, %v11871
      %11894 = vrot.lane.b32.xlu0 %v11874, 124
      %v11895 = vpop.permute.xlu0 %11894
      %11896 = vrot.lane.b32.xlu0 %v11875, 124
      %v11897 = vpop.permute.xlu0 %11896
      %11898 = vrot.lane.b32.xlu0 %v11876, 124
      %v11899 = vpop.permute.xlu0 %11898
      %11900 = vrot.lane.b32.xlu0 %v11877, 124
      %v11901 = vpop.permute.xlu0 %11900
      %11902 = vrot.lane.b32.xlu0 %v11878, 124
      %v11903 = vpop.permute.xlu0 %11902
      %11904 = vrot.lane.b32.xlu0 %v11879, 124
      %v11905 = vpop.permute.xlu0 %11904
      %11906 = vrot.lane.b32.xlu0 %v11880, 124
      %v11907 = vpop.permute.xlu0 %11906
      %11908 = vrot.lane.b32.xlu0 %v11881, 124
      %v11909 = vpop.permute.xlu0 %11908
      %11910 = vrot.lane.b32.xlu0 %v11882, 124
      %v11911 = vpop.permute.xlu0 %11910
      %11912 = vrot.lane.b32.xlu0 %v11883, 124
      %v11913 = vpop.permute.xlu0 %11912
      %11924 = vrot.lane.b32.xlu0 %v11874, 120
      %v11925 = vpop.permute.xlu0 %11924
      %11926 = vrot.lane.b32.xlu0 %v11875, 120
      %v11927 = vpop.permute.xlu0 %11926
      %11928 = vrot.lane.b32.xlu0 %v11876, 120
      %v11929 = vpop.permute.xlu0 %11928
      %11930 = vrot.lane.b32.xlu0 %v11877, 120
      %v11931 = vpop.permute.xlu0 %11930
      %11932 = vrot.lane.b32.xlu0 %v11878, 120
      %v11933 = vpop.permute.xlu0 %11932
      %11934 = vrot.lane.b32.xlu0 %v11879, 120
      %v11935 = vpop.permute.xlu0 %11934
      %11936 = vrot.lane.b32.xlu0 %v11880, 120
      %v11937 = vpop.permute.xlu0 %11936
      %11938 = vrot.lane.b32.xlu0 %v11881, 120
      %v11939 = vpop.permute.xlu0 %11938
      %11940 = vrot.lane.b32.xlu0 %v11882, 120
      %v11941 = vpop.permute.xlu0 %11940
      %11942 = vrot.lane.b32.xlu0 %v11883, 120
      %v11943 = vpop.permute.xlu0 %11942
      %11954 = vrot.lane.b32.xlu0 %v11874, 116
      %v11955 = vpop.permute.xlu0 %11954
      %11956 = vrot.lane.b32.xlu0 %v11875, 116
      %v11957 = vpop.permute.xlu0 %11956
      %11958 = vrot.lane.b32.xlu0 %v11876, 116
      %v11959 = vpop.permute.xlu0 %11958
      %11960 = vrot.lane.b32.xlu0 %v11877, 116
      %v11961 = vpop.permute.xlu0 %11960
      %11962 = vrot.lane.b32.xlu0 %v11878, 116
      %v11963 = vpop.permute.xlu0 %11962
      %11964 = vrot.lane.b32.xlu0 %v11879, 116
      %v11965 = vpop.permute.xlu0 %11964
      %11966 = vrot.lane.b32.xlu0 %v11880, 116
      %v11967 = vpop.permute.xlu0 %11966
      %11968 = vrot.lane.b32.xlu0 %v11881, 116
      %v11969 = vpop.permute.xlu0 %11968
      %11970 = vrot.lane.b32.xlu0 %v11882, 116
      %v11971 = vpop.permute.xlu0 %11970
      %11972 = vrot.lane.b32.xlu0 %v11883, 116
      %v11973 = vpop.permute.xlu0 %11972
      %11984 = vrot.lane.b32.xlu0 %v11874, 112
      %v11985 = vpop.permute.xlu0 %11984
      %11986 = vrot.lane.b32.xlu0 %v11875, 112
      %v11987 = vpop.permute.xlu0 %11986
      %11988 = vrot.lane.b32.xlu0 %v11876, 112
      %v11989 = vpop.permute.xlu0 %11988
      %11990 = vrot.lane.b32.xlu0 %v11877, 112
      %v11991 = vpop.permute.xlu0 %11990
      %11992 = vrot.lane.b32.xlu0 %v11878, 112
      %v11993 = vpop.permute.xlu0 %11992
      %11994 = vrot.lane.b32.xlu0 %v11879, 112
      %v11995 = vpop.permute.xlu0 %11994
      %11996 = vrot.lane.b32.xlu0 %v11880, 112
      %v11997 = vpop.permute.xlu0 %11996
      %11998 = vrot.lane.b32.xlu0 %v11881, 112
      %v11999 = vpop.permute.xlu0 %11998
      %12000 = vrot.lane.b32.xlu0 %v11882, 112
      %v12001 = vpop.permute.xlu0 %12000
      %12002 = vrot.lane.b32.xlu0 %v11883, 112
      %v12003 = vpop.permute.xlu0 %12002
      %v12014 = vld [vmem:[%s13] sm:$0xff]
      %v12015 = vld [vmem:[%s13 + $0x8] sm:$0xff]
      %v12016 = vld [vmem:[%s13 + $0x10] sm:$0xff]
      %v12017 = vld [vmem:[%s13 + $0x18] sm:$0xff]
      %v12018 = vld [vmem:[%s13 + $0x20] sm:$0xff]
      %v12019 = vld [vmem:[%s13 + $0x28] sm:$0xff]
      %v12020 = vld [vmem:[%s13 + $0x30] sm:$0xff]
      %v12021 = vld [vmem:[%s13 + $0x38] sm:$0xff]
      %v12022 = vld [vmem:[%s13 + $0x40] sm:$0xff]
      %v12023 = vld [vmem:[%s13 + $0x48] sm:$0xff]
      %v12024 = vld [vmem:[%s13 + $0x50] sm:$0xff]
      %v12025 = vld [vmem:[%s13 + $0x58] sm:$0xff]
      %v12026 = vld [vmem:[%s13 + $0x60] sm:$0xff]
      %v12027 = vld [vmem:[%s13 + $0x68] sm:$0xff]
      %v12028 = vld [vmem:[%s13 + $0x70] sm:$0xff]
      %v12029 = vld [vmem:[%s13 + $0x78] sm:$0xff]
      %v12030 = vld [vmem:[%s13 + $0x80] sm:$0xff]
      %v12031 = vld [vmem:[%s13 + $0x88] sm:$0xff]
      %v12032 = vld [vmem:[%s13 + $0x90] sm:$0xff]
      %v12033 = vld [vmem:[%s13 + $0x98] sm:$0xff]
      %v12034 = vld [vmem:[%s13 + $0xa0] sm:$0xff]
      %v12035 = vld [vmem:[%s13 + $0xa8] sm:$0xff]
      %v12036 = vld [vmem:[%s13 + $0xb0] sm:$0xff]
      %v12037 = vld [vmem:[%s13 + $0xb8] sm:$0xff]
      %v12038 = vld [vmem:[%s13 + $0xc0] sm:$0xff]
      %v12039 = vld [vmem:[%s13 + $0xc8] sm:$0xff]
      %v12040 = vld [vmem:[%s13 + $0xd0] sm:$0xff]
      %v12041 = vld [vmem:[%s13 + $0xd8] sm:$0xff]
      %v12042 = vld [vmem:[%s13 + $0xe0] sm:$0xff]
      %v12043 = vld [vmem:[%s13 + $0xe8] sm:$0xff]
      %v12044 = vld [vmem:[%s13 + $0xf0] sm:$0xff]
      %v12045 = vld [vmem:[%s13 + $0xf8] sm:$0xff]
      %v12046 = vld [vmem:[%s13 + $0x100] sm:$0xff]
      %v12047 = vld [vmem:[%s13 + $0x108] sm:$0xff]
      %v12048 = vld [vmem:[%s13 + $0x110] sm:$0xff]
      %v12049 = vld [vmem:[%s13 + $0x118] sm:$0xff]
      %v12050 = vld [vmem:[%s13 + $0x120] sm:$0xff]
      %v12051 = vld [vmem:[%s13 + $0x128] sm:$0xff]
      %v12052 = vld [vmem:[%s13 + $0x130] sm:$0xff]
      %v12053 = vld [vmem:[%s13 + $0x138] sm:$0xff]
      %v12054 = vld [vmem:[%s13 + $0x140] sm:$0xff]
      %v12055 = vld [vmem:[%s13 + $0x148] sm:$0xff]
      %v12056 = vld [vmem:[%s13 + $0x150] sm:$0xff]
      %v12057 = vld [vmem:[%s13 + $0x158] sm:$0xff]
      %v12058 = vld [vmem:[%s13 + $0x160] sm:$0xff]
      %v12059 = vld [vmem:[%s13 + $0x168] sm:$0xff]
      %v12060 = vld [vmem:[%s13 + $0x170] sm:$0xff]
      %v12061 = vld [vmem:[%s13 + $0x178] sm:$0xff]
      %v12062 = vld [vmem:[%s13 + $0x180] sm:$0xff]
      %v12063 = vld [vmem:[%s13 + $0x188] sm:$0xff]
      %v12064 = vld [vmem:[%s13 + $0x190] sm:$0xff]
      %v12065 = vld [vmem:[%s13 + $0x198] sm:$0xff]
      %v12066 = vld [vmem:[%s13 + $0x1a0] sm:$0xff]
      %v12067 = vld [vmem:[%s13 + $0x1a8] sm:$0xff]
      %v12068 = vld [vmem:[%s13 + $0x1b0] sm:$0xff]
      %v12069 = vld [vmem:[%s13 + $0x1b8] sm:$0xff]
      %v12070 = vld [vmem:[%s13 + $0x1c0] sm:$0xff]
      %v12071 = vld [vmem:[%s13 + $0x1c8] sm:$0xff]
      %v12072 = vld [vmem:[%s13 + $0x1d0] sm:$0xff]
      %v12073 = vld [vmem:[%s13 + $0x1d8] sm:$0xff]
      %v12074 = vld [vmem:[%s14] sm:$0xff]
      %v12075 = vld [vmem:[%s14 + $0x8] sm:$0xff]
      %v12076 = vld [vmem:[%s14 + $0x10] sm:$0xff]
      %v12077 = vld [vmem:[%s14 + $0x18] sm:$0xff]
      %v12078 = vld [vmem:[%s14 + $0x20] sm:$0xff]
      %v12079 = vld [vmem:[%s14 + $0x28] sm:$0xff]
      %v12080 = vld [vmem:[%s14 + $0x30] sm:$0xff]
      %v12081 = vld [vmem:[%s14 + $0x38] sm:$0xff]
      %v12082 = vld [vmem:[%s14 + $0x40] sm:$0xff]
      %v12083 = vld [vmem:[%s14 + $0x48] sm:$0xff]
      %v12084 = vld [vmem:[%s14 + $0x50] sm:$0xff]
      %v12085 = vld [vmem:[%s14 + $0x58] sm:$0xff]
      %v12086 = vld [vmem:[%s14 + $0x60] sm:$0xff]
      %v12087 = vld [vmem:[%s14 + $0x68] sm:$0xff]
      %v12088 = vld [vmem:[%s14 + $0x70] sm:$0xff]
      %12090 = vset.pattern.permute.xlu0 0
      %12091 = vperm.xlu0 %12090, %v12074
      %v12092 = vpop.permute.xlu0 %12091
      %12095 = vset.pattern.permute.xlu0 0
      %12096 = vperm.xlu0 %12095, %v12075
      %v12097 = vpop.permute.xlu0 %12096
      %12100 = vset.pattern.permute.xlu0 0
      %12101 = vperm.xlu0 %12100, %v12076
      %v12102 = vpop.permute.xlu0 %12101
      %12105 = vset.pattern.permute.xlu0 0
      %12106 = vperm.xlu0 %12105, %v12077
      %v12107 = vpop.permute.xlu0 %12106
      %12110 = vset.pattern.permute.xlu0 0
      %12111 = vperm.xlu0 %12110, %v12078
      %v12112 = vpop.permute.xlu0 %12111
      %12115 = vset.pattern.permute.xlu0 0
      %12116 = vperm.xlu0 %12115, %v12079
      %v12117 = vpop.permute.xlu0 %12116
      %12120 = vset.pattern.permute.xlu0 0
      %12121 = vperm.xlu0 %12120, %v12080
      %v12122 = vpop.permute.xlu0 %12121
      %12125 = vset.pattern.permute.xlu0 0
      %12126 = vperm.xlu0 %12125, %v12081
      %v12127 = vpop.permute.xlu0 %12126
      %12130 = vset.pattern.permute.xlu0 0
      %12131 = vperm.xlu0 %12130, %v12082
      %v12132 = vpop.permute.xlu0 %12131
      %12135 = vset.pattern.permute.xlu0 0
      %12136 = vperm.xlu0 %12135, %v12083
      %v12137 = vpop.permute.xlu0 %12136
      %12140 = vset.pattern.permute.xlu0 0
      %12141 = vperm.xlu0 %12140, %v12084
      %v12142 = vpop.permute.xlu0 %12141
      %12145 = vset.pattern.permute.xlu0 0
      %12146 = vperm.xlu0 %12145, %v12085
      %v12147 = vpop.permute.xlu0 %12146
      %12150 = vset.pattern.permute.xlu0 0
      %12151 = vperm.xlu0 %12150, %v12086
      %v12152 = vpop.permute.xlu0 %12151
      %12155 = vset.pattern.permute.xlu0 0
      %12156 = vperm.xlu0 %12155, %v12087
      %v12157 = vpop.permute.xlu0 %12156
      %12160 = vset.pattern.permute.xlu0 0
      %12161 = vperm.xlu0 %12160, %v12088
      %v12162 = vpop.permute.xlu0 %12161
      %v12165 = vsel %vm4142, %v12017, 0
      %v12168 = vsel %vm4142, %v12021, 0
      %v12171 = vsel %vm4142, %v12025, 0
      %v12174 = vsel %vm4142, %v12029, 0
      %v12177 = vsel %vm4142, %v12033, 0
      %v12180 = vsel %vm4142, %v12037, 0
      %v12183 = vsel %vm4142, %v12041, 0
      %v12186 = vsel %vm4142, %v12045, 0
      %v12189 = vsel %vm4142, %v12049, 0
      %v12192 = vsel %vm4142, %v12053, 0
      %v12195 = vsel %vm4142, %v12057, 0
      %v12198 = vsel %vm4142, %v12061, 0
      %v12201 = vsel %vm4142, %v12065, 0
      %v12204 = vsel %vm4142, %v12069, 0
      %v12207 = vsel %vm4142, %v12073, 0
      %12209 = vmatprep.subr.mxu0 0.0
      %12210 = vmatpush1.msra.mxu0 %v11905
      %12211 = vmatprep.subr.mxu0 0.0
      %12212 = vmatpush1.msra.mxu0 %v11903
      %12213 = vmatprep.subr.mxu0 0.0
      %12214 = vmatpush1.msra.mxu0 %v11901
      %12215 = vmatprep.subr.mxu0 0.0
      %12216 = vmatpush1.msra.mxu0 %v11899
      %12217 = vmatprep.subr.mxu0 0.0
      %12218 = vmatpush1.msra.mxu0 %v11897
      %12219 = vmatprep.subr.mxu0 0.0
      %12220 = vmatpush1.msra.mxu0 %v11895
      %12221 = vmatprep.subr.mxu0 0.0
      %12222 = vmatpush1.msra.mxu0 %v11883
      %12223 = vmatprep.subr.mxu0 0.0
      %12224 = vmatpush1.msra.mxu0 %v11882
      %12225 = vmatprep.subr.mxu0 0.0
      %12226 = vmatpush1.msra.mxu0 %v11881
      %12227 = vmatprep.subr.mxu0 0.0
      %12228 = vmatpush1.msra.mxu0 %v11880
      %12229 = vmatprep.subr.mxu0 0.0
      %12230 = vmatpush1.msra.mxu0 %v11879
      %12231 = vmatprep.subr.mxu0 0.0
      %12232 = vmatpush1.msra.mxu0 %v11878
      %12233 = vmatprep.subr.mxu0 0.0
      %12234 = vmatpush1.msra.mxu0 %v11877
      %12235 = vmatprep.subr.mxu0 0.0
      %12236 = vmatpush1.msra.mxu0 %v11876
      %12237 = vmatprep.subr.mxu0 0.0
      %12238 = vmatpush1.msra.mxu0 %v11875
      %12239 = vmatprep.subr.mxu0 0.0
      %12240 = vmatpush1.msra.mxu0 %v11874
      %12241 = vmatprep.subr.mxu0 0.0
      %12242 = vmatpush2.msra.mxu0 %v11957
      %12243 = vmatprep.subr.mxu0 0.0
      %12244 = vmatpush2.msra.mxu0 %v11955
      %12245 = vmatprep.subr.mxu0 0.0
      %12246 = vmatpush2.msra.mxu0 %v11943
      %12247 = vmatprep.subr.mxu0 0.0
      %12248 = vmatpush2.msra.mxu0 %v11941
      %12249 = vmatprep.subr.mxu0 0.0
      %12250 = vmatpush2.msra.mxu0 %v11939
      %12251 = vmatprep.subr.mxu0 0.0
      %12252 = vmatpush2.msra.mxu0 %v11937
      %12253 = vmatprep.subr.mxu0 0.0
      %12254 = vmatpush2.msra.mxu0 %v11935
      %12255 = vmatprep.subr.mxu0 0.0
      %12256 = vmatpush2.msra.mxu0 %v11933
      %12257 = vmatprep.subr.mxu0 0.0
      %12258 = vmatpush2.msra.mxu0 %v11931
      %12259 = vmatprep.subr.mxu0 0.0
      %12260 = vmatpush2.msra.mxu0 %v11929
      %12261 = vmatprep.subr.mxu0 0.0
      %12262 = vmatpush2.msra.mxu0 %v11927
      %12263 = vmatprep.subr.mxu0 0.0
      %12264 = vmatpush2.msra.mxu0 %v11925
      %12265 = vmatprep.subr.mxu0 0.0
      %12266 = vmatpush2.msra.mxu0 %v11913
      %12267 = vmatprep.subr.mxu0 0.0
      %12268 = vmatpush2.msra.mxu0 %v11911
      %12269 = vmatprep.subr.mxu0 0.0
      %12270 = vmatpush2.msra.mxu0 %v11909
      %12271 = vmatprep.subr.mxu0 0.0
      %12272 = vmatpush2.msra.mxu0 %v11907
      %12273 = vmatprep.mubr.f32.mxu0 %v12015
      %12274 = vmatmul.mubr.f32.gmra.mxu0 %v12014
      %v12275 = vpop.f32.mrf.mxu0
      %v12276 = vadd.f32 %v12092, %v12275
      %v12277 = vpop.f32.mrf.mxu0
      %12278 = vmatprep.mubr.f32.mxu0 %v12019
      %12279 = vmatmul.mubr.f32.gmra.mxu0 %v12018
      %v12280 = vpop.f32.mrf.mxu0
      %v12281 = vadd.f32 %v12097, %v12280
      %v12282 = vpop.f32.mrf.mxu0
      %12283 = vmatprep.mubr.f32.mxu0 %v12023
      %12284 = vmatmul.mubr.f32.gmra.mxu0 %v12022
      %v12285 = vpop.f32.mrf.mxu0
      %v12286 = vadd.f32 %v12102, %v12285
      %v12287 = vpop.f32.mrf.mxu0
      %12288 = vmatprep.mubr.f32.mxu0 %v12027
      %12289 = vmatmul.mubr.f32.gmra.mxu0 %v12026
      %v12290 = vpop.f32.mrf.mxu0
      %v12291 = vadd.f32 %v12107, %v12290
      %v12292 = vpop.f32.mrf.mxu0
      %12293 = vmatprep.mubr.f32.mxu0 %v12031
      %12294 = vmatmul.mubr.f32.gmra.mxu0 %v12030
      %v12295 = vpop.f32.mrf.mxu0
      %v12296 = vadd.f32 %v12112, %v12295
      %v12297 = vpop.f32.mrf.mxu0
      %12298 = vmatprep.mubr.f32.mxu0 %v12035
      %12299 = vmatmul.mubr.f32.gmra.mxu0 %v12034
      %v12300 = vpop.f32.mrf.mxu0
      %v12301 = vadd.f32 %v12117, %v12300
      %v12302 = vpop.f32.mrf.mxu0
      %12303 = vmatprep.mubr.f32.mxu0 %v12039
      %12304 = vmatmul.mubr.f32.gmra.mxu0 %v12038
      %v12305 = vpop.f32.mrf.mxu0
      %v12306 = vadd.f32 %v12122, %v12305
      %v12307 = vpop.f32.mrf.mxu0
      %12308 = vmatprep.mubr.f32.mxu0 %v12043
      %12309 = vmatmul.mubr.f32.gmra.mxu0 %v12042
      %v12310 = vpop.f32.mrf.mxu0
      %v12311 = vadd.f32 %v12127, %v12310
      %v12312 = vpop.f32.mrf.mxu0
      %12313 = vmatprep.mubr.f32.mxu0 %v12047
      %12314 = vmatmul.mubr.f32.gmra.mxu0 %v12046
      %v12315 = vpop.f32.mrf.mxu0
      %v12316 = vadd.f32 %v12132, %v12315
      %v12317 = vpop.f32.mrf.mxu0
      %12318 = vmatprep.mubr.f32.mxu0 %v12051
      %12319 = vmatmul.mubr.f32.gmra.mxu0 %v12050
      %v12320 = vpop.f32.mrf.mxu0
      %v12321 = vadd.f32 %v12137, %v12320
      %v12322 = vpop.f32.mrf.mxu0
      %12323 = vmatprep.mubr.f32.mxu0 %v12055
      %12324 = vmatmul.mubr.f32.gmra.mxu0 %v12054
      %v12325 = vpop.f32.mrf.mxu0
      %v12326 = vadd.f32 %v12142, %v12325
      %v12327 = vpop.f32.mrf.mxu0
      %12328 = vmatprep.mubr.f32.mxu0 %v12059
      %12329 = vmatmul.mubr.f32.gmra.mxu0 %v12058
      %v12330 = vpop.f32.mrf.mxu0
      %v12331 = vadd.f32 %v12147, %v12330
      %v12332 = vpop.f32.mrf.mxu0
      %12333 = vmatprep.mubr.f32.mxu0 %v12063
      %12334 = vmatmul.mubr.f32.gmra.mxu0 %v12062
      %v12335 = vpop.f32.mrf.mxu0
      %v12336 = vadd.f32 %v12152, %v12335
      %v12337 = vpop.f32.mrf.mxu0
      %12338 = vmatprep.mubr.f32.mxu0 %v12067
      %12339 = vmatmul.mubr.f32.gmra.mxu0 %v12066
      %v12340 = vpop.f32.mrf.mxu0
      %v12341 = vadd.f32 %v12157, %v12340
      %v12342 = vpop.f32.mrf.mxu0
      %12343 = vmatprep.mubr.f32.mxu0 %v12071
      %12344 = vmatmul.mubr.f32.gmra.mxu0 %v12070
      %v12345 = vpop.f32.mrf.mxu0
      %v12346 = vadd.f32 %v12162, %v12345
      %v12347 = vpop.f32.mrf.mxu0
      %12348 = vdwg.mxu0
      %12349 = vmatprep.subr.mxu0 0.0
      %12350 = vmatpush1.msra.mxu0 %v11999
      %12351 = vmatprep.subr.mxu0 0.0
      %12352 = vmatpush1.msra.mxu0 %v11997
      %12353 = vmatprep.subr.mxu0 0.0
      %12354 = vmatpush1.msra.mxu0 %v11995
      %12355 = vmatprep.subr.mxu0 0.0
      %12356 = vmatpush1.msra.mxu0 %v11993
      %12357 = vmatprep.subr.mxu0 0.0
      %12358 = vmatpush1.msra.mxu0 %v11991
      %12359 = vmatprep.subr.mxu0 0.0
      %12360 = vmatpush1.msra.mxu0 %v11989
      %12361 = vmatprep.subr.mxu0 0.0
      %12362 = vmatpush1.msra.mxu0 %v11987
      %12363 = vmatprep.subr.mxu0 0.0
      %12364 = vmatpush1.msra.mxu0 %v11985
      %12365 = vmatprep.subr.mxu0 0.0
      %12366 = vmatpush1.msra.mxu0 %v11973
      %12367 = vmatprep.subr.mxu0 0.0
      %12368 = vmatpush1.msra.mxu0 %v11971
      %12369 = vmatprep.subr.mxu0 0.0
      %12370 = vmatpush1.msra.mxu0 %v11969
      %12371 = vmatprep.subr.mxu0 0.0
      %12372 = vmatpush1.msra.mxu0 %v11967
      %12373 = vmatprep.subr.mxu0 0.0
      %12374 = vmatpush1.msra.mxu0 %v11965
      %12375 = vmatprep.subr.mxu0 0.0
      %12376 = vmatpush1.msra.mxu0 %v11963
      %12377 = vmatprep.subr.mxu0 0.0
      %12378 = vmatpush1.msra.mxu0 %v11961
      %12379 = vmatprep.subr.mxu0 0.0
      %12380 = vmatpush1.msra.mxu0 %v11959
      %12381 = vmatprep.subr.mxu0 0.0
      %12382 = vmatpush2.msra.mxu0 0.0
      %12383 = vmatprep.subr.mxu0 0.0
      %12384 = vmatpush2.msra.mxu0 0.0
      %12385 = vmatprep.subr.mxu0 0.0
      %12386 = vmatpush2.msra.mxu0 0.0
      %12387 = vmatprep.subr.mxu0 0.0
      %12388 = vmatpush2.msra.mxu0 0.0
      %12389 = vmatprep.subr.mxu0 0.0
      %12390 = vmatpush2.msra.mxu0 0.0
      %12391 = vmatprep.subr.mxu0 0.0
      %12392 = vmatpush2.msra.mxu0 0.0
      %12393 = vmatprep.subr.mxu0 0.0
      %12394 = vmatpush2.msra.mxu0 0.0
      %12395 = vmatprep.subr.mxu0 0.0
      %12396 = vmatpush2.msra.mxu0 0.0
      %12397 = vmatprep.subr.mxu0 0.0
      %12398 = vmatpush2.msra.mxu0 0.0
      %12399 = vmatprep.subr.mxu0 0.0
      %12400 = vmatpush2.msra.mxu0 0.0
      %12401 = vmatprep.subr.mxu0 0.0
      %12402 = vmatpush2.msra.mxu0 0.0
      %12403 = vmatprep.subr.mxu0 0.0
      %12404 = vmatpush2.msra.mxu0 0.0
      %12405 = vmatprep.subr.mxu0 0.0
      %12406 = vmatpush2.msra.mxu0 0.0
      %12407 = vmatprep.subr.mxu0 0.0
      %12408 = vmatpush2.msra.mxu0 0.0
      %12409 = vmatprep.subr.mxu0 0.0
      %12410 = vmatpush2.msra.mxu0 %v12003
      %12411 = vmatprep.subr.mxu0 0.0
      %12412 = vmatpush2.msra.mxu0 %v12001
      %12413 = vmatprep.mubr.f32.mxu0 %v12165
      %12414 = vmatmul.mubr.f32.gmra.mxu0 %v12016
      %v12415 = vpop.f32.mrf.mxu0
      %v12416 = vadd.f32 %v12276, %v12415
      %v12417 = vpop.f32.mrf.mxu0
      %12418 = vmatprep.mubr.f32.mxu0 %v12168
      %12419 = vmatmul.mubr.f32.gmra.mxu0 %v12020
      %v12420 = vpop.f32.mrf.mxu0
      %v12421 = vadd.f32 %v12281, %v12420
      %v12422 = vpop.f32.mrf.mxu0
      %12423 = vmatprep.mubr.f32.mxu0 %v12171
      %12424 = vmatmul.mubr.f32.gmra.mxu0 %v12024
      %v12425 = vpop.f32.mrf.mxu0
      %v12426 = vadd.f32 %v12286, %v12425
      %v12427 = vpop.f32.mrf.mxu0
      %12428 = vmatprep.mubr.f32.mxu0 %v12174
      %12429 = vmatmul.mubr.f32.gmra.mxu0 %v12028
      %v12430 = vpop.f32.mrf.mxu0
      %v12431 = vadd.f32 %v12291, %v12430
      %v12432 = vpop.f32.mrf.mxu0
      %12433 = vmatprep.mubr.f32.mxu0 %v12177
      %12434 = vmatmul.mubr.f32.gmra.mxu0 %v12032
      %v12435 = vpop.f32.mrf.mxu0
      %v12436 = vadd.f32 %v12296, %v12435
      %v12437 = vpop.f32.mrf.mxu0
      %12438 = vmatprep.mubr.f32.mxu0 %v12180
      %12439 = vmatmul.mubr.f32.gmra.mxu0 %v12036
      %v12440 = vpop.f32.mrf.mxu0
      %v12441 = vadd.f32 %v12301, %v12440
      %v12442 = vpop.f32.mrf.mxu0
      %12443 = vmatprep.mubr.f32.mxu0 %v12183
      %12444 = vmatmul.mubr.f32.gmra.mxu0 %v12040
      %v12445 = vpop.f32.mrf.mxu0
      %v12446 = vadd.f32 %v12306, %v12445
      %v12447 = vpop.f32.mrf.mxu0
      %12448 = vmatprep.mubr.f32.mxu0 %v12186
      %12449 = vmatmul.mubr.f32.gmra.mxu0 %v12044
      %v12450 = vpop.f32.mrf.mxu0
      %v12451 = vadd.f32 %v12311, %v12450
      %v12452 = vpop.f32.mrf.mxu0
      %12453 = vmatprep.mubr.f32.mxu0 %v12189
      %12454 = vmatmul.mubr.f32.gmra.mxu0 %v12048
      %v12455 = vpop.f32.mrf.mxu0
      %v12456 = vadd.f32 %v12316, %v12455
      %v12457 = vpop.f32.mrf.mxu0
      %12458 = vmatprep.mubr.f32.mxu0 %v12192
      %12459 = vmatmul.mubr.f32.gmra.mxu0 %v12052
      %v12460 = vpop.f32.mrf.mxu0
      %v12461 = vadd.f32 %v12321, %v12460
      %v12462 = vpop.f32.mrf.mxu0
      %12463 = vmatprep.mubr.f32.mxu0 %v12195
      %12464 = vmatmul.mubr.f32.gmra.mxu0 %v12056
      %v12465 = vpop.f32.mrf.mxu0
      %v12466 = vadd.f32 %v12326, %v12465
      %v12467 = vpop.f32.mrf.mxu0
      %12468 = vmatprep.mubr.f32.mxu0 %v12198
      %12469 = vmatmul.mubr.f32.gmra.mxu0 %v12060
      %v12470 = vpop.f32.mrf.mxu0
      %v12471 = vadd.f32 %v12331, %v12470
      %v12472 = vpop.f32.mrf.mxu0
      %12473 = vmatprep.mubr.f32.mxu0 %v12201
      %12474 = vmatmul.mubr.f32.gmra.mxu0 %v12064
      %v12475 = vpop.f32.mrf.mxu0
      %v12476 = vadd.f32 %v12336, %v12475
      %v12477 = vpop.f32.mrf.mxu0
      %12478 = vmatprep.mubr.f32.mxu0 %v12204
      %12479 = vmatmul.mubr.f32.gmra.mxu0 %v12068
      %v12480 = vpop.f32.mrf.mxu0
      %v12481 = vadd.f32 %v12341, %v12480
      %v12482 = vpop.f32.mrf.mxu0
      %12483 = vmatprep.mubr.f32.mxu0 %v12207
      %12484 = vmatmul.mubr.f32.gmra.mxu0 %v12072
      %v12485 = vpop.f32.mrf.mxu0
      %v12486 = vadd.f32 %v12346, %v12485
      %v12487 = vpop.f32.mrf.mxu0
      %12488 = vdwg.mxu0
      %v12489 = vsub.f32 0.0, %v12416
      %v12490 = vsub.f32 0.0, %v12421
      %v12491 = vsub.f32 0.0, %v12426
      %v12492 = vsub.f32 0.0, %v12431
      %v12493 = vsub.f32 0.0, %v12436
      %v12494 = vsub.f32 0.0, %v12441
      %v12495 = vsub.f32 0.0, %v12446
      %v12496 = vsub.f32 0.0, %v12451
      %v12497 = vsub.f32 0.0, %v12456
      %v12498 = vsub.f32 0.0, %v12461
      %v12499 = vsub.f32 0.0, %v12466
      %v12500 = vsub.f32 0.0, %v12471
      %v12501 = vsub.f32 0.0, %v12476
      %v12502 = vsub.f32 0.0, %v12481
      %v12503 = vsub.f32 0.0, %v12486
      %v12504 = vmul.f32 %v12489, 1.442695
      %v12505 = vpow.pop %v12504
      %v12506 = vmul.f32 %v12490, 1.442695
      %v12507 = vpow.pop %v12506
      %v12508 = vmul.f32 %v12491, 1.442695
      %v12509 = vpow.pop %v12508
      %v12510 = vmul.f32 %v12492, 1.442695
      %v12511 = vpow.pop %v12510
      %v12512 = vmul.f32 %v12493, 1.442695
      %v12513 = vpow.pop %v12512
      %v12514 = vmul.f32 %v12494, 1.442695
      %v12515 = vpow.pop %v12514
      %v12516 = vmul.f32 %v12495, 1.442695
      %v12517 = vpow.pop %v12516
      %v12518 = vmul.f32 %v12496, 1.442695
      %v12519 = vpow.pop %v12518
      %v12520 = vmul.f32 %v12497, 1.442695
      %v12521 = vpow.pop %v12520
      %v12522 = vmul.f32 %v12498, 1.442695
      %v12523 = vpow.pop %v12522
      %v12524 = vmul.f32 %v12499, 1.442695
      %v12525 = vpow.pop %v12524
      %v12526 = vmul.f32 %v12500, 1.442695
      %v12527 = vpow.pop %v12526
      %v12528 = vmul.f32 %v12501, 1.442695
      %v12529 = vpow.pop %v12528
      %v12530 = vmul.f32 %v12502, 1.442695
      %v12531 = vpow.pop %v12530
      %v12532 = vmul.f32 %v12503, 1.442695
      %v12533 = vpow.pop %v12532
      %v12534 = vadd.f32 %v12505, 1.0
      %v12535 = vadd.f32 %v12507, 1.0
      %v12536 = vadd.f32 %v12509, 1.0
      %v12537 = vadd.f32 %v12511, 1.0
      %v12538 = vadd.f32 %v12513, 1.0
      %v12539 = vadd.f32 %v12515, 1.0
      %v12540 = vadd.f32 %v12517, 1.0
      %v12541 = vadd.f32 %v12519, 1.0
      %v12542 = vadd.f32 %v12521, 1.0
      %v12543 = vadd.f32 %v12523, 1.0
      %v12544 = vadd.f32 %v12525, 1.0
      %v12545 = vadd.f32 %v12527, 1.0
      %v12546 = vadd.f32 %v12529, 1.0
      %v12547 = vadd.f32 %v12531, 1.0
      %v12548 = vadd.f32 %v12533, 1.0
      %v12549 = vrcp.pop %v12534
      %v12550 = vrcp.pop %v12535
      %v12551 = vrcp.pop %v12536
      %v12552 = vrcp.pop %v12537
      %v12553 = vrcp.pop %v12538
      %v12554 = vrcp.pop %v12539
      %v12555 = vrcp.pop %v12540
      %v12556 = vrcp.pop %v12541
      %v12557 = vrcp.pop %v12542
      %v12558 = vrcp.pop %v12543
      %v12559 = vrcp.pop %v12544
      %v12560 = vrcp.pop %v12545
      %v12561 = vrcp.pop %v12546
      %v12562 = vrcp.pop %v12547
      %v12563 = vrcp.pop %v12548
      %v12564 = vld [vmem:[%s15] sm:$0xff]
      %v12565 = vld [vmem:[%s15 + $0x8] sm:$0xff]
      %v12566 = vld [vmem:[%s15 + $0x10] sm:$0xff]
      %v12567 = vld [vmem:[%s15 + $0x18] sm:$0xff]
      %v12568 = vld [vmem:[%s15 + $0x20] sm:$0xff]
      %v12569 = vld [vmem:[%s15 + $0x28] sm:$0xff]
      %v12570 = vld [vmem:[%s15 + $0x30] sm:$0xff]
      %v12571 = vld [vmem:[%s15 + $0x38] sm:$0xff]
      %v12572 = vld [vmem:[%s15 + $0x40] sm:$0xff]
      %v12573 = vld [vmem:[%s15 + $0x48] sm:$0xff]
      %v12574 = vld [vmem:[%s15 + $0x50] sm:$0xf]
      %v12575 = vld [vmem:[%s16] sm:$0xff]
      %v12576 = vld [vmem:[%s16 + $0x8] sm:$0xff]
      %v12577 = vld [vmem:[%s16 + $0x10] sm:$0xff]
      %v12578 = vld [vmem:[%s16 + $0x18] sm:$0xff]
      %v12579 = vld [vmem:[%s16 + $0x20] sm:$0xff]
      %v12580 = vld [vmem:[%s16 + $0x28] sm:$0xff]
      %v12581 = vld [vmem:[%s16 + $0x30] sm:$0xff]
      %v12582 = vld [vmem:[%s16 + $0x38] sm:$0xff]
      %v12583 = vld [vmem:[%s16 + $0x40] sm:$0xff]
      %v12584 = vld [vmem:[%s16 + $0x48] sm:$0xff]
      %v12585 = vld [vmem:[%s16 + $0x50] sm:$0xf]
      %12587 = vset.pattern.permute.xlu0 0
      %12588 = vperm.xlu0 %12587, %v12575
      %v12589 = vpop.permute.xlu0 %12588
      %12592 = vset.pattern.permute.xlu0 0
      %12593 = vperm.xlu0 %12592, %v12576
      %v12594 = vpop.permute.xlu0 %12593
      %12597 = vset.pattern.permute.xlu0 0
      %12598 = vperm.xlu0 %12597, %v12577
      %v12599 = vpop.permute.xlu0 %12598
      %12602 = vset.pattern.permute.xlu0 0
      %12603 = vperm.xlu0 %12602, %v12578
      %v12604 = vpop.permute.xlu0 %12603
      %12607 = vset.pattern.permute.xlu0 0
      %12608 = vperm.xlu0 %12607, %v12579
      %v12609 = vpop.permute.xlu0 %12608
      %12612 = vset.pattern.permute.xlu0 0
      %12613 = vperm.xlu0 %12612, %v12580
      %v12614 = vpop.permute.xlu0 %12613
      %12617 = vset.pattern.permute.xlu0 0
      %12618 = vperm.xlu0 %12617, %v12581
      %v12619 = vpop.permute.xlu0 %12618
      %12622 = vset.pattern.permute.xlu0 0
      %12623 = vperm.xlu0 %12622, %v12582
      %v12624 = vpop.permute.xlu0 %12623
      %12627 = vset.pattern.permute.xlu0 0
      %12628 = vperm.xlu0 %12627, %v12583
      %v12629 = vpop.permute.xlu0 %12628
      %12632 = vset.pattern.permute.xlu0 0
      %12633 = vperm.xlu0 %12632, %v12584
      %v12634 = vpop.permute.xlu0 %12633
      %12637 = vset.pattern.permute.xlu0 0
      %12638 = vperm.xlu0 %12637, %v12585
      %v12639 = vpop.permute.xlu0 %12638
      %vm12641 = vcmask 982016
      %v12643 = vsel %vm12641, %v12564, 0
      %v12646 = vsel %vm12641, %v12565, 0
      %v12649 = vsel %vm12641, %v12566, 0
      %v12652 = vsel %vm12641, %v12567, 0
      %v12655 = vsel %vm12641, %v12568, 0
      %v12658 = vsel %vm12641, %v12569, 0
      %v12661 = vsel %vm12641, %v12570, 0
      %v12664 = vsel %vm12641, %v12571, 0
      %v12667 = vsel %vm12641, %v12572, 0
      %v12670 = vsel %vm12641, %v12573, 0
      %v12673 = vsel %vm12641, %v12574, 0
      %12675 = vmatprep.subr.mxu0 0.0
      %12676 = vmatpush1.msra.mxu0 0.0
      %12677 = vmatprep.subr.mxu0 0.0
      %12678 = vmatpush1.msra.mxu0 %v12563
      %12679 = vmatprep.subr.mxu0 0.0
      %12680 = vmatpush1.msra.mxu0 %v12562
      %12681 = vmatprep.subr.mxu0 0.0
      %12682 = vmatpush1.msra.mxu0 %v12561
      %12683 = vmatprep.subr.mxu0 0.0
      %12684 = vmatpush1.msra.mxu0 %v12560
      %12685 = vmatprep.subr.mxu0 0.0
      %12686 = vmatpush1.msra.mxu0 %v12559
      %12687 = vmatprep.subr.mxu0 0.0
      %12688 = vmatpush1.msra.mxu0 %v12558
      %12689 = vmatprep.subr.mxu0 0.0
      %12690 = vmatpush1.msra.mxu0 %v12557
      %12691 = vmatprep.subr.mxu0 0.0
      %12692 = vmatpush1.msra.mxu0 %v12556
      %12693 = vmatprep.subr.mxu0 0.0
      %12694 = vmatpush1.msra.mxu0 %v12555
      %12695 = vmatprep.subr.mxu0 0.0
      %12696 = vmatpush1.msra.mxu0 %v12554
      %12697 = vmatprep.subr.mxu0 0.0
      %12698 = vmatpush1.msra.mxu0 %v12553
      %12699 = vmatprep.subr.mxu0 0.0
      %12700 = vmatpush1.msra.mxu0 %v12552
      %12701 = vmatprep.subr.mxu0 0.0
      %12702 = vmatpush1.msra.mxu0 %v12551
      %12703 = vmatprep.subr.mxu0 0.0
      %12704 = vmatpush1.msra.mxu0 %v12550
      %12705 = vmatprep.subr.mxu0 0.0
      %12706 = vmatpush1.msra.mxu0 %v12549
      %12707 = vmatprep.subr.mxu0 0.0
      %12708 = vmatpush2.msra.mxu0 0.0
      %12709 = vmatprep.subr.mxu0 0.0
      %12710 = vmatpush2.msra.mxu0 0.0
      %12711 = vmatprep.subr.mxu0 0.0
      %12712 = vmatpush2.msra.mxu0 0.0
      %12713 = vmatprep.subr.mxu0 0.0
      %12714 = vmatpush2.msra.mxu0 0.0
      %12715 = vmatprep.subr.mxu0 0.0
      %12716 = vmatpush2.msra.mxu0 0.0
      %12717 = vmatprep.subr.mxu0 0.0
      %12718 = vmatpush2.msra.mxu0 0.0
      %12719 = vmatprep.subr.mxu0 0.0
      %12720 = vmatpush2.msra.mxu0 0.0
      %12721 = vmatprep.subr.mxu0 0.0
      %12722 = vmatpush2.msra.mxu0 0.0
      %12723 = vmatprep.subr.mxu0 0.0
      %12724 = vmatpush2.msra.mxu0 0.0
      %12725 = vmatprep.subr.mxu0 0.0
      %12726 = vmatpush2.msra.mxu0 0.0
      %12727 = vmatprep.subr.mxu0 0.0
      %12728 = vmatpush2.msra.mxu0 0.0
      %12729 = vmatprep.subr.mxu0 0.0
      %12730 = vmatpush2.msra.mxu0 0.0
      %12731 = vmatprep.subr.mxu0 0.0
      %12732 = vmatpush2.msra.mxu0 0.0
      %12733 = vmatprep.subr.mxu0 0.0
      %12734 = vmatpush2.msra.mxu0 0.0
      %12735 = vmatprep.subr.mxu0 0.0
      %12736 = vmatpush2.msra.mxu0 0.0
      %12737 = vmatprep.subr.mxu0 0.0
      %12738 = vmatpush2.msra.mxu0 0.0
      %12739 = vmatprep.mubr.f32.mxu0 0.0
      %12740 = vmatmul.mubr.f32.gmra.mxu0 %v12643
      %v12741 = vpop.f32.mrf.mxu0
      %v12742 = vadd.f32 %v12589, %v12741
      %v12743 = vpop.f32.mrf.mxu0
      %12744 = vmatprep.mubr.f32.mxu0 0.0
      %12745 = vmatmul.mubr.f32.gmra.mxu0 %v12646
      %v12746 = vpop.f32.mrf.mxu0
      %v12747 = vadd.f32 %v12594, %v12746
      %v12748 = vpop.f32.mrf.mxu0
      %12749 = vmatprep.mubr.f32.mxu0 0.0
      %12750 = vmatmul.mubr.f32.gmra.mxu0 %v12649
      %v12751 = vpop.f32.mrf.mxu0
      %v12752 = vadd.f32 %v12599, %v12751
      %v12753 = vpop.f32.mrf.mxu0
      %12754 = vmatprep.mubr.f32.mxu0 0.0
      %12755 = vmatmul.mubr.f32.gmra.mxu0 %v12652
      %v12756 = vpop.f32.mrf.mxu0
      %v12757 = vadd.f32 %v12604, %v12756
      %v12758 = vpop.f32.mrf.mxu0
      %12759 = vmatprep.mubr.f32.mxu0 0.0
      %12760 = vmatmul.mubr.f32.gmra.mxu0 %v12655
      %v12761 = vpop.f32.mrf.mxu0
      %v12762 = vadd.f32 %v12609, %v12761
      %v12763 = vpop.f32.mrf.mxu0
      %12764 = vmatprep.mubr.f32.mxu0 0.0
      %12765 = vmatmul.mubr.f32.gmra.mxu0 %v12658
      %v12766 = vpop.f32.mrf.mxu0
      %v12767 = vadd.f32 %v12614, %v12766
      %v12768 = vpop.f32.mrf.mxu0
      %12769 = vmatprep.mubr.f32.mxu0 0.0
      %12770 = vmatmul.mubr.f32.gmra.mxu0 %v12661
      %v12771 = vpop.f32.mrf.mxu0
      %v12772 = vadd.f32 %v12619, %v12771
      %v12773 = vpop.f32.mrf.mxu0
      %12774 = vmatprep.mubr.f32.mxu0 0.0
      %12775 = vmatmul.mubr.f32.gmra.mxu0 %v12664
      %v12776 = vpop.f32.mrf.mxu0
      %v12777 = vadd.f32 %v12624, %v12776
      %v12778 = vpop.f32.mrf.mxu0
      %12779 = vmatprep.mubr.f32.mxu0 0.0
      %12780 = vmatmul.mubr.f32.gmra.mxu0 %v12667
      %v12781 = vpop.f32.mrf.mxu0
      %v12782 = vadd.f32 %v12629, %v12781
      %v12783 = vpop.f32.mrf.mxu0
      %12784 = vmatprep.mubr.f32.mxu0 0.0
      %12785 = vmatmul.mubr.f32.gmra.mxu0 %v12670
      %v12786 = vpop.f32.mrf.mxu0
      %v12787 = vadd.f32 %v12634, %v12786
      %v12788 = vpop.f32.mrf.mxu0
      %12789 = vmatprep.mubr.f32.mxu0 0.0
      %12790 = vmatmul.mubr.f32.gmra.mxu0 %v12673
      %v12791 = vpop.f32.mrf.mxu0
      %v12792 = vadd.f32 %v12639, %v12791
      %v12793 = vpop.f32.mrf.mxu0
      %12794 = vdwg.mxu0
      %v12795 = vsub.f32 0.0, %v12742
      %v12796 = vsub.f32 0.0, %v12747
      %v12797 = vsub.f32 0.0, %v12752
      %v12798 = vsub.f32 0.0, %v12757
      %v12799 = vsub.f32 0.0, %v12762
      %v12800 = vsub.f32 0.0, %v12767
      %v12801 = vsub.f32 0.0, %v12772
      %v12802 = vsub.f32 0.0, %v12777
      %v12803 = vsub.f32 0.0, %v12782
      %v12804 = vsub.f32 0.0, %v12787
      %v12805 = vsub.f32 0.0, %v12792
      %v12806 = vmul.f32 %v12795, 1.442695
      %v12807 = vpow.pop %v12806
      %v12808 = vmul.f32 %v12796, 1.442695
      %v12809 = vpow.pop %v12808
      %v12810 = vmul.f32 %v12797, 1.442695
      %v12811 = vpow.pop %v12810
      %v12812 = vmul.f32 %v12798, 1.442695
      %v12813 = vpow.pop %v12812
      %v12814 = vmul.f32 %v12799, 1.442695
      %v12815 = vpow.pop %v12814
      %v12816 = vmul.f32 %v12800, 1.442695
      %v12817 = vpow.pop %v12816
      %v12818 = vmul.f32 %v12801, 1.442695
      %v12819 = vpow.pop %v12818
      %v12820 = vmul.f32 %v12802, 1.442695
      %v12821 = vpow.pop %v12820
      %v12822 = vmul.f32 %v12803, 1.442695
      %v12823 = vpow.pop %v12822
      %v12824 = vmul.f32 %v12804, 1.442695
      %v12825 = vpow.pop %v12824
      %v12826 = vmul.f32 %v12805, 1.442695
      %v12827 = vpow.pop %v12826
      %v12828 = vadd.f32 %v12807, 1.0
      %v12829 = vadd.f32 %v12809, 1.0
      %v12830 = vadd.f32 %v12811, 1.0
      %v12831 = vadd.f32 %v12813, 1.0
      %v12832 = vadd.f32 %v12815, 1.0
      %v12833 = vadd.f32 %v12817, 1.0
      %v12834 = vadd.f32 %v12819, 1.0
      %v12835 = vadd.f32 %v12821, 1.0
      %v12836 = vadd.f32 %v12823, 1.0
      %v12837 = vadd.f32 %v12825, 1.0
      %v12838 = vadd.f32 %v12827, 1.0
      %v12839 = vrcp.pop %v12828
      %v12840 = vrcp.pop %v12829
      %v12841 = vrcp.pop %v12830
      %v12842 = vrcp.pop %v12831
      %v12843 = vrcp.pop %v12832
      %v12844 = vrcp.pop %v12833
      %v12845 = vrcp.pop %v12834
      %v12846 = vrcp.pop %v12835
      %v12847 = vrcp.pop %v12836
      %v12848 = vrcp.pop %v12837
      %v12849 = vrcp.pop %v12838
      %v12850 = vld [vmem:[%s17] sm:$0xff]
      %v12851 = vld [vmem:[%s17 + $0x8] sm:$0x3]
      %v12852 = vld [vmem:[%s18] sm:$0xff]
      %v12853 = vld [vmem:[%s18 + $0x8] sm:$0x3]
      %12855 = vset.pattern.permute.xlu0 0
      %12856 = vperm.xlu0 %12855, %v12852
      %v12857 = vpop.permute.xlu0 %12856
      %12860 = vset.pattern.permute.xlu0 0
      %12861 = vperm.xlu0 %12860, %v12853
      %v12862 = vpop.permute.xlu0 %12861
      %v12865 = vsel %vm7566, %v12850, 0
      %v12868 = vsel %vm7566, %v12851, 0
      %v12871 = vsel %vm11018, %v12849, 0
      %12873 = vmatprep.subr.mxu0 0.0
      %12874 = vmatpush1.msra.mxu0 0.0
      %12875 = vmatprep.subr.mxu0 0.0
      %12876 = vmatpush1.msra.mxu0 0.0
      %12877 = vmatprep.subr.mxu0 0.0
      %12878 = vmatpush1.msra.mxu0 0.0
      %12879 = vmatprep.subr.mxu0 0.0
      %12880 = vmatpush1.msra.mxu0 0.0
      %12881 = vmatprep.subr.mxu0 0.0
      %12882 = vmatpush1.msra.mxu0 0.0
      %12883 = vmatprep.subr.mxu0 0.0
      %12884 = vmatpush1.msra.mxu0 %v12871
      %12885 = vmatprep.subr.mxu0 0.0
      %12886 = vmatpush1.msra.mxu0 %v12848
      %12887 = vmatprep.subr.mxu0 0.0
      %12888 = vmatpush1.msra.mxu0 %v12847
      %12889 = vmatprep.subr.mxu0 0.0
      %12890 = vmatpush1.msra.mxu0 %v12846
      %12891 = vmatprep.subr.mxu0 0.0
      %12892 = vmatpush1.msra.mxu0 %v12845
      %12893 = vmatprep.subr.mxu0 0.0
      %12894 = vmatpush1.msra.mxu0 %v12844
      %12895 = vmatprep.subr.mxu0 0.0
      %12896 = vmatpush1.msra.mxu0 %v12843
      %12897 = vmatprep.subr.mxu0 0.0
      %12898 = vmatpush1.msra.mxu0 %v12842
      %12899 = vmatprep.subr.mxu0 0.0
      %12900 = vmatpush1.msra.mxu0 %v12841
      %12901 = vmatprep.subr.mxu0 0.0
      %12902 = vmatpush1.msra.mxu0 %v12840
      %12903 = vmatprep.subr.mxu0 0.0
      %12904 = vmatpush1.msra.mxu0 %v12839
      %12905 = vmatprep.subr.mxu0 0.0
      %12906 = vmatpush2.msra.mxu0 0.0
      %12907 = vmatprep.subr.mxu0 0.0
      %12908 = vmatpush2.msra.mxu0 0.0
      %12909 = vmatprep.subr.mxu0 0.0
      %12910 = vmatpush2.msra.mxu0 0.0
      %12911 = vmatprep.subr.mxu0 0.0
      %12912 = vmatpush2.msra.mxu0 0.0
      %12913 = vmatprep.subr.mxu0 0.0
      %12914 = vmatpush2.msra.mxu0 0.0
      %12915 = vmatprep.subr.mxu0 0.0
      %12916 = vmatpush2.msra.mxu0 0.0
      %12917 = vmatprep.subr.mxu0 0.0
      %12918 = vmatpush2.msra.mxu0 0.0
      %12919 = vmatprep.subr.mxu0 0.0
      %12920 = vmatpush2.msra.mxu0 0.0
      %12921 = vmatprep.subr.mxu0 0.0
      %12922 = vmatpush2.msra.mxu0 0.0
      %12923 = vmatprep.subr.mxu0 0.0
      %12924 = vmatpush2.msra.mxu0 0.0
      %12925 = vmatprep.subr.mxu0 0.0
      %12926 = vmatpush2.msra.mxu0 0.0
      %12927 = vmatprep.subr.mxu0 0.0
      %12928 = vmatpush2.msra.mxu0 0.0
      %12929 = vmatprep.subr.mxu0 0.0
      %12930 = vmatpush2.msra.mxu0 0.0
      %12931 = vmatprep.subr.mxu0 0.0
      %12932 = vmatpush2.msra.mxu0 0.0
      %12933 = vmatprep.subr.mxu0 0.0
      %12934 = vmatpush2.msra.mxu0 0.0
      %12935 = vmatprep.subr.mxu0 0.0
      %12936 = vmatpush2.msra.mxu0 0.0
      %12937 = vmatprep.mubr.f32.mxu0 0.0
      %12938 = vmatmul.mubr.f32.gmra.mxu0 %v12865
      %v12939 = vpop.f32.mrf.mxu0
      %v12940 = vadd.f32 %v12857, %v12939
      %v12941 = vpop.f32.mrf.mxu0
      %12942 = vmatprep.mubr.f32.mxu0 0.0
      %12943 = vmatmul.mubr.f32.gmra.mxu0 %v12868
      %v12944 = vpop.f32.mrf.mxu0
      %v12945 = vadd.f32 %v12862, %v12944
      %v12946 = vpop.f32.mrf.mxu0
      %12947 = vdwg.mxu0
      %vm12948 = vcmask 31744
      %12949 = vst.msk [vmem:[%s602] sm:$0xff] %vm12948, %v12940
      %vm12950 = vcmask 25600
      %12951 = vst.msk [vmem:[%s602 + $0x8] sm:$0x3] %vm12950, %v12945
      %p12952 = scmp.lt.s32.totalorder %s30, 1
      %s12953 = scalar_select %p12952, %s30, 1
      %s12954 = smul.addr %s12953, 2
      %s12955 = smul.addr %s12954, 8
      %s12956 = scalar_lea.vmem %s19, %s12955
      // Predicated region
      $region97: #{net_forward.1} parent=95 // pred_check
        %p12957 = pneg %p452
      $region98: #{net_forward.1} parent=95 // pred_check_branch
        %12959 = sbr.rel (%p12957) target = $region100
      $region99: #{net_forward.1} parent=95 // pred_region
        _
      $region100: #{net_forward.1} parent=95 // pred_fallthru
        _
    $region96: #{net_forward.1} parent=5 // pred_fallthru
      _
    %p12960 = scmp.le.s32.totalorder 2, %s25
    // Predicated region
    $region101: #{net_forward.1} parent=5 // pred_check
      %p12961 = pneg %p12960
    $region102: #{net_forward.1} parent=5 // pred_check_branch
      %12963 = sbr.rel (%p12961) target = $region104
    $region103: #{net_forward.1} parent=5 // pred_region
      %s12964 = ssub.s32 %s25, 2
      // Predicated region
      $region105: #{net_forward.1} parent=103 // pred_check
        %p12965 = pneg %p458
      $region106: #{net_forward.1} parent=103 // pred_check_branch
        %12967 = sbr.rel (%p12965) target = $region108
      $region107: #{net_forward.1} parent=103 // pred_region
        %p12968 = scmp.lt.s32.totalorder %s31, 1
        %s12969 = scalar_select %p12968, %s31, 1
        %s12970 = smul.addr %s12969, 2
        %s12971 = smul.addr %s12970, 8
        %s12972 = scalar_lea.vmem %s19, %s12971
      $region108: #{net_forward.1} parent=103 // pred_fallthru
        _
    $region104: #{net_forward.1} parent=5 // pred_fallthru
      _
  $region6: #{net_forward.1} parent=0 // loop_footer
    %s29 = sadd.s32 1, %s25
  $region7: #{net_forward.1} parent=0 // loop_footer_branch
    %24 = sbr.rel target = $region3
  $region8: #{net_forward.1} parent=0 // loop_exit
    _

</llo_original>
